<compile_context>
chip_gen: v7x
topology: tpu7x:2x2x1
jax: 0.10.0
libtpu: 0.0.40
codegen_flags: <defaults>
</compile_context>

<pallas_src>
import jax
import jax.numpy as jnp
import numpy as np
from jax import lax
from jax.experimental import pallas as pl
from jax.experimental.pallas import tpu as pltpu

# Keep every f32 matmul (XLA wrapper GEMM, in-kernel dot, reference scan) at
# full f32 precision so kernel vs. reference differences stay at rounding level.
jax.config.update("jax_default_matmul_precision", "highest")


def _round_up(n, m):
    return ((n + m - 1) // m) * m


def _detect_num_tensorcores():
    """Best-effort TensorCore count (v7x: 2 per chip, v5e/v6e: 1)."""
    try:
        dev = jax.devices()[0]
        n = getattr(dev, "num_cores", None)
        if isinstance(n, int) and n > 0:
            return n
    except Exception:
        pass
    return 1


def _vmem_capacity_bytes():
    """Best-effort physical VMEM size; conservative (v7x = 64 MiB) fallback."""
    try:
        cap = getattr(pltpu.get_tpu_info(), "vmem_capacity_bytes", None)
        if cap:
            return int(cap)
    except Exception:
        pass
    return 64 * 1024 * 1024


def _make_recurrence_kernel(seq_len, t_blk, needs_mask, unroll):
    """Kernel factory: one grid step = one (batch block, time block)."""

    def kernel(xp_ref, h0_ref, whh_ref, wdec_ref, dec_ref, hlast_ref, h_scr):
        # xp_ref   : (T_BLK, B_BLK, H_pad)  x_t @ W_ih^T + (b_ih+b_hh), padded lanes 0
        # h0_ref   : (B_BLK, H_pad)         initial hidden (padded lanes 0)
        # whh_ref  : (H_pad, H_pad)         W_hh^T, zero-padded, resident
        # wdec_ref : (H_pad, C_pad)         W_dec^T, zero-padded, resident
        # dec_ref  : (T_BLK, B_BLK, C_pad)  per-timestep decoder readout (output)
        # hlast_ref: (B_BLK, H_pad)         final hidden state (output)
        # h_scr    : (B_BLK, H_pad) f32     hidden state carried across time blocks
        tb = pl.program_id(1)  # time-block index (innermost, sequential)

        @pl.when(tb == 0)
        def _():
            h_scr[...] = h0_ref[...].astype(jnp.float32)

        # Resident weight tiles, loaded once per grid step (hoisted out of the loop).
        whh = whh_ref[...]
        wdec = wdec_ref[...]

        def step(i, h_prev):
            # h_t = tanh(xp_t + h_{t-1} @ W_hh^T)   (both RNN biases folded into xp)
            pre = xp_ref[i].astype(jnp.float32) + jnp.dot(
                h_prev, whh, preferred_element_type=jnp.float32)
            h_new = jnp.tanh(pre)
            if needs_mask:
                valid = (tb * t_blk + i) < seq_len
                h_new = jnp.where(valid, h_new, h_prev)  # freeze state past T
            # Fused decoder readout; rides on MXU throughput that is otherwise
            # idle on this latency-bound recurrence.  Padded timesteps write
            # rows that the wrapper slices off.
            dec_ref[i] = jnp.dot(
                h_new, wdec, preferred_element_type=jnp.float32
            ).astype(dec_ref.dtype)
            return h_new

        h_final = lax.fori_loop(0, t_blk, step, h_scr[...], unroll=unroll)
        h_scr[...] = h_final

        @pl.when(tb == pl.num_programs(1) - 1)
        def _():
            hlast_ref[...] = h_final.astype(hlast_ref.dtype)

    return kernel


def rnn_classifier_forward(x, h0, w_ih, w_hh, b_ih, b_hh, w_dec, b_dec):
    """x: (T,B,I), h0: (1,B,H). Returns (decoded (T,B,C), hidden (1,B,H))."""
    T, B, I = x.shape
    H = w_ih.shape[0]
    C = w_dec.shape[0]
    H_pad = _round_up(H, 128)
    C_pad = _round_up(C, 128)
    itemsize = 4  # f32 path

    # ---- Lane-dense padded weights (pad the small weights, not the big xp) ----
    w_ih_pad = jnp.pad(w_ih, ((0, H_pad - H), (0, 0)))                 # (H_pad, I)
    bias_pad = jnp.pad(b_ih + b_hh, (0, H_pad - H))                    # (H_pad,)
    whh_t_pad = jnp.pad(jnp.transpose(w_hh),
                        ((0, H_pad - H), (0, H_pad - H)))              # (H_pad, H_pad)
    wdec_t_pad = jnp.pad(jnp.transpose(w_dec),
                         ((0, H_pad - H), (0, C_pad - C)))             # (H_pad, C_pad)
    h0_pad = jnp.pad(h0[0], ((0, 0), (0, H_pad - H)))                  # (B, H_pad)

    # ---- Megacore batch split: only when each core stays throughput-sized ----
    sublane = 8 if x.dtype == jnp.float32 else 16
    nb = 1
    if _detect_num_tensorcores() >= 2 and B % 2 == 0:
        if (B // 2) % sublane == 0 and (B // 2) >= 256:
            nb = 2
    B_BLK = B // nb

    # ---- VMEM-budget-driven time blocking ----
    capacity = _vmem_capacity_bytes()
    budget = int(0.7 * capacity)
    per_t_bytes = 2 * B_BLK * (H_pad + C_pad) * itemsize       # xp in + dec out, 2-buffered
    fixed_bytes = (2 * H_pad * H_pad * itemsize                # W_hh^T (double-buffered)
                   + 2 * H_pad * C_pad * itemsize              # W_dec^T
                   + 2 * 2 * B_BLK * H_pad * itemsize          # h0 in + h_last out
                   + B_BLK * H_pad * itemsize)                 # h carry scratch
    T_BLK = max(1, min(T, (budget - fixed_bytes) // max(1, per_t_bytes), 128))
    T_pad = _round_up(T, T_BLK)
    needs_mask = T_pad != T
    n_tb = T_pad // T_BLK

    # Full unroll only for single-tile step bodies; partial unroll otherwise.
    if H_pad <= 128 and B_BLK <= 128:
        unroll = True
    else:
        unroll = max(1, min(8, T_BLK))

    needed = fixed_bytes + per_t_bytes * T_BLK
    vmem_limit = int(min(int(0.9 * capacity),
                         max(2 * needed, 32 * 1024 * 1024)))

    # ---- Hoisted input projection: one big, lane-dense GEMM (plain XLA) ----
    # Pad the (small) raw input along time if needed, never the big xp tensor.
    x_in = x if not needs_mask else jnp.pad(x, ((0, T_pad - T), (0, 0), (0, 0)))
    xp = (x_in.reshape(T_pad * B, I) @ jnp.transpose(w_ih_pad)
          + bias_pad).reshape(T_pad, B, H_pad)                         # (T_pad,B,H_pad)

    kernel = _make_recurrence_kernel(T, T_BLK, needs_mask, unroll)

    grid_spec = pltpu.PrefetchScalarGridSpec(
        num_scalar_prefetch=0,
        grid=(nb, n_tb),                                               # time innermost
        in_specs=[
            pl.BlockSpec((T_BLK, B_BLK, H_pad), lambda bb, tb: (tb, bb, 0)),  # xp
            pl.BlockSpec((B_BLK, H_pad), lambda bb, tb: (bb, 0)),             # h0
            pl.BlockSpec((H_pad, H_pad), lambda bb, tb: (0, 0)),              # W_hh^T
            pl.BlockSpec((H_pad, C_pad), lambda bb, tb: (0, 0)),              # W_dec^T
        ],
        out_specs=[
            pl.BlockSpec((T_BLK, B_BLK, C_pad), lambda bb, tb: (tb, bb, 0)),  # decoded
            pl.BlockSpec((B_BLK, H_pad), lambda bb, tb: (bb, 0)),             # h_last
        ],
        scratch_shapes=[pltpu.VMEM((B_BLK, H_pad), jnp.float32)],
    )

    decoded_pad, h_last_pad = pl.pallas_call(
        kernel,
        out_shape=(jax.ShapeDtypeStruct((T_pad, B, C_pad), x.dtype),
                   jax.ShapeDtypeStruct((B, H_pad), x.dtype)),
        grid_spec=grid_spec,
        compiler_params=pltpu.CompilerParams(
            dimension_semantics=("parallel", "arbitrary"),
            vmem_limit_bytes=vmem_limit),
    )(xp, h0_pad, whh_t_pad, wdec_t_pad)

    # Tiny epilogue: drop padded timesteps / classes and add decoder bias.
    decoded = decoded_pad[:T, :, :C] + b_dec                           # (T,B,C)
    hidden = h_last_pad[:, :H][None]                                   # (1,B,H)
    return decoded, hidden


rnn_classifier_forward_jit = jax.jit(rnn_classifier_forward)


def reference_forward(x, h0, w_ih, w_hh, b_ih, b_hh, w_dec, b_dec):
    """Pure-JAX reference (matches PyTorch nn.RNN tanh + Linear)."""
    def step(h, x_t):
        h_new = jnp.tanh(x_t @ w_ih.T + b_ih + h @ w_hh.T + b_hh)
        return h_new, h_new
    h_last, outs = lax.scan(step, h0[0], x)
    decoded = outs @ w_dec.T + b_dec
    return decoded, h_last[None]


if __name__ == "__main__":
    # Small deterministic example consistent with the module's forward.
    T, B, I, H, C = 8, 8, 16, 32, 2
    key = jax.random.PRNGKey(0)
    k = jax.random.split(key, 8)

    x = jax.random.normal(k[0], (T, B, I), dtype=jnp.float32)
    h0 = jnp.zeros((1, B, H), dtype=jnp.float32)            # init_hidden(bsz)

    # nn.RNN params: uniform(-1/sqrt(H), 1/sqrt(H)); deterministic synthetic init.
    bound = 1.0 / np.sqrt(H)
    w_ih = jax.random.uniform(k[1], (H, I), jnp.float32, -bound, bound)
    w_hh = jax.random.uniform(k[2], (H, H), jnp.float32, -bound, bound)
    b_ih = jax.random.uniform(k[3], (H,), jnp.float32, -bound, bound)
    b_hh = jax.random.uniform(k[4], (H,), jnp.float32, -bound, bound)

    # init_weights(): decoder.weight ~ uniform[0,1), decoder.bias = 0.
    w_dec = jax.random.uniform(k[5], (C, H), jnp.float32, 0.0, 1.0)
    b_dec = jnp.zeros((C,), dtype=jnp.float32)

    decoded, hidden = rnn_classifier_forward_jit(
        x, h0, w_ih, w_hh, b_ih, b_hh, w_dec, b_dec)
    jax.block_until_ready((decoded, hidden))

    dec_ref, hid_ref = reference_forward(x, h0, w_ih, w_hh, b_ih, b_hh,
                                         w_dec, b_dec)
    # f32 everywhere; tolerance covers MXU f32 multi-pass / tanh-approx rounding.
    np.testing.assert_allclose(np.asarray(decoded), np.asarray(dec_ref),
                               rtol=1e-4, atol=1e-4)
    np.testing.assert_allclose(np.asarray(hidden), np.asarray(hid_ref),
                               rtol=1e-4, atol=1e-4)

    print("KERNEL_OK")
</pallas_src>

<mosaic_0001>
module attributes {stable_mosaic.version = 11 : i64} {
  func.func @kernel(%arg0: i32, %arg1: i32, %arg2: memref<8x8x128xf32, #tpu.memory_space<vmem>>, %arg3: memref<8x128xf32, #tpu.memory_space<vmem>>, %arg4: memref<128x128xf32, #tpu.memory_space<vmem>>, %arg5: memref<128x128xf32, #tpu.memory_space<vmem>>, %arg6: memref<8x8x128xf32, #tpu.memory_space<vmem>>, %arg7: memref<8x128xf32, #tpu.memory_space<vmem>>, %arg8: memref<8x128xf32, #tpu.memory_space<vmem>>) attributes {dimension_semantics = [#tpu.dimension_semantics<parallel>, #tpu.dimension_semantics<arbitrary>], iteration_bounds = array<i64: 1, 1>, scalar_prefetch = 0 : i64, scratch_operands = 1 : i64, tpu.core_type = #tpu.core_type<tc>, window_params = [{transform_indices = @transform_0, window_bounds = array<i64: 8, 8, 128>}, {transform_indices = @transform_1, window_bounds = array<i64: 8, 128>}, {pipeline_mode = #tpu.pipeline_mode<synchronous>, transform_indices = @transform_2, window_bounds = array<i64: 128, 128>}, {pipeline_mode = #tpu.pipeline_mode<synchronous>, transform_indices = @transform_3, window_bounds = array<i64: 128, 128>}, {transform_indices = @transform_4, window_bounds = array<i64: 8, 8, 128>}, {transform_indices = @transform_5, window_bounds = array<i64: 8, 128>}]} {
    %c0_i32 = arith.constant 0 : i32
    %0 = arith.cmpi eq, %arg1, %c0_i32 : i32
    %1 = arith.extui %0 : i1 to i32
    %c0_i32_0 = arith.constant 0 : i32
    %2 = arith.cmpi ne, %1, %c0_i32_0 : i32
    scf.if %2 {
      %c0_58 = arith.constant 0 : index
      %c0_59 = arith.constant 0 : index
      %98 = vector.load %arg3[%c0_58, %c0_59] : memref<8x128xf32, #tpu.memory_space<vmem>>, vector<8x128xf32>
      %c0_60 = arith.constant 0 : index
      %c0_61 = arith.constant 0 : index
      %99 = vector.load %arg8[%c0_60, %c0_61] : memref<8x128xf32, #tpu.memory_space<vmem>>, vector<8x128xf32>
      tpu.vector_store %arg8[%c0_60, %c0_61], %98 {strides = array<i32>} : memref<8x128xf32, #tpu.memory_space<vmem>>, vector<8x128xf32>,
    } else {
    }
    %c0 = arith.constant 0 : index
    %c0_1 = arith.constant 0 : index
    %3 = vector.load %arg4[%c0, %c0_1] : memref<128x128xf32, #tpu.memory_space<vmem>>, vector<128x128xf32>
    %c0_2 = arith.constant 0 : index
    %c0_3 = arith.constant 0 : index
    %4 = vector.load %arg5[%c0_2, %c0_3] : memref<128x128xf32, #tpu.memory_space<vmem>>, vector<128x128xf32>
    %c0_4 = arith.constant 0 : index
    %c0_5 = arith.constant 0 : index
    %5 = vector.load %arg8[%c0_4, %c0_5] : memref<8x128xf32, #tpu.memory_space<vmem>>, vector<8x128xf32>
    %c0_i32_6 = arith.constant 0 : i32
    %6 = arith.index_cast %c0_i32_6 : i32 to index
    %c0_7 = arith.constant 0 : index
    %c0_8 = arith.constant 0 : index
    %7 = vector.load %arg2[%6, %c0_7, %c0_8] : memref<8x8x128xf32, #tpu.memory_space<vmem>>, vector<1x8x128xf32>
    %8 = vector.shape_cast %7 : vector<1x8x128xf32> to vector<8x128xf32>
    %cst = arith.constant dense<0.000000e+00> : vector<8x128xf32>
    %9 = tpu.matmul %5, %3, %cst {dimension_numbers = #tpu.dot_dimension_numbers<[1], [0], [0], [1], [0, 0, 1, 1], [], []>, precision = #tpu.contract_precision<fp32>} : vector<8x128xf32>, vector<128x128xf32>, vector<8x128xf32> -> vector<8x128xf32>
    %10 = arith.addf %8, %9 : vector<8x128xf32>
    %11 = math.tanh %10 : vector<8x128xf32>
    %cst_9 = arith.constant dense<0.000000e+00> : vector<8x128xf32>
    %12 = tpu.matmul %11, %4, %cst_9 {dimension_numbers = #tpu.dot_dimension_numbers<[1], [0], [0], [1], [0, 0, 1, 1], [], []>, precision = #tpu.contract_precision<fp32>} : vector<8x128xf32>, vector<128x128xf32>, vector<8x128xf32> -> vector<8x128xf32>
    %13 = arith.index_cast %c0_i32_6 : i32 to index
    %c0_10 = arith.constant 0 : index
    %c0_11 = arith.constant 0 : index
    %14 = vector.load %arg6[%13, %c0_10, %c0_11] : memref<8x8x128xf32, #tpu.memory_space<vmem>>, vector<1x8x128xf32>
    %15 = vector.shape_cast %14 : vector<1x8x128xf32> to vector<8x128xf32>
    %16 = vector.shape_cast %12 : vector<8x128xf32> to vector<1x8x128xf32>
    tpu.vector_store %arg6[%13, %c0_10, %c0_11], %16 {strides = array<i32>} : memref<8x8x128xf32, #tpu.memory_space<vmem>>, vector<1x8x128xf32>,
    %c1_i32 = arith.constant 1 : i32
    %17 = arith.index_cast %c1_i32 : i32 to index
    %c0_12 = arith.constant 0 : index
    %c0_13 = arith.constant 0 : index
    %18 = vector.load %arg2[%17, %c0_12, %c0_13] : memref<8x8x128xf32, #tpu.memory_space<vmem>>, vector<1x8x128xf32>
    %19 = vector.shape_cast %18 : vector<1x8x128xf32> to vector<8x128xf32>
    %cst_14 = arith.constant dense<0.000000e+00> : vector<8x128xf32>
    %20 = tpu.matmul %11, %3, %cst_14 {dimension_numbers = #tpu.dot_dimension_numbers<[1], [0], [0], [1], [0, 0, 1, 1], [], []>, precision = #tpu.contract_precision<fp32>} : vector<8x128xf32>, vector<128x128xf32>, vector<8x128xf32> -> vector<8x128xf32>
    %21 = arith.addf %19, %20 : vector<8x128xf32>
    %22 = math.tanh %21 : vector<8x128xf32>
    %cst_15 = arith.constant dense<0.000000e+00> : vector<8x128xf32>
    %23 = tpu.matmul %22, %4, %cst_15 {dimension_numbers = #tpu.dot_dimension_numbers<[1], [0], [0], [1], [0, 0, 1, 1], [], []>, precision = #tpu.contract_precision<fp32>} : vector<8x128xf32>, vector<128x128xf32>, vector<8x128xf32> -> vector<8x128xf32>
    %24 = arith.index_cast %c1_i32 : i32 to index
    %c0_16 = arith.constant 0 : index
    %c0_17 = arith.constant 0 : index
    %25 = vector.load %arg6[%24, %c0_16, %c0_17] : memref<8x8x128xf32, #tpu.memory_space<vmem>>, vector<1x8x128xf32>
    %26 = vector.shape_cast %25 : vector<1x8x128xf32> to vector<8x128xf32>
    %27 = vector.shape_cast %23 : vector<8x128xf32> to vector<1x8x128xf32>
    tpu.vector_store %arg6[%24, %c0_16, %c0_17], %27 {strides = array<i32>} : memref<8x8x128xf32, #tpu.memory_space<vmem>>, vector<1x8x128xf32>,
    %c2_i32 = arith.constant 2 : i32
    %28 = arith.index_cast %c2_i32 : i32 to index
    %c0_18 = arith.constant 0 : index
    %c0_19 = arith.constant 0 : index
    %29 = vector.load %arg2[%28, %c0_18, %c0_19] : memref<8x8x128xf32, #tpu.memory_space<vmem>>, vector<1x8x128xf32>
    %30 = vector.shape_cast %29 : vector<1x8x128xf32> to vector<8x128xf32>
    %cst_20 = arith.constant dense<0.000000e+00> : vector<8x128xf32>
    %31 = tpu.matmul %22, %3, %cst_20 {dimension_numbers = #tpu.dot_dimension_numbers<[1], [0], [0], [1], [0, 0, 1, 1], [], []>, precision = #tpu.contract_precision<fp32>} : vector<8x128xf32>, vector<128x128xf32>, vector<8x128xf32> -> vector<8x128xf32>
    %32 = arith.addf %30, %31 : vector<8x128xf32>
    %33 = math.tanh %32 : vector<8x128xf32>
    %cst_21 = arith.constant dense<0.000000e+00> : vector<8x128xf32>
    %34 = tpu.matmul %33, %4, %cst_21 {dimension_numbers = #tpu.dot_dimension_numbers<[1], [0], [0], [1], [0, 0, 1, 1], [], []>, precision = #tpu.contract_precision<fp32>} : vector<8x128xf32>, vector<128x128xf32>, vector<8x128xf32> -> vector<8x128xf32>
    %35 = arith.index_cast %c2_i32 : i32 to index
    %c0_22 = arith.constant 0 : index
    %c0_23 = arith.constant 0 : index
    %36 = vector.load %arg6[%35, %c0_22, %c0_23] : memref<8x8x128xf32, #tpu.memory_space<vmem>>, vector<1x8x128xf32>
    %37 = vector.shape_cast %36 : vector<1x8x128xf32> to vector<8x128xf32>
    %38 = vector.shape_cast %34 : vector<8x128xf32> to vector<1x8x128xf32>
    tpu.vector_store %arg6[%35, %c0_22, %c0_23], %38 {strides = array<i32>} : memref<8x8x128xf32, #tpu.memory_space<vmem>>, vector<1x8x128xf32>,
    %c3_i32 = arith.constant 3 : i32
    %39 = arith.index_cast %c3_i32 : i32 to index
    %c0_24 = arith.constant 0 : index
    %c0_25 = arith.constant 0 : index
    %40 = vector.load %arg2[%39, %c0_24, %c0_25] : memref<8x8x128xf32, #tpu.memory_space<vmem>>, vector<1x8x128xf32>
    %41 = vector.shape_cast %40 : vector<1x8x128xf32> to vector<8x128xf32>
    %cst_26 = arith.constant dense<0.000000e+00> : vector<8x128xf32>
    %42 = tpu.matmul %33, %3, %cst_26 {dimension_numbers = #tpu.dot_dimension_numbers<[1], [0], [0], [1], [0, 0, 1, 1], [], []>, precision = #tpu.contract_precision<fp32>} : vector<8x128xf32>, vector<128x128xf32>, vector<8x128xf32> -> vector<8x128xf32>
    %43 = arith.addf %41, %42 : vector<8x128xf32>
    %44 = math.tanh %43 : vector<8x128xf32>
    %cst_27 = arith.constant dense<0.000000e+00> : vector<8x128xf32>
    %45 = tpu.matmul %44, %4, %cst_27 {dimension_numbers = #tpu.dot_dimension_numbers<[1], [0], [0], [1], [0, 0, 1, 1], [], []>, precision = #tpu.contract_precision<fp32>} : vector<8x128xf32>, vector<128x128xf32>, vector<8x128xf32> -> vector<8x128xf32>
    %46 = arith.index_cast %c3_i32 : i32 to index
    %c0_28 = arith.constant 0 : index
    %c0_29 = arith.constant 0 : index
    %47 = vector.load %arg6[%46, %c0_28, %c0_29] : memref<8x8x128xf32, #tpu.memory_space<vmem>>, vector<1x8x128xf32>
    %48 = vector.shape_cast %47 : vector<1x8x128xf32> to vector<8x128xf32>
    %49 = vector.shape_cast %45 : vector<8x128xf32> to vector<1x8x128xf32>
    tpu.vector_store %arg6[%46, %c0_28, %c0_29], %49 {strides = array<i32>} : memref<8x8x128xf32, #tpu.memory_space<vmem>>, vector<1x8x128xf32>,
    %c4_i32 = arith.constant 4 : i32
    %50 = arith.index_cast %c4_i32 : i32 to index
    %c0_30 = arith.constant 0 : index
    %c0_31 = arith.constant 0 : index
    %51 = vector.load %arg2[%50, %c0_30, %c0_31] : memref<8x8x128xf32, #tpu.memory_space<vmem>>, vector<1x8x128xf32>
    %52 = vector.shape_cast %51 : vector<1x8x128xf32> to vector<8x128xf32>
    %cst_32 = arith.constant dense<0.000000e+00> : vector<8x128xf32>
    %53 = tpu.matmul %44, %3, %cst_32 {dimension_numbers = #tpu.dot_dimension_numbers<[1], [0], [0], [1], [0, 0, 1, 1], [], []>, precision = #tpu.contract_precision<fp32>} : vector<8x128xf32>, vector<128x128xf32>, vector<8x128xf32> -> vector<8x128xf32>
    %54 = arith.addf %52, %53 : vector<8x128xf32>
    %55 = math.tanh %54 : vector<8x128xf32>
    %cst_33 = arith.constant dense<0.000000e+00> : vector<8x128xf32>
    %56 = tpu.matmul %55, %4, %cst_33 {dimension_numbers = #tpu.dot_dimension_numbers<[1], [0], [0], [1], [0, 0, 1, 1], [], []>, precision = #tpu.contract_precision<fp32>} : vector<8x128xf32>, vector<128x128xf32>, vector<8x128xf32> -> vector<8x128xf32>
    %57 = arith.index_cast %c4_i32 : i32 to index
    %c0_34 = arith.constant 0 : index
    %c0_35 = arith.constant 0 : index
    %58 = vector.load %arg6[%57, %c0_34, %c0_35] : memref<8x8x128xf32, #tpu.memory_space<vmem>>, vector<1x8x128xf32>
    %59 = vector.shape_cast %58 : vector<1x8x128xf32> to vector<8x128xf32>
    %60 = vector.shape_cast %56 : vector<8x128xf32> to vector<1x8x128xf32>
    tpu.vector_store %arg6[%57, %c0_34, %c0_35], %60 {strides = array<i32>} : memref<8x8x128xf32, #tpu.memory_space<vmem>>, vector<1x8x128xf32>,
    %c5_i32 = arith.constant 5 : i32
    %61 = arith.index_cast %c5_i32 : i32 to index
    %c0_36 = arith.constant 0 : index
    %c0_37 = arith.constant 0 : index
    %62 = vector.load %arg2[%61, %c0_36, %c0_37] : memref<8x8x128xf32, #tpu.memory_space<vmem>>, vector<1x8x128xf32>
    %63 = vector.shape_cast %62 : vector<1x8x128xf32> to vector<8x128xf32>
    %cst_38 = arith.constant dense<0.000000e+00> : vector<8x128xf32>
    %64 = tpu.matmul %55, %3, %cst_38 {dimension_numbers = #tpu.dot_dimension_numbers<[1], [0], [0], [1], [0, 0, 1, 1], [], []>, precision = #tpu.contract_precision<fp32>} : vector<8x128xf32>, vector<128x128xf32>, vector<8x128xf32> -> vector<8x128xf32>
    %65 = arith.addf %63, %64 : vector<8x128xf32>
    %66 = math.tanh %65 : vector<8x128xf32>
    %cst_39 = arith.constant dense<0.000000e+00> : vector<8x128xf32>
    %67 = tpu.matmul %66, %4, %cst_39 {dimension_numbers = #tpu.dot_dimension_numbers<[1], [0], [0], [1], [0, 0, 1, 1], [], []>, precision = #tpu.contract_precision<fp32>} : vector<8x128xf32>, vector<128x128xf32>, vector<8x128xf32> -> vector<8x128xf32>
    %68 = arith.index_cast %c5_i32 : i32 to index
    %c0_40 = arith.constant 0 : index
    %c0_41 = arith.constant 0 : index
    %69 = vector.load %arg6[%68, %c0_40, %c0_41] : memref<8x8x128xf32, #tpu.memory_space<vmem>>, vector<1x8x128xf32>
    %70 = vector.shape_cast %69 : vector<1x8x128xf32> to vector<8x128xf32>
    %71 = vector.shape_cast %67 : vector<8x128xf32> to vector<1x8x128xf32>
    tpu.vector_store %arg6[%68, %c0_40, %c0_41], %71 {strides = array<i32>} : memref<8x8x128xf32, #tpu.memory_space<vmem>>, vector<1x8x128xf32>,
    %c6_i32 = arith.constant 6 : i32
    %72 = arith.index_cast %c6_i32 : i32 to index
    %c0_42 = arith.constant 0 : index
    %c0_43 = arith.constant 0 : index
    %73 = vector.load %arg2[%72, %c0_42, %c0_43] : memref<8x8x128xf32, #tpu.memory_space<vmem>>, vector<1x8x128xf32>
    %74 = vector.shape_cast %73 : vector<1x8x128xf32> to vector<8x128xf32>
    %cst_44 = arith.constant dense<0.000000e+00> : vector<8x128xf32>
    %75 = tpu.matmul %66, %3, %cst_44 {dimension_numbers = #tpu.dot_dimension_numbers<[1], [0], [0], [1], [0, 0, 1, 1], [], []>, precision = #tpu.contract_precision<fp32>} : vector<8x128xf32>, vector<128x128xf32>, vector<8x128xf32> -> vector<8x128xf32>
    %76 = arith.addf %74, %75 : vector<8x128xf32>
    %77 = math.tanh %76 : vector<8x128xf32>
    %cst_45 = arith.constant dense<0.000000e+00> : vector<8x128xf32>
    %78 = tpu.matmul %77, %4, %cst_45 {dimension_numbers = #tpu.dot_dimension_numbers<[1], [0], [0], [1], [0, 0, 1, 1], [], []>, precision = #tpu.contract_precision<fp32>} : vector<8x128xf32>, vector<128x128xf32>, vector<8x128xf32> -> vector<8x128xf32>
    %79 = arith.index_cast %c6_i32 : i32 to index
    %c0_46 = arith.constant 0 : index
    %c0_47 = arith.constant 0 : index
    %80 = vector.load %arg6[%79, %c0_46, %c0_47] : memref<8x8x128xf32, #tpu.memory_space<vmem>>, vector<1x8x128xf32>
    %81 = vector.shape_cast %80 : vector<1x8x128xf32> to vector<8x128xf32>
    %82 = vector.shape_cast %78 : vector<8x128xf32> to vector<1x8x128xf32>
    tpu.vector_store %arg6[%79, %c0_46, %c0_47], %82 {strides = array<i32>} : memref<8x8x128xf32, #tpu.memory_space<vmem>>, vector<1x8x128xf32>,
    %c7_i32 = arith.constant 7 : i32
    %83 = arith.index_cast %c7_i32 : i32 to index
    %c0_48 = arith.constant 0 : index
    %c0_49 = arith.constant 0 : index
    %84 = vector.load %arg2[%83, %c0_48, %c0_49] : memref<8x8x128xf32, #tpu.memory_space<vmem>>, vector<1x8x128xf32>
    %85 = vector.shape_cast %84 : vector<1x8x128xf32> to vector<8x128xf32>
    %cst_50 = arith.constant dense<0.000000e+00> : vector<8x128xf32>
    %86 = tpu.matmul %77, %3, %cst_50 {dimension_numbers = #tpu.dot_dimension_numbers<[1], [0], [0], [1], [0, 0, 1, 1], [], []>, precision = #tpu.contract_precision<fp32>} : vector<8x128xf32>, vector<128x128xf32>, vector<8x128xf32> -> vector<8x128xf32>
    %87 = arith.addf %85, %86 : vector<8x128xf32>
    %88 = math.tanh %87 : vector<8x128xf32>
    %cst_51 = arith.constant dense<0.000000e+00> : vector<8x128xf32>
    %89 = tpu.matmul %88, %4, %cst_51 {dimension_numbers = #tpu.dot_dimension_numbers<[1], [0], [0], [1], [0, 0, 1, 1], [], []>, precision = #tpu.contract_precision<fp32>} : vector<8x128xf32>, vector<128x128xf32>, vector<8x128xf32> -> vector<8x128xf32>
    %90 = arith.index_cast %c7_i32 : i32 to index
    %c0_52 = arith.constant 0 : index
    %c0_53 = arith.constant 0 : index
    %91 = vector.load %arg6[%90, %c0_52, %c0_53] : memref<8x8x128xf32, #tpu.memory_space<vmem>>, vector<1x8x128xf32>
    %92 = vector.shape_cast %91 : vector<1x8x128xf32> to vector<8x128xf32>
    %93 = vector.shape_cast %89 : vector<8x128xf32> to vector<1x8x128xf32>
    tpu.vector_store %arg6[%90, %c0_52, %c0_53], %93 {strides = array<i32>} : memref<8x8x128xf32, #tpu.memory_space<vmem>>, vector<1x8x128xf32>,
    %c8_i32 = arith.constant 8 : i32
    %c0_54 = arith.constant 0 : index
    %c0_55 = arith.constant 0 : index
    %94 = vector.load %arg8[%c0_54, %c0_55] : memref<8x128xf32, #tpu.memory_space<vmem>>, vector<8x128xf32>
    tpu.vector_store %arg8[%c0_54, %c0_55], %88 {strides = array<i32>} : memref<8x128xf32, #tpu.memory_space<vmem>>, vector<8x128xf32>,
    %c0_i32_56 = arith.constant 0 : i32
    %95 = arith.cmpi eq, %arg1, %c0_i32_56 : i32
    %96 = arith.extui %95 : i1 to i32
    %c0_i32_57 = arith.constant 0 : i32
    %97 = arith.cmpi ne, %96, %c0_i32_57 : i32
    scf.if %97 {
      %c0_58 = arith.constant 0 : index
      %c0_59 = arith.constant 0 : index
      %98 = vector.load %arg7[%c0_58, %c0_59] : memref<8x128xf32, #tpu.memory_space<vmem>>, vector<8x128xf32>
      tpu.vector_store %arg7[%c0_58, %c0_59], %88 {strides = array<i32>} : memref<8x128xf32, #tpu.memory_space<vmem>>, vector<8x128xf32>,
    } else {
    }
    return
  }
  func.func @transform_0(%arg0: i32, %arg1: i32) -> (i32, i32, i32) {
    %c0_i32 = arith.constant 0 : i32
    %c0_i32_0 = arith.constant 0 : i32
    return %arg1, %arg0, %c0_i32 : i32, i32, i32
  }
  func.func @transform_1(%arg0: i32, %arg1: i32) -> (i32, i32) {
    %c0_i32 = arith.constant 0 : i32
    %c0_i32_0 = arith.constant 0 : i32
    return %arg0, %c0_i32 : i32, i32
  }
  func.func @transform_2(%arg0: i32, %arg1: i32) -> (i32, i32) {
    %c0_i32 = arith.constant 0 : i32
    %c0_i32_0 = arith.constant 0 : i32
    %c0_i32_1 = arith.constant 0 : i32
    return %c0_i32, %c0_i32_0 : i32, i32
  }
  func.func @transform_3(%arg0: i32, %arg1: i32) -> (i32, i32) {
    %c0_i32 = arith.constant 0 : i32
    %c0_i32_0 = arith.constant 0 : i32
    %c0_i32_1 = arith.constant 0 : i32
    return %c0_i32, %c0_i32_0 : i32, i32
  }
  func.func @transform_4(%arg0: i32, %arg1: i32) -> (i32, i32, i32) {
    %c0_i32 = arith.constant 0 : i32
    %c0_i32_0 = arith.constant 0 : i32
    return %arg1, %arg0, %c0_i32 : i32, i32, i32
  }
  func.func @transform_5(%arg0: i32, %arg1: i32) -> (i32, i32) {
    %c0_i32 = arith.constant 0 : i32
    %c0_i32_0 = arith.constant 0 : i32
    return %arg0, %c0_i32 : i32, i32
  }
}

</mosaic_0001>

<llo_original>
// kernel: rnn_classifier_forward.1
$region0: #{rnn_classifier_forward.1}
  #allocation0 [shape = 'u32[]', space=smem, size = 0x4, offset = 0x4, fixed_abs, tag = 'smem constant byte address 0x4 - core index']
  #allocation1 [shape = 'u32[144,128]{1,0:T(1,128)}', space=vmem, size = 0x12000, scoped, tag = 'internal scratch']
  #allocation2 [shape = 'f32[8,128]{1,0:T(8,128)}', space=vmem, size = 0x1000, scoped, tag = 'scratch operand']
  %s0 = inlined_call_operand.vmem [shape: f32[8,8,128], index: 0, kind: input, shape index: {}]
  %s1 = inlined_call_operand.vmem [shape: f32[8,128], index: 1, kind: input, shape index: {}]
  %s2 = inlined_call_operand.vmem [shape: f32[128,128], index: 2, kind: input, shape index: {}]
  %s3 = inlined_call_operand.vmem [shape: f32[128,128], index: 3, kind: input, shape index: {}]
  %s4 = inlined_call_operand.vmem [shape: f32[8,8,128], index: 4, kind: output, shape index: {0}]
  %s5 = inlined_call_operand.vmem [shape: f32[8,128], index: 5, kind: output, shape index: {1}]
  %6 = xla_tuple %s4, %s5
  %s7 = sld [smem:[#allocation0]]
  $region42: #{rnn_classifier_forward.1} parent=0
    _
  %s9 = ssub.s32 1, %s7
  %s10 = scalar_select 0, %s9, %s7
  // Predicated region
  $region2: #{rnn_classifier_forward.1} parent=0 // pred_check
    _
  $region3: #{rnn_classifier_forward.1} parent=0 // pred_check_branch
    %12 = sbr.rel (0) target = $region5
  $region4: #{rnn_classifier_forward.1} parent=0 // pred_region
    _
  $region5: #{rnn_classifier_forward.1} parent=0 // pred_fallthru
    _
  // Predicated region
  $region6: #{rnn_classifier_forward.1} parent=0 // pred_check
    _
  $region7: #{rnn_classifier_forward.1} parent=0 // pred_check_branch
    %14 = sbr.rel (0) target = $region9
  $region8: #{rnn_classifier_forward.1} parent=0 // pred_region
    _
  $region9: #{rnn_classifier_forward.1} parent=0 // pred_fallthru
    _
  // Predicated region
  $region10: #{rnn_classifier_forward.1} parent=0 // pred_check
    _
  $region11: #{rnn_classifier_forward.1} parent=0 // pred_check_branch
    %16 = sbr.rel (0) target = $region13
  $region12: #{rnn_classifier_forward.1} parent=0 // pred_region
    _
  $region13: #{rnn_classifier_forward.1} parent=0 // pred_fallthru
    _
  // Predicated region
  $region14: #{rnn_classifier_forward.1} parent=0 // pred_check
    _
  $region15: #{rnn_classifier_forward.1} parent=0 // pred_check_branch
    %18 = sbr.rel (0) target = $region17
  $region16: #{rnn_classifier_forward.1} parent=0 // pred_region
    _
  $region17: #{rnn_classifier_forward.1} parent=0 // pred_fallthru
    _
  %p19 = scmp.eq.s32.totalorder 0, 0
  // Predicated region
  $region18: #{rnn_classifier_forward.1} parent=0 // pred_check
    %p20 = pneg %p19
  $region19: #{rnn_classifier_forward.1} parent=0 // pred_check_branch
    %22 = sbr.rel (%p20) target = $region21
  $region20: #{rnn_classifier_forward.1} parent=0 // pred_region
    %v23 = vld [vmem:[%s1] sm:$0xff]
    %24 = vst [vmem:[#allocation2] sm:$0xff] %v23
  $region21: #{rnn_classifier_forward.1} parent=0 // pred_fallthru
    _
  %v25 = vld [vmem:[%s2] sm:$0xff]
  %v26 = vld [vmem:[%s2 + $0x8] sm:$0xff]
  %v27 = vld [vmem:[%s2 + $0x10] sm:$0xff]
  %v28 = vld [vmem:[%s2 + $0x18] sm:$0xff]
  %v29 = vld [vmem:[%s2 + $0x20] sm:$0xff]
  %v30 = vld [vmem:[%s2 + $0x28] sm:$0xff]
  %v31 = vld [vmem:[%s2 + $0x30] sm:$0xff]
  %v32 = vld [vmem:[%s2 + $0x38] sm:$0xff]
  %v33 = vld [vmem:[%s2 + $0x40] sm:$0xff]
  %v34 = vld [vmem:[%s2 + $0x48] sm:$0xff]
  %v35 = vld [vmem:[%s2 + $0x50] sm:$0xff]
  %v36 = vld [vmem:[%s2 + $0x58] sm:$0xff]
  %v37 = vld [vmem:[%s2 + $0x60] sm:$0xff]
  %v38 = vld [vmem:[%s2 + $0x68] sm:$0xff]
  %v39 = vld [vmem:[%s2 + $0x70] sm:$0xff]
  %v40 = vld [vmem:[%s2 + $0x78] sm:$0xff]
  %v41 = vld [vmem:[%s3] sm:$0xff]
  %v42 = vld [vmem:[%s3 + $0x8] sm:$0xff]
  %v43 = vld [vmem:[%s3 + $0x10] sm:$0xff]
  %v44 = vld [vmem:[%s3 + $0x18] sm:$0xff]
  %v45 = vld [vmem:[%s3 + $0x20] sm:$0xff]
  %v46 = vld [vmem:[%s3 + $0x28] sm:$0xff]
  %v47 = vld [vmem:[%s3 + $0x30] sm:$0xff]
  %v48 = vld [vmem:[%s3 + $0x38] sm:$0xff]
  %v49 = vld [vmem:[%s3 + $0x40] sm:$0xff]
  %v50 = vld [vmem:[%s3 + $0x48] sm:$0xff]
  %v51 = vld [vmem:[%s3 + $0x50] sm:$0xff]
  %v52 = vld [vmem:[%s3 + $0x58] sm:$0xff]
  %v53 = vld [vmem:[%s3 + $0x60] sm:$0xff]
  %v54 = vld [vmem:[%s3 + $0x68] sm:$0xff]
  %v55 = vld [vmem:[%s3 + $0x70] sm:$0xff]
  %v56 = vld [vmem:[%s3 + $0x78] sm:$0xff]
  %v57 = vld [vmem:[#allocation2] sm:$0xff]
  %v58 = vld [vmem:[%s0] sm:$0xff]
  %59 = vmatprep.subr.mxu0 0.0
  %v60 = vand.u32 %v25, 4294901760
  %61 = vmatpush1.msra.mxu0 %v60
  %62 = vmatprep.subr.mxu0 0.0
  %v63 = vand.u32 %v26, 4294901760
  %64 = vmatpush1.msra.mxu0 %v63
  %65 = vmatprep.subr.mxu0 0.0
  %v66 = vand.u32 %v27, 4294901760
  %67 = vmatpush1.msra.mxu0 %v66
  %68 = vmatprep.subr.mxu0 0.0
  %v69 = vand.u32 %v28, 4294901760
  %70 = vmatpush1.msra.mxu0 %v69
  %71 = vmatprep.subr.mxu0 0.0
  %v72 = vand.u32 %v29, 4294901760
  %73 = vmatpush1.msra.mxu0 %v72
  %74 = vmatprep.subr.mxu0 0.0
  %v75 = vand.u32 %v30, 4294901760
  %76 = vmatpush1.msra.mxu0 %v75
  %77 = vmatprep.subr.mxu0 0.0
  %v78 = vand.u32 %v31, 4294901760
  %79 = vmatpush1.msra.mxu0 %v78
  %80 = vmatprep.subr.mxu0 0.0
  %v81 = vand.u32 %v32, 4294901760
  %82 = vmatpush1.msra.mxu0 %v81
  %83 = vmatprep.subr.mxu0 0.0
  %v84 = vand.u32 %v33, 4294901760
  %85 = vmatpush1.msra.mxu0 %v84
  %86 = vmatprep.subr.mxu0 0.0
  %v87 = vand.u32 %v34, 4294901760
  %88 = vmatpush1.msra.mxu0 %v87
  %89 = vmatprep.subr.mxu0 0.0
  %v90 = vand.u32 %v35, 4294901760
  %91 = vmatpush1.msra.mxu0 %v90
  %92 = vmatprep.subr.mxu0 0.0
  %v93 = vand.u32 %v36, 4294901760
  %94 = vmatpush1.msra.mxu0 %v93
  %95 = vmatprep.subr.mxu0 0.0
  %v96 = vand.u32 %v37, 4294901760
  %97 = vmatpush1.msra.mxu0 %v96
  %98 = vmatprep.subr.mxu0 0.0
  %v99 = vand.u32 %v38, 4294901760
  %100 = vmatpush1.msra.mxu0 %v99
  %101 = vmatprep.subr.mxu0 0.0
  %v102 = vand.u32 %v39, 4294901760
  %103 = vmatpush1.msra.mxu0 %v102
  %104 = vmatprep.subr.mxu0 0.0
  %v105 = vand.u32 %v40, 4294901760
  %106 = vmatpush1.msra.mxu0 %v105
  %107 = vmatprep.subr.mxu0 0.0
  %108 = vmatpush1.msra.mxu0 0.0
  %109 = vmatprep.subr.mxu0 0.0
  %110 = vmatpush1.msra.mxu0 0.0
  %111 = vmatprep.subr.mxu0 0.0
  %112 = vmatpush1.msra.mxu0 0.0
  %113 = vmatprep.subr.mxu0 0.0
  %114 = vmatpush1.msra.mxu0 0.0
  %115 = vmatprep.subr.mxu0 0.0
  %116 = vmatpush1.msra.mxu0 0.0
  %117 = vmatprep.subr.mxu0 0.0
  %118 = vmatpush1.msra.mxu0 0.0
  %119 = vmatprep.subr.mxu0 0.0
  %120 = vmatpush1.msra.mxu0 0.0
  %121 = vmatprep.subr.mxu0 0.0
  %122 = vmatpush1.msra.mxu0 0.0
  %123 = vmatprep.subr.mxu0 0.0
  %124 = vmatpush1.msra.mxu0 0.0
  %125 = vmatprep.subr.mxu0 0.0
  %126 = vmatpush1.msra.mxu0 0.0
  %127 = vmatprep.subr.mxu0 0.0
  %128 = vmatpush1.msra.mxu0 0.0
  %129 = vmatprep.subr.mxu0 0.0
  %130 = vmatpush1.msra.mxu0 0.0
  %131 = vmatprep.subr.mxu0 0.0
  %132 = vmatpush1.msra.mxu0 0.0
  %133 = vmatprep.subr.mxu0 0.0
  %134 = vmatpush1.msra.mxu0 0.0
  %135 = vmatprep.subr.mxu0 0.0
  %136 = vmatpush1.msra.mxu0 0.0
  %137 = vmatprep.subr.mxu0 0.0
  %138 = vmatpush1.msra.mxu0 0.0
  %139 = vmatprep.mubr.f32.mxu0 0.0
  %v140 = vand.u32 %v57, 4294901760
  %v141 = vsub.f32 %v57, %v140
  %v142 = vand.u32 %v141, 4294901760
  %v143 = vsub.f32 %v141, %v142
  %v144 = vand.u32 %v143, 4294901760
  %145 = vmatmul.mubr.f32.gmra.mrb[0].mxu0 %v144
  %v146 = vpop.f32.mrb[0].mxu0
  %v147 = vadd.f32 0.0, %v146
  %v148 = vpop.f32.mrb[0].mxu0
  %149 = vdwg.mxu0
  %150 = vmatprep.subr.mxu0 0.0
  %v151 = vand.u32 %v25, 4294901760
  %v152 = vsub.f32 %v25, %v151
  %v153 = vand.u32 %v152, 4294901760
  %v154 = vsub.f32 %v152, %v153
  %v155 = vand.u32 %v154, 4294901760
  %156 = vmatpush1.msra.mxu0 %v155
  %157 = vmatprep.subr.mxu0 0.0
  %v158 = vand.u32 %v26, 4294901760
  %v159 = vsub.f32 %v26, %v158
  %v160 = vand.u32 %v159, 4294901760
  %v161 = vsub.f32 %v159, %v160
  %v162 = vand.u32 %v161, 4294901760
  %163 = vmatpush1.msra.mxu0 %v162
  %164 = vmatprep.subr.mxu0 0.0
  %v165 = vand.u32 %v27, 4294901760
  %v166 = vsub.f32 %v27, %v165
  %v167 = vand.u32 %v166, 4294901760
  %v168 = vsub.f32 %v166, %v167
  %v169 = vand.u32 %v168, 4294901760
  %170 = vmatpush1.msra.mxu0 %v169
  %171 = vmatprep.subr.mxu0 0.0
  %v172 = vand.u32 %v28, 4294901760
  %v173 = vsub.f32 %v28, %v172
  %v174 = vand.u32 %v173, 4294901760
  %v175 = vsub.f32 %v173, %v174
  %v176 = vand.u32 %v175, 4294901760
  %177 = vmatpush1.msra.mxu0 %v176
  %178 = vmatprep.subr.mxu0 0.0
  %v179 = vand.u32 %v29, 4294901760
  %v180 = vsub.f32 %v29, %v179
  %v181 = vand.u32 %v180, 4294901760
  %v182 = vsub.f32 %v180, %v181
  %v183 = vand.u32 %v182, 4294901760
  %184 = vmatpush1.msra.mxu0 %v183
  %185 = vmatprep.subr.mxu0 0.0
  %v186 = vand.u32 %v30, 4294901760
  %v187 = vsub.f32 %v30, %v186
  %v188 = vand.u32 %v187, 4294901760
  %v189 = vsub.f32 %v187, %v188
  %v190 = vand.u32 %v189, 4294901760
  %191 = vmatpush1.msra.mxu0 %v190
  %192 = vmatprep.subr.mxu0 0.0
  %v193 = vand.u32 %v31, 4294901760
  %v194 = vsub.f32 %v31, %v193
  %v195 = vand.u32 %v194, 4294901760
  %v196 = vsub.f32 %v194, %v195
  %v197 = vand.u32 %v196, 4294901760
  %198 = vmatpush1.msra.mxu0 %v197
  %199 = vmatprep.subr.mxu0 0.0
  %v200 = vand.u32 %v32, 4294901760
  %v201 = vsub.f32 %v32, %v200
  %v202 = vand.u32 %v201, 4294901760
  %v203 = vsub.f32 %v201, %v202
  %v204 = vand.u32 %v203, 4294901760
  %205 = vmatpush1.msra.mxu0 %v204
  %206 = vmatprep.subr.mxu0 0.0
  %v207 = vand.u32 %v33, 4294901760
  %v208 = vsub.f32 %v33, %v207
  %v209 = vand.u32 %v208, 4294901760
  %v210 = vsub.f32 %v208, %v209
  %v211 = vand.u32 %v210, 4294901760
  %212 = vmatpush1.msra.mxu0 %v211
  %213 = vmatprep.subr.mxu0 0.0
  %v214 = vand.u32 %v34, 4294901760
  %v215 = vsub.f32 %v34, %v214
  %v216 = vand.u32 %v215, 4294901760
  %v217 = vsub.f32 %v215, %v216
  %v218 = vand.u32 %v217, 4294901760
  %219 = vmatpush1.msra.mxu0 %v218
  %220 = vmatprep.subr.mxu0 0.0
  %v221 = vand.u32 %v35, 4294901760
  %v222 = vsub.f32 %v35, %v221
  %v223 = vand.u32 %v222, 4294901760
  %v224 = vsub.f32 %v222, %v223
  %v225 = vand.u32 %v224, 4294901760
  %226 = vmatpush1.msra.mxu0 %v225
  %227 = vmatprep.subr.mxu0 0.0
  %v228 = vand.u32 %v36, 4294901760
  %v229 = vsub.f32 %v36, %v228
  %v230 = vand.u32 %v229, 4294901760
  %v231 = vsub.f32 %v229, %v230
  %v232 = vand.u32 %v231, 4294901760
  %233 = vmatpush1.msra.mxu0 %v232
  %234 = vmatprep.subr.mxu0 0.0
  %v235 = vand.u32 %v37, 4294901760
  %v236 = vsub.f32 %v37, %v235
  %v237 = vand.u32 %v236, 4294901760
  %v238 = vsub.f32 %v236, %v237
  %v239 = vand.u32 %v238, 4294901760
  %240 = vmatpush1.msra.mxu0 %v239
  %241 = vmatprep.subr.mxu0 0.0
  %v242 = vand.u32 %v38, 4294901760
  %v243 = vsub.f32 %v38, %v242
  %v244 = vand.u32 %v243, 4294901760
  %v245 = vsub.f32 %v243, %v244
  %v246 = vand.u32 %v245, 4294901760
  %247 = vmatpush1.msra.mxu0 %v246
  %248 = vmatprep.subr.mxu0 0.0
  %v249 = vand.u32 %v39, 4294901760
  %v250 = vsub.f32 %v39, %v249
  %v251 = vand.u32 %v250, 4294901760
  %v252 = vsub.f32 %v250, %v251
  %v253 = vand.u32 %v252, 4294901760
  %254 = vmatpush1.msra.mxu0 %v253
  %255 = vmatprep.subr.mxu0 0.0
  %v256 = vand.u32 %v40, 4294901760
  %v257 = vsub.f32 %v40, %v256
  %v258 = vand.u32 %v257, 4294901760
  %v259 = vsub.f32 %v257, %v258
  %v260 = vand.u32 %v259, 4294901760
  %261 = vmatpush1.msra.mxu0 %v260
  %262 = vmatprep.subr.mxu0 0.0
  %263 = vmatpush1.msra.mxu0 0.0
  %264 = vmatprep.subr.mxu0 0.0
  %265 = vmatpush1.msra.mxu0 0.0
  %266 = vmatprep.subr.mxu0 0.0
  %267 = vmatpush1.msra.mxu0 0.0
  %268 = vmatprep.subr.mxu0 0.0
  %269 = vmatpush1.msra.mxu0 0.0
  %270 = vmatprep.subr.mxu0 0.0
  %271 = vmatpush1.msra.mxu0 0.0
  %272 = vmatprep.subr.mxu0 0.0
  %273 = vmatpush1.msra.mxu0 0.0
  %274 = vmatprep.subr.mxu0 0.0
  %275 = vmatpush1.msra.mxu0 0.0
  %276 = vmatprep.subr.mxu0 0.0
  %277 = vmatpush1.msra.mxu0 0.0
  %278 = vmatprep.subr.mxu0 0.0
  %279 = vmatpush1.msra.mxu0 0.0
  %280 = vmatprep.subr.mxu0 0.0
  %281 = vmatpush1.msra.mxu0 0.0
  %282 = vmatprep.subr.mxu0 0.0
  %283 = vmatpush1.msra.mxu0 0.0
  %284 = vmatprep.subr.mxu0 0.0
  %285 = vmatpush1.msra.mxu0 0.0
  %286 = vmatprep.subr.mxu0 0.0
  %287 = vmatpush1.msra.mxu0 0.0
  %288 = vmatprep.subr.mxu0 0.0
  %289 = vmatpush1.msra.mxu0 0.0
  %290 = vmatprep.subr.mxu0 0.0
  %291 = vmatpush1.msra.mxu0 0.0
  %292 = vmatprep.subr.mxu0 0.0
  %293 = vmatpush1.msra.mxu0 0.0
  %294 = vmatprep.mubr.f32.mxu0 0.0
  %v295 = vand.u32 %v57, 4294901760
  %296 = vmatmul.mubr.f32.gmra.mrb[0].mxu0 %v295
  %v297 = vpop.f32.mrb[0].mxu0
  %v298 = vadd.f32 %v147, %v297
  %v299 = vpop.f32.mrb[0].mxu0
  %300 = vdwg.mxu0
  %301 = vmatprep.subr.mxu0 0.0
  %v302 = vand.u32 %v25, 4294901760
  %v303 = vsub.f32 %v25, %v302
  %304 = vmatpush1.msra.mxu0 %v303
  %305 = vmatprep.subr.mxu0 0.0
  %v306 = vand.u32 %v26, 4294901760
  %v307 = vsub.f32 %v26, %v306
  %308 = vmatpush1.msra.mxu0 %v307
  %309 = vmatprep.subr.mxu0 0.0
  %v310 = vand.u32 %v27, 4294901760
  %v311 = vsub.f32 %v27, %v310
  %312 = vmatpush1.msra.mxu0 %v311
  %313 = vmatprep.subr.mxu0 0.0
  %v314 = vand.u32 %v28, 4294901760
  %v315 = vsub.f32 %v28, %v314
  %316 = vmatpush1.msra.mxu0 %v315
  %317 = vmatprep.subr.mxu0 0.0
  %v318 = vand.u32 %v29, 4294901760
  %v319 = vsub.f32 %v29, %v318
  %320 = vmatpush1.msra.mxu0 %v319
  %321 = vmatprep.subr.mxu0 0.0
  %v322 = vand.u32 %v30, 4294901760
  %v323 = vsub.f32 %v30, %v322
  %324 = vmatpush1.msra.mxu0 %v323
  %325 = vmatprep.subr.mxu0 0.0
  %v326 = vand.u32 %v31, 4294901760
  %v327 = vsub.f32 %v31, %v326
  %328 = vmatpush1.msra.mxu0 %v327
  %329 = vmatprep.subr.mxu0 0.0
  %v330 = vand.u32 %v32, 4294901760
  %v331 = vsub.f32 %v32, %v330
  %332 = vmatpush1.msra.mxu0 %v331
  %333 = vmatprep.subr.mxu0 0.0
  %v334 = vand.u32 %v33, 4294901760
  %v335 = vsub.f32 %v33, %v334
  %336 = vmatpush1.msra.mxu0 %v335
  %337 = vmatprep.subr.mxu0 0.0
  %v338 = vand.u32 %v34, 4294901760
  %v339 = vsub.f32 %v34, %v338
  %340 = vmatpush1.msra.mxu0 %v339
  %341 = vmatprep.subr.mxu0 0.0
  %v342 = vand.u32 %v35, 4294901760
  %v343 = vsub.f32 %v35, %v342
  %344 = vmatpush1.msra.mxu0 %v343
  %345 = vmatprep.subr.mxu0 0.0
  %v346 = vand.u32 %v36, 4294901760
  %v347 = vsub.f32 %v36, %v346
  %348 = vmatpush1.msra.mxu0 %v347
  %349 = vmatprep.subr.mxu0 0.0
  %v350 = vand.u32 %v37, 4294901760
  %v351 = vsub.f32 %v37, %v350
  %352 = vmatpush1.msra.mxu0 %v351
  %353 = vmatprep.subr.mxu0 0.0
  %v354 = vand.u32 %v38, 4294901760
  %v355 = vsub.f32 %v38, %v354
  %356 = vmatpush1.msra.mxu0 %v355
  %357 = vmatprep.subr.mxu0 0.0
  %v358 = vand.u32 %v39, 4294901760
  %v359 = vsub.f32 %v39, %v358
  %360 = vmatpush1.msra.mxu0 %v359
  %361 = vmatprep.subr.mxu0 0.0
  %v362 = vand.u32 %v40, 4294901760
  %v363 = vsub.f32 %v40, %v362
  %364 = vmatpush1.msra.mxu0 %v363
  %365 = vmatprep.subr.mxu0 0.0
  %366 = vmatpush1.msra.mxu0 0.0
  %367 = vmatprep.subr.mxu0 0.0
  %368 = vmatpush1.msra.mxu0 0.0
  %369 = vmatprep.subr.mxu0 0.0
  %370 = vmatpush1.msra.mxu0 0.0
  %371 = vmatprep.subr.mxu0 0.0
  %372 = vmatpush1.msra.mxu0 0.0
  %373 = vmatprep.subr.mxu0 0.0
  %374 = vmatpush1.msra.mxu0 0.0
  %375 = vmatprep.subr.mxu0 0.0
  %376 = vmatpush1.msra.mxu0 0.0
  %377 = vmatprep.subr.mxu0 0.0
  %378 = vmatpush1.msra.mxu0 0.0
  %379 = vmatprep.subr.mxu0 0.0
  %380 = vmatpush1.msra.mxu0 0.0
  %381 = vmatprep.subr.mxu0 0.0
  %382 = vmatpush1.msra.mxu0 0.0
  %383 = vmatprep.subr.mxu0 0.0
  %384 = vmatpush1.msra.mxu0 0.0
  %385 = vmatprep.subr.mxu0 0.0
  %386 = vmatpush1.msra.mxu0 0.0
  %387 = vmatprep.subr.mxu0 0.0
  %388 = vmatpush1.msra.mxu0 0.0
  %389 = vmatprep.subr.mxu0 0.0
  %390 = vmatpush1.msra.mxu0 0.0
  %391 = vmatprep.subr.mxu0 0.0
  %392 = vmatpush1.msra.mxu0 0.0
  %393 = vmatprep.subr.mxu0 0.0
  %394 = vmatpush1.msra.mxu0 0.0
  %395 = vmatprep.subr.mxu0 0.0
  %396 = vmatpush1.msra.mxu0 0.0
  %397 = vmatprep.mubr.f32.mxu0 0.0
  %v398 = vand.u32 %v57, 4294901760
  %v399 = vsub.f32 %v57, %v398
  %400 = vmatmul.mubr.f32.gmra.mrb[0].mxu0 %v399
  %v401 = vpop.f32.mrb[0].mxu0
  %v402 = vadd.f32 %v298, %v401
  %v403 = vpop.f32.mrb[0].mxu0
  %404 = vdwg.mxu0
  %405 = vmatprep.subr.mxu0 0.0
  %v406 = vand.u32 %v25, 4294901760
  %407 = vmatpush1.msra.mxu0 %v406
  %408 = vmatprep.subr.mxu0 0.0
  %v409 = vand.u32 %v26, 4294901760
  %410 = vmatpush1.msra.mxu0 %v409
  %411 = vmatprep.subr.mxu0 0.0
  %v412 = vand.u32 %v27, 4294901760
  %413 = vmatpush1.msra.mxu0 %v412
  %414 = vmatprep.subr.mxu0 0.0
  %v415 = vand.u32 %v28, 4294901760
  %416 = vmatpush1.msra.mxu0 %v415
  %417 = vmatprep.subr.mxu0 0.0
  %v418 = vand.u32 %v29, 4294901760
  %419 = vmatpush1.msra.mxu0 %v418
  %420 = vmatprep.subr.mxu0 0.0
  %v421 = vand.u32 %v30, 4294901760
  %422 = vmatpush1.msra.mxu0 %v421
  %423 = vmatprep.subr.mxu0 0.0
  %v424 = vand.u32 %v31, 4294901760
  %425 = vmatpush1.msra.mxu0 %v424
  %426 = vmatprep.subr.mxu0 0.0
  %v427 = vand.u32 %v32, 4294901760
  %428 = vmatpush1.msra.mxu0 %v427
  %429 = vmatprep.subr.mxu0 0.0
  %v430 = vand.u32 %v33, 4294901760
  %431 = vmatpush1.msra.mxu0 %v430
  %432 = vmatprep.subr.mxu0 0.0
  %v433 = vand.u32 %v34, 4294901760
  %434 = vmatpush1.msra.mxu0 %v433
  %435 = vmatprep.subr.mxu0 0.0
  %v436 = vand.u32 %v35, 4294901760
  %437 = vmatpush1.msra.mxu0 %v436
  %438 = vmatprep.subr.mxu0 0.0
  %v439 = vand.u32 %v36, 4294901760
  %440 = vmatpush1.msra.mxu0 %v439
  %441 = vmatprep.subr.mxu0 0.0
  %v442 = vand.u32 %v37, 4294901760
  %443 = vmatpush1.msra.mxu0 %v442
  %444 = vmatprep.subr.mxu0 0.0
  %v445 = vand.u32 %v38, 4294901760
  %446 = vmatpush1.msra.mxu0 %v445
  %447 = vmatprep.subr.mxu0 0.0
  %v448 = vand.u32 %v39, 4294901760
  %449 = vmatpush1.msra.mxu0 %v448
  %450 = vmatprep.subr.mxu0 0.0
  %v451 = vand.u32 %v40, 4294901760
  %452 = vmatpush1.msra.mxu0 %v451
  %453 = vmatprep.subr.mxu0 0.0
  %454 = vmatpush1.msra.mxu0 0.0
  %455 = vmatprep.subr.mxu0 0.0
  %456 = vmatpush1.msra.mxu0 0.0
  %457 = vmatprep.subr.mxu0 0.0
  %458 = vmatpush1.msra.mxu0 0.0
  %459 = vmatprep.subr.mxu0 0.0
  %460 = vmatpush1.msra.mxu0 0.0
  %461 = vmatprep.subr.mxu0 0.0
  %462 = vmatpush1.msra.mxu0 0.0
  %463 = vmatprep.subr.mxu0 0.0
  %464 = vmatpush1.msra.mxu0 0.0
  %465 = vmatprep.subr.mxu0 0.0
  %466 = vmatpush1.msra.mxu0 0.0
  %467 = vmatprep.subr.mxu0 0.0
  %468 = vmatpush1.msra.mxu0 0.0
  %469 = vmatprep.subr.mxu0 0.0
  %470 = vmatpush1.msra.mxu0 0.0
  %471 = vmatprep.subr.mxu0 0.0
  %472 = vmatpush1.msra.mxu0 0.0
  %473 = vmatprep.subr.mxu0 0.0
  %474 = vmatpush1.msra.mxu0 0.0
  %475 = vmatprep.subr.mxu0 0.0
  %476 = vmatpush1.msra.mxu0 0.0
  %477 = vmatprep.subr.mxu0 0.0
  %478 = vmatpush1.msra.mxu0 0.0
  %479 = vmatprep.subr.mxu0 0.0
  %480 = vmatpush1.msra.mxu0 0.0
  %481 = vmatprep.subr.mxu0 0.0
  %482 = vmatpush1.msra.mxu0 0.0
  %483 = vmatprep.subr.mxu0 0.0
  %484 = vmatpush1.msra.mxu0 0.0
  %485 = vmatprep.mubr.f32.mxu0 0.0
  %v486 = vand.u32 %v57, 4294901760
  %v487 = vsub.f32 %v57, %v486
  %v488 = vand.u32 %v487, 4294901760
  %489 = vmatmul.mubr.f32.gmra.mrb[0].mxu0 %v488
  %v490 = vpop.f32.mrb[0].mxu0
  %v491 = vadd.f32 %v402, %v490
  %v492 = vpop.f32.mrb[0].mxu0
  %493 = vdwg.mxu0
  %494 = vmatprep.subr.mxu0 0.0
  %v495 = vand.u32 %v25, 4294901760
  %v496 = vsub.f32 %v25, %v495
  %v497 = vand.u32 %v496, 4294901760
  %498 = vmatpush1.msra.mxu0 %v497
  %499 = vmatprep.subr.mxu0 0.0
  %v500 = vand.u32 %v26, 4294901760
  %v501 = vsub.f32 %v26, %v500
  %v502 = vand.u32 %v501, 4294901760
  %503 = vmatpush1.msra.mxu0 %v502
  %504 = vmatprep.subr.mxu0 0.0
  %v505 = vand.u32 %v27, 4294901760
  %v506 = vsub.f32 %v27, %v505
  %v507 = vand.u32 %v506, 4294901760
  %508 = vmatpush1.msra.mxu0 %v507
  %509 = vmatprep.subr.mxu0 0.0
  %v510 = vand.u32 %v28, 4294901760
  %v511 = vsub.f32 %v28, %v510
  %v512 = vand.u32 %v511, 4294901760
  %513 = vmatpush1.msra.mxu0 %v512
  %514 = vmatprep.subr.mxu0 0.0
  %v515 = vand.u32 %v29, 4294901760
  %v516 = vsub.f32 %v29, %v515
  %v517 = vand.u32 %v516, 4294901760
  %518 = vmatpush1.msra.mxu0 %v517
  %519 = vmatprep.subr.mxu0 0.0
  %v520 = vand.u32 %v30, 4294901760
  %v521 = vsub.f32 %v30, %v520
  %v522 = vand.u32 %v521, 4294901760
  %523 = vmatpush1.msra.mxu0 %v522
  %524 = vmatprep.subr.mxu0 0.0
  %v525 = vand.u32 %v31, 4294901760
  %v526 = vsub.f32 %v31, %v525
  %v527 = vand.u32 %v526, 4294901760
  %528 = vmatpush1.msra.mxu0 %v527
  %529 = vmatprep.subr.mxu0 0.0
  %v530 = vand.u32 %v32, 4294901760
  %v531 = vsub.f32 %v32, %v530
  %v532 = vand.u32 %v531, 4294901760
  %533 = vmatpush1.msra.mxu0 %v532
  %534 = vmatprep.subr.mxu0 0.0
  %v535 = vand.u32 %v33, 4294901760
  %v536 = vsub.f32 %v33, %v535
  %v537 = vand.u32 %v536, 4294901760
  %538 = vmatpush1.msra.mxu0 %v537
  %539 = vmatprep.subr.mxu0 0.0
  %v540 = vand.u32 %v34, 4294901760
  %v541 = vsub.f32 %v34, %v540
  %v542 = vand.u32 %v541, 4294901760
  %543 = vmatpush1.msra.mxu0 %v542
  %544 = vmatprep.subr.mxu0 0.0
  %v545 = vand.u32 %v35, 4294901760
  %v546 = vsub.f32 %v35, %v545
  %v547 = vand.u32 %v546, 4294901760
  %548 = vmatpush1.msra.mxu0 %v547
  %549 = vmatprep.subr.mxu0 0.0
  %v550 = vand.u32 %v36, 4294901760
  %v551 = vsub.f32 %v36, %v550
  %v552 = vand.u32 %v551, 4294901760
  %553 = vmatpush1.msra.mxu0 %v552
  %554 = vmatprep.subr.mxu0 0.0
  %v555 = vand.u32 %v37, 4294901760
  %v556 = vsub.f32 %v37, %v555
  %v557 = vand.u32 %v556, 4294901760
  %558 = vmatpush1.msra.mxu0 %v557
  %559 = vmatprep.subr.mxu0 0.0
  %v560 = vand.u32 %v38, 4294901760
  %v561 = vsub.f32 %v38, %v560
  %v562 = vand.u32 %v561, 4294901760
  %563 = vmatpush1.msra.mxu0 %v562
  %564 = vmatprep.subr.mxu0 0.0
  %v565 = vand.u32 %v39, 4294901760
  %v566 = vsub.f32 %v39, %v565
  %v567 = vand.u32 %v566, 4294901760
  %568 = vmatpush1.msra.mxu0 %v567
  %569 = vmatprep.subr.mxu0 0.0
  %v570 = vand.u32 %v40, 4294901760
  %v571 = vsub.f32 %v40, %v570
  %v572 = vand.u32 %v571, 4294901760
  %573 = vmatpush1.msra.mxu0 %v572
  %574 = vmatprep.subr.mxu0 0.0
  %575 = vmatpush1.msra.mxu0 0.0
  %576 = vmatprep.subr.mxu0 0.0
  %577 = vmatpush1.msra.mxu0 0.0
  %578 = vmatprep.subr.mxu0 0.0
  %579 = vmatpush1.msra.mxu0 0.0
  %580 = vmatprep.subr.mxu0 0.0
  %581 = vmatpush1.msra.mxu0 0.0
  %582 = vmatprep.subr.mxu0 0.0
  %583 = vmatpush1.msra.mxu0 0.0
  %584 = vmatprep.subr.mxu0 0.0
  %585 = vmatpush1.msra.mxu0 0.0
  %586 = vmatprep.subr.mxu0 0.0
  %587 = vmatpush1.msra.mxu0 0.0
  %588 = vmatprep.subr.mxu0 0.0
  %589 = vmatpush1.msra.mxu0 0.0
  %590 = vmatprep.subr.mxu0 0.0
  %591 = vmatpush1.msra.mxu0 0.0
  %592 = vmatprep.subr.mxu0 0.0
  %593 = vmatpush1.msra.mxu0 0.0
  %594 = vmatprep.subr.mxu0 0.0
  %595 = vmatpush1.msra.mxu0 0.0
  %596 = vmatprep.subr.mxu0 0.0
  %597 = vmatpush1.msra.mxu0 0.0
  %598 = vmatprep.subr.mxu0 0.0
  %599 = vmatpush1.msra.mxu0 0.0
  %600 = vmatprep.subr.mxu0 0.0
  %601 = vmatpush1.msra.mxu0 0.0
  %602 = vmatprep.subr.mxu0 0.0
  %603 = vmatpush1.msra.mxu0 0.0
  %604 = vmatprep.subr.mxu0 0.0
  %605 = vmatpush1.msra.mxu0 0.0
  %606 = vmatprep.mubr.f32.mxu0 0.0
  %v607 = vand.u32 %v57, 4294901760
  %608 = vmatmul.mubr.f32.gmra.mrb[0].mxu0 %v607
  %v609 = vpop.f32.mrb[0].mxu0
  %v610 = vadd.f32 %v491, %v609
  %v611 = vpop.f32.mrb[0].mxu0
  %612 = vdwg.mxu0
  %613 = vmatprep.subr.mxu0 0.0
  %v614 = vand.u32 %v25, 4294901760
  %615 = vmatpush1.msra.mxu0 %v614
  %616 = vmatprep.subr.mxu0 0.0
  %v617 = vand.u32 %v26, 4294901760
  %618 = vmatpush1.msra.mxu0 %v617
  %619 = vmatprep.subr.mxu0 0.0
  %v620 = vand.u32 %v27, 4294901760
  %621 = vmatpush1.msra.mxu0 %v620
  %622 = vmatprep.subr.mxu0 0.0
  %v623 = vand.u32 %v28, 4294901760
  %624 = vmatpush1.msra.mxu0 %v623
  %625 = vmatprep.subr.mxu0 0.0
  %v626 = vand.u32 %v29, 4294901760
  %627 = vmatpush1.msra.mxu0 %v626
  %628 = vmatprep.subr.mxu0 0.0
  %v629 = vand.u32 %v30, 4294901760
  %630 = vmatpush1.msra.mxu0 %v629
  %631 = vmatprep.subr.mxu0 0.0
  %v632 = vand.u32 %v31, 4294901760
  %633 = vmatpush1.msra.mxu0 %v632
  %634 = vmatprep.subr.mxu0 0.0
  %v635 = vand.u32 %v32, 4294901760
  %636 = vmatpush1.msra.mxu0 %v635
  %637 = vmatprep.subr.mxu0 0.0
  %v638 = vand.u32 %v33, 4294901760
  %639 = vmatpush1.msra.mxu0 %v638
  %640 = vmatprep.subr.mxu0 0.0
  %v641 = vand.u32 %v34, 4294901760
  %642 = vmatpush1.msra.mxu0 %v641
  %643 = vmatprep.subr.mxu0 0.0
  %v644 = vand.u32 %v35, 4294901760
  %645 = vmatpush1.msra.mxu0 %v644
  %646 = vmatprep.subr.mxu0 0.0
  %v647 = vand.u32 %v36, 4294901760
  %648 = vmatpush1.msra.mxu0 %v647
  %649 = vmatprep.subr.mxu0 0.0
  %v650 = vand.u32 %v37, 4294901760
  %651 = vmatpush1.msra.mxu0 %v650
  %652 = vmatprep.subr.mxu0 0.0
  %v653 = vand.u32 %v38, 4294901760
  %654 = vmatpush1.msra.mxu0 %v653
  %655 = vmatprep.subr.mxu0 0.0
  %v656 = vand.u32 %v39, 4294901760
  %657 = vmatpush1.msra.mxu0 %v656
  %658 = vmatprep.subr.mxu0 0.0
  %v659 = vand.u32 %v40, 4294901760
  %660 = vmatpush1.msra.mxu0 %v659
  %661 = vmatprep.subr.mxu0 0.0
  %662 = vmatpush1.msra.mxu0 0.0
  %663 = vmatprep.subr.mxu0 0.0
  %664 = vmatpush1.msra.mxu0 0.0
  %665 = vmatprep.subr.mxu0 0.0
  %666 = vmatpush1.msra.mxu0 0.0
  %667 = vmatprep.subr.mxu0 0.0
  %668 = vmatpush1.msra.mxu0 0.0
  %669 = vmatprep.subr.mxu0 0.0
  %670 = vmatpush1.msra.mxu0 0.0
  %671 = vmatprep.subr.mxu0 0.0
  %672 = vmatpush1.msra.mxu0 0.0
  %673 = vmatprep.subr.mxu0 0.0
  %674 = vmatpush1.msra.mxu0 0.0
  %675 = vmatprep.subr.mxu0 0.0
  %676 = vmatpush1.msra.mxu0 0.0
  %677 = vmatprep.subr.mxu0 0.0
  %678 = vmatpush1.msra.mxu0 0.0
  %679 = vmatprep.subr.mxu0 0.0
  %680 = vmatpush1.msra.mxu0 0.0
  %681 = vmatprep.subr.mxu0 0.0
  %682 = vmatpush1.msra.mxu0 0.0
  %683 = vmatprep.subr.mxu0 0.0
  %684 = vmatpush1.msra.mxu0 0.0
  %685 = vmatprep.subr.mxu0 0.0
  %686 = vmatpush1.msra.mxu0 0.0
  %687 = vmatprep.subr.mxu0 0.0
  %688 = vmatpush1.msra.mxu0 0.0
  %689 = vmatprep.subr.mxu0 0.0
  %690 = vmatpush1.msra.mxu0 0.0
  %691 = vmatprep.subr.mxu0 0.0
  %692 = vmatpush1.msra.mxu0 0.0
  %693 = vmatprep.mubr.f32.mxu0 0.0
  %v694 = vand.u32 %v57, 4294901760
  %695 = vmatmul.mubr.f32.gmra.mrb[0].mxu0 %v694
  %v696 = vpop.f32.mrb[0].mxu0
  %v697 = vadd.f32 %v610, %v696
  %v698 = vpop.f32.mrb[0].mxu0
  %699 = vdwg.mxu0
  %v700 = vadd.f32 %v58, %v697
  %v701 = vtanh.pop %v700
  %702 = vmatprep.subr.mxu0 0.0
  %v703 = vand.u32 %v41, 4294901760
  %704 = vmatpush1.msra.mxu0 %v703
  %705 = vmatprep.subr.mxu0 0.0
  %v706 = vand.u32 %v42, 4294901760
  %707 = vmatpush1.msra.mxu0 %v706
  %708 = vmatprep.subr.mxu0 0.0
  %v709 = vand.u32 %v43, 4294901760
  %710 = vmatpush1.msra.mxu0 %v709
  %711 = vmatprep.subr.mxu0 0.0
  %v712 = vand.u32 %v44, 4294901760
  %713 = vmatpush1.msra.mxu0 %v712
  %714 = vmatprep.subr.mxu0 0.0
  %v715 = vand.u32 %v45, 4294901760
  %716 = vmatpush1.msra.mxu0 %v715
  %717 = vmatprep.subr.mxu0 0.0
  %v718 = vand.u32 %v46, 4294901760
  %719 = vmatpush1.msra.mxu0 %v718
  %720 = vmatprep.subr.mxu0 0.0
  %v721 = vand.u32 %v47, 4294901760
  %722 = vmatpush1.msra.mxu0 %v721
  %723 = vmatprep.subr.mxu0 0.0
  %v724 = vand.u32 %v48, 4294901760
  %725 = vmatpush1.msra.mxu0 %v724
  %726 = vmatprep.subr.mxu0 0.0
  %v727 = vand.u32 %v49, 4294901760
  %728 = vmatpush1.msra.mxu0 %v727
  %729 = vmatprep.subr.mxu0 0.0
  %v730 = vand.u32 %v50, 4294901760
  %731 = vmatpush1.msra.mxu0 %v730
  %732 = vmatprep.subr.mxu0 0.0
  %v733 = vand.u32 %v51, 4294901760
  %734 = vmatpush1.msra.mxu0 %v733
  %735 = vmatprep.subr.mxu0 0.0
  %v736 = vand.u32 %v52, 4294901760
  %737 = vmatpush1.msra.mxu0 %v736
  %738 = vmatprep.subr.mxu0 0.0
  %v739 = vand.u32 %v53, 4294901760
  %740 = vmatpush1.msra.mxu0 %v739
  %741 = vmatprep.subr.mxu0 0.0
  %v742 = vand.u32 %v54, 4294901760
  %743 = vmatpush1.msra.mxu0 %v742
  %744 = vmatprep.subr.mxu0 0.0
  %v745 = vand.u32 %v55, 4294901760
  %746 = vmatpush1.msra.mxu0 %v745
  %747 = vmatprep.subr.mxu0 0.0
  %v748 = vand.u32 %v56, 4294901760
  %749 = vmatpush1.msra.mxu0 %v748
  %750 = vmatprep.subr.mxu0 0.0
  %751 = vmatpush1.msra.mxu0 0.0
  %752 = vmatprep.subr.mxu0 0.0
  %753 = vmatpush1.msra.mxu0 0.0
  %754 = vmatprep.subr.mxu0 0.0
  %755 = vmatpush1.msra.mxu0 0.0
  %756 = vmatprep.subr.mxu0 0.0
  %757 = vmatpush1.msra.mxu0 0.0
  %758 = vmatprep.subr.mxu0 0.0
  %759 = vmatpush1.msra.mxu0 0.0
  %760 = vmatprep.subr.mxu0 0.0
  %761 = vmatpush1.msra.mxu0 0.0
  %762 = vmatprep.subr.mxu0 0.0
  %763 = vmatpush1.msra.mxu0 0.0
  %764 = vmatprep.subr.mxu0 0.0
  %765 = vmatpush1.msra.mxu0 0.0
  %766 = vmatprep.subr.mxu0 0.0
  %767 = vmatpush1.msra.mxu0 0.0
  %768 = vmatprep.subr.mxu0 0.0
  %769 = vmatpush1.msra.mxu0 0.0
  %770 = vmatprep.subr.mxu0 0.0
  %771 = vmatpush1.msra.mxu0 0.0
  %772 = vmatprep.subr.mxu0 0.0
  %773 = vmatpush1.msra.mxu0 0.0
  %774 = vmatprep.subr.mxu0 0.0
  %775 = vmatpush1.msra.mxu0 0.0
  %776 = vmatprep.subr.mxu0 0.0
  %777 = vmatpush1.msra.mxu0 0.0
  %778 = vmatprep.subr.mxu0 0.0
  %779 = vmatpush1.msra.mxu0 0.0
  %780 = vmatprep.subr.mxu0 0.0
  %781 = vmatpush1.msra.mxu0 0.0
  %782 = vmatprep.mubr.f32.mxu0 0.0
  %v783 = vand.u32 %v701, 4294901760
  %v784 = vsub.f32 %v701, %v783
  %v785 = vand.u32 %v784, 4294901760
  %v786 = vsub.f32 %v784, %v785
  %v787 = vand.u32 %v786, 4294901760
  %788 = vmatmul.mubr.f32.gmra.mrb[0].mxu0 %v787
  %v789 = vpop.f32.mrb[0].mxu0
  %v790 = vadd.f32 0.0, %v789
  %v791 = vpop.f32.mrb[0].mxu0
  %792 = vdwg.mxu0
  %793 = vmatprep.subr.mxu0 0.0
  %v794 = vand.u32 %v41, 4294901760
  %v795 = vsub.f32 %v41, %v794
  %v796 = vand.u32 %v795, 4294901760
  %v797 = vsub.f32 %v795, %v796
  %v798 = vand.u32 %v797, 4294901760
  %799 = vmatpush1.msra.mxu0 %v798
  %800 = vmatprep.subr.mxu0 0.0
  %v801 = vand.u32 %v42, 4294901760
  %v802 = vsub.f32 %v42, %v801
  %v803 = vand.u32 %v802, 4294901760
  %v804 = vsub.f32 %v802, %v803
  %v805 = vand.u32 %v804, 4294901760
  %806 = vmatpush1.msra.mxu0 %v805
  %807 = vmatprep.subr.mxu0 0.0
  %v808 = vand.u32 %v43, 4294901760
  %v809 = vsub.f32 %v43, %v808
  %v810 = vand.u32 %v809, 4294901760
  %v811 = vsub.f32 %v809, %v810
  %v812 = vand.u32 %v811, 4294901760
  %813 = vmatpush1.msra.mxu0 %v812
  %814 = vmatprep.subr.mxu0 0.0
  %v815 = vand.u32 %v44, 4294901760
  %v816 = vsub.f32 %v44, %v815
  %v817 = vand.u32 %v816, 4294901760
  %v818 = vsub.f32 %v816, %v817
  %v819 = vand.u32 %v818, 4294901760
  %820 = vmatpush1.msra.mxu0 %v819
  %821 = vmatprep.subr.mxu0 0.0
  %v822 = vand.u32 %v45, 4294901760
  %v823 = vsub.f32 %v45, %v822
  %v824 = vand.u32 %v823, 4294901760
  %v825 = vsub.f32 %v823, %v824
  %v826 = vand.u32 %v825, 4294901760
  %827 = vmatpush1.msra.mxu0 %v826
  %828 = vmatprep.subr.mxu0 0.0
  %v829 = vand.u32 %v46, 4294901760
  %v830 = vsub.f32 %v46, %v829
  %v831 = vand.u32 %v830, 4294901760
  %v832 = vsub.f32 %v830, %v831
  %v833 = vand.u32 %v832, 4294901760
  %834 = vmatpush1.msra.mxu0 %v833
  %835 = vmatprep.subr.mxu0 0.0
  %v836 = vand.u32 %v47, 4294901760
  %v837 = vsub.f32 %v47, %v836
  %v838 = vand.u32 %v837, 4294901760
  %v839 = vsub.f32 %v837, %v838
  %v840 = vand.u32 %v839, 4294901760
  %841 = vmatpush1.msra.mxu0 %v840
  %842 = vmatprep.subr.mxu0 0.0
  %v843 = vand.u32 %v48, 4294901760
  %v844 = vsub.f32 %v48, %v843
  %v845 = vand.u32 %v844, 4294901760
  %v846 = vsub.f32 %v844, %v845
  %v847 = vand.u32 %v846, 4294901760
  %848 = vmatpush1.msra.mxu0 %v847
  %849 = vmatprep.subr.mxu0 0.0
  %v850 = vand.u32 %v49, 4294901760
  %v851 = vsub.f32 %v49, %v850
  %v852 = vand.u32 %v851, 4294901760
  %v853 = vsub.f32 %v851, %v852
  %v854 = vand.u32 %v853, 4294901760
  %855 = vmatpush1.msra.mxu0 %v854
  %856 = vmatprep.subr.mxu0 0.0
  %v857 = vand.u32 %v50, 4294901760
  %v858 = vsub.f32 %v50, %v857
  %v859 = vand.u32 %v858, 4294901760
  %v860 = vsub.f32 %v858, %v859
  %v861 = vand.u32 %v860, 4294901760
  %862 = vmatpush1.msra.mxu0 %v861
  %863 = vmatprep.subr.mxu0 0.0
  %v864 = vand.u32 %v51, 4294901760
  %v865 = vsub.f32 %v51, %v864
  %v866 = vand.u32 %v865, 4294901760
  %v867 = vsub.f32 %v865, %v866
  %v868 = vand.u32 %v867, 4294901760
  %869 = vmatpush1.msra.mxu0 %v868
  %870 = vmatprep.subr.mxu0 0.0
  %v871 = vand.u32 %v52, 4294901760
  %v872 = vsub.f32 %v52, %v871
  %v873 = vand.u32 %v872, 4294901760
  %v874 = vsub.f32 %v872, %v873
  %v875 = vand.u32 %v874, 4294901760
  %876 = vmatpush1.msra.mxu0 %v875
  %877 = vmatprep.subr.mxu0 0.0
  %v878 = vand.u32 %v53, 4294901760
  %v879 = vsub.f32 %v53, %v878
  %v880 = vand.u32 %v879, 4294901760
  %v881 = vsub.f32 %v879, %v880
  %v882 = vand.u32 %v881, 4294901760
  %883 = vmatpush1.msra.mxu0 %v882
  %884 = vmatprep.subr.mxu0 0.0
  %v885 = vand.u32 %v54, 4294901760
  %v886 = vsub.f32 %v54, %v885
  %v887 = vand.u32 %v886, 4294901760
  %v888 = vsub.f32 %v886, %v887
  %v889 = vand.u32 %v888, 4294901760
  %890 = vmatpush1.msra.mxu0 %v889
  %891 = vmatprep.subr.mxu0 0.0
  %v892 = vand.u32 %v55, 4294901760
  %v893 = vsub.f32 %v55, %v892
  %v894 = vand.u32 %v893, 4294901760
  %v895 = vsub.f32 %v893, %v894
  %v896 = vand.u32 %v895, 4294901760
  %897 = vmatpush1.msra.mxu0 %v896
  %898 = vmatprep.subr.mxu0 0.0
  %v899 = vand.u32 %v56, 4294901760
  %v900 = vsub.f32 %v56, %v899
  %v901 = vand.u32 %v900, 4294901760
  %v902 = vsub.f32 %v900, %v901
  %v903 = vand.u32 %v902, 4294901760
  %904 = vmatpush1.msra.mxu0 %v903
  %905 = vmatprep.subr.mxu0 0.0
  %906 = vmatpush1.msra.mxu0 0.0
  %907 = vmatprep.subr.mxu0 0.0
  %908 = vmatpush1.msra.mxu0 0.0
  %909 = vmatprep.subr.mxu0 0.0
  %910 = vmatpush1.msra.mxu0 0.0
  %911 = vmatprep.subr.mxu0 0.0
  %912 = vmatpush1.msra.mxu0 0.0
  %913 = vmatprep.subr.mxu0 0.0
  %914 = vmatpush1.msra.mxu0 0.0
  %915 = vmatprep.subr.mxu0 0.0
  %916 = vmatpush1.msra.mxu0 0.0
  %917 = vmatprep.subr.mxu0 0.0
  %918 = vmatpush1.msra.mxu0 0.0
  %919 = vmatprep.subr.mxu0 0.0
  %920 = vmatpush1.msra.mxu0 0.0
  %921 = vmatprep.subr.mxu0 0.0
  %922 = vmatpush1.msra.mxu0 0.0
  %923 = vmatprep.subr.mxu0 0.0
  %924 = vmatpush1.msra.mxu0 0.0
  %925 = vmatprep.subr.mxu0 0.0
  %926 = vmatpush1.msra.mxu0 0.0
  %927 = vmatprep.subr.mxu0 0.0
  %928 = vmatpush1.msra.mxu0 0.0
  %929 = vmatprep.subr.mxu0 0.0
  %930 = vmatpush1.msra.mxu0 0.0
  %931 = vmatprep.subr.mxu0 0.0
  %932 = vmatpush1.msra.mxu0 0.0
  %933 = vmatprep.subr.mxu0 0.0
  %934 = vmatpush1.msra.mxu0 0.0
  %935 = vmatprep.subr.mxu0 0.0
  %936 = vmatpush1.msra.mxu0 0.0
  %937 = vmatprep.mubr.f32.mxu0 0.0
  %v938 = vand.u32 %v701, 4294901760
  %939 = vmatmul.mubr.f32.gmra.mrb[0].mxu0 %v938
  %v940 = vpop.f32.mrb[0].mxu0
  %v941 = vadd.f32 %v790, %v940
  %v942 = vpop.f32.mrb[0].mxu0
  %943 = vdwg.mxu0
  %944 = vmatprep.subr.mxu0 0.0
  %v945 = vand.u32 %v41, 4294901760
  %v946 = vsub.f32 %v41, %v945
  %947 = vmatpush1.msra.mxu0 %v946
  %948 = vmatprep.subr.mxu0 0.0
  %v949 = vand.u32 %v42, 4294901760
  %v950 = vsub.f32 %v42, %v949
  %951 = vmatpush1.msra.mxu0 %v950
  %952 = vmatprep.subr.mxu0 0.0
  %v953 = vand.u32 %v43, 4294901760
  %v954 = vsub.f32 %v43, %v953
  %955 = vmatpush1.msra.mxu0 %v954
  %956 = vmatprep.subr.mxu0 0.0
  %v957 = vand.u32 %v44, 4294901760
  %v958 = vsub.f32 %v44, %v957
  %959 = vmatpush1.msra.mxu0 %v958
  %960 = vmatprep.subr.mxu0 0.0
  %v961 = vand.u32 %v45, 4294901760
  %v962 = vsub.f32 %v45, %v961
  %963 = vmatpush1.msra.mxu0 %v962
  %964 = vmatprep.subr.mxu0 0.0
  %v965 = vand.u32 %v46, 4294901760
  %v966 = vsub.f32 %v46, %v965
  %967 = vmatpush1.msra.mxu0 %v966
  %968 = vmatprep.subr.mxu0 0.0
  %v969 = vand.u32 %v47, 4294901760
  %v970 = vsub.f32 %v47, %v969
  %971 = vmatpush1.msra.mxu0 %v970
  %972 = vmatprep.subr.mxu0 0.0
  %v973 = vand.u32 %v48, 4294901760
  %v974 = vsub.f32 %v48, %v973
  %975 = vmatpush1.msra.mxu0 %v974
  %976 = vmatprep.subr.mxu0 0.0
  %v977 = vand.u32 %v49, 4294901760
  %v978 = vsub.f32 %v49, %v977
  %979 = vmatpush1.msra.mxu0 %v978
  %980 = vmatprep.subr.mxu0 0.0
  %v981 = vand.u32 %v50, 4294901760
  %v982 = vsub.f32 %v50, %v981
  %983 = vmatpush1.msra.mxu0 %v982
  %984 = vmatprep.subr.mxu0 0.0
  %v985 = vand.u32 %v51, 4294901760
  %v986 = vsub.f32 %v51, %v985
  %987 = vmatpush1.msra.mxu0 %v986
  %988 = vmatprep.subr.mxu0 0.0
  %v989 = vand.u32 %v52, 4294901760
  %v990 = vsub.f32 %v52, %v989
  %991 = vmatpush1.msra.mxu0 %v990
  %992 = vmatprep.subr.mxu0 0.0
  %v993 = vand.u32 %v53, 4294901760
  %v994 = vsub.f32 %v53, %v993
  %995 = vmatpush1.msra.mxu0 %v994
  %996 = vmatprep.subr.mxu0 0.0
  %v997 = vand.u32 %v54, 4294901760
  %v998 = vsub.f32 %v54, %v997
  %999 = vmatpush1.msra.mxu0 %v998
  %1000 = vmatprep.subr.mxu0 0.0
  %v1001 = vand.u32 %v55, 4294901760
  %v1002 = vsub.f32 %v55, %v1001
  %1003 = vmatpush1.msra.mxu0 %v1002
  %1004 = vmatprep.subr.mxu0 0.0
  %v1005 = vand.u32 %v56, 4294901760
  %v1006 = vsub.f32 %v56, %v1005
  %1007 = vmatpush1.msra.mxu0 %v1006
  %1008 = vmatprep.subr.mxu0 0.0
  %1009 = vmatpush1.msra.mxu0 0.0
  %1010 = vmatprep.subr.mxu0 0.0
  %1011 = vmatpush1.msra.mxu0 0.0
  %1012 = vmatprep.subr.mxu0 0.0
  %1013 = vmatpush1.msra.mxu0 0.0
  %1014 = vmatprep.subr.mxu0 0.0
  %1015 = vmatpush1.msra.mxu0 0.0
  %1016 = vmatprep.subr.mxu0 0.0
  %1017 = vmatpush1.msra.mxu0 0.0
  %1018 = vmatprep.subr.mxu0 0.0
  %1019 = vmatpush1.msra.mxu0 0.0
  %1020 = vmatprep.subr.mxu0 0.0
  %1021 = vmatpush1.msra.mxu0 0.0
  %1022 = vmatprep.subr.mxu0 0.0
  %1023 = vmatpush1.msra.mxu0 0.0
  %1024 = vmatprep.subr.mxu0 0.0
  %1025 = vmatpush1.msra.mxu0 0.0
  %1026 = vmatprep.subr.mxu0 0.0
  %1027 = vmatpush1.msra.mxu0 0.0
  %1028 = vmatprep.subr.mxu0 0.0
  %1029 = vmatpush1.msra.mxu0 0.0
  %1030 = vmatprep.subr.mxu0 0.0
  %1031 = vmatpush1.msra.mxu0 0.0
  %1032 = vmatprep.subr.mxu0 0.0
  %1033 = vmatpush1.msra.mxu0 0.0
  %1034 = vmatprep.subr.mxu0 0.0
  %1035 = vmatpush1.msra.mxu0 0.0
  %1036 = vmatprep.subr.mxu0 0.0
  %1037 = vmatpush1.msra.mxu0 0.0
  %1038 = vmatprep.subr.mxu0 0.0
  %1039 = vmatpush1.msra.mxu0 0.0
  %1040 = vmatprep.mubr.f32.mxu0 0.0
  %v1041 = vand.u32 %v701, 4294901760
  %v1042 = vsub.f32 %v701, %v1041
  %1043 = vmatmul.mubr.f32.gmra.mrb[0].mxu0 %v1042
  %v1044 = vpop.f32.mrb[0].mxu0
  %v1045 = vadd.f32 %v941, %v1044
  %v1046 = vpop.f32.mrb[0].mxu0
  %1047 = vdwg.mxu0
  %1048 = vmatprep.subr.mxu0 0.0
  %v1049 = vand.u32 %v41, 4294901760
  %1050 = vmatpush1.msra.mxu0 %v1049
  %1051 = vmatprep.subr.mxu0 0.0
  %v1052 = vand.u32 %v42, 4294901760
  %1053 = vmatpush1.msra.mxu0 %v1052
  %1054 = vmatprep.subr.mxu0 0.0
  %v1055 = vand.u32 %v43, 4294901760
  %1056 = vmatpush1.msra.mxu0 %v1055
  %1057 = vmatprep.subr.mxu0 0.0
  %v1058 = vand.u32 %v44, 4294901760
  %1059 = vmatpush1.msra.mxu0 %v1058
  %1060 = vmatprep.subr.mxu0 0.0
  %v1061 = vand.u32 %v45, 4294901760
  %1062 = vmatpush1.msra.mxu0 %v1061
  %1063 = vmatprep.subr.mxu0 0.0
  %v1064 = vand.u32 %v46, 4294901760
  %1065 = vmatpush1.msra.mxu0 %v1064
  %1066 = vmatprep.subr.mxu0 0.0
  %v1067 = vand.u32 %v47, 4294901760
  %1068 = vmatpush1.msra.mxu0 %v1067
  %1069 = vmatprep.subr.mxu0 0.0
  %v1070 = vand.u32 %v48, 4294901760
  %1071 = vmatpush1.msra.mxu0 %v1070
  %1072 = vmatprep.subr.mxu0 0.0
  %v1073 = vand.u32 %v49, 4294901760
  %1074 = vmatpush1.msra.mxu0 %v1073
  %1075 = vmatprep.subr.mxu0 0.0
  %v1076 = vand.u32 %v50, 4294901760
  %1077 = vmatpush1.msra.mxu0 %v1076
  %1078 = vmatprep.subr.mxu0 0.0
  %v1079 = vand.u32 %v51, 4294901760
  %1080 = vmatpush1.msra.mxu0 %v1079
  %1081 = vmatprep.subr.mxu0 0.0
  %v1082 = vand.u32 %v52, 4294901760
  %1083 = vmatpush1.msra.mxu0 %v1082
  %1084 = vmatprep.subr.mxu0 0.0
  %v1085 = vand.u32 %v53, 4294901760
  %1086 = vmatpush1.msra.mxu0 %v1085
  %1087 = vmatprep.subr.mxu0 0.0
  %v1088 = vand.u32 %v54, 4294901760
  %1089 = vmatpush1.msra.mxu0 %v1088
  %1090 = vmatprep.subr.mxu0 0.0
  %v1091 = vand.u32 %v55, 4294901760
  %1092 = vmatpush1.msra.mxu0 %v1091
  %1093 = vmatprep.subr.mxu0 0.0
  %v1094 = vand.u32 %v56, 4294901760
  %1095 = vmatpush1.msra.mxu0 %v1094
  %1096 = vmatprep.subr.mxu0 0.0
  %1097 = vmatpush1.msra.mxu0 0.0
  %1098 = vmatprep.subr.mxu0 0.0
  %1099 = vmatpush1.msra.mxu0 0.0
  %1100 = vmatprep.subr.mxu0 0.0
  %1101 = vmatpush1.msra.mxu0 0.0
  %1102 = vmatprep.subr.mxu0 0.0
  %1103 = vmatpush1.msra.mxu0 0.0
  %1104 = vmatprep.subr.mxu0 0.0
  %1105 = vmatpush1.msra.mxu0 0.0
  %1106 = vmatprep.subr.mxu0 0.0
  %1107 = vmatpush1.msra.mxu0 0.0
  %1108 = vmatprep.subr.mxu0 0.0
  %1109 = vmatpush1.msra.mxu0 0.0
  %1110 = vmatprep.subr.mxu0 0.0
  %1111 = vmatpush1.msra.mxu0 0.0
  %1112 = vmatprep.subr.mxu0 0.0
  %1113 = vmatpush1.msra.mxu0 0.0
  %1114 = vmatprep.subr.mxu0 0.0
  %1115 = vmatpush1.msra.mxu0 0.0
  %1116 = vmatprep.subr.mxu0 0.0
  %1117 = vmatpush1.msra.mxu0 0.0
  %1118 = vmatprep.subr.mxu0 0.0
  %1119 = vmatpush1.msra.mxu0 0.0
  %1120 = vmatprep.subr.mxu0 0.0
  %1121 = vmatpush1.msra.mxu0 0.0
  %1122 = vmatprep.subr.mxu0 0.0
  %1123 = vmatpush1.msra.mxu0 0.0
  %1124 = vmatprep.subr.mxu0 0.0
  %1125 = vmatpush1.msra.mxu0 0.0
  %1126 = vmatprep.subr.mxu0 0.0
  %1127 = vmatpush1.msra.mxu0 0.0
  %1128 = vmatprep.mubr.f32.mxu0 0.0
  %v1129 = vand.u32 %v701, 4294901760
  %v1130 = vsub.f32 %v701, %v1129
  %v1131 = vand.u32 %v1130, 4294901760
  %1132 = vmatmul.mubr.f32.gmra.mrb[0].mxu0 %v1131
  %v1133 = vpop.f32.mrb[0].mxu0
  %v1134 = vadd.f32 %v1045, %v1133
  %v1135 = vpop.f32.mrb[0].mxu0
  %1136 = vdwg.mxu0
  %1137 = vmatprep.subr.mxu0 0.0
  %v1138 = vand.u32 %v41, 4294901760
  %v1139 = vsub.f32 %v41, %v1138
  %v1140 = vand.u32 %v1139, 4294901760
  %1141 = vmatpush1.msra.mxu0 %v1140
  %1142 = vmatprep.subr.mxu0 0.0
  %v1143 = vand.u32 %v42, 4294901760
  %v1144 = vsub.f32 %v42, %v1143
  %v1145 = vand.u32 %v1144, 4294901760
  %1146 = vmatpush1.msra.mxu0 %v1145
  %1147 = vmatprep.subr.mxu0 0.0
  %v1148 = vand.u32 %v43, 4294901760
  %v1149 = vsub.f32 %v43, %v1148
  %v1150 = vand.u32 %v1149, 4294901760
  %1151 = vmatpush1.msra.mxu0 %v1150
  %1152 = vmatprep.subr.mxu0 0.0
  %v1153 = vand.u32 %v44, 4294901760
  %v1154 = vsub.f32 %v44, %v1153
  %v1155 = vand.u32 %v1154, 4294901760
  %1156 = vmatpush1.msra.mxu0 %v1155
  %1157 = vmatprep.subr.mxu0 0.0
  %v1158 = vand.u32 %v45, 4294901760
  %v1159 = vsub.f32 %v45, %v1158
  %v1160 = vand.u32 %v1159, 4294901760
  %1161 = vmatpush1.msra.mxu0 %v1160
  %1162 = vmatprep.subr.mxu0 0.0
  %v1163 = vand.u32 %v46, 4294901760
  %v1164 = vsub.f32 %v46, %v1163
  %v1165 = vand.u32 %v1164, 4294901760
  %1166 = vmatpush1.msra.mxu0 %v1165
  %1167 = vmatprep.subr.mxu0 0.0
  %v1168 = vand.u32 %v47, 4294901760
  %v1169 = vsub.f32 %v47, %v1168
  %v1170 = vand.u32 %v1169, 4294901760
  %1171 = vmatpush1.msra.mxu0 %v1170
  %1172 = vmatprep.subr.mxu0 0.0
  %v1173 = vand.u32 %v48, 4294901760
  %v1174 = vsub.f32 %v48, %v1173
  %v1175 = vand.u32 %v1174, 4294901760
  %1176 = vmatpush1.msra.mxu0 %v1175
  %1177 = vmatprep.subr.mxu0 0.0
  %v1178 = vand.u32 %v49, 4294901760
  %v1179 = vsub.f32 %v49, %v1178
  %v1180 = vand.u32 %v1179, 4294901760
  %1181 = vmatpush1.msra.mxu0 %v1180
  %1182 = vmatprep.subr.mxu0 0.0
  %v1183 = vand.u32 %v50, 4294901760
  %v1184 = vsub.f32 %v50, %v1183
  %v1185 = vand.u32 %v1184, 4294901760
  %1186 = vmatpush1.msra.mxu0 %v1185
  %1187 = vmatprep.subr.mxu0 0.0
  %v1188 = vand.u32 %v51, 4294901760
  %v1189 = vsub.f32 %v51, %v1188
  %v1190 = vand.u32 %v1189, 4294901760
  %1191 = vmatpush1.msra.mxu0 %v1190
  %1192 = vmatprep.subr.mxu0 0.0
  %v1193 = vand.u32 %v52, 4294901760
  %v1194 = vsub.f32 %v52, %v1193
  %v1195 = vand.u32 %v1194, 4294901760
  %1196 = vmatpush1.msra.mxu0 %v1195
  %1197 = vmatprep.subr.mxu0 0.0
  %v1198 = vand.u32 %v53, 4294901760
  %v1199 = vsub.f32 %v53, %v1198
  %v1200 = vand.u32 %v1199, 4294901760
  %1201 = vmatpush1.msra.mxu0 %v1200
  %1202 = vmatprep.subr.mxu0 0.0
  %v1203 = vand.u32 %v54, 4294901760
  %v1204 = vsub.f32 %v54, %v1203
  %v1205 = vand.u32 %v1204, 4294901760
  %1206 = vmatpush1.msra.mxu0 %v1205
  %1207 = vmatprep.subr.mxu0 0.0
  %v1208 = vand.u32 %v55, 4294901760
  %v1209 = vsub.f32 %v55, %v1208
  %v1210 = vand.u32 %v1209, 4294901760
  %1211 = vmatpush1.msra.mxu0 %v1210
  %1212 = vmatprep.subr.mxu0 0.0
  %v1213 = vand.u32 %v56, 4294901760
  %v1214 = vsub.f32 %v56, %v1213
  %v1215 = vand.u32 %v1214, 4294901760
  %1216 = vmatpush1.msra.mxu0 %v1215
  %1217 = vmatprep.subr.mxu0 0.0
  %1218 = vmatpush1.msra.mxu0 0.0
  %1219 = vmatprep.subr.mxu0 0.0
  %1220 = vmatpush1.msra.mxu0 0.0
  %1221 = vmatprep.subr.mxu0 0.0
  %1222 = vmatpush1.msra.mxu0 0.0
  %1223 = vmatprep.subr.mxu0 0.0
  %1224 = vmatpush1.msra.mxu0 0.0
  %1225 = vmatprep.subr.mxu0 0.0
  %1226 = vmatpush1.msra.mxu0 0.0
  %1227 = vmatprep.subr.mxu0 0.0
  %1228 = vmatpush1.msra.mxu0 0.0
  %1229 = vmatprep.subr.mxu0 0.0
  %1230 = vmatpush1.msra.mxu0 0.0
  %1231 = vmatprep.subr.mxu0 0.0
  %1232 = vmatpush1.msra.mxu0 0.0
  %1233 = vmatprep.subr.mxu0 0.0
  %1234 = vmatpush1.msra.mxu0 0.0
  %1235 = vmatprep.subr.mxu0 0.0
  %1236 = vmatpush1.msra.mxu0 0.0
  %1237 = vmatprep.subr.mxu0 0.0
  %1238 = vmatpush1.msra.mxu0 0.0
  %1239 = vmatprep.subr.mxu0 0.0
  %1240 = vmatpush1.msra.mxu0 0.0
  %1241 = vmatprep.subr.mxu0 0.0
  %1242 = vmatpush1.msra.mxu0 0.0
  %1243 = vmatprep.subr.mxu0 0.0
  %1244 = vmatpush1.msra.mxu0 0.0
  %1245 = vmatprep.subr.mxu0 0.0
  %1246 = vmatpush1.msra.mxu0 0.0
  %1247 = vmatprep.subr.mxu0 0.0
  %1248 = vmatpush1.msra.mxu0 0.0
  %1249 = vmatprep.mubr.f32.mxu0 0.0
  %v1250 = vand.u32 %v701, 4294901760
  %1251 = vmatmul.mubr.f32.gmra.mrb[0].mxu0 %v1250
  %v1252 = vpop.f32.mrb[0].mxu0
  %v1253 = vadd.f32 %v1134, %v1252
  %v1254 = vpop.f32.mrb[0].mxu0
  %1255 = vdwg.mxu0
  %1256 = vmatprep.subr.mxu0 0.0
  %v1257 = vand.u32 %v41, 4294901760
  %1258 = vmatpush1.msra.mxu0 %v1257
  %1259 = vmatprep.subr.mxu0 0.0
  %v1260 = vand.u32 %v42, 4294901760
  %1261 = vmatpush1.msra.mxu0 %v1260
  %1262 = vmatprep.subr.mxu0 0.0
  %v1263 = vand.u32 %v43, 4294901760
  %1264 = vmatpush1.msra.mxu0 %v1263
  %1265 = vmatprep.subr.mxu0 0.0
  %v1266 = vand.u32 %v44, 4294901760
  %1267 = vmatpush1.msra.mxu0 %v1266
  %1268 = vmatprep.subr.mxu0 0.0
  %v1269 = vand.u32 %v45, 4294901760
  %1270 = vmatpush1.msra.mxu0 %v1269
  %1271 = vmatprep.subr.mxu0 0.0
  %v1272 = vand.u32 %v46, 4294901760
  %1273 = vmatpush1.msra.mxu0 %v1272
  %1274 = vmatprep.subr.mxu0 0.0
  %v1275 = vand.u32 %v47, 4294901760
  %1276 = vmatpush1.msra.mxu0 %v1275
  %1277 = vmatprep.subr.mxu0 0.0
  %v1278 = vand.u32 %v48, 4294901760
  %1279 = vmatpush1.msra.mxu0 %v1278
  %1280 = vmatprep.subr.mxu0 0.0
  %v1281 = vand.u32 %v49, 4294901760
  %1282 = vmatpush1.msra.mxu0 %v1281
  %1283 = vmatprep.subr.mxu0 0.0
  %v1284 = vand.u32 %v50, 4294901760
  %1285 = vmatpush1.msra.mxu0 %v1284
  %1286 = vmatprep.subr.mxu0 0.0
  %v1287 = vand.u32 %v51, 4294901760
  %1288 = vmatpush1.msra.mxu0 %v1287
  %1289 = vmatprep.subr.mxu0 0.0
  %v1290 = vand.u32 %v52, 4294901760
  %1291 = vmatpush1.msra.mxu0 %v1290
  %1292 = vmatprep.subr.mxu0 0.0
  %v1293 = vand.u32 %v53, 4294901760
  %1294 = vmatpush1.msra.mxu0 %v1293
  %1295 = vmatprep.subr.mxu0 0.0
  %v1296 = vand.u32 %v54, 4294901760
  %1297 = vmatpush1.msra.mxu0 %v1296
  %1298 = vmatprep.subr.mxu0 0.0
  %v1299 = vand.u32 %v55, 4294901760
  %1300 = vmatpush1.msra.mxu0 %v1299
  %1301 = vmatprep.subr.mxu0 0.0
  %v1302 = vand.u32 %v56, 4294901760
  %1303 = vmatpush1.msra.mxu0 %v1302
  %1304 = vmatprep.subr.mxu0 0.0
  %1305 = vmatpush1.msra.mxu0 0.0
  %1306 = vmatprep.subr.mxu0 0.0
  %1307 = vmatpush1.msra.mxu0 0.0
  %1308 = vmatprep.subr.mxu0 0.0
  %1309 = vmatpush1.msra.mxu0 0.0
  %1310 = vmatprep.subr.mxu0 0.0
  %1311 = vmatpush1.msra.mxu0 0.0
  %1312 = vmatprep.subr.mxu0 0.0
  %1313 = vmatpush1.msra.mxu0 0.0
  %1314 = vmatprep.subr.mxu0 0.0
  %1315 = vmatpush1.msra.mxu0 0.0
  %1316 = vmatprep.subr.mxu0 0.0
  %1317 = vmatpush1.msra.mxu0 0.0
  %1318 = vmatprep.subr.mxu0 0.0
  %1319 = vmatpush1.msra.mxu0 0.0
  %1320 = vmatprep.subr.mxu0 0.0
  %1321 = vmatpush1.msra.mxu0 0.0
  %1322 = vmatprep.subr.mxu0 0.0
  %1323 = vmatpush1.msra.mxu0 0.0
  %1324 = vmatprep.subr.mxu0 0.0
  %1325 = vmatpush1.msra.mxu0 0.0
  %1326 = vmatprep.subr.mxu0 0.0
  %1327 = vmatpush1.msra.mxu0 0.0
  %1328 = vmatprep.subr.mxu0 0.0
  %1329 = vmatpush1.msra.mxu0 0.0
  %1330 = vmatprep.subr.mxu0 0.0
  %1331 = vmatpush1.msra.mxu0 0.0
  %1332 = vmatprep.subr.mxu0 0.0
  %1333 = vmatpush1.msra.mxu0 0.0
  %1334 = vmatprep.subr.mxu0 0.0
  %1335 = vmatpush1.msra.mxu0 0.0
  %1336 = vmatprep.mubr.f32.mxu0 0.0
  %v1337 = vand.u32 %v701, 4294901760
  %1338 = vmatmul.mubr.f32.gmra.mrb[0].mxu0 %v1337
  %v1339 = vpop.f32.mrb[0].mxu0
  %v1340 = vadd.f32 %v1253, %v1339
  %v1341 = vpop.f32.mrb[0].mxu0
  %1342 = vdwg.mxu0
  %1343 = vst [vmem:[%s4] sm:$0xff] %v1340
  %s1344 = scalar_lea.vmem %s0, 8
  %v1345 = vld [vmem:[%s1344] sm:$0xff]
  %1346 = vmatprep.subr.mxu0 0.0
  %v1347 = vand.u32 %v25, 4294901760
  %1348 = vmatpush1.msra.mxu0 %v1347
  %1349 = vmatprep.subr.mxu0 0.0
  %v1350 = vand.u32 %v26, 4294901760
  %1351 = vmatpush1.msra.mxu0 %v1350
  %1352 = vmatprep.subr.mxu0 0.0
  %v1353 = vand.u32 %v27, 4294901760
  %1354 = vmatpush1.msra.mxu0 %v1353
  %1355 = vmatprep.subr.mxu0 0.0
  %v1356 = vand.u32 %v28, 4294901760
  %1357 = vmatpush1.msra.mxu0 %v1356
  %1358 = vmatprep.subr.mxu0 0.0
  %v1359 = vand.u32 %v29, 4294901760
  %1360 = vmatpush1.msra.mxu0 %v1359
  %1361 = vmatprep.subr.mxu0 0.0
  %v1362 = vand.u32 %v30, 4294901760
  %1363 = vmatpush1.msra.mxu0 %v1362
  %1364 = vmatprep.subr.mxu0 0.0
  %v1365 = vand.u32 %v31, 4294901760
  %1366 = vmatpush1.msra.mxu0 %v1365
  %1367 = vmatprep.subr.mxu0 0.0
  %v1368 = vand.u32 %v32, 4294901760
  %1369 = vmatpush1.msra.mxu0 %v1368
  %1370 = vmatprep.subr.mxu0 0.0
  %v1371 = vand.u32 %v33, 4294901760
  %1372 = vmatpush1.msra.mxu0 %v1371
  %1373 = vmatprep.subr.mxu0 0.0
  %v1374 = vand.u32 %v34, 4294901760
  %1375 = vmatpush1.msra.mxu0 %v1374
  %1376 = vmatprep.subr.mxu0 0.0
  %v1377 = vand.u32 %v35, 4294901760
  %1378 = vmatpush1.msra.mxu0 %v1377
  %1379 = vmatprep.subr.mxu0 0.0
  %v1380 = vand.u32 %v36, 4294901760
  %1381 = vmatpush1.msra.mxu0 %v1380
  %1382 = vmatprep.subr.mxu0 0.0
  %v1383 = vand.u32 %v37, 4294901760
  %1384 = vmatpush1.msra.mxu0 %v1383
  %1385 = vmatprep.subr.mxu0 0.0
  %v1386 = vand.u32 %v38, 4294901760
  %1387 = vmatpush1.msra.mxu0 %v1386
  %1388 = vmatprep.subr.mxu0 0.0
  %v1389 = vand.u32 %v39, 4294901760
  %1390 = vmatpush1.msra.mxu0 %v1389
  %1391 = vmatprep.subr.mxu0 0.0
  %v1392 = vand.u32 %v40, 4294901760
  %1393 = vmatpush1.msra.mxu0 %v1392
  %1394 = vmatprep.subr.mxu0 0.0
  %1395 = vmatpush1.msra.mxu0 0.0
  %1396 = vmatprep.subr.mxu0 0.0
  %1397 = vmatpush1.msra.mxu0 0.0
  %1398 = vmatprep.subr.mxu0 0.0
  %1399 = vmatpush1.msra.mxu0 0.0
  %1400 = vmatprep.subr.mxu0 0.0
  %1401 = vmatpush1.msra.mxu0 0.0
  %1402 = vmatprep.subr.mxu0 0.0
  %1403 = vmatpush1.msra.mxu0 0.0
  %1404 = vmatprep.subr.mxu0 0.0
  %1405 = vmatpush1.msra.mxu0 0.0
  %1406 = vmatprep.subr.mxu0 0.0
  %1407 = vmatpush1.msra.mxu0 0.0
  %1408 = vmatprep.subr.mxu0 0.0
  %1409 = vmatpush1.msra.mxu0 0.0
  %1410 = vmatprep.subr.mxu0 0.0
  %1411 = vmatpush1.msra.mxu0 0.0
  %1412 = vmatprep.subr.mxu0 0.0
  %1413 = vmatpush1.msra.mxu0 0.0
  %1414 = vmatprep.subr.mxu0 0.0
  %1415 = vmatpush1.msra.mxu0 0.0
  %1416 = vmatprep.subr.mxu0 0.0
  %1417 = vmatpush1.msra.mxu0 0.0
  %1418 = vmatprep.subr.mxu0 0.0
  %1419 = vmatpush1.msra.mxu0 0.0
  %1420 = vmatprep.subr.mxu0 0.0
  %1421 = vmatpush1.msra.mxu0 0.0
  %1422 = vmatprep.subr.mxu0 0.0
  %1423 = vmatpush1.msra.mxu0 0.0
  %1424 = vmatprep.subr.mxu0 0.0
  %1425 = vmatpush1.msra.mxu0 0.0
  %1426 = vmatprep.mubr.f32.mxu0 0.0
  %v1427 = vand.u32 %v701, 4294901760
  %v1428 = vsub.f32 %v701, %v1427
  %v1429 = vand.u32 %v1428, 4294901760
  %v1430 = vsub.f32 %v1428, %v1429
  %v1431 = vand.u32 %v1430, 4294901760
  %1432 = vmatmul.mubr.f32.gmra.mrb[0].mxu0 %v1431
  %v1433 = vpop.f32.mrb[0].mxu0
  %v1434 = vadd.f32 0.0, %v1433
  %v1435 = vpop.f32.mrb[0].mxu0
  %1436 = vdwg.mxu0
  %1437 = vmatprep.subr.mxu0 0.0
  %v1438 = vand.u32 %v25, 4294901760
  %v1439 = vsub.f32 %v25, %v1438
  %v1440 = vand.u32 %v1439, 4294901760
  %v1441 = vsub.f32 %v1439, %v1440
  %v1442 = vand.u32 %v1441, 4294901760
  %1443 = vmatpush1.msra.mxu0 %v1442
  %1444 = vmatprep.subr.mxu0 0.0
  %v1445 = vand.u32 %v26, 4294901760
  %v1446 = vsub.f32 %v26, %v1445
  %v1447 = vand.u32 %v1446, 4294901760
  %v1448 = vsub.f32 %v1446, %v1447
  %v1449 = vand.u32 %v1448, 4294901760
  %1450 = vmatpush1.msra.mxu0 %v1449
  %1451 = vmatprep.subr.mxu0 0.0
  %v1452 = vand.u32 %v27, 4294901760
  %v1453 = vsub.f32 %v27, %v1452
  %v1454 = vand.u32 %v1453, 4294901760
  %v1455 = vsub.f32 %v1453, %v1454
  %v1456 = vand.u32 %v1455, 4294901760
  %1457 = vmatpush1.msra.mxu0 %v1456
  %1458 = vmatprep.subr.mxu0 0.0
  %v1459 = vand.u32 %v28, 4294901760
  %v1460 = vsub.f32 %v28, %v1459
  %v1461 = vand.u32 %v1460, 4294901760
  %v1462 = vsub.f32 %v1460, %v1461
  %v1463 = vand.u32 %v1462, 4294901760
  %1464 = vmatpush1.msra.mxu0 %v1463
  %1465 = vmatprep.subr.mxu0 0.0
  %v1466 = vand.u32 %v29, 4294901760
  %v1467 = vsub.f32 %v29, %v1466
  %v1468 = vand.u32 %v1467, 4294901760
  %v1469 = vsub.f32 %v1467, %v1468
  %v1470 = vand.u32 %v1469, 4294901760
  %1471 = vmatpush1.msra.mxu0 %v1470
  %1472 = vmatprep.subr.mxu0 0.0
  %v1473 = vand.u32 %v30, 4294901760
  %v1474 = vsub.f32 %v30, %v1473
  %v1475 = vand.u32 %v1474, 4294901760
  %v1476 = vsub.f32 %v1474, %v1475
  %v1477 = vand.u32 %v1476, 4294901760
  %1478 = vmatpush1.msra.mxu0 %v1477
  %1479 = vmatprep.subr.mxu0 0.0
  %v1480 = vand.u32 %v31, 4294901760
  %v1481 = vsub.f32 %v31, %v1480
  %v1482 = vand.u32 %v1481, 4294901760
  %v1483 = vsub.f32 %v1481, %v1482
  %v1484 = vand.u32 %v1483, 4294901760
  %1485 = vmatpush1.msra.mxu0 %v1484
  %1486 = vmatprep.subr.mxu0 0.0
  %v1487 = vand.u32 %v32, 4294901760
  %v1488 = vsub.f32 %v32, %v1487
  %v1489 = vand.u32 %v1488, 4294901760
  %v1490 = vsub.f32 %v1488, %v1489
  %v1491 = vand.u32 %v1490, 4294901760
  %1492 = vmatpush1.msra.mxu0 %v1491
  %1493 = vmatprep.subr.mxu0 0.0
  %v1494 = vand.u32 %v33, 4294901760
  %v1495 = vsub.f32 %v33, %v1494
  %v1496 = vand.u32 %v1495, 4294901760
  %v1497 = vsub.f32 %v1495, %v1496
  %v1498 = vand.u32 %v1497, 4294901760
  %1499 = vmatpush1.msra.mxu0 %v1498
  %1500 = vmatprep.subr.mxu0 0.0
  %v1501 = vand.u32 %v34, 4294901760
  %v1502 = vsub.f32 %v34, %v1501
  %v1503 = vand.u32 %v1502, 4294901760
  %v1504 = vsub.f32 %v1502, %v1503
  %v1505 = vand.u32 %v1504, 4294901760
  %1506 = vmatpush1.msra.mxu0 %v1505
  %1507 = vmatprep.subr.mxu0 0.0
  %v1508 = vand.u32 %v35, 4294901760
  %v1509 = vsub.f32 %v35, %v1508
  %v1510 = vand.u32 %v1509, 4294901760
  %v1511 = vsub.f32 %v1509, %v1510
  %v1512 = vand.u32 %v1511, 4294901760
  %1513 = vmatpush1.msra.mxu0 %v1512
  %1514 = vmatprep.subr.mxu0 0.0
  %v1515 = vand.u32 %v36, 4294901760
  %v1516 = vsub.f32 %v36, %v1515
  %v1517 = vand.u32 %v1516, 4294901760
  %v1518 = vsub.f32 %v1516, %v1517
  %v1519 = vand.u32 %v1518, 4294901760
  %1520 = vmatpush1.msra.mxu0 %v1519
  %1521 = vmatprep.subr.mxu0 0.0
  %v1522 = vand.u32 %v37, 4294901760
  %v1523 = vsub.f32 %v37, %v1522
  %v1524 = vand.u32 %v1523, 4294901760
  %v1525 = vsub.f32 %v1523, %v1524
  %v1526 = vand.u32 %v1525, 4294901760
  %1527 = vmatpush1.msra.mxu0 %v1526
  %1528 = vmatprep.subr.mxu0 0.0
  %v1529 = vand.u32 %v38, 4294901760
  %v1530 = vsub.f32 %v38, %v1529
  %v1531 = vand.u32 %v1530, 4294901760
  %v1532 = vsub.f32 %v1530, %v1531
  %v1533 = vand.u32 %v1532, 4294901760
  %1534 = vmatpush1.msra.mxu0 %v1533
  %1535 = vmatprep.subr.mxu0 0.0
  %v1536 = vand.u32 %v39, 4294901760
  %v1537 = vsub.f32 %v39, %v1536
  %v1538 = vand.u32 %v1537, 4294901760
  %v1539 = vsub.f32 %v1537, %v1538
  %v1540 = vand.u32 %v1539, 4294901760
  %1541 = vmatpush1.msra.mxu0 %v1540
  %1542 = vmatprep.subr.mxu0 0.0
  %v1543 = vand.u32 %v40, 4294901760
  %v1544 = vsub.f32 %v40, %v1543
  %v1545 = vand.u32 %v1544, 4294901760
  %v1546 = vsub.f32 %v1544, %v1545
  %v1547 = vand.u32 %v1546, 4294901760
  %1548 = vmatpush1.msra.mxu0 %v1547
  %1549 = vmatprep.subr.mxu0 0.0
  %1550 = vmatpush1.msra.mxu0 0.0
  %1551 = vmatprep.subr.mxu0 0.0
  %1552 = vmatpush1.msra.mxu0 0.0
  %1553 = vmatprep.subr.mxu0 0.0
  %1554 = vmatpush1.msra.mxu0 0.0
  %1555 = vmatprep.subr.mxu0 0.0
  %1556 = vmatpush1.msra.mxu0 0.0
  %1557 = vmatprep.subr.mxu0 0.0
  %1558 = vmatpush1.msra.mxu0 0.0
  %1559 = vmatprep.subr.mxu0 0.0
  %1560 = vmatpush1.msra.mxu0 0.0
  %1561 = vmatprep.subr.mxu0 0.0
  %1562 = vmatpush1.msra.mxu0 0.0
  %1563 = vmatprep.subr.mxu0 0.0
  %1564 = vmatpush1.msra.mxu0 0.0
  %1565 = vmatprep.subr.mxu0 0.0
  %1566 = vmatpush1.msra.mxu0 0.0
  %1567 = vmatprep.subr.mxu0 0.0
  %1568 = vmatpush1.msra.mxu0 0.0
  %1569 = vmatprep.subr.mxu0 0.0
  %1570 = vmatpush1.msra.mxu0 0.0
  %1571 = vmatprep.subr.mxu0 0.0
  %1572 = vmatpush1.msra.mxu0 0.0
  %1573 = vmatprep.subr.mxu0 0.0
  %1574 = vmatpush1.msra.mxu0 0.0
  %1575 = vmatprep.subr.mxu0 0.0
  %1576 = vmatpush1.msra.mxu0 0.0
  %1577 = vmatprep.subr.mxu0 0.0
  %1578 = vmatpush1.msra.mxu0 0.0
  %1579 = vmatprep.subr.mxu0 0.0
  %1580 = vmatpush1.msra.mxu0 0.0
  %1581 = vmatprep.mubr.f32.mxu0 0.0
  %v1582 = vand.u32 %v701, 4294901760
  %1583 = vmatmul.mubr.f32.gmra.mrb[0].mxu0 %v1582
  %v1584 = vpop.f32.mrb[0].mxu0
  %v1585 = vadd.f32 %v1434, %v1584
  %v1586 = vpop.f32.mrb[0].mxu0
  %1587 = vdwg.mxu0
  %1588 = vmatprep.subr.mxu0 0.0
  %v1589 = vand.u32 %v25, 4294901760
  %v1590 = vsub.f32 %v25, %v1589
  %1591 = vmatpush1.msra.mxu0 %v1590
  %1592 = vmatprep.subr.mxu0 0.0
  %v1593 = vand.u32 %v26, 4294901760
  %v1594 = vsub.f32 %v26, %v1593
  %1595 = vmatpush1.msra.mxu0 %v1594
  %1596 = vmatprep.subr.mxu0 0.0
  %v1597 = vand.u32 %v27, 4294901760
  %v1598 = vsub.f32 %v27, %v1597
  %1599 = vmatpush1.msra.mxu0 %v1598
  %1600 = vmatprep.subr.mxu0 0.0
  %v1601 = vand.u32 %v28, 4294901760
  %v1602 = vsub.f32 %v28, %v1601
  %1603 = vmatpush1.msra.mxu0 %v1602
  %1604 = vmatprep.subr.mxu0 0.0
  %v1605 = vand.u32 %v29, 4294901760
  %v1606 = vsub.f32 %v29, %v1605
  %1607 = vmatpush1.msra.mxu0 %v1606
  %1608 = vmatprep.subr.mxu0 0.0
  %v1609 = vand.u32 %v30, 4294901760
  %v1610 = vsub.f32 %v30, %v1609
  %1611 = vmatpush1.msra.mxu0 %v1610
  %1612 = vmatprep.subr.mxu0 0.0
  %v1613 = vand.u32 %v31, 4294901760
  %v1614 = vsub.f32 %v31, %v1613
  %1615 = vmatpush1.msra.mxu0 %v1614
  %1616 = vmatprep.subr.mxu0 0.0
  %v1617 = vand.u32 %v32, 4294901760
  %v1618 = vsub.f32 %v32, %v1617
  %1619 = vmatpush1.msra.mxu0 %v1618
  %1620 = vmatprep.subr.mxu0 0.0
  %v1621 = vand.u32 %v33, 4294901760
  %v1622 = vsub.f32 %v33, %v1621
  %1623 = vmatpush1.msra.mxu0 %v1622
  %1624 = vmatprep.subr.mxu0 0.0
  %v1625 = vand.u32 %v34, 4294901760
  %v1626 = vsub.f32 %v34, %v1625
  %1627 = vmatpush1.msra.mxu0 %v1626
  %1628 = vmatprep.subr.mxu0 0.0
  %v1629 = vand.u32 %v35, 4294901760
  %v1630 = vsub.f32 %v35, %v1629
  %1631 = vmatpush1.msra.mxu0 %v1630
  %1632 = vmatprep.subr.mxu0 0.0
  %v1633 = vand.u32 %v36, 4294901760
  %v1634 = vsub.f32 %v36, %v1633
  %1635 = vmatpush1.msra.mxu0 %v1634
  %1636 = vmatprep.subr.mxu0 0.0
  %v1637 = vand.u32 %v37, 4294901760
  %v1638 = vsub.f32 %v37, %v1637
  %1639 = vmatpush1.msra.mxu0 %v1638
  %1640 = vmatprep.subr.mxu0 0.0
  %v1641 = vand.u32 %v38, 4294901760
  %v1642 = vsub.f32 %v38, %v1641
  %1643 = vmatpush1.msra.mxu0 %v1642
  %1644 = vmatprep.subr.mxu0 0.0
  %v1645 = vand.u32 %v39, 4294901760
  %v1646 = vsub.f32 %v39, %v1645
  %1647 = vmatpush1.msra.mxu0 %v1646
  %1648 = vmatprep.subr.mxu0 0.0
  %v1649 = vand.u32 %v40, 4294901760
  %v1650 = vsub.f32 %v40, %v1649
  %1651 = vmatpush1.msra.mxu0 %v1650
  %1652 = vmatprep.subr.mxu0 0.0
  %1653 = vmatpush1.msra.mxu0 0.0
  %1654 = vmatprep.subr.mxu0 0.0
  %1655 = vmatpush1.msra.mxu0 0.0
  %1656 = vmatprep.subr.mxu0 0.0
  %1657 = vmatpush1.msra.mxu0 0.0
  %1658 = vmatprep.subr.mxu0 0.0
  %1659 = vmatpush1.msra.mxu0 0.0
  %1660 = vmatprep.subr.mxu0 0.0
  %1661 = vmatpush1.msra.mxu0 0.0
  %1662 = vmatprep.subr.mxu0 0.0
  %1663 = vmatpush1.msra.mxu0 0.0
  %1664 = vmatprep.subr.mxu0 0.0
  %1665 = vmatpush1.msra.mxu0 0.0
  %1666 = vmatprep.subr.mxu0 0.0
  %1667 = vmatpush1.msra.mxu0 0.0
  %1668 = vmatprep.subr.mxu0 0.0
  %1669 = vmatpush1.msra.mxu0 0.0
  %1670 = vmatprep.subr.mxu0 0.0
  %1671 = vmatpush1.msra.mxu0 0.0
  %1672 = vmatprep.subr.mxu0 0.0
  %1673 = vmatpush1.msra.mxu0 0.0
  %1674 = vmatprep.subr.mxu0 0.0
  %1675 = vmatpush1.msra.mxu0 0.0
  %1676 = vmatprep.subr.mxu0 0.0
  %1677 = vmatpush1.msra.mxu0 0.0
  %1678 = vmatprep.subr.mxu0 0.0
  %1679 = vmatpush1.msra.mxu0 0.0
  %1680 = vmatprep.subr.mxu0 0.0
  %1681 = vmatpush1.msra.mxu0 0.0
  %1682 = vmatprep.subr.mxu0 0.0
  %1683 = vmatpush1.msra.mxu0 0.0
  %1684 = vmatprep.mubr.f32.mxu0 0.0
  %v1685 = vand.u32 %v701, 4294901760
  %v1686 = vsub.f32 %v701, %v1685
  %1687 = vmatmul.mubr.f32.gmra.mrb[0].mxu0 %v1686
  %v1688 = vpop.f32.mrb[0].mxu0
  %v1689 = vadd.f32 %v1585, %v1688
  %v1690 = vpop.f32.mrb[0].mxu0
  %1691 = vdwg.mxu0
  %1692 = vmatprep.subr.mxu0 0.0
  %v1693 = vand.u32 %v25, 4294901760
  %1694 = vmatpush1.msra.mxu0 %v1693
  %1695 = vmatprep.subr.mxu0 0.0
  %v1696 = vand.u32 %v26, 4294901760
  %1697 = vmatpush1.msra.mxu0 %v1696
  %1698 = vmatprep.subr.mxu0 0.0
  %v1699 = vand.u32 %v27, 4294901760
  %1700 = vmatpush1.msra.mxu0 %v1699
  %1701 = vmatprep.subr.mxu0 0.0
  %v1702 = vand.u32 %v28, 4294901760
  %1703 = vmatpush1.msra.mxu0 %v1702
  %1704 = vmatprep.subr.mxu0 0.0
  %v1705 = vand.u32 %v29, 4294901760
  %1706 = vmatpush1.msra.mxu0 %v1705
  %1707 = vmatprep.subr.mxu0 0.0
  %v1708 = vand.u32 %v30, 4294901760
  %1709 = vmatpush1.msra.mxu0 %v1708
  %1710 = vmatprep.subr.mxu0 0.0
  %v1711 = vand.u32 %v31, 4294901760
  %1712 = vmatpush1.msra.mxu0 %v1711
  %1713 = vmatprep.subr.mxu0 0.0
  %v1714 = vand.u32 %v32, 4294901760
  %1715 = vmatpush1.msra.mxu0 %v1714
  %1716 = vmatprep.subr.mxu0 0.0
  %v1717 = vand.u32 %v33, 4294901760
  %1718 = vmatpush1.msra.mxu0 %v1717
  %1719 = vmatprep.subr.mxu0 0.0
  %v1720 = vand.u32 %v34, 4294901760
  %1721 = vmatpush1.msra.mxu0 %v1720
  %1722 = vmatprep.subr.mxu0 0.0
  %v1723 = vand.u32 %v35, 4294901760
  %1724 = vmatpush1.msra.mxu0 %v1723
  %1725 = vmatprep.subr.mxu0 0.0
  %v1726 = vand.u32 %v36, 4294901760
  %1727 = vmatpush1.msra.mxu0 %v1726
  %1728 = vmatprep.subr.mxu0 0.0
  %v1729 = vand.u32 %v37, 4294901760
  %1730 = vmatpush1.msra.mxu0 %v1729
  %1731 = vmatprep.subr.mxu0 0.0
  %v1732 = vand.u32 %v38, 4294901760
  %1733 = vmatpush1.msra.mxu0 %v1732
  %1734 = vmatprep.subr.mxu0 0.0
  %v1735 = vand.u32 %v39, 4294901760
  %1736 = vmatpush1.msra.mxu0 %v1735
  %1737 = vmatprep.subr.mxu0 0.0
  %v1738 = vand.u32 %v40, 4294901760
  %1739 = vmatpush1.msra.mxu0 %v1738
  %1740 = vmatprep.subr.mxu0 0.0
  %1741 = vmatpush1.msra.mxu0 0.0
  %1742 = vmatprep.subr.mxu0 0.0
  %1743 = vmatpush1.msra.mxu0 0.0
  %1744 = vmatprep.subr.mxu0 0.0
  %1745 = vmatpush1.msra.mxu0 0.0
  %1746 = vmatprep.subr.mxu0 0.0
  %1747 = vmatpush1.msra.mxu0 0.0
  %1748 = vmatprep.subr.mxu0 0.0
  %1749 = vmatpush1.msra.mxu0 0.0
  %1750 = vmatprep.subr.mxu0 0.0
  %1751 = vmatpush1.msra.mxu0 0.0
  %1752 = vmatprep.subr.mxu0 0.0
  %1753 = vmatpush1.msra.mxu0 0.0
  %1754 = vmatprep.subr.mxu0 0.0
  %1755 = vmatpush1.msra.mxu0 0.0
  %1756 = vmatprep.subr.mxu0 0.0
  %1757 = vmatpush1.msra.mxu0 0.0
  %1758 = vmatprep.subr.mxu0 0.0
  %1759 = vmatpush1.msra.mxu0 0.0
  %1760 = vmatprep.subr.mxu0 0.0
  %1761 = vmatpush1.msra.mxu0 0.0
  %1762 = vmatprep.subr.mxu0 0.0
  %1763 = vmatpush1.msra.mxu0 0.0
  %1764 = vmatprep.subr.mxu0 0.0
  %1765 = vmatpush1.msra.mxu0 0.0
  %1766 = vmatprep.subr.mxu0 0.0
  %1767 = vmatpush1.msra.mxu0 0.0
  %1768 = vmatprep.subr.mxu0 0.0
  %1769 = vmatpush1.msra.mxu0 0.0
  %1770 = vmatprep.subr.mxu0 0.0
  %1771 = vmatpush1.msra.mxu0 0.0
  %1772 = vmatprep.mubr.f32.mxu0 0.0
  %v1773 = vand.u32 %v701, 4294901760
  %v1774 = vsub.f32 %v701, %v1773
  %v1775 = vand.u32 %v1774, 4294901760
  %1776 = vmatmul.mubr.f32.gmra.mrb[0].mxu0 %v1775
  %v1777 = vpop.f32.mrb[0].mxu0
  %v1778 = vadd.f32 %v1689, %v1777
  %v1779 = vpop.f32.mrb[0].mxu0
  %1780 = vdwg.mxu0
  %1781 = vmatprep.subr.mxu0 0.0
  %v1782 = vand.u32 %v25, 4294901760
  %v1783 = vsub.f32 %v25, %v1782
  %v1784 = vand.u32 %v1783, 4294901760
  %1785 = vmatpush1.msra.mxu0 %v1784
  %1786 = vmatprep.subr.mxu0 0.0
  %v1787 = vand.u32 %v26, 4294901760
  %v1788 = vsub.f32 %v26, %v1787
  %v1789 = vand.u32 %v1788, 4294901760
  %1790 = vmatpush1.msra.mxu0 %v1789
  %1791 = vmatprep.subr.mxu0 0.0
  %v1792 = vand.u32 %v27, 4294901760
  %v1793 = vsub.f32 %v27, %v1792
  %v1794 = vand.u32 %v1793, 4294901760
  %1795 = vmatpush1.msra.mxu0 %v1794
  %1796 = vmatprep.subr.mxu0 0.0
  %v1797 = vand.u32 %v28, 4294901760
  %v1798 = vsub.f32 %v28, %v1797
  %v1799 = vand.u32 %v1798, 4294901760
  %1800 = vmatpush1.msra.mxu0 %v1799
  %1801 = vmatprep.subr.mxu0 0.0
  %v1802 = vand.u32 %v29, 4294901760
  %v1803 = vsub.f32 %v29, %v1802
  %v1804 = vand.u32 %v1803, 4294901760
  %1805 = vmatpush1.msra.mxu0 %v1804
  %1806 = vmatprep.subr.mxu0 0.0
  %v1807 = vand.u32 %v30, 4294901760
  %v1808 = vsub.f32 %v30, %v1807
  %v1809 = vand.u32 %v1808, 4294901760
  %1810 = vmatpush1.msra.mxu0 %v1809
  %1811 = vmatprep.subr.mxu0 0.0
  %v1812 = vand.u32 %v31, 4294901760
  %v1813 = vsub.f32 %v31, %v1812
  %v1814 = vand.u32 %v1813, 4294901760
  %1815 = vmatpush1.msra.mxu0 %v1814
  %1816 = vmatprep.subr.mxu0 0.0
  %v1817 = vand.u32 %v32, 4294901760
  %v1818 = vsub.f32 %v32, %v1817
  %v1819 = vand.u32 %v1818, 4294901760
  %1820 = vmatpush1.msra.mxu0 %v1819
  %1821 = vmatprep.subr.mxu0 0.0
  %v1822 = vand.u32 %v33, 4294901760
  %v1823 = vsub.f32 %v33, %v1822
  %v1824 = vand.u32 %v1823, 4294901760
  %1825 = vmatpush1.msra.mxu0 %v1824
  %1826 = vmatprep.subr.mxu0 0.0
  %v1827 = vand.u32 %v34, 4294901760
  %v1828 = vsub.f32 %v34, %v1827
  %v1829 = vand.u32 %v1828, 4294901760
  %1830 = vmatpush1.msra.mxu0 %v1829
  %1831 = vmatprep.subr.mxu0 0.0
  %v1832 = vand.u32 %v35, 4294901760
  %v1833 = vsub.f32 %v35, %v1832
  %v1834 = vand.u32 %v1833, 4294901760
  %1835 = vmatpush1.msra.mxu0 %v1834
  %1836 = vmatprep.subr.mxu0 0.0
  %v1837 = vand.u32 %v36, 4294901760
  %v1838 = vsub.f32 %v36, %v1837
  %v1839 = vand.u32 %v1838, 4294901760
  %1840 = vmatpush1.msra.mxu0 %v1839
  %1841 = vmatprep.subr.mxu0 0.0
  %v1842 = vand.u32 %v37, 4294901760
  %v1843 = vsub.f32 %v37, %v1842
  %v1844 = vand.u32 %v1843, 4294901760
  %1845 = vmatpush1.msra.mxu0 %v1844
  %1846 = vmatprep.subr.mxu0 0.0
  %v1847 = vand.u32 %v38, 4294901760
  %v1848 = vsub.f32 %v38, %v1847
  %v1849 = vand.u32 %v1848, 4294901760
  %1850 = vmatpush1.msra.mxu0 %v1849
  %1851 = vmatprep.subr.mxu0 0.0
  %v1852 = vand.u32 %v39, 4294901760
  %v1853 = vsub.f32 %v39, %v1852
  %v1854 = vand.u32 %v1853, 4294901760
  %1855 = vmatpush1.msra.mxu0 %v1854
  %1856 = vmatprep.subr.mxu0 0.0
  %v1857 = vand.u32 %v40, 4294901760
  %v1858 = vsub.f32 %v40, %v1857
  %v1859 = vand.u32 %v1858, 4294901760
  %1860 = vmatpush1.msra.mxu0 %v1859
  %1861 = vmatprep.subr.mxu0 0.0
  %1862 = vmatpush1.msra.mxu0 0.0
  %1863 = vmatprep.subr.mxu0 0.0
  %1864 = vmatpush1.msra.mxu0 0.0
  %1865 = vmatprep.subr.mxu0 0.0
  %1866 = vmatpush1.msra.mxu0 0.0
  %1867 = vmatprep.subr.mxu0 0.0
  %1868 = vmatpush1.msra.mxu0 0.0
  %1869 = vmatprep.subr.mxu0 0.0
  %1870 = vmatpush1.msra.mxu0 0.0
  %1871 = vmatprep.subr.mxu0 0.0
  %1872 = vmatpush1.msra.mxu0 0.0
  %1873 = vmatprep.subr.mxu0 0.0
  %1874 = vmatpush1.msra.mxu0 0.0
  %1875 = vmatprep.subr.mxu0 0.0
  %1876 = vmatpush1.msra.mxu0 0.0
  %1877 = vmatprep.subr.mxu0 0.0
  %1878 = vmatpush1.msra.mxu0 0.0
  %1879 = vmatprep.subr.mxu0 0.0
  %1880 = vmatpush1.msra.mxu0 0.0
  %1881 = vmatprep.subr.mxu0 0.0
  %1882 = vmatpush1.msra.mxu0 0.0
  %1883 = vmatprep.subr.mxu0 0.0
  %1884 = vmatpush1.msra.mxu0 0.0
  %1885 = vmatprep.subr.mxu0 0.0
  %1886 = vmatpush1.msra.mxu0 0.0
  %1887 = vmatprep.subr.mxu0 0.0
  %1888 = vmatpush1.msra.mxu0 0.0
  %1889 = vmatprep.subr.mxu0 0.0
  %1890 = vmatpush1.msra.mxu0 0.0
  %1891 = vmatprep.subr.mxu0 0.0
  %1892 = vmatpush1.msra.mxu0 0.0
  %1893 = vmatprep.mubr.f32.mxu0 0.0
  %v1894 = vand.u32 %v701, 4294901760
  %1895 = vmatmul.mubr.f32.gmra.mrb[0].mxu0 %v1894
  %v1896 = vpop.f32.mrb[0].mxu0
  %v1897 = vadd.f32 %v1778, %v1896
  %v1898 = vpop.f32.mrb[0].mxu0
  %1899 = vdwg.mxu0
  %1900 = vmatprep.subr.mxu0 0.0
  %v1901 = vand.u32 %v25, 4294901760
  %1902 = vmatpush1.msra.mxu0 %v1901
  %1903 = vmatprep.subr.mxu0 0.0
  %v1904 = vand.u32 %v26, 4294901760
  %1905 = vmatpush1.msra.mxu0 %v1904
  %1906 = vmatprep.subr.mxu0 0.0
  %v1907 = vand.u32 %v27, 4294901760
  %1908 = vmatpush1.msra.mxu0 %v1907
  %1909 = vmatprep.subr.mxu0 0.0
  %v1910 = vand.u32 %v28, 4294901760
  %1911 = vmatpush1.msra.mxu0 %v1910
  %1912 = vmatprep.subr.mxu0 0.0
  %v1913 = vand.u32 %v29, 4294901760
  %1914 = vmatpush1.msra.mxu0 %v1913
  %1915 = vmatprep.subr.mxu0 0.0
  %v1916 = vand.u32 %v30, 4294901760
  %1917 = vmatpush1.msra.mxu0 %v1916
  %1918 = vmatprep.subr.mxu0 0.0
  %v1919 = vand.u32 %v31, 4294901760
  %1920 = vmatpush1.msra.mxu0 %v1919
  %1921 = vmatprep.subr.mxu0 0.0
  %v1922 = vand.u32 %v32, 4294901760
  %1923 = vmatpush1.msra.mxu0 %v1922
  %1924 = vmatprep.subr.mxu0 0.0
  %v1925 = vand.u32 %v33, 4294901760
  %1926 = vmatpush1.msra.mxu0 %v1925
  %1927 = vmatprep.subr.mxu0 0.0
  %v1928 = vand.u32 %v34, 4294901760
  %1929 = vmatpush1.msra.mxu0 %v1928
  %1930 = vmatprep.subr.mxu0 0.0
  %v1931 = vand.u32 %v35, 4294901760
  %1932 = vmatpush1.msra.mxu0 %v1931
  %1933 = vmatprep.subr.mxu0 0.0
  %v1934 = vand.u32 %v36, 4294901760
  %1935 = vmatpush1.msra.mxu0 %v1934
  %1936 = vmatprep.subr.mxu0 0.0
  %v1937 = vand.u32 %v37, 4294901760
  %1938 = vmatpush1.msra.mxu0 %v1937
  %1939 = vmatprep.subr.mxu0 0.0
  %v1940 = vand.u32 %v38, 4294901760
  %1941 = vmatpush1.msra.mxu0 %v1940
  %1942 = vmatprep.subr.mxu0 0.0
  %v1943 = vand.u32 %v39, 4294901760
  %1944 = vmatpush1.msra.mxu0 %v1943
  %1945 = vmatprep.subr.mxu0 0.0
  %v1946 = vand.u32 %v40, 4294901760
  %1947 = vmatpush1.msra.mxu0 %v1946
  %1948 = vmatprep.subr.mxu0 0.0
  %1949 = vmatpush1.msra.mxu0 0.0
  %1950 = vmatprep.subr.mxu0 0.0
  %1951 = vmatpush1.msra.mxu0 0.0
  %1952 = vmatprep.subr.mxu0 0.0
  %1953 = vmatpush1.msra.mxu0 0.0
  %1954 = vmatprep.subr.mxu0 0.0
  %1955 = vmatpush1.msra.mxu0 0.0
  %1956 = vmatprep.subr.mxu0 0.0
  %1957 = vmatpush1.msra.mxu0 0.0
  %1958 = vmatprep.subr.mxu0 0.0
  %1959 = vmatpush1.msra.mxu0 0.0
  %1960 = vmatprep.subr.mxu0 0.0
  %1961 = vmatpush1.msra.mxu0 0.0
  %1962 = vmatprep.subr.mxu0 0.0
  %1963 = vmatpush1.msra.mxu0 0.0
  %1964 = vmatprep.subr.mxu0 0.0
  %1965 = vmatpush1.msra.mxu0 0.0
  %1966 = vmatprep.subr.mxu0 0.0
  %1967 = vmatpush1.msra.mxu0 0.0
  %1968 = vmatprep.subr.mxu0 0.0
  %1969 = vmatpush1.msra.mxu0 0.0
  %1970 = vmatprep.subr.mxu0 0.0
  %1971 = vmatpush1.msra.mxu0 0.0
  %1972 = vmatprep.subr.mxu0 0.0
  %1973 = vmatpush1.msra.mxu0 0.0
  %1974 = vmatprep.subr.mxu0 0.0
  %1975 = vmatpush1.msra.mxu0 0.0
  %1976 = vmatprep.subr.mxu0 0.0
  %1977 = vmatpush1.msra.mxu0 0.0
  %1978 = vmatprep.subr.mxu0 0.0
  %1979 = vmatpush1.msra.mxu0 0.0
  %1980 = vmatprep.mubr.f32.mxu0 0.0
  %v1981 = vand.u32 %v701, 4294901760
  %1982 = vmatmul.mubr.f32.gmra.mrb[0].mxu0 %v1981
  %v1983 = vpop.f32.mrb[0].mxu0
  %v1984 = vadd.f32 %v1897, %v1983
  %v1985 = vpop.f32.mrb[0].mxu0
  %1986 = vdwg.mxu0
  %v1987 = vadd.f32 %v1345, %v1984
  %v1988 = vtanh.pop %v1987
  %1989 = vmatprep.subr.mxu0 0.0
  %v1990 = vand.u32 %v41, 4294901760
  %1991 = vmatpush1.msra.mxu0 %v1990
  %1992 = vmatprep.subr.mxu0 0.0
  %v1993 = vand.u32 %v42, 4294901760
  %1994 = vmatpush1.msra.mxu0 %v1993
  %1995 = vmatprep.subr.mxu0 0.0
  %v1996 = vand.u32 %v43, 4294901760
  %1997 = vmatpush1.msra.mxu0 %v1996
  %1998 = vmatprep.subr.mxu0 0.0
  %v1999 = vand.u32 %v44, 4294901760
  %2000 = vmatpush1.msra.mxu0 %v1999
  %2001 = vmatprep.subr.mxu0 0.0
  %v2002 = vand.u32 %v45, 4294901760
  %2003 = vmatpush1.msra.mxu0 %v2002
  %2004 = vmatprep.subr.mxu0 0.0
  %v2005 = vand.u32 %v46, 4294901760
  %2006 = vmatpush1.msra.mxu0 %v2005
  %2007 = vmatprep.subr.mxu0 0.0
  %v2008 = vand.u32 %v47, 4294901760
  %2009 = vmatpush1.msra.mxu0 %v2008
  %2010 = vmatprep.subr.mxu0 0.0
  %v2011 = vand.u32 %v48, 4294901760
  %2012 = vmatpush1.msra.mxu0 %v2011
  %2013 = vmatprep.subr.mxu0 0.0
  %v2014 = vand.u32 %v49, 4294901760
  %2015 = vmatpush1.msra.mxu0 %v2014
  %2016 = vmatprep.subr.mxu0 0.0
  %v2017 = vand.u32 %v50, 4294901760
  %2018 = vmatpush1.msra.mxu0 %v2017
  %2019 = vmatprep.subr.mxu0 0.0
  %v2020 = vand.u32 %v51, 4294901760
  %2021 = vmatpush1.msra.mxu0 %v2020
  %2022 = vmatprep.subr.mxu0 0.0
  %v2023 = vand.u32 %v52, 4294901760
  %2024 = vmatpush1.msra.mxu0 %v2023
  %2025 = vmatprep.subr.mxu0 0.0
  %v2026 = vand.u32 %v53, 4294901760
  %2027 = vmatpush1.msra.mxu0 %v2026
  %2028 = vmatprep.subr.mxu0 0.0
  %v2029 = vand.u32 %v54, 4294901760
  %2030 = vmatpush1.msra.mxu0 %v2029
  %2031 = vmatprep.subr.mxu0 0.0
  %v2032 = vand.u32 %v55, 4294901760
  %2033 = vmatpush1.msra.mxu0 %v2032
  %2034 = vmatprep.subr.mxu0 0.0
  %v2035 = vand.u32 %v56, 4294901760
  %2036 = vmatpush1.msra.mxu0 %v2035
  %2037 = vmatprep.subr.mxu0 0.0
  %2038 = vmatpush1.msra.mxu0 0.0
  %2039 = vmatprep.subr.mxu0 0.0
  %2040 = vmatpush1.msra.mxu0 0.0
  %2041 = vmatprep.subr.mxu0 0.0
  %2042 = vmatpush1.msra.mxu0 0.0
  %2043 = vmatprep.subr.mxu0 0.0
  %2044 = vmatpush1.msra.mxu0 0.0
  %2045 = vmatprep.subr.mxu0 0.0
  %2046 = vmatpush1.msra.mxu0 0.0
  %2047 = vmatprep.subr.mxu0 0.0
  %2048 = vmatpush1.msra.mxu0 0.0
  %2049 = vmatprep.subr.mxu0 0.0
  %2050 = vmatpush1.msra.mxu0 0.0
  %2051 = vmatprep.subr.mxu0 0.0
  %2052 = vmatpush1.msra.mxu0 0.0
  %2053 = vmatprep.subr.mxu0 0.0
  %2054 = vmatpush1.msra.mxu0 0.0
  %2055 = vmatprep.subr.mxu0 0.0
  %2056 = vmatpush1.msra.mxu0 0.0
  %2057 = vmatprep.subr.mxu0 0.0
  %2058 = vmatpush1.msra.mxu0 0.0
  %2059 = vmatprep.subr.mxu0 0.0
  %2060 = vmatpush1.msra.mxu0 0.0
  %2061 = vmatprep.subr.mxu0 0.0
  %2062 = vmatpush1.msra.mxu0 0.0
  %2063 = vmatprep.subr.mxu0 0.0
  %2064 = vmatpush1.msra.mxu0 0.0
  %2065 = vmatprep.subr.mxu0 0.0
  %2066 = vmatpush1.msra.mxu0 0.0
  %2067 = vmatprep.subr.mxu0 0.0
  %2068 = vmatpush1.msra.mxu0 0.0
  %2069 = vmatprep.mubr.f32.mxu0 0.0
  %v2070 = vand.u32 %v1988, 4294901760
  %v2071 = vsub.f32 %v1988, %v2070
  %v2072 = vand.u32 %v2071, 4294901760
  %v2073 = vsub.f32 %v2071, %v2072
  %v2074 = vand.u32 %v2073, 4294901760
  %2075 = vmatmul.mubr.f32.gmra.mrb[0].mxu0 %v2074
  %v2076 = vpop.f32.mrb[0].mxu0
  %v2077 = vadd.f32 0.0, %v2076
  %v2078 = vpop.f32.mrb[0].mxu0
  %2079 = vdwg.mxu0
  %2080 = vmatprep.subr.mxu0 0.0
  %v2081 = vand.u32 %v41, 4294901760
  %v2082 = vsub.f32 %v41, %v2081
  %v2083 = vand.u32 %v2082, 4294901760
  %v2084 = vsub.f32 %v2082, %v2083
  %v2085 = vand.u32 %v2084, 4294901760
  %2086 = vmatpush1.msra.mxu0 %v2085
  %2087 = vmatprep.subr.mxu0 0.0
  %v2088 = vand.u32 %v42, 4294901760
  %v2089 = vsub.f32 %v42, %v2088
  %v2090 = vand.u32 %v2089, 4294901760
  %v2091 = vsub.f32 %v2089, %v2090
  %v2092 = vand.u32 %v2091, 4294901760
  %2093 = vmatpush1.msra.mxu0 %v2092
  %2094 = vmatprep.subr.mxu0 0.0
  %v2095 = vand.u32 %v43, 4294901760
  %v2096 = vsub.f32 %v43, %v2095
  %v2097 = vand.u32 %v2096, 4294901760
  %v2098 = vsub.f32 %v2096, %v2097
  %v2099 = vand.u32 %v2098, 4294901760
  %2100 = vmatpush1.msra.mxu0 %v2099
  %2101 = vmatprep.subr.mxu0 0.0
  %v2102 = vand.u32 %v44, 4294901760
  %v2103 = vsub.f32 %v44, %v2102
  %v2104 = vand.u32 %v2103, 4294901760
  %v2105 = vsub.f32 %v2103, %v2104
  %v2106 = vand.u32 %v2105, 4294901760
  %2107 = vmatpush1.msra.mxu0 %v2106
  %2108 = vmatprep.subr.mxu0 0.0
  %v2109 = vand.u32 %v45, 4294901760
  %v2110 = vsub.f32 %v45, %v2109
  %v2111 = vand.u32 %v2110, 4294901760
  %v2112 = vsub.f32 %v2110, %v2111
  %v2113 = vand.u32 %v2112, 4294901760
  %2114 = vmatpush1.msra.mxu0 %v2113
  %2115 = vmatprep.subr.mxu0 0.0
  %v2116 = vand.u32 %v46, 4294901760
  %v2117 = vsub.f32 %v46, %v2116
  %v2118 = vand.u32 %v2117, 4294901760
  %v2119 = vsub.f32 %v2117, %v2118
  %v2120 = vand.u32 %v2119, 4294901760
  %2121 = vmatpush1.msra.mxu0 %v2120
  %2122 = vmatprep.subr.mxu0 0.0
  %v2123 = vand.u32 %v47, 4294901760
  %v2124 = vsub.f32 %v47, %v2123
  %v2125 = vand.u32 %v2124, 4294901760
  %v2126 = vsub.f32 %v2124, %v2125
  %v2127 = vand.u32 %v2126, 4294901760
  %2128 = vmatpush1.msra.mxu0 %v2127
  %2129 = vmatprep.subr.mxu0 0.0
  %v2130 = vand.u32 %v48, 4294901760
  %v2131 = vsub.f32 %v48, %v2130
  %v2132 = vand.u32 %v2131, 4294901760
  %v2133 = vsub.f32 %v2131, %v2132
  %v2134 = vand.u32 %v2133, 4294901760
  %2135 = vmatpush1.msra.mxu0 %v2134
  %2136 = vmatprep.subr.mxu0 0.0
  %v2137 = vand.u32 %v49, 4294901760
  %v2138 = vsub.f32 %v49, %v2137
  %v2139 = vand.u32 %v2138, 4294901760
  %v2140 = vsub.f32 %v2138, %v2139
  %v2141 = vand.u32 %v2140, 4294901760
  %2142 = vmatpush1.msra.mxu0 %v2141
  %2143 = vmatprep.subr.mxu0 0.0
  %v2144 = vand.u32 %v50, 4294901760
  %v2145 = vsub.f32 %v50, %v2144
  %v2146 = vand.u32 %v2145, 4294901760
  %v2147 = vsub.f32 %v2145, %v2146
  %v2148 = vand.u32 %v2147, 4294901760
  %2149 = vmatpush1.msra.mxu0 %v2148
  %2150 = vmatprep.subr.mxu0 0.0
  %v2151 = vand.u32 %v51, 4294901760
  %v2152 = vsub.f32 %v51, %v2151
  %v2153 = vand.u32 %v2152, 4294901760
  %v2154 = vsub.f32 %v2152, %v2153
  %v2155 = vand.u32 %v2154, 4294901760
  %2156 = vmatpush1.msra.mxu0 %v2155
  %2157 = vmatprep.subr.mxu0 0.0
  %v2158 = vand.u32 %v52, 4294901760
  %v2159 = vsub.f32 %v52, %v2158
  %v2160 = vand.u32 %v2159, 4294901760
  %v2161 = vsub.f32 %v2159, %v2160
  %v2162 = vand.u32 %v2161, 4294901760
  %2163 = vmatpush1.msra.mxu0 %v2162
  %2164 = vmatprep.subr.mxu0 0.0
  %v2165 = vand.u32 %v53, 4294901760
  %v2166 = vsub.f32 %v53, %v2165
  %v2167 = vand.u32 %v2166, 4294901760
  %v2168 = vsub.f32 %v2166, %v2167
  %v2169 = vand.u32 %v2168, 4294901760
  %2170 = vmatpush1.msra.mxu0 %v2169
  %2171 = vmatprep.subr.mxu0 0.0
  %v2172 = vand.u32 %v54, 4294901760
  %v2173 = vsub.f32 %v54, %v2172
  %v2174 = vand.u32 %v2173, 4294901760
  %v2175 = vsub.f32 %v2173, %v2174
  %v2176 = vand.u32 %v2175, 4294901760
  %2177 = vmatpush1.msra.mxu0 %v2176
  %2178 = vmatprep.subr.mxu0 0.0
  %v2179 = vand.u32 %v55, 4294901760
  %v2180 = vsub.f32 %v55, %v2179
  %v2181 = vand.u32 %v2180, 4294901760
  %v2182 = vsub.f32 %v2180, %v2181
  %v2183 = vand.u32 %v2182, 4294901760
  %2184 = vmatpush1.msra.mxu0 %v2183
  %2185 = vmatprep.subr.mxu0 0.0
  %v2186 = vand.u32 %v56, 4294901760
  %v2187 = vsub.f32 %v56, %v2186
  %v2188 = vand.u32 %v2187, 4294901760
  %v2189 = vsub.f32 %v2187, %v2188
  %v2190 = vand.u32 %v2189, 4294901760
  %2191 = vmatpush1.msra.mxu0 %v2190
  %2192 = vmatprep.subr.mxu0 0.0
  %2193 = vmatpush1.msra.mxu0 0.0
  %2194 = vmatprep.subr.mxu0 0.0
  %2195 = vmatpush1.msra.mxu0 0.0
  %2196 = vmatprep.subr.mxu0 0.0
  %2197 = vmatpush1.msra.mxu0 0.0
  %2198 = vmatprep.subr.mxu0 0.0
  %2199 = vmatpush1.msra.mxu0 0.0
  %2200 = vmatprep.subr.mxu0 0.0
  %2201 = vmatpush1.msra.mxu0 0.0
  %2202 = vmatprep.subr.mxu0 0.0
  %2203 = vmatpush1.msra.mxu0 0.0
  %2204 = vmatprep.subr.mxu0 0.0
  %2205 = vmatpush1.msra.mxu0 0.0
  %2206 = vmatprep.subr.mxu0 0.0
  %2207 = vmatpush1.msra.mxu0 0.0
  %2208 = vmatprep.subr.mxu0 0.0
  %2209 = vmatpush1.msra.mxu0 0.0
  %2210 = vmatprep.subr.mxu0 0.0
  %2211 = vmatpush1.msra.mxu0 0.0
  %2212 = vmatprep.subr.mxu0 0.0
  %2213 = vmatpush1.msra.mxu0 0.0
  %2214 = vmatprep.subr.mxu0 0.0
  %2215 = vmatpush1.msra.mxu0 0.0
  %2216 = vmatprep.subr.mxu0 0.0
  %2217 = vmatpush1.msra.mxu0 0.0
  %2218 = vmatprep.subr.mxu0 0.0
  %2219 = vmatpush1.msra.mxu0 0.0
  %2220 = vmatprep.subr.mxu0 0.0
  %2221 = vmatpush1.msra.mxu0 0.0
  %2222 = vmatprep.subr.mxu0 0.0
  %2223 = vmatpush1.msra.mxu0 0.0
  %2224 = vmatprep.mubr.f32.mxu0 0.0
  %v2225 = vand.u32 %v1988, 4294901760
  %2226 = vmatmul.mubr.f32.gmra.mrb[0].mxu0 %v2225
  %v2227 = vpop.f32.mrb[0].mxu0
  %v2228 = vadd.f32 %v2077, %v2227
  %v2229 = vpop.f32.mrb[0].mxu0
  %2230 = vdwg.mxu0
  %2231 = vmatprep.subr.mxu0 0.0
  %v2232 = vand.u32 %v41, 4294901760
  %v2233 = vsub.f32 %v41, %v2232
  %2234 = vmatpush1.msra.mxu0 %v2233
  %2235 = vmatprep.subr.mxu0 0.0
  %v2236 = vand.u32 %v42, 4294901760
  %v2237 = vsub.f32 %v42, %v2236
  %2238 = vmatpush1.msra.mxu0 %v2237
  %2239 = vmatprep.subr.mxu0 0.0
  %v2240 = vand.u32 %v43, 4294901760
  %v2241 = vsub.f32 %v43, %v2240
  %2242 = vmatpush1.msra.mxu0 %v2241
  %2243 = vmatprep.subr.mxu0 0.0
  %v2244 = vand.u32 %v44, 4294901760
  %v2245 = vsub.f32 %v44, %v2244
  %2246 = vmatpush1.msra.mxu0 %v2245
  %2247 = vmatprep.subr.mxu0 0.0
  %v2248 = vand.u32 %v45, 4294901760
  %v2249 = vsub.f32 %v45, %v2248
  %2250 = vmatpush1.msra.mxu0 %v2249
  %2251 = vmatprep.subr.mxu0 0.0
  %v2252 = vand.u32 %v46, 4294901760
  %v2253 = vsub.f32 %v46, %v2252
  %2254 = vmatpush1.msra.mxu0 %v2253
  %2255 = vmatprep.subr.mxu0 0.0
  %v2256 = vand.u32 %v47, 4294901760
  %v2257 = vsub.f32 %v47, %v2256
  %2258 = vmatpush1.msra.mxu0 %v2257
  %2259 = vmatprep.subr.mxu0 0.0
  %v2260 = vand.u32 %v48, 4294901760
  %v2261 = vsub.f32 %v48, %v2260
  %2262 = vmatpush1.msra.mxu0 %v2261
  %2263 = vmatprep.subr.mxu0 0.0
  %v2264 = vand.u32 %v49, 4294901760
  %v2265 = vsub.f32 %v49, %v2264
  %2266 = vmatpush1.msra.mxu0 %v2265
  %2267 = vmatprep.subr.mxu0 0.0
  %v2268 = vand.u32 %v50, 4294901760
  %v2269 = vsub.f32 %v50, %v2268
  %2270 = vmatpush1.msra.mxu0 %v2269
  %2271 = vmatprep.subr.mxu0 0.0
  %v2272 = vand.u32 %v51, 4294901760
  %v2273 = vsub.f32 %v51, %v2272
  %2274 = vmatpush1.msra.mxu0 %v2273
  %2275 = vmatprep.subr.mxu0 0.0
  %v2276 = vand.u32 %v52, 4294901760
  %v2277 = vsub.f32 %v52, %v2276
  %2278 = vmatpush1.msra.mxu0 %v2277
  %2279 = vmatprep.subr.mxu0 0.0
  %v2280 = vand.u32 %v53, 4294901760
  %v2281 = vsub.f32 %v53, %v2280
  %2282 = vmatpush1.msra.mxu0 %v2281
  %2283 = vmatprep.subr.mxu0 0.0
  %v2284 = vand.u32 %v54, 4294901760
  %v2285 = vsub.f32 %v54, %v2284
  %2286 = vmatpush1.msra.mxu0 %v2285
  %2287 = vmatprep.subr.mxu0 0.0
  %v2288 = vand.u32 %v55, 4294901760
  %v2289 = vsub.f32 %v55, %v2288
  %2290 = vmatpush1.msra.mxu0 %v2289
  %2291 = vmatprep.subr.mxu0 0.0
  %v2292 = vand.u32 %v56, 4294901760
  %v2293 = vsub.f32 %v56, %v2292
  %2294 = vmatpush1.msra.mxu0 %v2293
  %2295 = vmatprep.subr.mxu0 0.0
  %2296 = vmatpush1.msra.mxu0 0.0
  %2297 = vmatprep.subr.mxu0 0.0
  %2298 = vmatpush1.msra.mxu0 0.0
  %2299 = vmatprep.subr.mxu0 0.0
  %2300 = vmatpush1.msra.mxu0 0.0
  %2301 = vmatprep.subr.mxu0 0.0
  %2302 = vmatpush1.msra.mxu0 0.0
  %2303 = vmatprep.subr.mxu0 0.0
  %2304 = vmatpush1.msra.mxu0 0.0
  %2305 = vmatprep.subr.mxu0 0.0
  %2306 = vmatpush1.msra.mxu0 0.0
  %2307 = vmatprep.subr.mxu0 0.0
  %2308 = vmatpush1.msra.mxu0 0.0
  %2309 = vmatprep.subr.mxu0 0.0
  %2310 = vmatpush1.msra.mxu0 0.0
  %2311 = vmatprep.subr.mxu0 0.0
  %2312 = vmatpush1.msra.mxu0 0.0
  %2313 = vmatprep.subr.mxu0 0.0
  %2314 = vmatpush1.msra.mxu0 0.0
  %2315 = vmatprep.subr.mxu0 0.0
  %2316 = vmatpush1.msra.mxu0 0.0
  %2317 = vmatprep.subr.mxu0 0.0
  %2318 = vmatpush1.msra.mxu0 0.0
  %2319 = vmatprep.subr.mxu0 0.0
  %2320 = vmatpush1.msra.mxu0 0.0
  %2321 = vmatprep.subr.mxu0 0.0
  %2322 = vmatpush1.msra.mxu0 0.0
  %2323 = vmatprep.subr.mxu0 0.0
  %2324 = vmatpush1.msra.mxu0 0.0
  %2325 = vmatprep.subr.mxu0 0.0
  %2326 = vmatpush1.msra.mxu0 0.0
  %2327 = vmatprep.mubr.f32.mxu0 0.0
  %v2328 = vand.u32 %v1988, 4294901760
  %v2329 = vsub.f32 %v1988, %v2328
  %2330 = vmatmul.mubr.f32.gmra.mrb[0].mxu0 %v2329
  %v2331 = vpop.f32.mrb[0].mxu0
  %v2332 = vadd.f32 %v2228, %v2331
  %v2333 = vpop.f32.mrb[0].mxu0
  %2334 = vdwg.mxu0
  %2335 = vmatprep.subr.mxu0 0.0
  %v2336 = vand.u32 %v41, 4294901760
  %2337 = vmatpush1.msra.mxu0 %v2336
  %2338 = vmatprep.subr.mxu0 0.0
  %v2339 = vand.u32 %v42, 4294901760
  %2340 = vmatpush1.msra.mxu0 %v2339
  %2341 = vmatprep.subr.mxu0 0.0
  %v2342 = vand.u32 %v43, 4294901760
  %2343 = vmatpush1.msra.mxu0 %v2342
  %2344 = vmatprep.subr.mxu0 0.0
  %v2345 = vand.u32 %v44, 4294901760
  %2346 = vmatpush1.msra.mxu0 %v2345
  %2347 = vmatprep.subr.mxu0 0.0
  %v2348 = vand.u32 %v45, 4294901760
  %2349 = vmatpush1.msra.mxu0 %v2348
  %2350 = vmatprep.subr.mxu0 0.0
  %v2351 = vand.u32 %v46, 4294901760
  %2352 = vmatpush1.msra.mxu0 %v2351
  %2353 = vmatprep.subr.mxu0 0.0
  %v2354 = vand.u32 %v47, 4294901760
  %2355 = vmatpush1.msra.mxu0 %v2354
  %2356 = vmatprep.subr.mxu0 0.0
  %v2357 = vand.u32 %v48, 4294901760
  %2358 = vmatpush1.msra.mxu0 %v2357
  %2359 = vmatprep.subr.mxu0 0.0
  %v2360 = vand.u32 %v49, 4294901760
  %2361 = vmatpush1.msra.mxu0 %v2360
  %2362 = vmatprep.subr.mxu0 0.0
  %v2363 = vand.u32 %v50, 4294901760
  %2364 = vmatpush1.msra.mxu0 %v2363
  %2365 = vmatprep.subr.mxu0 0.0
  %v2366 = vand.u32 %v51, 4294901760
  %2367 = vmatpush1.msra.mxu0 %v2366
  %2368 = vmatprep.subr.mxu0 0.0
  %v2369 = vand.u32 %v52, 4294901760
  %2370 = vmatpush1.msra.mxu0 %v2369
  %2371 = vmatprep.subr.mxu0 0.0
  %v2372 = vand.u32 %v53, 4294901760
  %2373 = vmatpush1.msra.mxu0 %v2372
  %2374 = vmatprep.subr.mxu0 0.0
  %v2375 = vand.u32 %v54, 4294901760
  %2376 = vmatpush1.msra.mxu0 %v2375
  %2377 = vmatprep.subr.mxu0 0.0
  %v2378 = vand.u32 %v55, 4294901760
  %2379 = vmatpush1.msra.mxu0 %v2378
  %2380 = vmatprep.subr.mxu0 0.0
  %v2381 = vand.u32 %v56, 4294901760
  %2382 = vmatpush1.msra.mxu0 %v2381
  %2383 = vmatprep.subr.mxu0 0.0
  %2384 = vmatpush1.msra.mxu0 0.0
  %2385 = vmatprep.subr.mxu0 0.0
  %2386 = vmatpush1.msra.mxu0 0.0
  %2387 = vmatprep.subr.mxu0 0.0
  %2388 = vmatpush1.msra.mxu0 0.0
  %2389 = vmatprep.subr.mxu0 0.0
  %2390 = vmatpush1.msra.mxu0 0.0
  %2391 = vmatprep.subr.mxu0 0.0
  %2392 = vmatpush1.msra.mxu0 0.0
  %2393 = vmatprep.subr.mxu0 0.0
  %2394 = vmatpush1.msra.mxu0 0.0
  %2395 = vmatprep.subr.mxu0 0.0
  %2396 = vmatpush1.msra.mxu0 0.0
  %2397 = vmatprep.subr.mxu0 0.0
  %2398 = vmatpush1.msra.mxu0 0.0
  %2399 = vmatprep.subr.mxu0 0.0
  %2400 = vmatpush1.msra.mxu0 0.0
  %2401 = vmatprep.subr.mxu0 0.0
  %2402 = vmatpush1.msra.mxu0 0.0
  %2403 = vmatprep.subr.mxu0 0.0
  %2404 = vmatpush1.msra.mxu0 0.0
  %2405 = vmatprep.subr.mxu0 0.0
  %2406 = vmatpush1.msra.mxu0 0.0
  %2407 = vmatprep.subr.mxu0 0.0
  %2408 = vmatpush1.msra.mxu0 0.0
  %2409 = vmatprep.subr.mxu0 0.0
  %2410 = vmatpush1.msra.mxu0 0.0
  %2411 = vmatprep.subr.mxu0 0.0
  %2412 = vmatpush1.msra.mxu0 0.0
  %2413 = vmatprep.subr.mxu0 0.0
  %2414 = vmatpush1.msra.mxu0 0.0
  %2415 = vmatprep.mubr.f32.mxu0 0.0
  %v2416 = vand.u32 %v1988, 4294901760
  %v2417 = vsub.f32 %v1988, %v2416
  %v2418 = vand.u32 %v2417, 4294901760
  %2419 = vmatmul.mubr.f32.gmra.mrb[0].mxu0 %v2418
  %v2420 = vpop.f32.mrb[0].mxu0
  %v2421 = vadd.f32 %v2332, %v2420
  %v2422 = vpop.f32.mrb[0].mxu0
  %2423 = vdwg.mxu0
  %2424 = vmatprep.subr.mxu0 0.0
  %v2425 = vand.u32 %v41, 4294901760
  %v2426 = vsub.f32 %v41, %v2425
  %v2427 = vand.u32 %v2426, 4294901760
  %2428 = vmatpush1.msra.mxu0 %v2427
  %2429 = vmatprep.subr.mxu0 0.0
  %v2430 = vand.u32 %v42, 4294901760
  %v2431 = vsub.f32 %v42, %v2430
  %v2432 = vand.u32 %v2431, 4294901760
  %2433 = vmatpush1.msra.mxu0 %v2432
  %2434 = vmatprep.subr.mxu0 0.0
  %v2435 = vand.u32 %v43, 4294901760
  %v2436 = vsub.f32 %v43, %v2435
  %v2437 = vand.u32 %v2436, 4294901760
  %2438 = vmatpush1.msra.mxu0 %v2437
  %2439 = vmatprep.subr.mxu0 0.0
  %v2440 = vand.u32 %v44, 4294901760
  %v2441 = vsub.f32 %v44, %v2440
  %v2442 = vand.u32 %v2441, 4294901760
  %2443 = vmatpush1.msra.mxu0 %v2442
  %2444 = vmatprep.subr.mxu0 0.0
  %v2445 = vand.u32 %v45, 4294901760
  %v2446 = vsub.f32 %v45, %v2445
  %v2447 = vand.u32 %v2446, 4294901760
  %2448 = vmatpush1.msra.mxu0 %v2447
  %2449 = vmatprep.subr.mxu0 0.0
  %v2450 = vand.u32 %v46, 4294901760
  %v2451 = vsub.f32 %v46, %v2450
  %v2452 = vand.u32 %v2451, 4294901760
  %2453 = vmatpush1.msra.mxu0 %v2452
  %2454 = vmatprep.subr.mxu0 0.0
  %v2455 = vand.u32 %v47, 4294901760
  %v2456 = vsub.f32 %v47, %v2455
  %v2457 = vand.u32 %v2456, 4294901760
  %2458 = vmatpush1.msra.mxu0 %v2457
  %2459 = vmatprep.subr.mxu0 0.0
  %v2460 = vand.u32 %v48, 4294901760
  %v2461 = vsub.f32 %v48, %v2460
  %v2462 = vand.u32 %v2461, 4294901760
  %2463 = vmatpush1.msra.mxu0 %v2462
  %2464 = vmatprep.subr.mxu0 0.0
  %v2465 = vand.u32 %v49, 4294901760
  %v2466 = vsub.f32 %v49, %v2465
  %v2467 = vand.u32 %v2466, 4294901760
  %2468 = vmatpush1.msra.mxu0 %v2467
  %2469 = vmatprep.subr.mxu0 0.0
  %v2470 = vand.u32 %v50, 4294901760
  %v2471 = vsub.f32 %v50, %v2470
  %v2472 = vand.u32 %v2471, 4294901760
  %2473 = vmatpush1.msra.mxu0 %v2472
  %2474 = vmatprep.subr.mxu0 0.0
  %v2475 = vand.u32 %v51, 4294901760
  %v2476 = vsub.f32 %v51, %v2475
  %v2477 = vand.u32 %v2476, 4294901760
  %2478 = vmatpush1.msra.mxu0 %v2477
  %2479 = vmatprep.subr.mxu0 0.0
  %v2480 = vand.u32 %v52, 4294901760
  %v2481 = vsub.f32 %v52, %v2480
  %v2482 = vand.u32 %v2481, 4294901760
  %2483 = vmatpush1.msra.mxu0 %v2482
  %2484 = vmatprep.subr.mxu0 0.0
  %v2485 = vand.u32 %v53, 4294901760
  %v2486 = vsub.f32 %v53, %v2485
  %v2487 = vand.u32 %v2486, 4294901760
  %2488 = vmatpush1.msra.mxu0 %v2487
  %2489 = vmatprep.subr.mxu0 0.0
  %v2490 = vand.u32 %v54, 4294901760
  %v2491 = vsub.f32 %v54, %v2490
  %v2492 = vand.u32 %v2491, 4294901760
  %2493 = vmatpush1.msra.mxu0 %v2492
  %2494 = vmatprep.subr.mxu0 0.0
  %v2495 = vand.u32 %v55, 4294901760
  %v2496 = vsub.f32 %v55, %v2495
  %v2497 = vand.u32 %v2496, 4294901760
  %2498 = vmatpush1.msra.mxu0 %v2497
  %2499 = vmatprep.subr.mxu0 0.0
  %v2500 = vand.u32 %v56, 4294901760
  %v2501 = vsub.f32 %v56, %v2500
  %v2502 = vand.u32 %v2501, 4294901760
  %2503 = vmatpush1.msra.mxu0 %v2502
  %2504 = vmatprep.subr.mxu0 0.0
  %2505 = vmatpush1.msra.mxu0 0.0
  %2506 = vmatprep.subr.mxu0 0.0
  %2507 = vmatpush1.msra.mxu0 0.0
  %2508 = vmatprep.subr.mxu0 0.0
  %2509 = vmatpush1.msra.mxu0 0.0
  %2510 = vmatprep.subr.mxu0 0.0
  %2511 = vmatpush1.msra.mxu0 0.0
  %2512 = vmatprep.subr.mxu0 0.0
  %2513 = vmatpush1.msra.mxu0 0.0
  %2514 = vmatprep.subr.mxu0 0.0
  %2515 = vmatpush1.msra.mxu0 0.0
  %2516 = vmatprep.subr.mxu0 0.0
  %2517 = vmatpush1.msra.mxu0 0.0
  %2518 = vmatprep.subr.mxu0 0.0
  %2519 = vmatpush1.msra.mxu0 0.0
  %2520 = vmatprep.subr.mxu0 0.0
  %2521 = vmatpush1.msra.mxu0 0.0
  %2522 = vmatprep.subr.mxu0 0.0
  %2523 = vmatpush1.msra.mxu0 0.0
  %2524 = vmatprep.subr.mxu0 0.0
  %2525 = vmatpush1.msra.mxu0 0.0
  %2526 = vmatprep.subr.mxu0 0.0
  %2527 = vmatpush1.msra.mxu0 0.0
  %2528 = vmatprep.subr.mxu0 0.0
  %2529 = vmatpush1.msra.mxu0 0.0
  %2530 = vmatprep.subr.mxu0 0.0
  %2531 = vmatpush1.msra.mxu0 0.0
  %2532 = vmatprep.subr.mxu0 0.0
  %2533 = vmatpush1.msra.mxu0 0.0
  %2534 = vmatprep.subr.mxu0 0.0
  %2535 = vmatpush1.msra.mxu0 0.0
  %2536 = vmatprep.mubr.f32.mxu0 0.0
  %v2537 = vand.u32 %v1988, 4294901760
  %2538 = vmatmul.mubr.f32.gmra.mrb[0].mxu0 %v2537
  %v2539 = vpop.f32.mrb[0].mxu0
  %v2540 = vadd.f32 %v2421, %v2539
  %v2541 = vpop.f32.mrb[0].mxu0
  %2542 = vdwg.mxu0
  %2543 = vmatprep.subr.mxu0 0.0
  %v2544 = vand.u32 %v41, 4294901760
  %2545 = vmatpush1.msra.mxu0 %v2544
  %2546 = vmatprep.subr.mxu0 0.0
  %v2547 = vand.u32 %v42, 4294901760
  %2548 = vmatpush1.msra.mxu0 %v2547
  %2549 = vmatprep.subr.mxu0 0.0
  %v2550 = vand.u32 %v43, 4294901760
  %2551 = vmatpush1.msra.mxu0 %v2550
  %2552 = vmatprep.subr.mxu0 0.0
  %v2553 = vand.u32 %v44, 4294901760
  %2554 = vmatpush1.msra.mxu0 %v2553
  %2555 = vmatprep.subr.mxu0 0.0
  %v2556 = vand.u32 %v45, 4294901760
  %2557 = vmatpush1.msra.mxu0 %v2556
  %2558 = vmatprep.subr.mxu0 0.0
  %v2559 = vand.u32 %v46, 4294901760
  %2560 = vmatpush1.msra.mxu0 %v2559
  %2561 = vmatprep.subr.mxu0 0.0
  %v2562 = vand.u32 %v47, 4294901760
  %2563 = vmatpush1.msra.mxu0 %v2562
  %2564 = vmatprep.subr.mxu0 0.0
  %v2565 = vand.u32 %v48, 4294901760
  %2566 = vmatpush1.msra.mxu0 %v2565
  %2567 = vmatprep.subr.mxu0 0.0
  %v2568 = vand.u32 %v49, 4294901760
  %2569 = vmatpush1.msra.mxu0 %v2568
  %2570 = vmatprep.subr.mxu0 0.0
  %v2571 = vand.u32 %v50, 4294901760
  %2572 = vmatpush1.msra.mxu0 %v2571
  %2573 = vmatprep.subr.mxu0 0.0
  %v2574 = vand.u32 %v51, 4294901760
  %2575 = vmatpush1.msra.mxu0 %v2574
  %2576 = vmatprep.subr.mxu0 0.0
  %v2577 = vand.u32 %v52, 4294901760
  %2578 = vmatpush1.msra.mxu0 %v2577
  %2579 = vmatprep.subr.mxu0 0.0
  %v2580 = vand.u32 %v53, 4294901760
  %2581 = vmatpush1.msra.mxu0 %v2580
  %2582 = vmatprep.subr.mxu0 0.0
  %v2583 = vand.u32 %v54, 4294901760
  %2584 = vmatpush1.msra.mxu0 %v2583
  %2585 = vmatprep.subr.mxu0 0.0
  %v2586 = vand.u32 %v55, 4294901760
  %2587 = vmatpush1.msra.mxu0 %v2586
  %2588 = vmatprep.subr.mxu0 0.0
  %v2589 = vand.u32 %v56, 4294901760
  %2590 = vmatpush1.msra.mxu0 %v2589
  %2591 = vmatprep.subr.mxu0 0.0
  %2592 = vmatpush1.msra.mxu0 0.0
  %2593 = vmatprep.subr.mxu0 0.0
  %2594 = vmatpush1.msra.mxu0 0.0
  %2595 = vmatprep.subr.mxu0 0.0
  %2596 = vmatpush1.msra.mxu0 0.0
  %2597 = vmatprep.subr.mxu0 0.0
  %2598 = vmatpush1.msra.mxu0 0.0
  %2599 = vmatprep.subr.mxu0 0.0
  %2600 = vmatpush1.msra.mxu0 0.0
  %2601 = vmatprep.subr.mxu0 0.0
  %2602 = vmatpush1.msra.mxu0 0.0
  %2603 = vmatprep.subr.mxu0 0.0
  %2604 = vmatpush1.msra.mxu0 0.0
  %2605 = vmatprep.subr.mxu0 0.0
  %2606 = vmatpush1.msra.mxu0 0.0
  %2607 = vmatprep.subr.mxu0 0.0
  %2608 = vmatpush1.msra.mxu0 0.0
  %2609 = vmatprep.subr.mxu0 0.0
  %2610 = vmatpush1.msra.mxu0 0.0
  %2611 = vmatprep.subr.mxu0 0.0
  %2612 = vmatpush1.msra.mxu0 0.0
  %2613 = vmatprep.subr.mxu0 0.0
  %2614 = vmatpush1.msra.mxu0 0.0
  %2615 = vmatprep.subr.mxu0 0.0
  %2616 = vmatpush1.msra.mxu0 0.0
  %2617 = vmatprep.subr.mxu0 0.0
  %2618 = vmatpush1.msra.mxu0 0.0
  %2619 = vmatprep.subr.mxu0 0.0
  %2620 = vmatpush1.msra.mxu0 0.0
  %2621 = vmatprep.subr.mxu0 0.0
  %2622 = vmatpush1.msra.mxu0 0.0
  %2623 = vmatprep.mubr.f32.mxu0 0.0
  %v2624 = vand.u32 %v1988, 4294901760
  %2625 = vmatmul.mubr.f32.gmra.mrb[0].mxu0 %v2624
  %v2626 = vpop.f32.mrb[0].mxu0
  %v2627 = vadd.f32 %v2540, %v2626
  %v2628 = vpop.f32.mrb[0].mxu0
  %2629 = vdwg.mxu0
  %s2630 = scalar_lea.vmem %s4, 8
  %2631 = vst [vmem:[%s2630] sm:$0xff] %v2627
  %s2632 = scalar_lea.vmem %s0, 16
  %v2633 = vld [vmem:[%s2632] sm:$0xff]
  %2634 = vmatprep.subr.mxu0 0.0
  %v2635 = vand.u32 %v25, 4294901760
  %2636 = vmatpush1.msra.mxu0 %v2635
  %2637 = vmatprep.subr.mxu0 0.0
  %v2638 = vand.u32 %v26, 4294901760
  %2639 = vmatpush1.msra.mxu0 %v2638
  %2640 = vmatprep.subr.mxu0 0.0
  %v2641 = vand.u32 %v27, 4294901760
  %2642 = vmatpush1.msra.mxu0 %v2641
  %2643 = vmatprep.subr.mxu0 0.0
  %v2644 = vand.u32 %v28, 4294901760
  %2645 = vmatpush1.msra.mxu0 %v2644
  %2646 = vmatprep.subr.mxu0 0.0
  %v2647 = vand.u32 %v29, 4294901760
  %2648 = vmatpush1.msra.mxu0 %v2647
  %2649 = vmatprep.subr.mxu0 0.0
  %v2650 = vand.u32 %v30, 4294901760
  %2651 = vmatpush1.msra.mxu0 %v2650
  %2652 = vmatprep.subr.mxu0 0.0
  %v2653 = vand.u32 %v31, 4294901760
  %2654 = vmatpush1.msra.mxu0 %v2653
  %2655 = vmatprep.subr.mxu0 0.0
  %v2656 = vand.u32 %v32, 4294901760
  %2657 = vmatpush1.msra.mxu0 %v2656
  %2658 = vmatprep.subr.mxu0 0.0
  %v2659 = vand.u32 %v33, 4294901760
  %2660 = vmatpush1.msra.mxu0 %v2659
  %2661 = vmatprep.subr.mxu0 0.0
  %v2662 = vand.u32 %v34, 4294901760
  %2663 = vmatpush1.msra.mxu0 %v2662
  %2664 = vmatprep.subr.mxu0 0.0
  %v2665 = vand.u32 %v35, 4294901760
  %2666 = vmatpush1.msra.mxu0 %v2665
  %2667 = vmatprep.subr.mxu0 0.0
  %v2668 = vand.u32 %v36, 4294901760
  %2669 = vmatpush1.msra.mxu0 %v2668
  %2670 = vmatprep.subr.mxu0 0.0
  %v2671 = vand.u32 %v37, 4294901760
  %2672 = vmatpush1.msra.mxu0 %v2671
  %2673 = vmatprep.subr.mxu0 0.0
  %v2674 = vand.u32 %v38, 4294901760
  %2675 = vmatpush1.msra.mxu0 %v2674
  %2676 = vmatprep.subr.mxu0 0.0
  %v2677 = vand.u32 %v39, 4294901760
  %2678 = vmatpush1.msra.mxu0 %v2677
  %2679 = vmatprep.subr.mxu0 0.0
  %v2680 = vand.u32 %v40, 4294901760
  %2681 = vmatpush1.msra.mxu0 %v2680
  %2682 = vmatprep.subr.mxu0 0.0
  %2683 = vmatpush1.msra.mxu0 0.0
  %2684 = vmatprep.subr.mxu0 0.0
  %2685 = vmatpush1.msra.mxu0 0.0
  %2686 = vmatprep.subr.mxu0 0.0
  %2687 = vmatpush1.msra.mxu0 0.0
  %2688 = vmatprep.subr.mxu0 0.0
  %2689 = vmatpush1.msra.mxu0 0.0
  %2690 = vmatprep.subr.mxu0 0.0
  %2691 = vmatpush1.msra.mxu0 0.0
  %2692 = vmatprep.subr.mxu0 0.0
  %2693 = vmatpush1.msra.mxu0 0.0
  %2694 = vmatprep.subr.mxu0 0.0
  %2695 = vmatpush1.msra.mxu0 0.0
  %2696 = vmatprep.subr.mxu0 0.0
  %2697 = vmatpush1.msra.mxu0 0.0
  %2698 = vmatprep.subr.mxu0 0.0
  %2699 = vmatpush1.msra.mxu0 0.0
  %2700 = vmatprep.subr.mxu0 0.0
  %2701 = vmatpush1.msra.mxu0 0.0
  %2702 = vmatprep.subr.mxu0 0.0
  %2703 = vmatpush1.msra.mxu0 0.0
  %2704 = vmatprep.subr.mxu0 0.0
  %2705 = vmatpush1.msra.mxu0 0.0
  %2706 = vmatprep.subr.mxu0 0.0
  %2707 = vmatpush1.msra.mxu0 0.0
  %2708 = vmatprep.subr.mxu0 0.0
  %2709 = vmatpush1.msra.mxu0 0.0
  %2710 = vmatprep.subr.mxu0 0.0
  %2711 = vmatpush1.msra.mxu0 0.0
  %2712 = vmatprep.subr.mxu0 0.0
  %2713 = vmatpush1.msra.mxu0 0.0
  %2714 = vmatprep.mubr.f32.mxu0 0.0
  %v2715 = vand.u32 %v1988, 4294901760
  %v2716 = vsub.f32 %v1988, %v2715
  %v2717 = vand.u32 %v2716, 4294901760
  %v2718 = vsub.f32 %v2716, %v2717
  %v2719 = vand.u32 %v2718, 4294901760
  %2720 = vmatmul.mubr.f32.gmra.mrb[0].mxu0 %v2719
  %v2721 = vpop.f32.mrb[0].mxu0
  %v2722 = vadd.f32 0.0, %v2721
  %v2723 = vpop.f32.mrb[0].mxu0
  %2724 = vdwg.mxu0
  %2725 = vmatprep.subr.mxu0 0.0
  %v2726 = vand.u32 %v25, 4294901760
  %v2727 = vsub.f32 %v25, %v2726
  %v2728 = vand.u32 %v2727, 4294901760
  %v2729 = vsub.f32 %v2727, %v2728
  %v2730 = vand.u32 %v2729, 4294901760
  %2731 = vmatpush1.msra.mxu0 %v2730
  %2732 = vmatprep.subr.mxu0 0.0
  %v2733 = vand.u32 %v26, 4294901760
  %v2734 = vsub.f32 %v26, %v2733
  %v2735 = vand.u32 %v2734, 4294901760
  %v2736 = vsub.f32 %v2734, %v2735
  %v2737 = vand.u32 %v2736, 4294901760
  %2738 = vmatpush1.msra.mxu0 %v2737
  %2739 = vmatprep.subr.mxu0 0.0
  %v2740 = vand.u32 %v27, 4294901760
  %v2741 = vsub.f32 %v27, %v2740
  %v2742 = vand.u32 %v2741, 4294901760
  %v2743 = vsub.f32 %v2741, %v2742
  %v2744 = vand.u32 %v2743, 4294901760
  %2745 = vmatpush1.msra.mxu0 %v2744
  %2746 = vmatprep.subr.mxu0 0.0
  %v2747 = vand.u32 %v28, 4294901760
  %v2748 = vsub.f32 %v28, %v2747
  %v2749 = vand.u32 %v2748, 4294901760
  %v2750 = vsub.f32 %v2748, %v2749
  %v2751 = vand.u32 %v2750, 4294901760
  %2752 = vmatpush1.msra.mxu0 %v2751
  %2753 = vmatprep.subr.mxu0 0.0
  %v2754 = vand.u32 %v29, 4294901760
  %v2755 = vsub.f32 %v29, %v2754
  %v2756 = vand.u32 %v2755, 4294901760
  %v2757 = vsub.f32 %v2755, %v2756
  %v2758 = vand.u32 %v2757, 4294901760
  %2759 = vmatpush1.msra.mxu0 %v2758
  %2760 = vmatprep.subr.mxu0 0.0
  %v2761 = vand.u32 %v30, 4294901760
  %v2762 = vsub.f32 %v30, %v2761
  %v2763 = vand.u32 %v2762, 4294901760
  %v2764 = vsub.f32 %v2762, %v2763
  %v2765 = vand.u32 %v2764, 4294901760
  %2766 = vmatpush1.msra.mxu0 %v2765
  %2767 = vmatprep.subr.mxu0 0.0
  %v2768 = vand.u32 %v31, 4294901760
  %v2769 = vsub.f32 %v31, %v2768
  %v2770 = vand.u32 %v2769, 4294901760
  %v2771 = vsub.f32 %v2769, %v2770
  %v2772 = vand.u32 %v2771, 4294901760
  %2773 = vmatpush1.msra.mxu0 %v2772
  %2774 = vmatprep.subr.mxu0 0.0
  %v2775 = vand.u32 %v32, 4294901760
  %v2776 = vsub.f32 %v32, %v2775
  %v2777 = vand.u32 %v2776, 4294901760
  %v2778 = vsub.f32 %v2776, %v2777
  %v2779 = vand.u32 %v2778, 4294901760
  %2780 = vmatpush1.msra.mxu0 %v2779
  %2781 = vmatprep.subr.mxu0 0.0
  %v2782 = vand.u32 %v33, 4294901760
  %v2783 = vsub.f32 %v33, %v2782
  %v2784 = vand.u32 %v2783, 4294901760
  %v2785 = vsub.f32 %v2783, %v2784
  %v2786 = vand.u32 %v2785, 4294901760
  %2787 = vmatpush1.msra.mxu0 %v2786
  %2788 = vmatprep.subr.mxu0 0.0
  %v2789 = vand.u32 %v34, 4294901760
  %v2790 = vsub.f32 %v34, %v2789
  %v2791 = vand.u32 %v2790, 4294901760
  %v2792 = vsub.f32 %v2790, %v2791
  %v2793 = vand.u32 %v2792, 4294901760
  %2794 = vmatpush1.msra.mxu0 %v2793
  %2795 = vmatprep.subr.mxu0 0.0
  %v2796 = vand.u32 %v35, 4294901760
  %v2797 = vsub.f32 %v35, %v2796
  %v2798 = vand.u32 %v2797, 4294901760
  %v2799 = vsub.f32 %v2797, %v2798
  %v2800 = vand.u32 %v2799, 4294901760
  %2801 = vmatpush1.msra.mxu0 %v2800
  %2802 = vmatprep.subr.mxu0 0.0
  %v2803 = vand.u32 %v36, 4294901760
  %v2804 = vsub.f32 %v36, %v2803
  %v2805 = vand.u32 %v2804, 4294901760
  %v2806 = vsub.f32 %v2804, %v2805
  %v2807 = vand.u32 %v2806, 4294901760
  %2808 = vmatpush1.msra.mxu0 %v2807
  %2809 = vmatprep.subr.mxu0 0.0
  %v2810 = vand.u32 %v37, 4294901760
  %v2811 = vsub.f32 %v37, %v2810
  %v2812 = vand.u32 %v2811, 4294901760
  %v2813 = vsub.f32 %v2811, %v2812
  %v2814 = vand.u32 %v2813, 4294901760
  %2815 = vmatpush1.msra.mxu0 %v2814
  %2816 = vmatprep.subr.mxu0 0.0
  %v2817 = vand.u32 %v38, 4294901760
  %v2818 = vsub.f32 %v38, %v2817
  %v2819 = vand.u32 %v2818, 4294901760
  %v2820 = vsub.f32 %v2818, %v2819
  %v2821 = vand.u32 %v2820, 4294901760
  %2822 = vmatpush1.msra.mxu0 %v2821
  %2823 = vmatprep.subr.mxu0 0.0
  %v2824 = vand.u32 %v39, 4294901760
  %v2825 = vsub.f32 %v39, %v2824
  %v2826 = vand.u32 %v2825, 4294901760
  %v2827 = vsub.f32 %v2825, %v2826
  %v2828 = vand.u32 %v2827, 4294901760
  %2829 = vmatpush1.msra.mxu0 %v2828
  %2830 = vmatprep.subr.mxu0 0.0
  %v2831 = vand.u32 %v40, 4294901760
  %v2832 = vsub.f32 %v40, %v2831
  %v2833 = vand.u32 %v2832, 4294901760
  %v2834 = vsub.f32 %v2832, %v2833
  %v2835 = vand.u32 %v2834, 4294901760
  %2836 = vmatpush1.msra.mxu0 %v2835
  %2837 = vmatprep.subr.mxu0 0.0
  %2838 = vmatpush1.msra.mxu0 0.0
  %2839 = vmatprep.subr.mxu0 0.0
  %2840 = vmatpush1.msra.mxu0 0.0
  %2841 = vmatprep.subr.mxu0 0.0
  %2842 = vmatpush1.msra.mxu0 0.0
  %2843 = vmatprep.subr.mxu0 0.0
  %2844 = vmatpush1.msra.mxu0 0.0
  %2845 = vmatprep.subr.mxu0 0.0
  %2846 = vmatpush1.msra.mxu0 0.0
  %2847 = vmatprep.subr.mxu0 0.0
  %2848 = vmatpush1.msra.mxu0 0.0
  %2849 = vmatprep.subr.mxu0 0.0
  %2850 = vmatpush1.msra.mxu0 0.0
  %2851 = vmatprep.subr.mxu0 0.0
  %2852 = vmatpush1.msra.mxu0 0.0
  %2853 = vmatprep.subr.mxu0 0.0
  %2854 = vmatpush1.msra.mxu0 0.0
  %2855 = vmatprep.subr.mxu0 0.0
  %2856 = vmatpush1.msra.mxu0 0.0
  %2857 = vmatprep.subr.mxu0 0.0
  %2858 = vmatpush1.msra.mxu0 0.0
  %2859 = vmatprep.subr.mxu0 0.0
  %2860 = vmatpush1.msra.mxu0 0.0
  %2861 = vmatprep.subr.mxu0 0.0
  %2862 = vmatpush1.msra.mxu0 0.0
  %2863 = vmatprep.subr.mxu0 0.0
  %2864 = vmatpush1.msra.mxu0 0.0
  %2865 = vmatprep.subr.mxu0 0.0
  %2866 = vmatpush1.msra.mxu0 0.0
  %2867 = vmatprep.subr.mxu0 0.0
  %2868 = vmatpush1.msra.mxu0 0.0
  %2869 = vmatprep.mubr.f32.mxu0 0.0
  %v2870 = vand.u32 %v1988, 4294901760
  %2871 = vmatmul.mubr.f32.gmra.mrb[0].mxu0 %v2870
  %v2872 = vpop.f32.mrb[0].mxu0
  %v2873 = vadd.f32 %v2722, %v2872
  %v2874 = vpop.f32.mrb[0].mxu0
  %2875 = vdwg.mxu0
  %2876 = vmatprep.subr.mxu0 0.0
  %v2877 = vand.u32 %v25, 4294901760
  %v2878 = vsub.f32 %v25, %v2877
  %2879 = vmatpush1.msra.mxu0 %v2878
  %2880 = vmatprep.subr.mxu0 0.0
  %v2881 = vand.u32 %v26, 4294901760
  %v2882 = vsub.f32 %v26, %v2881
  %2883 = vmatpush1.msra.mxu0 %v2882
  %2884 = vmatprep.subr.mxu0 0.0
  %v2885 = vand.u32 %v27, 4294901760
  %v2886 = vsub.f32 %v27, %v2885
  %2887 = vmatpush1.msra.mxu0 %v2886
  %2888 = vmatprep.subr.mxu0 0.0
  %v2889 = vand.u32 %v28, 4294901760
  %v2890 = vsub.f32 %v28, %v2889
  %2891 = vmatpush1.msra.mxu0 %v2890
  %2892 = vmatprep.subr.mxu0 0.0
  %v2893 = vand.u32 %v29, 4294901760
  %v2894 = vsub.f32 %v29, %v2893
  %2895 = vmatpush1.msra.mxu0 %v2894
  %2896 = vmatprep.subr.mxu0 0.0
  %v2897 = vand.u32 %v30, 4294901760
  %v2898 = vsub.f32 %v30, %v2897
  %2899 = vmatpush1.msra.mxu0 %v2898
  %2900 = vmatprep.subr.mxu0 0.0
  %v2901 = vand.u32 %v31, 4294901760
  %v2902 = vsub.f32 %v31, %v2901
  %2903 = vmatpush1.msra.mxu0 %v2902
  %2904 = vmatprep.subr.mxu0 0.0
  %v2905 = vand.u32 %v32, 4294901760
  %v2906 = vsub.f32 %v32, %v2905
  %2907 = vmatpush1.msra.mxu0 %v2906
  %2908 = vmatprep.subr.mxu0 0.0
  %v2909 = vand.u32 %v33, 4294901760
  %v2910 = vsub.f32 %v33, %v2909
  %2911 = vmatpush1.msra.mxu0 %v2910
  %2912 = vmatprep.subr.mxu0 0.0
  %v2913 = vand.u32 %v34, 4294901760
  %v2914 = vsub.f32 %v34, %v2913
  %2915 = vmatpush1.msra.mxu0 %v2914
  %2916 = vmatprep.subr.mxu0 0.0
  %v2917 = vand.u32 %v35, 4294901760
  %v2918 = vsub.f32 %v35, %v2917
  %2919 = vmatpush1.msra.mxu0 %v2918
  %2920 = vmatprep.subr.mxu0 0.0
  %v2921 = vand.u32 %v36, 4294901760
  %v2922 = vsub.f32 %v36, %v2921
  %2923 = vmatpush1.msra.mxu0 %v2922
  %2924 = vmatprep.subr.mxu0 0.0
  %v2925 = vand.u32 %v37, 4294901760
  %v2926 = vsub.f32 %v37, %v2925
  %2927 = vmatpush1.msra.mxu0 %v2926
  %2928 = vmatprep.subr.mxu0 0.0
  %v2929 = vand.u32 %v38, 4294901760
  %v2930 = vsub.f32 %v38, %v2929
  %2931 = vmatpush1.msra.mxu0 %v2930
  %2932 = vmatprep.subr.mxu0 0.0
  %v2933 = vand.u32 %v39, 4294901760
  %v2934 = vsub.f32 %v39, %v2933
  %2935 = vmatpush1.msra.mxu0 %v2934
  %2936 = vmatprep.subr.mxu0 0.0
  %v2937 = vand.u32 %v40, 4294901760
  %v2938 = vsub.f32 %v40, %v2937
  %2939 = vmatpush1.msra.mxu0 %v2938
  %2940 = vmatprep.subr.mxu0 0.0
  %2941 = vmatpush1.msra.mxu0 0.0
  %2942 = vmatprep.subr.mxu0 0.0
  %2943 = vmatpush1.msra.mxu0 0.0
  %2944 = vmatprep.subr.mxu0 0.0
  %2945 = vmatpush1.msra.mxu0 0.0
  %2946 = vmatprep.subr.mxu0 0.0
  %2947 = vmatpush1.msra.mxu0 0.0
  %2948 = vmatprep.subr.mxu0 0.0
  %2949 = vmatpush1.msra.mxu0 0.0
  %2950 = vmatprep.subr.mxu0 0.0
  %2951 = vmatpush1.msra.mxu0 0.0
  %2952 = vmatprep.subr.mxu0 0.0
  %2953 = vmatpush1.msra.mxu0 0.0
  %2954 = vmatprep.subr.mxu0 0.0
  %2955 = vmatpush1.msra.mxu0 0.0
  %2956 = vmatprep.subr.mxu0 0.0
  %2957 = vmatpush1.msra.mxu0 0.0
  %2958 = vmatprep.subr.mxu0 0.0
  %2959 = vmatpush1.msra.mxu0 0.0
  %2960 = vmatprep.subr.mxu0 0.0
  %2961 = vmatpush1.msra.mxu0 0.0
  %2962 = vmatprep.subr.mxu0 0.0
  %2963 = vmatpush1.msra.mxu0 0.0
  %2964 = vmatprep.subr.mxu0 0.0
  %2965 = vmatpush1.msra.mxu0 0.0
  %2966 = vmatprep.subr.mxu0 0.0
  %2967 = vmatpush1.msra.mxu0 0.0
  %2968 = vmatprep.subr.mxu0 0.0
  %2969 = vmatpush1.msra.mxu0 0.0
  %2970 = vmatprep.subr.mxu0 0.0
  %2971 = vmatpush1.msra.mxu0 0.0
  %2972 = vmatprep.mubr.f32.mxu0 0.0
  %v2973 = vand.u32 %v1988, 4294901760
  %v2974 = vsub.f32 %v1988, %v2973
  %2975 = vmatmul.mubr.f32.gmra.mrb[0].mxu0 %v2974
  %v2976 = vpop.f32.mrb[0].mxu0
  %v2977 = vadd.f32 %v2873, %v2976
  %v2978 = vpop.f32.mrb[0].mxu0
  %2979 = vdwg.mxu0
  %2980 = vmatprep.subr.mxu0 0.0
  %v2981 = vand.u32 %v25, 4294901760
  %2982 = vmatpush1.msra.mxu0 %v2981
  %2983 = vmatprep.subr.mxu0 0.0
  %v2984 = vand.u32 %v26, 4294901760
  %2985 = vmatpush1.msra.mxu0 %v2984
  %2986 = vmatprep.subr.mxu0 0.0
  %v2987 = vand.u32 %v27, 4294901760
  %2988 = vmatpush1.msra.mxu0 %v2987
  %2989 = vmatprep.subr.mxu0 0.0
  %v2990 = vand.u32 %v28, 4294901760
  %2991 = vmatpush1.msra.mxu0 %v2990
  %2992 = vmatprep.subr.mxu0 0.0
  %v2993 = vand.u32 %v29, 4294901760
  %2994 = vmatpush1.msra.mxu0 %v2993
  %2995 = vmatprep.subr.mxu0 0.0
  %v2996 = vand.u32 %v30, 4294901760
  %2997 = vmatpush1.msra.mxu0 %v2996
  %2998 = vmatprep.subr.mxu0 0.0
  %v2999 = vand.u32 %v31, 4294901760
  %3000 = vmatpush1.msra.mxu0 %v2999
  %3001 = vmatprep.subr.mxu0 0.0
  %v3002 = vand.u32 %v32, 4294901760
  %3003 = vmatpush1.msra.mxu0 %v3002
  %3004 = vmatprep.subr.mxu0 0.0
  %v3005 = vand.u32 %v33, 4294901760
  %3006 = vmatpush1.msra.mxu0 %v3005
  %3007 = vmatprep.subr.mxu0 0.0
  %v3008 = vand.u32 %v34, 4294901760
  %3009 = vmatpush1.msra.mxu0 %v3008
  %3010 = vmatprep.subr.mxu0 0.0
  %v3011 = vand.u32 %v35, 4294901760
  %3012 = vmatpush1.msra.mxu0 %v3011
  %3013 = vmatprep.subr.mxu0 0.0
  %v3014 = vand.u32 %v36, 4294901760
  %3015 = vmatpush1.msra.mxu0 %v3014
  %3016 = vmatprep.subr.mxu0 0.0
  %v3017 = vand.u32 %v37, 4294901760
  %3018 = vmatpush1.msra.mxu0 %v3017
  %3019 = vmatprep.subr.mxu0 0.0
  %v3020 = vand.u32 %v38, 4294901760
  %3021 = vmatpush1.msra.mxu0 %v3020
  %3022 = vmatprep.subr.mxu0 0.0
  %v3023 = vand.u32 %v39, 4294901760
  %3024 = vmatpush1.msra.mxu0 %v3023
  %3025 = vmatprep.subr.mxu0 0.0
  %v3026 = vand.u32 %v40, 4294901760
  %3027 = vmatpush1.msra.mxu0 %v3026
  %3028 = vmatprep.subr.mxu0 0.0
  %3029 = vmatpush1.msra.mxu0 0.0
  %3030 = vmatprep.subr.mxu0 0.0
  %3031 = vmatpush1.msra.mxu0 0.0
  %3032 = vmatprep.subr.mxu0 0.0
  %3033 = vmatpush1.msra.mxu0 0.0
  %3034 = vmatprep.subr.mxu0 0.0
  %3035 = vmatpush1.msra.mxu0 0.0
  %3036 = vmatprep.subr.mxu0 0.0
  %3037 = vmatpush1.msra.mxu0 0.0
  %3038 = vmatprep.subr.mxu0 0.0
  %3039 = vmatpush1.msra.mxu0 0.0
  %3040 = vmatprep.subr.mxu0 0.0
  %3041 = vmatpush1.msra.mxu0 0.0
  %3042 = vmatprep.subr.mxu0 0.0
  %3043 = vmatpush1.msra.mxu0 0.0
  %3044 = vmatprep.subr.mxu0 0.0
  %3045 = vmatpush1.msra.mxu0 0.0
  %3046 = vmatprep.subr.mxu0 0.0
  %3047 = vmatpush1.msra.mxu0 0.0
  %3048 = vmatprep.subr.mxu0 0.0
  %3049 = vmatpush1.msra.mxu0 0.0
  %3050 = vmatprep.subr.mxu0 0.0
  %3051 = vmatpush1.msra.mxu0 0.0
  %3052 = vmatprep.subr.mxu0 0.0
  %3053 = vmatpush1.msra.mxu0 0.0
  %3054 = vmatprep.subr.mxu0 0.0
  %3055 = vmatpush1.msra.mxu0 0.0
  %3056 = vmatprep.subr.mxu0 0.0
  %3057 = vmatpush1.msra.mxu0 0.0
  %3058 = vmatprep.subr.mxu0 0.0
  %3059 = vmatpush1.msra.mxu0 0.0
  %3060 = vmatprep.mubr.f32.mxu0 0.0
  %v3061 = vand.u32 %v1988, 4294901760
  %v3062 = vsub.f32 %v1988, %v3061
  %v3063 = vand.u32 %v3062, 4294901760
  %3064 = vmatmul.mubr.f32.gmra.mrb[0].mxu0 %v3063
  %v3065 = vpop.f32.mrb[0].mxu0
  %v3066 = vadd.f32 %v2977, %v3065
  %v3067 = vpop.f32.mrb[0].mxu0
  %3068 = vdwg.mxu0
  %3069 = vmatprep.subr.mxu0 0.0
  %v3070 = vand.u32 %v25, 4294901760
  %v3071 = vsub.f32 %v25, %v3070
  %v3072 = vand.u32 %v3071, 4294901760
  %3073 = vmatpush1.msra.mxu0 %v3072
  %3074 = vmatprep.subr.mxu0 0.0
  %v3075 = vand.u32 %v26, 4294901760
  %v3076 = vsub.f32 %v26, %v3075
  %v3077 = vand.u32 %v3076, 4294901760
  %3078 = vmatpush1.msra.mxu0 %v3077
  %3079 = vmatprep.subr.mxu0 0.0
  %v3080 = vand.u32 %v27, 4294901760
  %v3081 = vsub.f32 %v27, %v3080
  %v3082 = vand.u32 %v3081, 4294901760
  %3083 = vmatpush1.msra.mxu0 %v3082
  %3084 = vmatprep.subr.mxu0 0.0
  %v3085 = vand.u32 %v28, 4294901760
  %v3086 = vsub.f32 %v28, %v3085
  %v3087 = vand.u32 %v3086, 4294901760
  %3088 = vmatpush1.msra.mxu0 %v3087
  %3089 = vmatprep.subr.mxu0 0.0
  %v3090 = vand.u32 %v29, 4294901760
  %v3091 = vsub.f32 %v29, %v3090
  %v3092 = vand.u32 %v3091, 4294901760
  %3093 = vmatpush1.msra.mxu0 %v3092
  %3094 = vmatprep.subr.mxu0 0.0
  %v3095 = vand.u32 %v30, 4294901760
  %v3096 = vsub.f32 %v30, %v3095
  %v3097 = vand.u32 %v3096, 4294901760
  %3098 = vmatpush1.msra.mxu0 %v3097
  %3099 = vmatprep.subr.mxu0 0.0
  %v3100 = vand.u32 %v31, 4294901760
  %v3101 = vsub.f32 %v31, %v3100
  %v3102 = vand.u32 %v3101, 4294901760
  %3103 = vmatpush1.msra.mxu0 %v3102
  %3104 = vmatprep.subr.mxu0 0.0
  %v3105 = vand.u32 %v32, 4294901760
  %v3106 = vsub.f32 %v32, %v3105
  %v3107 = vand.u32 %v3106, 4294901760
  %3108 = vmatpush1.msra.mxu0 %v3107
  %3109 = vmatprep.subr.mxu0 0.0
  %v3110 = vand.u32 %v33, 4294901760
  %v3111 = vsub.f32 %v33, %v3110
  %v3112 = vand.u32 %v3111, 4294901760
  %3113 = vmatpush1.msra.mxu0 %v3112
  %3114 = vmatprep.subr.mxu0 0.0
  %v3115 = vand.u32 %v34, 4294901760
  %v3116 = vsub.f32 %v34, %v3115
  %v3117 = vand.u32 %v3116, 4294901760
  %3118 = vmatpush1.msra.mxu0 %v3117
  %3119 = vmatprep.subr.mxu0 0.0
  %v3120 = vand.u32 %v35, 4294901760
  %v3121 = vsub.f32 %v35, %v3120
  %v3122 = vand.u32 %v3121, 4294901760
  %3123 = vmatpush1.msra.mxu0 %v3122
  %3124 = vmatprep.subr.mxu0 0.0
  %v3125 = vand.u32 %v36, 4294901760
  %v3126 = vsub.f32 %v36, %v3125
  %v3127 = vand.u32 %v3126, 4294901760
  %3128 = vmatpush1.msra.mxu0 %v3127
  %3129 = vmatprep.subr.mxu0 0.0
  %v3130 = vand.u32 %v37, 4294901760
  %v3131 = vsub.f32 %v37, %v3130
  %v3132 = vand.u32 %v3131, 4294901760
  %3133 = vmatpush1.msra.mxu0 %v3132
  %3134 = vmatprep.subr.mxu0 0.0
  %v3135 = vand.u32 %v38, 4294901760
  %v3136 = vsub.f32 %v38, %v3135
  %v3137 = vand.u32 %v3136, 4294901760
  %3138 = vmatpush1.msra.mxu0 %v3137
  %3139 = vmatprep.subr.mxu0 0.0
  %v3140 = vand.u32 %v39, 4294901760
  %v3141 = vsub.f32 %v39, %v3140
  %v3142 = vand.u32 %v3141, 4294901760
  %3143 = vmatpush1.msra.mxu0 %v3142
  %3144 = vmatprep.subr.mxu0 0.0
  %v3145 = vand.u32 %v40, 4294901760
  %v3146 = vsub.f32 %v40, %v3145
  %v3147 = vand.u32 %v3146, 4294901760
  %3148 = vmatpush1.msra.mxu0 %v3147
  %3149 = vmatprep.subr.mxu0 0.0
  %3150 = vmatpush1.msra.mxu0 0.0
  %3151 = vmatprep.subr.mxu0 0.0
  %3152 = vmatpush1.msra.mxu0 0.0
  %3153 = vmatprep.subr.mxu0 0.0
  %3154 = vmatpush1.msra.mxu0 0.0
  %3155 = vmatprep.subr.mxu0 0.0
  %3156 = vmatpush1.msra.mxu0 0.0
  %3157 = vmatprep.subr.mxu0 0.0
  %3158 = vmatpush1.msra.mxu0 0.0
  %3159 = vmatprep.subr.mxu0 0.0
  %3160 = vmatpush1.msra.mxu0 0.0
  %3161 = vmatprep.subr.mxu0 0.0
  %3162 = vmatpush1.msra.mxu0 0.0
  %3163 = vmatprep.subr.mxu0 0.0
  %3164 = vmatpush1.msra.mxu0 0.0
  %3165 = vmatprep.subr.mxu0 0.0
  %3166 = vmatpush1.msra.mxu0 0.0
  %3167 = vmatprep.subr.mxu0 0.0
  %3168 = vmatpush1.msra.mxu0 0.0
  %3169 = vmatprep.subr.mxu0 0.0
  %3170 = vmatpush1.msra.mxu0 0.0
  %3171 = vmatprep.subr.mxu0 0.0
  %3172 = vmatpush1.msra.mxu0 0.0
  %3173 = vmatprep.subr.mxu0 0.0
  %3174 = vmatpush1.msra.mxu0 0.0
  %3175 = vmatprep.subr.mxu0 0.0
  %3176 = vmatpush1.msra.mxu0 0.0
  %3177 = vmatprep.subr.mxu0 0.0
  %3178 = vmatpush1.msra.mxu0 0.0
  %3179 = vmatprep.subr.mxu0 0.0
  %3180 = vmatpush1.msra.mxu0 0.0
  %3181 = vmatprep.mubr.f32.mxu0 0.0
  %v3182 = vand.u32 %v1988, 4294901760
  %3183 = vmatmul.mubr.f32.gmra.mrb[0].mxu0 %v3182
  %v3184 = vpop.f32.mrb[0].mxu0
  %v3185 = vadd.f32 %v3066, %v3184
  %v3186 = vpop.f32.mrb[0].mxu0
  %3187 = vdwg.mxu0
  %3188 = vmatprep.subr.mxu0 0.0
  %v3189 = vand.u32 %v25, 4294901760
  %3190 = vmatpush1.msra.mxu0 %v3189
  %3191 = vmatprep.subr.mxu0 0.0
  %v3192 = vand.u32 %v26, 4294901760
  %3193 = vmatpush1.msra.mxu0 %v3192
  %3194 = vmatprep.subr.mxu0 0.0
  %v3195 = vand.u32 %v27, 4294901760
  %3196 = vmatpush1.msra.mxu0 %v3195
  %3197 = vmatprep.subr.mxu0 0.0
  %v3198 = vand.u32 %v28, 4294901760
  %3199 = vmatpush1.msra.mxu0 %v3198
  %3200 = vmatprep.subr.mxu0 0.0
  %v3201 = vand.u32 %v29, 4294901760
  %3202 = vmatpush1.msra.mxu0 %v3201
  %3203 = vmatprep.subr.mxu0 0.0
  %v3204 = vand.u32 %v30, 4294901760
  %3205 = vmatpush1.msra.mxu0 %v3204
  %3206 = vmatprep.subr.mxu0 0.0
  %v3207 = vand.u32 %v31, 4294901760
  %3208 = vmatpush1.msra.mxu0 %v3207
  %3209 = vmatprep.subr.mxu0 0.0
  %v3210 = vand.u32 %v32, 4294901760
  %3211 = vmatpush1.msra.mxu0 %v3210
  %3212 = vmatprep.subr.mxu0 0.0
  %v3213 = vand.u32 %v33, 4294901760
  %3214 = vmatpush1.msra.mxu0 %v3213
  %3215 = vmatprep.subr.mxu0 0.0
  %v3216 = vand.u32 %v34, 4294901760
  %3217 = vmatpush1.msra.mxu0 %v3216
  %3218 = vmatprep.subr.mxu0 0.0
  %v3219 = vand.u32 %v35, 4294901760
  %3220 = vmatpush1.msra.mxu0 %v3219
  %3221 = vmatprep.subr.mxu0 0.0
  %v3222 = vand.u32 %v36, 4294901760
  %3223 = vmatpush1.msra.mxu0 %v3222
  %3224 = vmatprep.subr.mxu0 0.0
  %v3225 = vand.u32 %v37, 4294901760
  %3226 = vmatpush1.msra.mxu0 %v3225
  %3227 = vmatprep.subr.mxu0 0.0
  %v3228 = vand.u32 %v38, 4294901760
  %3229 = vmatpush1.msra.mxu0 %v3228
  %3230 = vmatprep.subr.mxu0 0.0
  %v3231 = vand.u32 %v39, 4294901760
  %3232 = vmatpush1.msra.mxu0 %v3231
  %3233 = vmatprep.subr.mxu0 0.0
  %v3234 = vand.u32 %v40, 4294901760
  %3235 = vmatpush1.msra.mxu0 %v3234
  %3236 = vmatprep.subr.mxu0 0.0
  %3237 = vmatpush1.msra.mxu0 0.0
  %3238 = vmatprep.subr.mxu0 0.0
  %3239 = vmatpush1.msra.mxu0 0.0
  %3240 = vmatprep.subr.mxu0 0.0
  %3241 = vmatpush1.msra.mxu0 0.0
  %3242 = vmatprep.subr.mxu0 0.0
  %3243 = vmatpush1.msra.mxu0 0.0
  %3244 = vmatprep.subr.mxu0 0.0
  %3245 = vmatpush1.msra.mxu0 0.0
  %3246 = vmatprep.subr.mxu0 0.0
  %3247 = vmatpush1.msra.mxu0 0.0
  %3248 = vmatprep.subr.mxu0 0.0
  %3249 = vmatpush1.msra.mxu0 0.0
  %3250 = vmatprep.subr.mxu0 0.0
  %3251 = vmatpush1.msra.mxu0 0.0
  %3252 = vmatprep.subr.mxu0 0.0
  %3253 = vmatpush1.msra.mxu0 0.0
  %3254 = vmatprep.subr.mxu0 0.0
  %3255 = vmatpush1.msra.mxu0 0.0
  %3256 = vmatprep.subr.mxu0 0.0
  %3257 = vmatpush1.msra.mxu0 0.0
  %3258 = vmatprep.subr.mxu0 0.0
  %3259 = vmatpush1.msra.mxu0 0.0
  %3260 = vmatprep.subr.mxu0 0.0
  %3261 = vmatpush1.msra.mxu0 0.0
  %3262 = vmatprep.subr.mxu0 0.0
  %3263 = vmatpush1.msra.mxu0 0.0
  %3264 = vmatprep.subr.mxu0 0.0
  %3265 = vmatpush1.msra.mxu0 0.0
  %3266 = vmatprep.subr.mxu0 0.0
  %3267 = vmatpush1.msra.mxu0 0.0
  %3268 = vmatprep.mubr.f32.mxu0 0.0
  %v3269 = vand.u32 %v1988, 4294901760
  %3270 = vmatmul.mubr.f32.gmra.mrb[0].mxu0 %v3269
  %v3271 = vpop.f32.mrb[0].mxu0
  %v3272 = vadd.f32 %v3185, %v3271
  %v3273 = vpop.f32.mrb[0].mxu0
  %3274 = vdwg.mxu0
  %v3275 = vadd.f32 %v2633, %v3272
  %v3276 = vtanh.pop %v3275
  %3277 = vmatprep.subr.mxu0 0.0
  %v3278 = vand.u32 %v41, 4294901760
  %3279 = vmatpush1.msra.mxu0 %v3278
  %3280 = vmatprep.subr.mxu0 0.0
  %v3281 = vand.u32 %v42, 4294901760
  %3282 = vmatpush1.msra.mxu0 %v3281
  %3283 = vmatprep.subr.mxu0 0.0
  %v3284 = vand.u32 %v43, 4294901760
  %3285 = vmatpush1.msra.mxu0 %v3284
  %3286 = vmatprep.subr.mxu0 0.0
  %v3287 = vand.u32 %v44, 4294901760
  %3288 = vmatpush1.msra.mxu0 %v3287
  %3289 = vmatprep.subr.mxu0 0.0
  %v3290 = vand.u32 %v45, 4294901760
  %3291 = vmatpush1.msra.mxu0 %v3290
  %3292 = vmatprep.subr.mxu0 0.0
  %v3293 = vand.u32 %v46, 4294901760
  %3294 = vmatpush1.msra.mxu0 %v3293
  %3295 = vmatprep.subr.mxu0 0.0
  %v3296 = vand.u32 %v47, 4294901760
  %3297 = vmatpush1.msra.mxu0 %v3296
  %3298 = vmatprep.subr.mxu0 0.0
  %v3299 = vand.u32 %v48, 4294901760
  %3300 = vmatpush1.msra.mxu0 %v3299
  %3301 = vmatprep.subr.mxu0 0.0
  %v3302 = vand.u32 %v49, 4294901760
  %3303 = vmatpush1.msra.mxu0 %v3302
  %3304 = vmatprep.subr.mxu0 0.0
  %v3305 = vand.u32 %v50, 4294901760
  %3306 = vmatpush1.msra.mxu0 %v3305
  %3307 = vmatprep.subr.mxu0 0.0
  %v3308 = vand.u32 %v51, 4294901760
  %3309 = vmatpush1.msra.mxu0 %v3308
  %3310 = vmatprep.subr.mxu0 0.0
  %v3311 = vand.u32 %v52, 4294901760
  %3312 = vmatpush1.msra.mxu0 %v3311
  %3313 = vmatprep.subr.mxu0 0.0
  %v3314 = vand.u32 %v53, 4294901760
  %3315 = vmatpush1.msra.mxu0 %v3314
  %3316 = vmatprep.subr.mxu0 0.0
  %v3317 = vand.u32 %v54, 4294901760
  %3318 = vmatpush1.msra.mxu0 %v3317
  %3319 = vmatprep.subr.mxu0 0.0
  %v3320 = vand.u32 %v55, 4294901760
  %3321 = vmatpush1.msra.mxu0 %v3320
  %3322 = vmatprep.subr.mxu0 0.0
  %v3323 = vand.u32 %v56, 4294901760
  %3324 = vmatpush1.msra.mxu0 %v3323
  %3325 = vmatprep.subr.mxu0 0.0
  %3326 = vmatpush1.msra.mxu0 0.0
  %3327 = vmatprep.subr.mxu0 0.0
  %3328 = vmatpush1.msra.mxu0 0.0
  %3329 = vmatprep.subr.mxu0 0.0
  %3330 = vmatpush1.msra.mxu0 0.0
  %3331 = vmatprep.subr.mxu0 0.0
  %3332 = vmatpush1.msra.mxu0 0.0
  %3333 = vmatprep.subr.mxu0 0.0
  %3334 = vmatpush1.msra.mxu0 0.0
  %3335 = vmatprep.subr.mxu0 0.0
  %3336 = vmatpush1.msra.mxu0 0.0
  %3337 = vmatprep.subr.mxu0 0.0
  %3338 = vmatpush1.msra.mxu0 0.0
  %3339 = vmatprep.subr.mxu0 0.0
  %3340 = vmatpush1.msra.mxu0 0.0
  %3341 = vmatprep.subr.mxu0 0.0
  %3342 = vmatpush1.msra.mxu0 0.0
  %3343 = vmatprep.subr.mxu0 0.0
  %3344 = vmatpush1.msra.mxu0 0.0
  %3345 = vmatprep.subr.mxu0 0.0
  %3346 = vmatpush1.msra.mxu0 0.0
  %3347 = vmatprep.subr.mxu0 0.0
  %3348 = vmatpush1.msra.mxu0 0.0
  %3349 = vmatprep.subr.mxu0 0.0
  %3350 = vmatpush1.msra.mxu0 0.0
  %3351 = vmatprep.subr.mxu0 0.0
  %3352 = vmatpush1.msra.mxu0 0.0
  %3353 = vmatprep.subr.mxu0 0.0
  %3354 = vmatpush1.msra.mxu0 0.0
  %3355 = vmatprep.subr.mxu0 0.0
  %3356 = vmatpush1.msra.mxu0 0.0
  %3357 = vmatprep.mubr.f32.mxu0 0.0
  %v3358 = vand.u32 %v3276, 4294901760
  %v3359 = vsub.f32 %v3276, %v3358
  %v3360 = vand.u32 %v3359, 4294901760
  %v3361 = vsub.f32 %v3359, %v3360
  %v3362 = vand.u32 %v3361, 4294901760
  %3363 = vmatmul.mubr.f32.gmra.mrb[0].mxu0 %v3362
  %v3364 = vpop.f32.mrb[0].mxu0
  %v3365 = vadd.f32 0.0, %v3364
  %v3366 = vpop.f32.mrb[0].mxu0
  %3367 = vdwg.mxu0
  %3368 = vmatprep.subr.mxu0 0.0
  %v3369 = vand.u32 %v41, 4294901760
  %v3370 = vsub.f32 %v41, %v3369
  %v3371 = vand.u32 %v3370, 4294901760
  %v3372 = vsub.f32 %v3370, %v3371
  %v3373 = vand.u32 %v3372, 4294901760
  %3374 = vmatpush1.msra.mxu0 %v3373
  %3375 = vmatprep.subr.mxu0 0.0
  %v3376 = vand.u32 %v42, 4294901760
  %v3377 = vsub.f32 %v42, %v3376
  %v3378 = vand.u32 %v3377, 4294901760
  %v3379 = vsub.f32 %v3377, %v3378
  %v3380 = vand.u32 %v3379, 4294901760
  %3381 = vmatpush1.msra.mxu0 %v3380
  %3382 = vmatprep.subr.mxu0 0.0
  %v3383 = vand.u32 %v43, 4294901760
  %v3384 = vsub.f32 %v43, %v3383
  %v3385 = vand.u32 %v3384, 4294901760
  %v3386 = vsub.f32 %v3384, %v3385
  %v3387 = vand.u32 %v3386, 4294901760
  %3388 = vmatpush1.msra.mxu0 %v3387
  %3389 = vmatprep.subr.mxu0 0.0
  %v3390 = vand.u32 %v44, 4294901760
  %v3391 = vsub.f32 %v44, %v3390
  %v3392 = vand.u32 %v3391, 4294901760
  %v3393 = vsub.f32 %v3391, %v3392
  %v3394 = vand.u32 %v3393, 4294901760
  %3395 = vmatpush1.msra.mxu0 %v3394
  %3396 = vmatprep.subr.mxu0 0.0
  %v3397 = vand.u32 %v45, 4294901760
  %v3398 = vsub.f32 %v45, %v3397
  %v3399 = vand.u32 %v3398, 4294901760
  %v3400 = vsub.f32 %v3398, %v3399
  %v3401 = vand.u32 %v3400, 4294901760
  %3402 = vmatpush1.msra.mxu0 %v3401
  %3403 = vmatprep.subr.mxu0 0.0
  %v3404 = vand.u32 %v46, 4294901760
  %v3405 = vsub.f32 %v46, %v3404
  %v3406 = vand.u32 %v3405, 4294901760
  %v3407 = vsub.f32 %v3405, %v3406
  %v3408 = vand.u32 %v3407, 4294901760
  %3409 = vmatpush1.msra.mxu0 %v3408
  %3410 = vmatprep.subr.mxu0 0.0
  %v3411 = vand.u32 %v47, 4294901760
  %v3412 = vsub.f32 %v47, %v3411
  %v3413 = vand.u32 %v3412, 4294901760
  %v3414 = vsub.f32 %v3412, %v3413
  %v3415 = vand.u32 %v3414, 4294901760
  %3416 = vmatpush1.msra.mxu0 %v3415
  %3417 = vmatprep.subr.mxu0 0.0
  %v3418 = vand.u32 %v48, 4294901760
  %v3419 = vsub.f32 %v48, %v3418
  %v3420 = vand.u32 %v3419, 4294901760
  %v3421 = vsub.f32 %v3419, %v3420
  %v3422 = vand.u32 %v3421, 4294901760
  %3423 = vmatpush1.msra.mxu0 %v3422
  %3424 = vmatprep.subr.mxu0 0.0
  %v3425 = vand.u32 %v49, 4294901760
  %v3426 = vsub.f32 %v49, %v3425
  %v3427 = vand.u32 %v3426, 4294901760
  %v3428 = vsub.f32 %v3426, %v3427
  %v3429 = vand.u32 %v3428, 4294901760
  %3430 = vmatpush1.msra.mxu0 %v3429
  %3431 = vmatprep.subr.mxu0 0.0
  %v3432 = vand.u32 %v50, 4294901760
  %v3433 = vsub.f32 %v50, %v3432
  %v3434 = vand.u32 %v3433, 4294901760
  %v3435 = vsub.f32 %v3433, %v3434
  %v3436 = vand.u32 %v3435, 4294901760
  %3437 = vmatpush1.msra.mxu0 %v3436
  %3438 = vmatprep.subr.mxu0 0.0
  %v3439 = vand.u32 %v51, 4294901760
  %v3440 = vsub.f32 %v51, %v3439
  %v3441 = vand.u32 %v3440, 4294901760
  %v3442 = vsub.f32 %v3440, %v3441
  %v3443 = vand.u32 %v3442, 4294901760
  %3444 = vmatpush1.msra.mxu0 %v3443
  %3445 = vmatprep.subr.mxu0 0.0
  %v3446 = vand.u32 %v52, 4294901760
  %v3447 = vsub.f32 %v52, %v3446
  %v3448 = vand.u32 %v3447, 4294901760
  %v3449 = vsub.f32 %v3447, %v3448
  %v3450 = vand.u32 %v3449, 4294901760
  %3451 = vmatpush1.msra.mxu0 %v3450
  %3452 = vmatprep.subr.mxu0 0.0
  %v3453 = vand.u32 %v53, 4294901760
  %v3454 = vsub.f32 %v53, %v3453
  %v3455 = vand.u32 %v3454, 4294901760
  %v3456 = vsub.f32 %v3454, %v3455
  %v3457 = vand.u32 %v3456, 4294901760
  %3458 = vmatpush1.msra.mxu0 %v3457
  %3459 = vmatprep.subr.mxu0 0.0
  %v3460 = vand.u32 %v54, 4294901760
  %v3461 = vsub.f32 %v54, %v3460
  %v3462 = vand.u32 %v3461, 4294901760
  %v3463 = vsub.f32 %v3461, %v3462
  %v3464 = vand.u32 %v3463, 4294901760
  %3465 = vmatpush1.msra.mxu0 %v3464
  %3466 = vmatprep.subr.mxu0 0.0
  %v3467 = vand.u32 %v55, 4294901760
  %v3468 = vsub.f32 %v55, %v3467
  %v3469 = vand.u32 %v3468, 4294901760
  %v3470 = vsub.f32 %v3468, %v3469
  %v3471 = vand.u32 %v3470, 4294901760
  %3472 = vmatpush1.msra.mxu0 %v3471
  %3473 = vmatprep.subr.mxu0 0.0
  %v3474 = vand.u32 %v56, 4294901760
  %v3475 = vsub.f32 %v56, %v3474
  %v3476 = vand.u32 %v3475, 4294901760
  %v3477 = vsub.f32 %v3475, %v3476
  %v3478 = vand.u32 %v3477, 4294901760
  %3479 = vmatpush1.msra.mxu0 %v3478
  %3480 = vmatprep.subr.mxu0 0.0
  %3481 = vmatpush1.msra.mxu0 0.0
  %3482 = vmatprep.subr.mxu0 0.0
  %3483 = vmatpush1.msra.mxu0 0.0
  %3484 = vmatprep.subr.mxu0 0.0
  %3485 = vmatpush1.msra.mxu0 0.0
  %3486 = vmatprep.subr.mxu0 0.0
  %3487 = vmatpush1.msra.mxu0 0.0
  %3488 = vmatprep.subr.mxu0 0.0
  %3489 = vmatpush1.msra.mxu0 0.0
  %3490 = vmatprep.subr.mxu0 0.0
  %3491 = vmatpush1.msra.mxu0 0.0
  %3492 = vmatprep.subr.mxu0 0.0
  %3493 = vmatpush1.msra.mxu0 0.0
  %3494 = vmatprep.subr.mxu0 0.0
  %3495 = vmatpush1.msra.mxu0 0.0
  %3496 = vmatprep.subr.mxu0 0.0
  %3497 = vmatpush1.msra.mxu0 0.0
  %3498 = vmatprep.subr.mxu0 0.0
  %3499 = vmatpush1.msra.mxu0 0.0
  %3500 = vmatprep.subr.mxu0 0.0
  %3501 = vmatpush1.msra.mxu0 0.0
  %3502 = vmatprep.subr.mxu0 0.0
  %3503 = vmatpush1.msra.mxu0 0.0
  %3504 = vmatprep.subr.mxu0 0.0
  %3505 = vmatpush1.msra.mxu0 0.0
  %3506 = vmatprep.subr.mxu0 0.0
  %3507 = vmatpush1.msra.mxu0 0.0
  %3508 = vmatprep.subr.mxu0 0.0
  %3509 = vmatpush1.msra.mxu0 0.0
  %3510 = vmatprep.subr.mxu0 0.0
  %3511 = vmatpush1.msra.mxu0 0.0
  %3512 = vmatprep.mubr.f32.mxu0 0.0
  %v3513 = vand.u32 %v3276, 4294901760
  %3514 = vmatmul.mubr.f32.gmra.mrb[0].mxu0 %v3513
  %v3515 = vpop.f32.mrb[0].mxu0
  %v3516 = vadd.f32 %v3365, %v3515
  %v3517 = vpop.f32.mrb[0].mxu0
  %3518 = vdwg.mxu0
  %3519 = vmatprep.subr.mxu0 0.0
  %v3520 = vand.u32 %v41, 4294901760
  %v3521 = vsub.f32 %v41, %v3520
  %3522 = vmatpush1.msra.mxu0 %v3521
  %3523 = vmatprep.subr.mxu0 0.0
  %v3524 = vand.u32 %v42, 4294901760
  %v3525 = vsub.f32 %v42, %v3524
  %3526 = vmatpush1.msra.mxu0 %v3525
  %3527 = vmatprep.subr.mxu0 0.0
  %v3528 = vand.u32 %v43, 4294901760
  %v3529 = vsub.f32 %v43, %v3528
  %3530 = vmatpush1.msra.mxu0 %v3529
  %3531 = vmatprep.subr.mxu0 0.0
  %v3532 = vand.u32 %v44, 4294901760
  %v3533 = vsub.f32 %v44, %v3532
  %3534 = vmatpush1.msra.mxu0 %v3533
  %3535 = vmatprep.subr.mxu0 0.0
  %v3536 = vand.u32 %v45, 4294901760
  %v3537 = vsub.f32 %v45, %v3536
  %3538 = vmatpush1.msra.mxu0 %v3537
  %3539 = vmatprep.subr.mxu0 0.0
  %v3540 = vand.u32 %v46, 4294901760
  %v3541 = vsub.f32 %v46, %v3540
  %3542 = vmatpush1.msra.mxu0 %v3541
  %3543 = vmatprep.subr.mxu0 0.0
  %v3544 = vand.u32 %v47, 4294901760
  %v3545 = vsub.f32 %v47, %v3544
  %3546 = vmatpush1.msra.mxu0 %v3545
  %3547 = vmatprep.subr.mxu0 0.0
  %v3548 = vand.u32 %v48, 4294901760
  %v3549 = vsub.f32 %v48, %v3548
  %3550 = vmatpush1.msra.mxu0 %v3549
  %3551 = vmatprep.subr.mxu0 0.0
  %v3552 = vand.u32 %v49, 4294901760
  %v3553 = vsub.f32 %v49, %v3552
  %3554 = vmatpush1.msra.mxu0 %v3553
  %3555 = vmatprep.subr.mxu0 0.0
  %v3556 = vand.u32 %v50, 4294901760
  %v3557 = vsub.f32 %v50, %v3556
  %3558 = vmatpush1.msra.mxu0 %v3557
  %3559 = vmatprep.subr.mxu0 0.0
  %v3560 = vand.u32 %v51, 4294901760
  %v3561 = vsub.f32 %v51, %v3560
  %3562 = vmatpush1.msra.mxu0 %v3561
  %3563 = vmatprep.subr.mxu0 0.0
  %v3564 = vand.u32 %v52, 4294901760
  %v3565 = vsub.f32 %v52, %v3564
  %3566 = vmatpush1.msra.mxu0 %v3565
  %3567 = vmatprep.subr.mxu0 0.0
  %v3568 = vand.u32 %v53, 4294901760
  %v3569 = vsub.f32 %v53, %v3568
  %3570 = vmatpush1.msra.mxu0 %v3569
  %3571 = vmatprep.subr.mxu0 0.0
  %v3572 = vand.u32 %v54, 4294901760
  %v3573 = vsub.f32 %v54, %v3572
  %3574 = vmatpush1.msra.mxu0 %v3573
  %3575 = vmatprep.subr.mxu0 0.0
  %v3576 = vand.u32 %v55, 4294901760
  %v3577 = vsub.f32 %v55, %v3576
  %3578 = vmatpush1.msra.mxu0 %v3577
  %3579 = vmatprep.subr.mxu0 0.0
  %v3580 = vand.u32 %v56, 4294901760
  %v3581 = vsub.f32 %v56, %v3580
  %3582 = vmatpush1.msra.mxu0 %v3581
  %3583 = vmatprep.subr.mxu0 0.0
  %3584 = vmatpush1.msra.mxu0 0.0
  %3585 = vmatprep.subr.mxu0 0.0
  %3586 = vmatpush1.msra.mxu0 0.0
  %3587 = vmatprep.subr.mxu0 0.0
  %3588 = vmatpush1.msra.mxu0 0.0
  %3589 = vmatprep.subr.mxu0 0.0
  %3590 = vmatpush1.msra.mxu0 0.0
  %3591 = vmatprep.subr.mxu0 0.0
  %3592 = vmatpush1.msra.mxu0 0.0
  %3593 = vmatprep.subr.mxu0 0.0
  %3594 = vmatpush1.msra.mxu0 0.0
  %3595 = vmatprep.subr.mxu0 0.0
  %3596 = vmatpush1.msra.mxu0 0.0
  %3597 = vmatprep.subr.mxu0 0.0
  %3598 = vmatpush1.msra.mxu0 0.0
  %3599 = vmatprep.subr.mxu0 0.0
  %3600 = vmatpush1.msra.mxu0 0.0
  %3601 = vmatprep.subr.mxu0 0.0
  %3602 = vmatpush1.msra.mxu0 0.0
  %3603 = vmatprep.subr.mxu0 0.0
  %3604 = vmatpush1.msra.mxu0 0.0
  %3605 = vmatprep.subr.mxu0 0.0
  %3606 = vmatpush1.msra.mxu0 0.0
  %3607 = vmatprep.subr.mxu0 0.0
  %3608 = vmatpush1.msra.mxu0 0.0
  %3609 = vmatprep.subr.mxu0 0.0
  %3610 = vmatpush1.msra.mxu0 0.0
  %3611 = vmatprep.subr.mxu0 0.0
  %3612 = vmatpush1.msra.mxu0 0.0
  %3613 = vmatprep.subr.mxu0 0.0
  %3614 = vmatpush1.msra.mxu0 0.0
  %3615 = vmatprep.mubr.f32.mxu0 0.0
  %v3616 = vand.u32 %v3276, 4294901760
  %v3617 = vsub.f32 %v3276, %v3616
  %3618 = vmatmul.mubr.f32.gmra.mrb[0].mxu0 %v3617
  %v3619 = vpop.f32.mrb[0].mxu0
  %v3620 = vadd.f32 %v3516, %v3619
  %v3621 = vpop.f32.mrb[0].mxu0
  %3622 = vdwg.mxu0
  %3623 = vmatprep.subr.mxu0 0.0
  %v3624 = vand.u32 %v41, 4294901760
  %3625 = vmatpush1.msra.mxu0 %v3624
  %3626 = vmatprep.subr.mxu0 0.0
  %v3627 = vand.u32 %v42, 4294901760
  %3628 = vmatpush1.msra.mxu0 %v3627
  %3629 = vmatprep.subr.mxu0 0.0
  %v3630 = vand.u32 %v43, 4294901760
  %3631 = vmatpush1.msra.mxu0 %v3630
  %3632 = vmatprep.subr.mxu0 0.0
  %v3633 = vand.u32 %v44, 4294901760
  %3634 = vmatpush1.msra.mxu0 %v3633
  %3635 = vmatprep.subr.mxu0 0.0
  %v3636 = vand.u32 %v45, 4294901760
  %3637 = vmatpush1.msra.mxu0 %v3636
  %3638 = vmatprep.subr.mxu0 0.0
  %v3639 = vand.u32 %v46, 4294901760
  %3640 = vmatpush1.msra.mxu0 %v3639
  %3641 = vmatprep.subr.mxu0 0.0
  %v3642 = vand.u32 %v47, 4294901760
  %3643 = vmatpush1.msra.mxu0 %v3642
  %3644 = vmatprep.subr.mxu0 0.0
  %v3645 = vand.u32 %v48, 4294901760
  %3646 = vmatpush1.msra.mxu0 %v3645
  %3647 = vmatprep.subr.mxu0 0.0
  %v3648 = vand.u32 %v49, 4294901760
  %3649 = vmatpush1.msra.mxu0 %v3648
  %3650 = vmatprep.subr.mxu0 0.0
  %v3651 = vand.u32 %v50, 4294901760
  %3652 = vmatpush1.msra.mxu0 %v3651
  %3653 = vmatprep.subr.mxu0 0.0
  %v3654 = vand.u32 %v51, 4294901760
  %3655 = vmatpush1.msra.mxu0 %v3654
  %3656 = vmatprep.subr.mxu0 0.0
  %v3657 = vand.u32 %v52, 4294901760
  %3658 = vmatpush1.msra.mxu0 %v3657
  %3659 = vmatprep.subr.mxu0 0.0
  %v3660 = vand.u32 %v53, 4294901760
  %3661 = vmatpush1.msra.mxu0 %v3660
  %3662 = vmatprep.subr.mxu0 0.0
  %v3663 = vand.u32 %v54, 4294901760
  %3664 = vmatpush1.msra.mxu0 %v3663
  %3665 = vmatprep.subr.mxu0 0.0
  %v3666 = vand.u32 %v55, 4294901760
  %3667 = vmatpush1.msra.mxu0 %v3666
  %3668 = vmatprep.subr.mxu0 0.0
  %v3669 = vand.u32 %v56, 4294901760
  %3670 = vmatpush1.msra.mxu0 %v3669
  %3671 = vmatprep.subr.mxu0 0.0
  %3672 = vmatpush1.msra.mxu0 0.0
  %3673 = vmatprep.subr.mxu0 0.0
  %3674 = vmatpush1.msra.mxu0 0.0
  %3675 = vmatprep.subr.mxu0 0.0
  %3676 = vmatpush1.msra.mxu0 0.0
  %3677 = vmatprep.subr.mxu0 0.0
  %3678 = vmatpush1.msra.mxu0 0.0
  %3679 = vmatprep.subr.mxu0 0.0
  %3680 = vmatpush1.msra.mxu0 0.0
  %3681 = vmatprep.subr.mxu0 0.0
  %3682 = vmatpush1.msra.mxu0 0.0
  %3683 = vmatprep.subr.mxu0 0.0
  %3684 = vmatpush1.msra.mxu0 0.0
  %3685 = vmatprep.subr.mxu0 0.0
  %3686 = vmatpush1.msra.mxu0 0.0
  %3687 = vmatprep.subr.mxu0 0.0
  %3688 = vmatpush1.msra.mxu0 0.0
  %3689 = vmatprep.subr.mxu0 0.0
  %3690 = vmatpush1.msra.mxu0 0.0
  %3691 = vmatprep.subr.mxu0 0.0
  %3692 = vmatpush1.msra.mxu0 0.0
  %3693 = vmatprep.subr.mxu0 0.0
  %3694 = vmatpush1.msra.mxu0 0.0
  %3695 = vmatprep.subr.mxu0 0.0
  %3696 = vmatpush1.msra.mxu0 0.0
  %3697 = vmatprep.subr.mxu0 0.0
  %3698 = vmatpush1.msra.mxu0 0.0
  %3699 = vmatprep.subr.mxu0 0.0
  %3700 = vmatpush1.msra.mxu0 0.0
  %3701 = vmatprep.subr.mxu0 0.0
  %3702 = vmatpush1.msra.mxu0 0.0
  %3703 = vmatprep.mubr.f32.mxu0 0.0
  %v3704 = vand.u32 %v3276, 4294901760
  %v3705 = vsub.f32 %v3276, %v3704
  %v3706 = vand.u32 %v3705, 4294901760
  %3707 = vmatmul.mubr.f32.gmra.mrb[0].mxu0 %v3706
  %v3708 = vpop.f32.mrb[0].mxu0
  %v3709 = vadd.f32 %v3620, %v3708
  %v3710 = vpop.f32.mrb[0].mxu0
  %3711 = vdwg.mxu0
  %3712 = vmatprep.subr.mxu0 0.0
  %v3713 = vand.u32 %v41, 4294901760
  %v3714 = vsub.f32 %v41, %v3713
  %v3715 = vand.u32 %v3714, 4294901760
  %3716 = vmatpush1.msra.mxu0 %v3715
  %3717 = vmatprep.subr.mxu0 0.0
  %v3718 = vand.u32 %v42, 4294901760
  %v3719 = vsub.f32 %v42, %v3718
  %v3720 = vand.u32 %v3719, 4294901760
  %3721 = vmatpush1.msra.mxu0 %v3720
  %3722 = vmatprep.subr.mxu0 0.0
  %v3723 = vand.u32 %v43, 4294901760
  %v3724 = vsub.f32 %v43, %v3723
  %v3725 = vand.u32 %v3724, 4294901760
  %3726 = vmatpush1.msra.mxu0 %v3725
  %3727 = vmatprep.subr.mxu0 0.0
  %v3728 = vand.u32 %v44, 4294901760
  %v3729 = vsub.f32 %v44, %v3728
  %v3730 = vand.u32 %v3729, 4294901760
  %3731 = vmatpush1.msra.mxu0 %v3730
  %3732 = vmatprep.subr.mxu0 0.0
  %v3733 = vand.u32 %v45, 4294901760
  %v3734 = vsub.f32 %v45, %v3733
  %v3735 = vand.u32 %v3734, 4294901760
  %3736 = vmatpush1.msra.mxu0 %v3735
  %3737 = vmatprep.subr.mxu0 0.0
  %v3738 = vand.u32 %v46, 4294901760
  %v3739 = vsub.f32 %v46, %v3738
  %v3740 = vand.u32 %v3739, 4294901760
  %3741 = vmatpush1.msra.mxu0 %v3740
  %3742 = vmatprep.subr.mxu0 0.0
  %v3743 = vand.u32 %v47, 4294901760
  %v3744 = vsub.f32 %v47, %v3743
  %v3745 = vand.u32 %v3744, 4294901760
  %3746 = vmatpush1.msra.mxu0 %v3745
  %3747 = vmatprep.subr.mxu0 0.0
  %v3748 = vand.u32 %v48, 4294901760
  %v3749 = vsub.f32 %v48, %v3748
  %v3750 = vand.u32 %v3749, 4294901760
  %3751 = vmatpush1.msra.mxu0 %v3750
  %3752 = vmatprep.subr.mxu0 0.0
  %v3753 = vand.u32 %v49, 4294901760
  %v3754 = vsub.f32 %v49, %v3753
  %v3755 = vand.u32 %v3754, 4294901760
  %3756 = vmatpush1.msra.mxu0 %v3755
  %3757 = vmatprep.subr.mxu0 0.0
  %v3758 = vand.u32 %v50, 4294901760
  %v3759 = vsub.f32 %v50, %v3758
  %v3760 = vand.u32 %v3759, 4294901760
  %3761 = vmatpush1.msra.mxu0 %v3760
  %3762 = vmatprep.subr.mxu0 0.0
  %v3763 = vand.u32 %v51, 4294901760
  %v3764 = vsub.f32 %v51, %v3763
  %v3765 = vand.u32 %v3764, 4294901760
  %3766 = vmatpush1.msra.mxu0 %v3765
  %3767 = vmatprep.subr.mxu0 0.0
  %v3768 = vand.u32 %v52, 4294901760
  %v3769 = vsub.f32 %v52, %v3768
  %v3770 = vand.u32 %v3769, 4294901760
  %3771 = vmatpush1.msra.mxu0 %v3770
  %3772 = vmatprep.subr.mxu0 0.0
  %v3773 = vand.u32 %v53, 4294901760
  %v3774 = vsub.f32 %v53, %v3773
  %v3775 = vand.u32 %v3774, 4294901760
  %3776 = vmatpush1.msra.mxu0 %v3775
  %3777 = vmatprep.subr.mxu0 0.0
  %v3778 = vand.u32 %v54, 4294901760
  %v3779 = vsub.f32 %v54, %v3778
  %v3780 = vand.u32 %v3779, 4294901760
  %3781 = vmatpush1.msra.mxu0 %v3780
  %3782 = vmatprep.subr.mxu0 0.0
  %v3783 = vand.u32 %v55, 4294901760
  %v3784 = vsub.f32 %v55, %v3783
  %v3785 = vand.u32 %v3784, 4294901760
  %3786 = vmatpush1.msra.mxu0 %v3785
  %3787 = vmatprep.subr.mxu0 0.0
  %v3788 = vand.u32 %v56, 4294901760
  %v3789 = vsub.f32 %v56, %v3788
  %v3790 = vand.u32 %v3789, 4294901760
  %3791 = vmatpush1.msra.mxu0 %v3790
  %3792 = vmatprep.subr.mxu0 0.0
  %3793 = vmatpush1.msra.mxu0 0.0
  %3794 = vmatprep.subr.mxu0 0.0
  %3795 = vmatpush1.msra.mxu0 0.0
  %3796 = vmatprep.subr.mxu0 0.0
  %3797 = vmatpush1.msra.mxu0 0.0
  %3798 = vmatprep.subr.mxu0 0.0
  %3799 = vmatpush1.msra.mxu0 0.0
  %3800 = vmatprep.subr.mxu0 0.0
  %3801 = vmatpush1.msra.mxu0 0.0
  %3802 = vmatprep.subr.mxu0 0.0
  %3803 = vmatpush1.msra.mxu0 0.0
  %3804 = vmatprep.subr.mxu0 0.0
  %3805 = vmatpush1.msra.mxu0 0.0
  %3806 = vmatprep.subr.mxu0 0.0
  %3807 = vmatpush1.msra.mxu0 0.0
  %3808 = vmatprep.subr.mxu0 0.0
  %3809 = vmatpush1.msra.mxu0 0.0
  %3810 = vmatprep.subr.mxu0 0.0
  %3811 = vmatpush1.msra.mxu0 0.0
  %3812 = vmatprep.subr.mxu0 0.0
  %3813 = vmatpush1.msra.mxu0 0.0
  %3814 = vmatprep.subr.mxu0 0.0
  %3815 = vmatpush1.msra.mxu0 0.0
  %3816 = vmatprep.subr.mxu0 0.0
  %3817 = vmatpush1.msra.mxu0 0.0
  %3818 = vmatprep.subr.mxu0 0.0
  %3819 = vmatpush1.msra.mxu0 0.0
  %3820 = vmatprep.subr.mxu0 0.0
  %3821 = vmatpush1.msra.mxu0 0.0
  %3822 = vmatprep.subr.mxu0 0.0
  %3823 = vmatpush1.msra.mxu0 0.0
  %3824 = vmatprep.mubr.f32.mxu0 0.0
  %v3825 = vand.u32 %v3276, 4294901760
  %3826 = vmatmul.mubr.f32.gmra.mrb[0].mxu0 %v3825
  %v3827 = vpop.f32.mrb[0].mxu0
  %v3828 = vadd.f32 %v3709, %v3827
  %v3829 = vpop.f32.mrb[0].mxu0
  %3830 = vdwg.mxu0
  %3831 = vmatprep.subr.mxu0 0.0
  %v3832 = vand.u32 %v41, 4294901760
  %3833 = vmatpush1.msra.mxu0 %v3832
  %3834 = vmatprep.subr.mxu0 0.0
  %v3835 = vand.u32 %v42, 4294901760
  %3836 = vmatpush1.msra.mxu0 %v3835
  %3837 = vmatprep.subr.mxu0 0.0
  %v3838 = vand.u32 %v43, 4294901760
  %3839 = vmatpush1.msra.mxu0 %v3838
  %3840 = vmatprep.subr.mxu0 0.0
  %v3841 = vand.u32 %v44, 4294901760
  %3842 = vmatpush1.msra.mxu0 %v3841
  %3843 = vmatprep.subr.mxu0 0.0
  %v3844 = vand.u32 %v45, 4294901760
  %3845 = vmatpush1.msra.mxu0 %v3844
  %3846 = vmatprep.subr.mxu0 0.0
  %v3847 = vand.u32 %v46, 4294901760
  %3848 = vmatpush1.msra.mxu0 %v3847
  %3849 = vmatprep.subr.mxu0 0.0
  %v3850 = vand.u32 %v47, 4294901760
  %3851 = vmatpush1.msra.mxu0 %v3850
  %3852 = vmatprep.subr.mxu0 0.0
  %v3853 = vand.u32 %v48, 4294901760
  %3854 = vmatpush1.msra.mxu0 %v3853
  %3855 = vmatprep.subr.mxu0 0.0
  %v3856 = vand.u32 %v49, 4294901760
  %3857 = vmatpush1.msra.mxu0 %v3856
  %3858 = vmatprep.subr.mxu0 0.0
  %v3859 = vand.u32 %v50, 4294901760
  %3860 = vmatpush1.msra.mxu0 %v3859
  %3861 = vmatprep.subr.mxu0 0.0
  %v3862 = vand.u32 %v51, 4294901760
  %3863 = vmatpush1.msra.mxu0 %v3862
  %3864 = vmatprep.subr.mxu0 0.0
  %v3865 = vand.u32 %v52, 4294901760
  %3866 = vmatpush1.msra.mxu0 %v3865
  %3867 = vmatprep.subr.mxu0 0.0
  %v3868 = vand.u32 %v53, 4294901760
  %3869 = vmatpush1.msra.mxu0 %v3868
  %3870 = vmatprep.subr.mxu0 0.0
  %v3871 = vand.u32 %v54, 4294901760
  %3872 = vmatpush1.msra.mxu0 %v3871
  %3873 = vmatprep.subr.mxu0 0.0
  %v3874 = vand.u32 %v55, 4294901760
  %3875 = vmatpush1.msra.mxu0 %v3874
  %3876 = vmatprep.subr.mxu0 0.0
  %v3877 = vand.u32 %v56, 4294901760
  %3878 = vmatpush1.msra.mxu0 %v3877
  %3879 = vmatprep.subr.mxu0 0.0
  %3880 = vmatpush1.msra.mxu0 0.0
  %3881 = vmatprep.subr.mxu0 0.0
  %3882 = vmatpush1.msra.mxu0 0.0
  %3883 = vmatprep.subr.mxu0 0.0
  %3884 = vmatpush1.msra.mxu0 0.0
  %3885 = vmatprep.subr.mxu0 0.0
  %3886 = vmatpush1.msra.mxu0 0.0
  %3887 = vmatprep.subr.mxu0 0.0
  %3888 = vmatpush1.msra.mxu0 0.0
  %3889 = vmatprep.subr.mxu0 0.0
  %3890 = vmatpush1.msra.mxu0 0.0
  %3891 = vmatprep.subr.mxu0 0.0
  %3892 = vmatpush1.msra.mxu0 0.0
  %3893 = vmatprep.subr.mxu0 0.0
  %3894 = vmatpush1.msra.mxu0 0.0
  %3895 = vmatprep.subr.mxu0 0.0
  %3896 = vmatpush1.msra.mxu0 0.0
  %3897 = vmatprep.subr.mxu0 0.0
  %3898 = vmatpush1.msra.mxu0 0.0
  %3899 = vmatprep.subr.mxu0 0.0
  %3900 = vmatpush1.msra.mxu0 0.0
  %3901 = vmatprep.subr.mxu0 0.0
  %3902 = vmatpush1.msra.mxu0 0.0
  %3903 = vmatprep.subr.mxu0 0.0
  %3904 = vmatpush1.msra.mxu0 0.0
  %3905 = vmatprep.subr.mxu0 0.0
  %3906 = vmatpush1.msra.mxu0 0.0
  %3907 = vmatprep.subr.mxu0 0.0
  %3908 = vmatpush1.msra.mxu0 0.0
  %3909 = vmatprep.subr.mxu0 0.0
  %3910 = vmatpush1.msra.mxu0 0.0
  %3911 = vmatprep.mubr.f32.mxu0 0.0
  %v3912 = vand.u32 %v3276, 4294901760
  %3913 = vmatmul.mubr.f32.gmra.mrb[0].mxu0 %v3912
  %v3914 = vpop.f32.mrb[0].mxu0
  %v3915 = vadd.f32 %v3828, %v3914
  %v3916 = vpop.f32.mrb[0].mxu0
  %3917 = vdwg.mxu0
  %s3918 = scalar_lea.vmem %s4, 16
  %3919 = vst [vmem:[%s3918] sm:$0xff] %v3915
  %s3920 = scalar_lea.vmem %s0, 24
  %v3921 = vld [vmem:[%s3920] sm:$0xff]
  %3922 = vmatprep.subr.mxu0 0.0
  %v3923 = vand.u32 %v25, 4294901760
  %3924 = vmatpush1.msra.mxu0 %v3923
  %3925 = vmatprep.subr.mxu0 0.0
  %v3926 = vand.u32 %v26, 4294901760
  %3927 = vmatpush1.msra.mxu0 %v3926
  %3928 = vmatprep.subr.mxu0 0.0
  %v3929 = vand.u32 %v27, 4294901760
  %3930 = vmatpush1.msra.mxu0 %v3929
  %3931 = vmatprep.subr.mxu0 0.0
  %v3932 = vand.u32 %v28, 4294901760
  %3933 = vmatpush1.msra.mxu0 %v3932
  %3934 = vmatprep.subr.mxu0 0.0
  %v3935 = vand.u32 %v29, 4294901760
  %3936 = vmatpush1.msra.mxu0 %v3935
  %3937 = vmatprep.subr.mxu0 0.0
  %v3938 = vand.u32 %v30, 4294901760
  %3939 = vmatpush1.msra.mxu0 %v3938
  %3940 = vmatprep.subr.mxu0 0.0
  %v3941 = vand.u32 %v31, 4294901760
  %3942 = vmatpush1.msra.mxu0 %v3941
  %3943 = vmatprep.subr.mxu0 0.0
  %v3944 = vand.u32 %v32, 4294901760
  %3945 = vmatpush1.msra.mxu0 %v3944
  %3946 = vmatprep.subr.mxu0 0.0
  %v3947 = vand.u32 %v33, 4294901760
  %3948 = vmatpush1.msra.mxu0 %v3947
  %3949 = vmatprep.subr.mxu0 0.0
  %v3950 = vand.u32 %v34, 4294901760
  %3951 = vmatpush1.msra.mxu0 %v3950
  %3952 = vmatprep.subr.mxu0 0.0
  %v3953 = vand.u32 %v35, 4294901760
  %3954 = vmatpush1.msra.mxu0 %v3953
  %3955 = vmatprep.subr.mxu0 0.0
  %v3956 = vand.u32 %v36, 4294901760
  %3957 = vmatpush1.msra.mxu0 %v3956
  %3958 = vmatprep.subr.mxu0 0.0
  %v3959 = vand.u32 %v37, 4294901760
  %3960 = vmatpush1.msra.mxu0 %v3959
  %3961 = vmatprep.subr.mxu0 0.0
  %v3962 = vand.u32 %v38, 4294901760
  %3963 = vmatpush1.msra.mxu0 %v3962
  %3964 = vmatprep.subr.mxu0 0.0
  %v3965 = vand.u32 %v39, 4294901760
  %3966 = vmatpush1.msra.mxu0 %v3965
  %3967 = vmatprep.subr.mxu0 0.0
  %v3968 = vand.u32 %v40, 4294901760
  %3969 = vmatpush1.msra.mxu0 %v3968
  %3970 = vmatprep.subr.mxu0 0.0
  %3971 = vmatpush1.msra.mxu0 0.0
  %3972 = vmatprep.subr.mxu0 0.0
  %3973 = vmatpush1.msra.mxu0 0.0
  %3974 = vmatprep.subr.mxu0 0.0
  %3975 = vmatpush1.msra.mxu0 0.0
  %3976 = vmatprep.subr.mxu0 0.0
  %3977 = vmatpush1.msra.mxu0 0.0
  %3978 = vmatprep.subr.mxu0 0.0
  %3979 = vmatpush1.msra.mxu0 0.0
  %3980 = vmatprep.subr.mxu0 0.0
  %3981 = vmatpush1.msra.mxu0 0.0
  %3982 = vmatprep.subr.mxu0 0.0
  %3983 = vmatpush1.msra.mxu0 0.0
  %3984 = vmatprep.subr.mxu0 0.0
  %3985 = vmatpush1.msra.mxu0 0.0
  %3986 = vmatprep.subr.mxu0 0.0
  %3987 = vmatpush1.msra.mxu0 0.0
  %3988 = vmatprep.subr.mxu0 0.0
  %3989 = vmatpush1.msra.mxu0 0.0
  %3990 = vmatprep.subr.mxu0 0.0
  %3991 = vmatpush1.msra.mxu0 0.0
  %3992 = vmatprep.subr.mxu0 0.0
  %3993 = vmatpush1.msra.mxu0 0.0
  %3994 = vmatprep.subr.mxu0 0.0
  %3995 = vmatpush1.msra.mxu0 0.0
  %3996 = vmatprep.subr.mxu0 0.0
  %3997 = vmatpush1.msra.mxu0 0.0
  %3998 = vmatprep.subr.mxu0 0.0
  %3999 = vmatpush1.msra.mxu0 0.0
  %4000 = vmatprep.subr.mxu0 0.0
  %4001 = vmatpush1.msra.mxu0 0.0
  %4002 = vmatprep.mubr.f32.mxu0 0.0
  %v4003 = vand.u32 %v3276, 4294901760
  %v4004 = vsub.f32 %v3276, %v4003
  %v4005 = vand.u32 %v4004, 4294901760
  %v4006 = vsub.f32 %v4004, %v4005
  %v4007 = vand.u32 %v4006, 4294901760
  %4008 = vmatmul.mubr.f32.gmra.mrb[0].mxu0 %v4007
  %v4009 = vpop.f32.mrb[0].mxu0
  %v4010 = vadd.f32 0.0, %v4009
  %v4011 = vpop.f32.mrb[0].mxu0
  %4012 = vdwg.mxu0
  %4013 = vmatprep.subr.mxu0 0.0
  %v4014 = vand.u32 %v25, 4294901760
  %v4015 = vsub.f32 %v25, %v4014
  %v4016 = vand.u32 %v4015, 4294901760
  %v4017 = vsub.f32 %v4015, %v4016
  %v4018 = vand.u32 %v4017, 4294901760
  %4019 = vmatpush1.msra.mxu0 %v4018
  %4020 = vmatprep.subr.mxu0 0.0
  %v4021 = vand.u32 %v26, 4294901760
  %v4022 = vsub.f32 %v26, %v4021
  %v4023 = vand.u32 %v4022, 4294901760
  %v4024 = vsub.f32 %v4022, %v4023
  %v4025 = vand.u32 %v4024, 4294901760
  %4026 = vmatpush1.msra.mxu0 %v4025
  %4027 = vmatprep.subr.mxu0 0.0
  %v4028 = vand.u32 %v27, 4294901760
  %v4029 = vsub.f32 %v27, %v4028
  %v4030 = vand.u32 %v4029, 4294901760
  %v4031 = vsub.f32 %v4029, %v4030
  %v4032 = vand.u32 %v4031, 4294901760
  %4033 = vmatpush1.msra.mxu0 %v4032
  %4034 = vmatprep.subr.mxu0 0.0
  %v4035 = vand.u32 %v28, 4294901760
  %v4036 = vsub.f32 %v28, %v4035
  %v4037 = vand.u32 %v4036, 4294901760
  %v4038 = vsub.f32 %v4036, %v4037
  %v4039 = vand.u32 %v4038, 4294901760
  %4040 = vmatpush1.msra.mxu0 %v4039
  %4041 = vmatprep.subr.mxu0 0.0
  %v4042 = vand.u32 %v29, 4294901760
  %v4043 = vsub.f32 %v29, %v4042
  %v4044 = vand.u32 %v4043, 4294901760
  %v4045 = vsub.f32 %v4043, %v4044
  %v4046 = vand.u32 %v4045, 4294901760
  %4047 = vmatpush1.msra.mxu0 %v4046
  %4048 = vmatprep.subr.mxu0 0.0
  %v4049 = vand.u32 %v30, 4294901760
  %v4050 = vsub.f32 %v30, %v4049
  %v4051 = vand.u32 %v4050, 4294901760
  %v4052 = vsub.f32 %v4050, %v4051
  %v4053 = vand.u32 %v4052, 4294901760
  %4054 = vmatpush1.msra.mxu0 %v4053
  %4055 = vmatprep.subr.mxu0 0.0
  %v4056 = vand.u32 %v31, 4294901760
  %v4057 = vsub.f32 %v31, %v4056
  %v4058 = vand.u32 %v4057, 4294901760
  %v4059 = vsub.f32 %v4057, %v4058
  %v4060 = vand.u32 %v4059, 4294901760
  %4061 = vmatpush1.msra.mxu0 %v4060
  %4062 = vmatprep.subr.mxu0 0.0
  %v4063 = vand.u32 %v32, 4294901760
  %v4064 = vsub.f32 %v32, %v4063
  %v4065 = vand.u32 %v4064, 4294901760
  %v4066 = vsub.f32 %v4064, %v4065
  %v4067 = vand.u32 %v4066, 4294901760
  %4068 = vmatpush1.msra.mxu0 %v4067
  %4069 = vmatprep.subr.mxu0 0.0
  %v4070 = vand.u32 %v33, 4294901760
  %v4071 = vsub.f32 %v33, %v4070
  %v4072 = vand.u32 %v4071, 4294901760
  %v4073 = vsub.f32 %v4071, %v4072
  %v4074 = vand.u32 %v4073, 4294901760
  %4075 = vmatpush1.msra.mxu0 %v4074
  %4076 = vmatprep.subr.mxu0 0.0
  %v4077 = vand.u32 %v34, 4294901760
  %v4078 = vsub.f32 %v34, %v4077
  %v4079 = vand.u32 %v4078, 4294901760
  %v4080 = vsub.f32 %v4078, %v4079
  %v4081 = vand.u32 %v4080, 4294901760
  %4082 = vmatpush1.msra.mxu0 %v4081
  %4083 = vmatprep.subr.mxu0 0.0
  %v4084 = vand.u32 %v35, 4294901760
  %v4085 = vsub.f32 %v35, %v4084
  %v4086 = vand.u32 %v4085, 4294901760
  %v4087 = vsub.f32 %v4085, %v4086
  %v4088 = vand.u32 %v4087, 4294901760
  %4089 = vmatpush1.msra.mxu0 %v4088
  %4090 = vmatprep.subr.mxu0 0.0
  %v4091 = vand.u32 %v36, 4294901760
  %v4092 = vsub.f32 %v36, %v4091
  %v4093 = vand.u32 %v4092, 4294901760
  %v4094 = vsub.f32 %v4092, %v4093
  %v4095 = vand.u32 %v4094, 4294901760
  %4096 = vmatpush1.msra.mxu0 %v4095
  %4097 = vmatprep.subr.mxu0 0.0
  %v4098 = vand.u32 %v37, 4294901760
  %v4099 = vsub.f32 %v37, %v4098
  %v4100 = vand.u32 %v4099, 4294901760
  %v4101 = vsub.f32 %v4099, %v4100
  %v4102 = vand.u32 %v4101, 4294901760
  %4103 = vmatpush1.msra.mxu0 %v4102
  %4104 = vmatprep.subr.mxu0 0.0
  %v4105 = vand.u32 %v38, 4294901760
  %v4106 = vsub.f32 %v38, %v4105
  %v4107 = vand.u32 %v4106, 4294901760
  %v4108 = vsub.f32 %v4106, %v4107
  %v4109 = vand.u32 %v4108, 4294901760
  %4110 = vmatpush1.msra.mxu0 %v4109
  %4111 = vmatprep.subr.mxu0 0.0
  %v4112 = vand.u32 %v39, 4294901760
  %v4113 = vsub.f32 %v39, %v4112
  %v4114 = vand.u32 %v4113, 4294901760
  %v4115 = vsub.f32 %v4113, %v4114
  %v4116 = vand.u32 %v4115, 4294901760
  %4117 = vmatpush1.msra.mxu0 %v4116
  %4118 = vmatprep.subr.mxu0 0.0
  %v4119 = vand.u32 %v40, 4294901760
  %v4120 = vsub.f32 %v40, %v4119
  %v4121 = vand.u32 %v4120, 4294901760
  %v4122 = vsub.f32 %v4120, %v4121
  %v4123 = vand.u32 %v4122, 4294901760
  %4124 = vmatpush1.msra.mxu0 %v4123
  %4125 = vmatprep.subr.mxu0 0.0
  %4126 = vmatpush1.msra.mxu0 0.0
  %4127 = vmatprep.subr.mxu0 0.0
  %4128 = vmatpush1.msra.mxu0 0.0
  %4129 = vmatprep.subr.mxu0 0.0
  %4130 = vmatpush1.msra.mxu0 0.0
  %4131 = vmatprep.subr.mxu0 0.0
  %4132 = vmatpush1.msra.mxu0 0.0
  %4133 = vmatprep.subr.mxu0 0.0
  %4134 = vmatpush1.msra.mxu0 0.0
  %4135 = vmatprep.subr.mxu0 0.0
  %4136 = vmatpush1.msra.mxu0 0.0
  %4137 = vmatprep.subr.mxu0 0.0
  %4138 = vmatpush1.msra.mxu0 0.0
  %4139 = vmatprep.subr.mxu0 0.0
  %4140 = vmatpush1.msra.mxu0 0.0
  %4141 = vmatprep.subr.mxu0 0.0
  %4142 = vmatpush1.msra.mxu0 0.0
  %4143 = vmatprep.subr.mxu0 0.0
  %4144 = vmatpush1.msra.mxu0 0.0
  %4145 = vmatprep.subr.mxu0 0.0
  %4146 = vmatpush1.msra.mxu0 0.0
  %4147 = vmatprep.subr.mxu0 0.0
  %4148 = vmatpush1.msra.mxu0 0.0
  %4149 = vmatprep.subr.mxu0 0.0
  %4150 = vmatpush1.msra.mxu0 0.0
  %4151 = vmatprep.subr.mxu0 0.0
  %4152 = vmatpush1.msra.mxu0 0.0
  %4153 = vmatprep.subr.mxu0 0.0
  %4154 = vmatpush1.msra.mxu0 0.0
  %4155 = vmatprep.subr.mxu0 0.0
  %4156 = vmatpush1.msra.mxu0 0.0
  %4157 = vmatprep.mubr.f32.mxu0 0.0
  %v4158 = vand.u32 %v3276, 4294901760
  %4159 = vmatmul.mubr.f32.gmra.mrb[0].mxu0 %v4158
  %v4160 = vpop.f32.mrb[0].mxu0
  %v4161 = vadd.f32 %v4010, %v4160
  %v4162 = vpop.f32.mrb[0].mxu0
  %4163 = vdwg.mxu0
  %4164 = vmatprep.subr.mxu0 0.0
  %v4165 = vand.u32 %v25, 4294901760
  %v4166 = vsub.f32 %v25, %v4165
  %4167 = vmatpush1.msra.mxu0 %v4166
  %4168 = vmatprep.subr.mxu0 0.0
  %v4169 = vand.u32 %v26, 4294901760
  %v4170 = vsub.f32 %v26, %v4169
  %4171 = vmatpush1.msra.mxu0 %v4170
  %4172 = vmatprep.subr.mxu0 0.0
  %v4173 = vand.u32 %v27, 4294901760
  %v4174 = vsub.f32 %v27, %v4173
  %4175 = vmatpush1.msra.mxu0 %v4174
  %4176 = vmatprep.subr.mxu0 0.0
  %v4177 = vand.u32 %v28, 4294901760
  %v4178 = vsub.f32 %v28, %v4177
  %4179 = vmatpush1.msra.mxu0 %v4178
  %4180 = vmatprep.subr.mxu0 0.0
  %v4181 = vand.u32 %v29, 4294901760
  %v4182 = vsub.f32 %v29, %v4181
  %4183 = vmatpush1.msra.mxu0 %v4182
  %4184 = vmatprep.subr.mxu0 0.0
  %v4185 = vand.u32 %v30, 4294901760
  %v4186 = vsub.f32 %v30, %v4185
  %4187 = vmatpush1.msra.mxu0 %v4186
  %4188 = vmatprep.subr.mxu0 0.0
  %v4189 = vand.u32 %v31, 4294901760
  %v4190 = vsub.f32 %v31, %v4189
  %4191 = vmatpush1.msra.mxu0 %v4190
  %4192 = vmatprep.subr.mxu0 0.0
  %v4193 = vand.u32 %v32, 4294901760
  %v4194 = vsub.f32 %v32, %v4193
  %4195 = vmatpush1.msra.mxu0 %v4194
  %4196 = vmatprep.subr.mxu0 0.0
  %v4197 = vand.u32 %v33, 4294901760
  %v4198 = vsub.f32 %v33, %v4197
  %4199 = vmatpush1.msra.mxu0 %v4198
  %4200 = vmatprep.subr.mxu0 0.0
  %v4201 = vand.u32 %v34, 4294901760
  %v4202 = vsub.f32 %v34, %v4201
  %4203 = vmatpush1.msra.mxu0 %v4202
  %4204 = vmatprep.subr.mxu0 0.0
  %v4205 = vand.u32 %v35, 4294901760
  %v4206 = vsub.f32 %v35, %v4205
  %4207 = vmatpush1.msra.mxu0 %v4206
  %4208 = vmatprep.subr.mxu0 0.0
  %v4209 = vand.u32 %v36, 4294901760
  %v4210 = vsub.f32 %v36, %v4209
  %4211 = vmatpush1.msra.mxu0 %v4210
  %4212 = vmatprep.subr.mxu0 0.0
  %v4213 = vand.u32 %v37, 4294901760
  %v4214 = vsub.f32 %v37, %v4213
  %4215 = vmatpush1.msra.mxu0 %v4214
  %4216 = vmatprep.subr.mxu0 0.0
  %v4217 = vand.u32 %v38, 4294901760
  %v4218 = vsub.f32 %v38, %v4217
  %4219 = vmatpush1.msra.mxu0 %v4218
  %4220 = vmatprep.subr.mxu0 0.0
  %v4221 = vand.u32 %v39, 4294901760
  %v4222 = vsub.f32 %v39, %v4221
  %4223 = vmatpush1.msra.mxu0 %v4222
  %4224 = vmatprep.subr.mxu0 0.0
  %v4225 = vand.u32 %v40, 4294901760
  %v4226 = vsub.f32 %v40, %v4225
  %4227 = vmatpush1.msra.mxu0 %v4226
  %4228 = vmatprep.subr.mxu0 0.0
  %4229 = vmatpush1.msra.mxu0 0.0
  %4230 = vmatprep.subr.mxu0 0.0
  %4231 = vmatpush1.msra.mxu0 0.0
  %4232 = vmatprep.subr.mxu0 0.0
  %4233 = vmatpush1.msra.mxu0 0.0
  %4234 = vmatprep.subr.mxu0 0.0
  %4235 = vmatpush1.msra.mxu0 0.0
  %4236 = vmatprep.subr.mxu0 0.0
  %4237 = vmatpush1.msra.mxu0 0.0
  %4238 = vmatprep.subr.mxu0 0.0
  %4239 = vmatpush1.msra.mxu0 0.0
  %4240 = vmatprep.subr.mxu0 0.0
  %4241 = vmatpush1.msra.mxu0 0.0
  %4242 = vmatprep.subr.mxu0 0.0
  %4243 = vmatpush1.msra.mxu0 0.0
  %4244 = vmatprep.subr.mxu0 0.0
  %4245 = vmatpush1.msra.mxu0 0.0
  %4246 = vmatprep.subr.mxu0 0.0
  %4247 = vmatpush1.msra.mxu0 0.0
  %4248 = vmatprep.subr.mxu0 0.0
  %4249 = vmatpush1.msra.mxu0 0.0
  %4250 = vmatprep.subr.mxu0 0.0
  %4251 = vmatpush1.msra.mxu0 0.0
  %4252 = vmatprep.subr.mxu0 0.0
  %4253 = vmatpush1.msra.mxu0 0.0
  %4254 = vmatprep.subr.mxu0 0.0
  %4255 = vmatpush1.msra.mxu0 0.0
  %4256 = vmatprep.subr.mxu0 0.0
  %4257 = vmatpush1.msra.mxu0 0.0
  %4258 = vmatprep.subr.mxu0 0.0
  %4259 = vmatpush1.msra.mxu0 0.0
  %4260 = vmatprep.mubr.f32.mxu0 0.0
  %v4261 = vand.u32 %v3276, 4294901760
  %v4262 = vsub.f32 %v3276, %v4261
  %4263 = vmatmul.mubr.f32.gmra.mrb[0].mxu0 %v4262
  %v4264 = vpop.f32.mrb[0].mxu0
  %v4265 = vadd.f32 %v4161, %v4264
  %v4266 = vpop.f32.mrb[0].mxu0
  %4267 = vdwg.mxu0
  %4268 = vmatprep.subr.mxu0 0.0
  %v4269 = vand.u32 %v25, 4294901760
  %4270 = vmatpush1.msra.mxu0 %v4269
  %4271 = vmatprep.subr.mxu0 0.0
  %v4272 = vand.u32 %v26, 4294901760
  %4273 = vmatpush1.msra.mxu0 %v4272
  %4274 = vmatprep.subr.mxu0 0.0
  %v4275 = vand.u32 %v27, 4294901760
  %4276 = vmatpush1.msra.mxu0 %v4275
  %4277 = vmatprep.subr.mxu0 0.0
  %v4278 = vand.u32 %v28, 4294901760
  %4279 = vmatpush1.msra.mxu0 %v4278
  %4280 = vmatprep.subr.mxu0 0.0
  %v4281 = vand.u32 %v29, 4294901760
  %4282 = vmatpush1.msra.mxu0 %v4281
  %4283 = vmatprep.subr.mxu0 0.0
  %v4284 = vand.u32 %v30, 4294901760
  %4285 = vmatpush1.msra.mxu0 %v4284
  %4286 = vmatprep.subr.mxu0 0.0
  %v4287 = vand.u32 %v31, 4294901760
  %4288 = vmatpush1.msra.mxu0 %v4287
  %4289 = vmatprep.subr.mxu0 0.0
  %v4290 = vand.u32 %v32, 4294901760
  %4291 = vmatpush1.msra.mxu0 %v4290
  %4292 = vmatprep.subr.mxu0 0.0
  %v4293 = vand.u32 %v33, 4294901760
  %4294 = vmatpush1.msra.mxu0 %v4293
  %4295 = vmatprep.subr.mxu0 0.0
  %v4296 = vand.u32 %v34, 4294901760
  %4297 = vmatpush1.msra.mxu0 %v4296
  %4298 = vmatprep.subr.mxu0 0.0
  %v4299 = vand.u32 %v35, 4294901760
  %4300 = vmatpush1.msra.mxu0 %v4299
  %4301 = vmatprep.subr.mxu0 0.0
  %v4302 = vand.u32 %v36, 4294901760
  %4303 = vmatpush1.msra.mxu0 %v4302
  %4304 = vmatprep.subr.mxu0 0.0
  %v4305 = vand.u32 %v37, 4294901760
  %4306 = vmatpush1.msra.mxu0 %v4305
  %4307 = vmatprep.subr.mxu0 0.0
  %v4308 = vand.u32 %v38, 4294901760
  %4309 = vmatpush1.msra.mxu0 %v4308
  %4310 = vmatprep.subr.mxu0 0.0
  %v4311 = vand.u32 %v39, 4294901760
  %4312 = vmatpush1.msra.mxu0 %v4311
  %4313 = vmatprep.subr.mxu0 0.0
  %v4314 = vand.u32 %v40, 4294901760
  %4315 = vmatpush1.msra.mxu0 %v4314
  %4316 = vmatprep.subr.mxu0 0.0
  %4317 = vmatpush1.msra.mxu0 0.0
  %4318 = vmatprep.subr.mxu0 0.0
  %4319 = vmatpush1.msra.mxu0 0.0
  %4320 = vmatprep.subr.mxu0 0.0
  %4321 = vmatpush1.msra.mxu0 0.0
  %4322 = vmatprep.subr.mxu0 0.0
  %4323 = vmatpush1.msra.mxu0 0.0
  %4324 = vmatprep.subr.mxu0 0.0
  %4325 = vmatpush1.msra.mxu0 0.0
  %4326 = vmatprep.subr.mxu0 0.0
  %4327 = vmatpush1.msra.mxu0 0.0
  %4328 = vmatprep.subr.mxu0 0.0
  %4329 = vmatpush1.msra.mxu0 0.0
  %4330 = vmatprep.subr.mxu0 0.0
  %4331 = vmatpush1.msra.mxu0 0.0
  %4332 = vmatprep.subr.mxu0 0.0
  %4333 = vmatpush1.msra.mxu0 0.0
  %4334 = vmatprep.subr.mxu0 0.0
  %4335 = vmatpush1.msra.mxu0 0.0
  %4336 = vmatprep.subr.mxu0 0.0
  %4337 = vmatpush1.msra.mxu0 0.0
  %4338 = vmatprep.subr.mxu0 0.0
  %4339 = vmatpush1.msra.mxu0 0.0
  %4340 = vmatprep.subr.mxu0 0.0
  %4341 = vmatpush1.msra.mxu0 0.0
  %4342 = vmatprep.subr.mxu0 0.0
  %4343 = vmatpush1.msra.mxu0 0.0
  %4344 = vmatprep.subr.mxu0 0.0
  %4345 = vmatpush1.msra.mxu0 0.0
  %4346 = vmatprep.subr.mxu0 0.0
  %4347 = vmatpush1.msra.mxu0 0.0
  %4348 = vmatprep.mubr.f32.mxu0 0.0
  %v4349 = vand.u32 %v3276, 4294901760
  %v4350 = vsub.f32 %v3276, %v4349
  %v4351 = vand.u32 %v4350, 4294901760
  %4352 = vmatmul.mubr.f32.gmra.mrb[0].mxu0 %v4351
  %v4353 = vpop.f32.mrb[0].mxu0
  %v4354 = vadd.f32 %v4265, %v4353
  %v4355 = vpop.f32.mrb[0].mxu0
  %4356 = vdwg.mxu0
  %4357 = vmatprep.subr.mxu0 0.0
  %v4358 = vand.u32 %v25, 4294901760
  %v4359 = vsub.f32 %v25, %v4358
  %v4360 = vand.u32 %v4359, 4294901760
  %4361 = vmatpush1.msra.mxu0 %v4360
  %4362 = vmatprep.subr.mxu0 0.0
  %v4363 = vand.u32 %v26, 4294901760
  %v4364 = vsub.f32 %v26, %v4363
  %v4365 = vand.u32 %v4364, 4294901760
  %4366 = vmatpush1.msra.mxu0 %v4365
  %4367 = vmatprep.subr.mxu0 0.0
  %v4368 = vand.u32 %v27, 4294901760
  %v4369 = vsub.f32 %v27, %v4368
  %v4370 = vand.u32 %v4369, 4294901760
  %4371 = vmatpush1.msra.mxu0 %v4370
  %4372 = vmatprep.subr.mxu0 0.0
  %v4373 = vand.u32 %v28, 4294901760
  %v4374 = vsub.f32 %v28, %v4373
  %v4375 = vand.u32 %v4374, 4294901760
  %4376 = vmatpush1.msra.mxu0 %v4375
  %4377 = vmatprep.subr.mxu0 0.0
  %v4378 = vand.u32 %v29, 4294901760
  %v4379 = vsub.f32 %v29, %v4378
  %v4380 = vand.u32 %v4379, 4294901760
  %4381 = vmatpush1.msra.mxu0 %v4380
  %4382 = vmatprep.subr.mxu0 0.0
  %v4383 = vand.u32 %v30, 4294901760
  %v4384 = vsub.f32 %v30, %v4383
  %v4385 = vand.u32 %v4384, 4294901760
  %4386 = vmatpush1.msra.mxu0 %v4385
  %4387 = vmatprep.subr.mxu0 0.0
  %v4388 = vand.u32 %v31, 4294901760
  %v4389 = vsub.f32 %v31, %v4388
  %v4390 = vand.u32 %v4389, 4294901760
  %4391 = vmatpush1.msra.mxu0 %v4390
  %4392 = vmatprep.subr.mxu0 0.0
  %v4393 = vand.u32 %v32, 4294901760
  %v4394 = vsub.f32 %v32, %v4393
  %v4395 = vand.u32 %v4394, 4294901760
  %4396 = vmatpush1.msra.mxu0 %v4395
  %4397 = vmatprep.subr.mxu0 0.0
  %v4398 = vand.u32 %v33, 4294901760
  %v4399 = vsub.f32 %v33, %v4398
  %v4400 = vand.u32 %v4399, 4294901760
  %4401 = vmatpush1.msra.mxu0 %v4400
  %4402 = vmatprep.subr.mxu0 0.0
  %v4403 = vand.u32 %v34, 4294901760
  %v4404 = vsub.f32 %v34, %v4403
  %v4405 = vand.u32 %v4404, 4294901760
  %4406 = vmatpush1.msra.mxu0 %v4405
  %4407 = vmatprep.subr.mxu0 0.0
  %v4408 = vand.u32 %v35, 4294901760
  %v4409 = vsub.f32 %v35, %v4408
  %v4410 = vand.u32 %v4409, 4294901760
  %4411 = vmatpush1.msra.mxu0 %v4410
  %4412 = vmatprep.subr.mxu0 0.0
  %v4413 = vand.u32 %v36, 4294901760
  %v4414 = vsub.f32 %v36, %v4413
  %v4415 = vand.u32 %v4414, 4294901760
  %4416 = vmatpush1.msra.mxu0 %v4415
  %4417 = vmatprep.subr.mxu0 0.0
  %v4418 = vand.u32 %v37, 4294901760
  %v4419 = vsub.f32 %v37, %v4418
  %v4420 = vand.u32 %v4419, 4294901760
  %4421 = vmatpush1.msra.mxu0 %v4420
  %4422 = vmatprep.subr.mxu0 0.0
  %v4423 = vand.u32 %v38, 4294901760
  %v4424 = vsub.f32 %v38, %v4423
  %v4425 = vand.u32 %v4424, 4294901760
  %4426 = vmatpush1.msra.mxu0 %v4425
  %4427 = vmatprep.subr.mxu0 0.0
  %v4428 = vand.u32 %v39, 4294901760
  %v4429 = vsub.f32 %v39, %v4428
  %v4430 = vand.u32 %v4429, 4294901760
  %4431 = vmatpush1.msra.mxu0 %v4430
  %4432 = vmatprep.subr.mxu0 0.0
  %v4433 = vand.u32 %v40, 4294901760
  %v4434 = vsub.f32 %v40, %v4433
  %v4435 = vand.u32 %v4434, 4294901760
  %4436 = vmatpush1.msra.mxu0 %v4435
  %4437 = vmatprep.subr.mxu0 0.0
  %4438 = vmatpush1.msra.mxu0 0.0
  %4439 = vmatprep.subr.mxu0 0.0
  %4440 = vmatpush1.msra.mxu0 0.0
  %4441 = vmatprep.subr.mxu0 0.0
  %4442 = vmatpush1.msra.mxu0 0.0
  %4443 = vmatprep.subr.mxu0 0.0
  %4444 = vmatpush1.msra.mxu0 0.0
  %4445 = vmatprep.subr.mxu0 0.0
  %4446 = vmatpush1.msra.mxu0 0.0
  %4447 = vmatprep.subr.mxu0 0.0
  %4448 = vmatpush1.msra.mxu0 0.0
  %4449 = vmatprep.subr.mxu0 0.0
  %4450 = vmatpush1.msra.mxu0 0.0
  %4451 = vmatprep.subr.mxu0 0.0
  %4452 = vmatpush1.msra.mxu0 0.0
  %4453 = vmatprep.subr.mxu0 0.0
  %4454 = vmatpush1.msra.mxu0 0.0
  %4455 = vmatprep.subr.mxu0 0.0
  %4456 = vmatpush1.msra.mxu0 0.0
  %4457 = vmatprep.subr.mxu0 0.0
  %4458 = vmatpush1.msra.mxu0 0.0
  %4459 = vmatprep.subr.mxu0 0.0
  %4460 = vmatpush1.msra.mxu0 0.0
  %4461 = vmatprep.subr.mxu0 0.0
  %4462 = vmatpush1.msra.mxu0 0.0
  %4463 = vmatprep.subr.mxu0 0.0
  %4464 = vmatpush1.msra.mxu0 0.0
  %4465 = vmatprep.subr.mxu0 0.0
  %4466 = vmatpush1.msra.mxu0 0.0
  %4467 = vmatprep.subr.mxu0 0.0
  %4468 = vmatpush1.msra.mxu0 0.0
  %4469 = vmatprep.mubr.f32.mxu0 0.0
  %v4470 = vand.u32 %v3276, 4294901760
  %4471 = vmatmul.mubr.f32.gmra.mrb[0].mxu0 %v4470
  %v4472 = vpop.f32.mrb[0].mxu0
  %v4473 = vadd.f32 %v4354, %v4472
  %v4474 = vpop.f32.mrb[0].mxu0
  %4475 = vdwg.mxu0
  %4476 = vmatprep.subr.mxu0 0.0
  %v4477 = vand.u32 %v25, 4294901760
  %4478 = vmatpush1.msra.mxu0 %v4477
  %4479 = vmatprep.subr.mxu0 0.0
  %v4480 = vand.u32 %v26, 4294901760
  %4481 = vmatpush1.msra.mxu0 %v4480
  %4482 = vmatprep.subr.mxu0 0.0
  %v4483 = vand.u32 %v27, 4294901760
  %4484 = vmatpush1.msra.mxu0 %v4483
  %4485 = vmatprep.subr.mxu0 0.0
  %v4486 = vand.u32 %v28, 4294901760
  %4487 = vmatpush1.msra.mxu0 %v4486
  %4488 = vmatprep.subr.mxu0 0.0
  %v4489 = vand.u32 %v29, 4294901760
  %4490 = vmatpush1.msra.mxu0 %v4489
  %4491 = vmatprep.subr.mxu0 0.0
  %v4492 = vand.u32 %v30, 4294901760
  %4493 = vmatpush1.msra.mxu0 %v4492
  %4494 = vmatprep.subr.mxu0 0.0
  %v4495 = vand.u32 %v31, 4294901760
  %4496 = vmatpush1.msra.mxu0 %v4495
  %4497 = vmatprep.subr.mxu0 0.0
  %v4498 = vand.u32 %v32, 4294901760
  %4499 = vmatpush1.msra.mxu0 %v4498
  %4500 = vmatprep.subr.mxu0 0.0
  %v4501 = vand.u32 %v33, 4294901760
  %4502 = vmatpush1.msra.mxu0 %v4501
  %4503 = vmatprep.subr.mxu0 0.0
  %v4504 = vand.u32 %v34, 4294901760
  %4505 = vmatpush1.msra.mxu0 %v4504
  %4506 = vmatprep.subr.mxu0 0.0
  %v4507 = vand.u32 %v35, 4294901760
  %4508 = vmatpush1.msra.mxu0 %v4507
  %4509 = vmatprep.subr.mxu0 0.0
  %v4510 = vand.u32 %v36, 4294901760
  %4511 = vmatpush1.msra.mxu0 %v4510
  %4512 = vmatprep.subr.mxu0 0.0
  %v4513 = vand.u32 %v37, 4294901760
  %4514 = vmatpush1.msra.mxu0 %v4513
  %4515 = vmatprep.subr.mxu0 0.0
  %v4516 = vand.u32 %v38, 4294901760
  %4517 = vmatpush1.msra.mxu0 %v4516
  %4518 = vmatprep.subr.mxu0 0.0
  %v4519 = vand.u32 %v39, 4294901760
  %4520 = vmatpush1.msra.mxu0 %v4519
  %4521 = vmatprep.subr.mxu0 0.0
  %v4522 = vand.u32 %v40, 4294901760
  %4523 = vmatpush1.msra.mxu0 %v4522
  %4524 = vmatprep.subr.mxu0 0.0
  %4525 = vmatpush1.msra.mxu0 0.0
  %4526 = vmatprep.subr.mxu0 0.0
  %4527 = vmatpush1.msra.mxu0 0.0
  %4528 = vmatprep.subr.mxu0 0.0
  %4529 = vmatpush1.msra.mxu0 0.0
  %4530 = vmatprep.subr.mxu0 0.0
  %4531 = vmatpush1.msra.mxu0 0.0
  %4532 = vmatprep.subr.mxu0 0.0
  %4533 = vmatpush1.msra.mxu0 0.0
  %4534 = vmatprep.subr.mxu0 0.0
  %4535 = vmatpush1.msra.mxu0 0.0
  %4536 = vmatprep.subr.mxu0 0.0
  %4537 = vmatpush1.msra.mxu0 0.0
  %4538 = vmatprep.subr.mxu0 0.0
  %4539 = vmatpush1.msra.mxu0 0.0
  %4540 = vmatprep.subr.mxu0 0.0
  %4541 = vmatpush1.msra.mxu0 0.0
  %4542 = vmatprep.subr.mxu0 0.0
  %4543 = vmatpush1.msra.mxu0 0.0
  %4544 = vmatprep.subr.mxu0 0.0
  %4545 = vmatpush1.msra.mxu0 0.0
  %4546 = vmatprep.subr.mxu0 0.0
  %4547 = vmatpush1.msra.mxu0 0.0
  %4548 = vmatprep.subr.mxu0 0.0
  %4549 = vmatpush1.msra.mxu0 0.0
  %4550 = vmatprep.subr.mxu0 0.0
  %4551 = vmatpush1.msra.mxu0 0.0
  %4552 = vmatprep.subr.mxu0 0.0
  %4553 = vmatpush1.msra.mxu0 0.0
  %4554 = vmatprep.subr.mxu0 0.0
  %4555 = vmatpush1.msra.mxu0 0.0
  %4556 = vmatprep.mubr.f32.mxu0 0.0
  %v4557 = vand.u32 %v3276, 4294901760
  %4558 = vmatmul.mubr.f32.gmra.mrb[0].mxu0 %v4557
  %v4559 = vpop.f32.mrb[0].mxu0
  %v4560 = vadd.f32 %v4473, %v4559
  %v4561 = vpop.f32.mrb[0].mxu0
  %4562 = vdwg.mxu0
  %v4563 = vadd.f32 %v3921, %v4560
  %v4564 = vtanh.pop %v4563
  %4565 = vmatprep.subr.mxu0 0.0
  %v4566 = vand.u32 %v41, 4294901760
  %4567 = vmatpush1.msra.mxu0 %v4566
  %4568 = vmatprep.subr.mxu0 0.0
  %v4569 = vand.u32 %v42, 4294901760
  %4570 = vmatpush1.msra.mxu0 %v4569
  %4571 = vmatprep.subr.mxu0 0.0
  %v4572 = vand.u32 %v43, 4294901760
  %4573 = vmatpush1.msra.mxu0 %v4572
  %4574 = vmatprep.subr.mxu0 0.0
  %v4575 = vand.u32 %v44, 4294901760
  %4576 = vmatpush1.msra.mxu0 %v4575
  %4577 = vmatprep.subr.mxu0 0.0
  %v4578 = vand.u32 %v45, 4294901760
  %4579 = vmatpush1.msra.mxu0 %v4578
  %4580 = vmatprep.subr.mxu0 0.0
  %v4581 = vand.u32 %v46, 4294901760
  %4582 = vmatpush1.msra.mxu0 %v4581
  %4583 = vmatprep.subr.mxu0 0.0
  %v4584 = vand.u32 %v47, 4294901760
  %4585 = vmatpush1.msra.mxu0 %v4584
  %4586 = vmatprep.subr.mxu0 0.0
  %v4587 = vand.u32 %v48, 4294901760
  %4588 = vmatpush1.msra.mxu0 %v4587
  %4589 = vmatprep.subr.mxu0 0.0
  %v4590 = vand.u32 %v49, 4294901760
  %4591 = vmatpush1.msra.mxu0 %v4590
  %4592 = vmatprep.subr.mxu0 0.0
  %v4593 = vand.u32 %v50, 4294901760
  %4594 = vmatpush1.msra.mxu0 %v4593
  %4595 = vmatprep.subr.mxu0 0.0
  %v4596 = vand.u32 %v51, 4294901760
  %4597 = vmatpush1.msra.mxu0 %v4596
  %4598 = vmatprep.subr.mxu0 0.0
  %v4599 = vand.u32 %v52, 4294901760
  %4600 = vmatpush1.msra.mxu0 %v4599
  %4601 = vmatprep.subr.mxu0 0.0
  %v4602 = vand.u32 %v53, 4294901760
  %4603 = vmatpush1.msra.mxu0 %v4602
  %4604 = vmatprep.subr.mxu0 0.0
  %v4605 = vand.u32 %v54, 4294901760
  %4606 = vmatpush1.msra.mxu0 %v4605
  %4607 = vmatprep.subr.mxu0 0.0
  %v4608 = vand.u32 %v55, 4294901760
  %4609 = vmatpush1.msra.mxu0 %v4608
  %4610 = vmatprep.subr.mxu0 0.0
  %v4611 = vand.u32 %v56, 4294901760
  %4612 = vmatpush1.msra.mxu0 %v4611
  %4613 = vmatprep.subr.mxu0 0.0
  %4614 = vmatpush1.msra.mxu0 0.0
  %4615 = vmatprep.subr.mxu0 0.0
  %4616 = vmatpush1.msra.mxu0 0.0
  %4617 = vmatprep.subr.mxu0 0.0
  %4618 = vmatpush1.msra.mxu0 0.0
  %4619 = vmatprep.subr.mxu0 0.0
  %4620 = vmatpush1.msra.mxu0 0.0
  %4621 = vmatprep.subr.mxu0 0.0
  %4622 = vmatpush1.msra.mxu0 0.0
  %4623 = vmatprep.subr.mxu0 0.0
  %4624 = vmatpush1.msra.mxu0 0.0
  %4625 = vmatprep.subr.mxu0 0.0
  %4626 = vmatpush1.msra.mxu0 0.0
  %4627 = vmatprep.subr.mxu0 0.0
  %4628 = vmatpush1.msra.mxu0 0.0
  %4629 = vmatprep.subr.mxu0 0.0
  %4630 = vmatpush1.msra.mxu0 0.0
  %4631 = vmatprep.subr.mxu0 0.0
  %4632 = vmatpush1.msra.mxu0 0.0
  %4633 = vmatprep.subr.mxu0 0.0
  %4634 = vmatpush1.msra.mxu0 0.0
  %4635 = vmatprep.subr.mxu0 0.0
  %4636 = vmatpush1.msra.mxu0 0.0
  %4637 = vmatprep.subr.mxu0 0.0
  %4638 = vmatpush1.msra.mxu0 0.0
  %4639 = vmatprep.subr.mxu0 0.0
  %4640 = vmatpush1.msra.mxu0 0.0
  %4641 = vmatprep.subr.mxu0 0.0
  %4642 = vmatpush1.msra.mxu0 0.0
  %4643 = vmatprep.subr.mxu0 0.0
  %4644 = vmatpush1.msra.mxu0 0.0
  %4645 = vmatprep.mubr.f32.mxu0 0.0
  %v4646 = vand.u32 %v4564, 4294901760
  %v4647 = vsub.f32 %v4564, %v4646
  %v4648 = vand.u32 %v4647, 4294901760
  %v4649 = vsub.f32 %v4647, %v4648
  %v4650 = vand.u32 %v4649, 4294901760
  %4651 = vmatmul.mubr.f32.gmra.mrb[0].mxu0 %v4650
  %v4652 = vpop.f32.mrb[0].mxu0
  %v4653 = vadd.f32 0.0, %v4652
  %v4654 = vpop.f32.mrb[0].mxu0
  %4655 = vdwg.mxu0
  %4656 = vmatprep.subr.mxu0 0.0
  %v4657 = vand.u32 %v41, 4294901760
  %v4658 = vsub.f32 %v41, %v4657
  %v4659 = vand.u32 %v4658, 4294901760
  %v4660 = vsub.f32 %v4658, %v4659
  %v4661 = vand.u32 %v4660, 4294901760
  %4662 = vmatpush1.msra.mxu0 %v4661
  %4663 = vmatprep.subr.mxu0 0.0
  %v4664 = vand.u32 %v42, 4294901760
  %v4665 = vsub.f32 %v42, %v4664
  %v4666 = vand.u32 %v4665, 4294901760
  %v4667 = vsub.f32 %v4665, %v4666
  %v4668 = vand.u32 %v4667, 4294901760
  %4669 = vmatpush1.msra.mxu0 %v4668
  %4670 = vmatprep.subr.mxu0 0.0
  %v4671 = vand.u32 %v43, 4294901760
  %v4672 = vsub.f32 %v43, %v4671
  %v4673 = vand.u32 %v4672, 4294901760
  %v4674 = vsub.f32 %v4672, %v4673
  %v4675 = vand.u32 %v4674, 4294901760
  %4676 = vmatpush1.msra.mxu0 %v4675
  %4677 = vmatprep.subr.mxu0 0.0
  %v4678 = vand.u32 %v44, 4294901760
  %v4679 = vsub.f32 %v44, %v4678
  %v4680 = vand.u32 %v4679, 4294901760
  %v4681 = vsub.f32 %v4679, %v4680
  %v4682 = vand.u32 %v4681, 4294901760
  %4683 = vmatpush1.msra.mxu0 %v4682
  %4684 = vmatprep.subr.mxu0 0.0
  %v4685 = vand.u32 %v45, 4294901760
  %v4686 = vsub.f32 %v45, %v4685
  %v4687 = vand.u32 %v4686, 4294901760
  %v4688 = vsub.f32 %v4686, %v4687
  %v4689 = vand.u32 %v4688, 4294901760
  %4690 = vmatpush1.msra.mxu0 %v4689
  %4691 = vmatprep.subr.mxu0 0.0
  %v4692 = vand.u32 %v46, 4294901760
  %v4693 = vsub.f32 %v46, %v4692
  %v4694 = vand.u32 %v4693, 4294901760
  %v4695 = vsub.f32 %v4693, %v4694
  %v4696 = vand.u32 %v4695, 4294901760
  %4697 = vmatpush1.msra.mxu0 %v4696
  %4698 = vmatprep.subr.mxu0 0.0
  %v4699 = vand.u32 %v47, 4294901760
  %v4700 = vsub.f32 %v47, %v4699
  %v4701 = vand.u32 %v4700, 4294901760
  %v4702 = vsub.f32 %v4700, %v4701
  %v4703 = vand.u32 %v4702, 4294901760
  %4704 = vmatpush1.msra.mxu0 %v4703
  %4705 = vmatprep.subr.mxu0 0.0
  %v4706 = vand.u32 %v48, 4294901760
  %v4707 = vsub.f32 %v48, %v4706
  %v4708 = vand.u32 %v4707, 4294901760
  %v4709 = vsub.f32 %v4707, %v4708
  %v4710 = vand.u32 %v4709, 4294901760
  %4711 = vmatpush1.msra.mxu0 %v4710
  %4712 = vmatprep.subr.mxu0 0.0
  %v4713 = vand.u32 %v49, 4294901760
  %v4714 = vsub.f32 %v49, %v4713
  %v4715 = vand.u32 %v4714, 4294901760
  %v4716 = vsub.f32 %v4714, %v4715
  %v4717 = vand.u32 %v4716, 4294901760
  %4718 = vmatpush1.msra.mxu0 %v4717
  %4719 = vmatprep.subr.mxu0 0.0
  %v4720 = vand.u32 %v50, 4294901760
  %v4721 = vsub.f32 %v50, %v4720
  %v4722 = vand.u32 %v4721, 4294901760
  %v4723 = vsub.f32 %v4721, %v4722
  %v4724 = vand.u32 %v4723, 4294901760
  %4725 = vmatpush1.msra.mxu0 %v4724
  %4726 = vmatprep.subr.mxu0 0.0
  %v4727 = vand.u32 %v51, 4294901760
  %v4728 = vsub.f32 %v51, %v4727
  %v4729 = vand.u32 %v4728, 4294901760
  %v4730 = vsub.f32 %v4728, %v4729
  %v4731 = vand.u32 %v4730, 4294901760
  %4732 = vmatpush1.msra.mxu0 %v4731
  %4733 = vmatprep.subr.mxu0 0.0
  %v4734 = vand.u32 %v52, 4294901760
  %v4735 = vsub.f32 %v52, %v4734
  %v4736 = vand.u32 %v4735, 4294901760
  %v4737 = vsub.f32 %v4735, %v4736
  %v4738 = vand.u32 %v4737, 4294901760
  %4739 = vmatpush1.msra.mxu0 %v4738
  %4740 = vmatprep.subr.mxu0 0.0
  %v4741 = vand.u32 %v53, 4294901760
  %v4742 = vsub.f32 %v53, %v4741
  %v4743 = vand.u32 %v4742, 4294901760
  %v4744 = vsub.f32 %v4742, %v4743
  %v4745 = vand.u32 %v4744, 4294901760
  %4746 = vmatpush1.msra.mxu0 %v4745
  %4747 = vmatprep.subr.mxu0 0.0
  %v4748 = vand.u32 %v54, 4294901760
  %v4749 = vsub.f32 %v54, %v4748
  %v4750 = vand.u32 %v4749, 4294901760
  %v4751 = vsub.f32 %v4749, %v4750
  %v4752 = vand.u32 %v4751, 4294901760
  %4753 = vmatpush1.msra.mxu0 %v4752
  %4754 = vmatprep.subr.mxu0 0.0
  %v4755 = vand.u32 %v55, 4294901760
  %v4756 = vsub.f32 %v55, %v4755
  %v4757 = vand.u32 %v4756, 4294901760
  %v4758 = vsub.f32 %v4756, %v4757
  %v4759 = vand.u32 %v4758, 4294901760
  %4760 = vmatpush1.msra.mxu0 %v4759
  %4761 = vmatprep.subr.mxu0 0.0
  %v4762 = vand.u32 %v56, 4294901760
  %v4763 = vsub.f32 %v56, %v4762
  %v4764 = vand.u32 %v4763, 4294901760
  %v4765 = vsub.f32 %v4763, %v4764
  %v4766 = vand.u32 %v4765, 4294901760
  %4767 = vmatpush1.msra.mxu0 %v4766
  %4768 = vmatprep.subr.mxu0 0.0
  %4769 = vmatpush1.msra.mxu0 0.0
  %4770 = vmatprep.subr.mxu0 0.0
  %4771 = vmatpush1.msra.mxu0 0.0
  %4772 = vmatprep.subr.mxu0 0.0
  %4773 = vmatpush1.msra.mxu0 0.0
  %4774 = vmatprep.subr.mxu0 0.0
  %4775 = vmatpush1.msra.mxu0 0.0
  %4776 = vmatprep.subr.mxu0 0.0
  %4777 = vmatpush1.msra.mxu0 0.0
  %4778 = vmatprep.subr.mxu0 0.0
  %4779 = vmatpush1.msra.mxu0 0.0
  %4780 = vmatprep.subr.mxu0 0.0
  %4781 = vmatpush1.msra.mxu0 0.0
  %4782 = vmatprep.subr.mxu0 0.0
  %4783 = vmatpush1.msra.mxu0 0.0
  %4784 = vmatprep.subr.mxu0 0.0
  %4785 = vmatpush1.msra.mxu0 0.0
  %4786 = vmatprep.subr.mxu0 0.0
  %4787 = vmatpush1.msra.mxu0 0.0
  %4788 = vmatprep.subr.mxu0 0.0
  %4789 = vmatpush1.msra.mxu0 0.0
  %4790 = vmatprep.subr.mxu0 0.0
  %4791 = vmatpush1.msra.mxu0 0.0
  %4792 = vmatprep.subr.mxu0 0.0
  %4793 = vmatpush1.msra.mxu0 0.0
  %4794 = vmatprep.subr.mxu0 0.0
  %4795 = vmatpush1.msra.mxu0 0.0
  %4796 = vmatprep.subr.mxu0 0.0
  %4797 = vmatpush1.msra.mxu0 0.0
  %4798 = vmatprep.subr.mxu0 0.0
  %4799 = vmatpush1.msra.mxu0 0.0
  %4800 = vmatprep.mubr.f32.mxu0 0.0
  %v4801 = vand.u32 %v4564, 4294901760
  %4802 = vmatmul.mubr.f32.gmra.mrb[0].mxu0 %v4801
  %v4803 = vpop.f32.mrb[0].mxu0
  %v4804 = vadd.f32 %v4653, %v4803
  %v4805 = vpop.f32.mrb[0].mxu0
  %4806 = vdwg.mxu0
  %4807 = vmatprep.subr.mxu0 0.0
  %v4808 = vand.u32 %v41, 4294901760
  %v4809 = vsub.f32 %v41, %v4808
  %4810 = vmatpush1.msra.mxu0 %v4809
  %4811 = vmatprep.subr.mxu0 0.0
  %v4812 = vand.u32 %v42, 4294901760
  %v4813 = vsub.f32 %v42, %v4812
  %4814 = vmatpush1.msra.mxu0 %v4813
  %4815 = vmatprep.subr.mxu0 0.0
  %v4816 = vand.u32 %v43, 4294901760
  %v4817 = vsub.f32 %v43, %v4816
  %4818 = vmatpush1.msra.mxu0 %v4817
  %4819 = vmatprep.subr.mxu0 0.0
  %v4820 = vand.u32 %v44, 4294901760
  %v4821 = vsub.f32 %v44, %v4820
  %4822 = vmatpush1.msra.mxu0 %v4821
  %4823 = vmatprep.subr.mxu0 0.0
  %v4824 = vand.u32 %v45, 4294901760
  %v4825 = vsub.f32 %v45, %v4824
  %4826 = vmatpush1.msra.mxu0 %v4825
  %4827 = vmatprep.subr.mxu0 0.0
  %v4828 = vand.u32 %v46, 4294901760
  %v4829 = vsub.f32 %v46, %v4828
  %4830 = vmatpush1.msra.mxu0 %v4829
  %4831 = vmatprep.subr.mxu0 0.0
  %v4832 = vand.u32 %v47, 4294901760
  %v4833 = vsub.f32 %v47, %v4832
  %4834 = vmatpush1.msra.mxu0 %v4833
  %4835 = vmatprep.subr.mxu0 0.0
  %v4836 = vand.u32 %v48, 4294901760
  %v4837 = vsub.f32 %v48, %v4836
  %4838 = vmatpush1.msra.mxu0 %v4837
  %4839 = vmatprep.subr.mxu0 0.0
  %v4840 = vand.u32 %v49, 4294901760
  %v4841 = vsub.f32 %v49, %v4840
  %4842 = vmatpush1.msra.mxu0 %v4841
  %4843 = vmatprep.subr.mxu0 0.0
  %v4844 = vand.u32 %v50, 4294901760
  %v4845 = vsub.f32 %v50, %v4844
  %4846 = vmatpush1.msra.mxu0 %v4845
  %4847 = vmatprep.subr.mxu0 0.0
  %v4848 = vand.u32 %v51, 4294901760
  %v4849 = vsub.f32 %v51, %v4848
  %4850 = vmatpush1.msra.mxu0 %v4849
  %4851 = vmatprep.subr.mxu0 0.0
  %v4852 = vand.u32 %v52, 4294901760
  %v4853 = vsub.f32 %v52, %v4852
  %4854 = vmatpush1.msra.mxu0 %v4853
  %4855 = vmatprep.subr.mxu0 0.0
  %v4856 = vand.u32 %v53, 4294901760
  %v4857 = vsub.f32 %v53, %v4856
  %4858 = vmatpush1.msra.mxu0 %v4857
  %4859 = vmatprep.subr.mxu0 0.0
  %v4860 = vand.u32 %v54, 4294901760
  %v4861 = vsub.f32 %v54, %v4860
  %4862 = vmatpush1.msra.mxu0 %v4861
  %4863 = vmatprep.subr.mxu0 0.0
  %v4864 = vand.u32 %v55, 4294901760
  %v4865 = vsub.f32 %v55, %v4864
  %4866 = vmatpush1.msra.mxu0 %v4865
  %4867 = vmatprep.subr.mxu0 0.0
  %v4868 = vand.u32 %v56, 4294901760
  %v4869 = vsub.f32 %v56, %v4868
  %4870 = vmatpush1.msra.mxu0 %v4869
  %4871 = vmatprep.subr.mxu0 0.0
  %4872 = vmatpush1.msra.mxu0 0.0
  %4873 = vmatprep.subr.mxu0 0.0
  %4874 = vmatpush1.msra.mxu0 0.0
  %4875 = vmatprep.subr.mxu0 0.0
  %4876 = vmatpush1.msra.mxu0 0.0
  %4877 = vmatprep.subr.mxu0 0.0
  %4878 = vmatpush1.msra.mxu0 0.0
  %4879 = vmatprep.subr.mxu0 0.0
  %4880 = vmatpush1.msra.mxu0 0.0
  %4881 = vmatprep.subr.mxu0 0.0
  %4882 = vmatpush1.msra.mxu0 0.0
  %4883 = vmatprep.subr.mxu0 0.0
  %4884 = vmatpush1.msra.mxu0 0.0
  %4885 = vmatprep.subr.mxu0 0.0
  %4886 = vmatpush1.msra.mxu0 0.0
  %4887 = vmatprep.subr.mxu0 0.0
  %4888 = vmatpush1.msra.mxu0 0.0
  %4889 = vmatprep.subr.mxu0 0.0
  %4890 = vmatpush1.msra.mxu0 0.0
  %4891 = vmatprep.subr.mxu0 0.0
  %4892 = vmatpush1.msra.mxu0 0.0
  %4893 = vmatprep.subr.mxu0 0.0
  %4894 = vmatpush1.msra.mxu0 0.0
  %4895 = vmatprep.subr.mxu0 0.0
  %4896 = vmatpush1.msra.mxu0 0.0
  %4897 = vmatprep.subr.mxu0 0.0
  %4898 = vmatpush1.msra.mxu0 0.0
  %4899 = vmatprep.subr.mxu0 0.0
  %4900 = vmatpush1.msra.mxu0 0.0
  %4901 = vmatprep.subr.mxu0 0.0
  %4902 = vmatpush1.msra.mxu0 0.0
  %4903 = vmatprep.mubr.f32.mxu0 0.0
  %v4904 = vand.u32 %v4564, 4294901760
  %v4905 = vsub.f32 %v4564, %v4904
  %4906 = vmatmul.mubr.f32.gmra.mrb[0].mxu0 %v4905
  %v4907 = vpop.f32.mrb[0].mxu0
  %v4908 = vadd.f32 %v4804, %v4907
  %v4909 = vpop.f32.mrb[0].mxu0
  %4910 = vdwg.mxu0
  %4911 = vmatprep.subr.mxu0 0.0
  %v4912 = vand.u32 %v41, 4294901760
  %4913 = vmatpush1.msra.mxu0 %v4912
  %4914 = vmatprep.subr.mxu0 0.0
  %v4915 = vand.u32 %v42, 4294901760
  %4916 = vmatpush1.msra.mxu0 %v4915
  %4917 = vmatprep.subr.mxu0 0.0
  %v4918 = vand.u32 %v43, 4294901760
  %4919 = vmatpush1.msra.mxu0 %v4918
  %4920 = vmatprep.subr.mxu0 0.0
  %v4921 = vand.u32 %v44, 4294901760
  %4922 = vmatpush1.msra.mxu0 %v4921
  %4923 = vmatprep.subr.mxu0 0.0
  %v4924 = vand.u32 %v45, 4294901760
  %4925 = vmatpush1.msra.mxu0 %v4924
  %4926 = vmatprep.subr.mxu0 0.0
  %v4927 = vand.u32 %v46, 4294901760
  %4928 = vmatpush1.msra.mxu0 %v4927
  %4929 = vmatprep.subr.mxu0 0.0
  %v4930 = vand.u32 %v47, 4294901760
  %4931 = vmatpush1.msra.mxu0 %v4930
  %4932 = vmatprep.subr.mxu0 0.0
  %v4933 = vand.u32 %v48, 4294901760
  %4934 = vmatpush1.msra.mxu0 %v4933
  %4935 = vmatprep.subr.mxu0 0.0
  %v4936 = vand.u32 %v49, 4294901760
  %4937 = vmatpush1.msra.mxu0 %v4936
  %4938 = vmatprep.subr.mxu0 0.0
  %v4939 = vand.u32 %v50, 4294901760
  %4940 = vmatpush1.msra.mxu0 %v4939
  %4941 = vmatprep.subr.mxu0 0.0
  %v4942 = vand.u32 %v51, 4294901760
  %4943 = vmatpush1.msra.mxu0 %v4942
  %4944 = vmatprep.subr.mxu0 0.0
  %v4945 = vand.u32 %v52, 4294901760
  %4946 = vmatpush1.msra.mxu0 %v4945
  %4947 = vmatprep.subr.mxu0 0.0
  %v4948 = vand.u32 %v53, 4294901760
  %4949 = vmatpush1.msra.mxu0 %v4948
  %4950 = vmatprep.subr.mxu0 0.0
  %v4951 = vand.u32 %v54, 4294901760
  %4952 = vmatpush1.msra.mxu0 %v4951
  %4953 = vmatprep.subr.mxu0 0.0
  %v4954 = vand.u32 %v55, 4294901760
  %4955 = vmatpush1.msra.mxu0 %v4954
  %4956 = vmatprep.subr.mxu0 0.0
  %v4957 = vand.u32 %v56, 4294901760
  %4958 = vmatpush1.msra.mxu0 %v4957
  %4959 = vmatprep.subr.mxu0 0.0
  %4960 = vmatpush1.msra.mxu0 0.0
  %4961 = vmatprep.subr.mxu0 0.0
  %4962 = vmatpush1.msra.mxu0 0.0
  %4963 = vmatprep.subr.mxu0 0.0
  %4964 = vmatpush1.msra.mxu0 0.0
  %4965 = vmatprep.subr.mxu0 0.0
  %4966 = vmatpush1.msra.mxu0 0.0
  %4967 = vmatprep.subr.mxu0 0.0
  %4968 = vmatpush1.msra.mxu0 0.0
  %4969 = vmatprep.subr.mxu0 0.0
  %4970 = vmatpush1.msra.mxu0 0.0
  %4971 = vmatprep.subr.mxu0 0.0
  %4972 = vmatpush1.msra.mxu0 0.0
  %4973 = vmatprep.subr.mxu0 0.0
  %4974 = vmatpush1.msra.mxu0 0.0
  %4975 = vmatprep.subr.mxu0 0.0
  %4976 = vmatpush1.msra.mxu0 0.0
  %4977 = vmatprep.subr.mxu0 0.0
  %4978 = vmatpush1.msra.mxu0 0.0
  %4979 = vmatprep.subr.mxu0 0.0
  %4980 = vmatpush1.msra.mxu0 0.0
  %4981 = vmatprep.subr.mxu0 0.0
  %4982 = vmatpush1.msra.mxu0 0.0
  %4983 = vmatprep.subr.mxu0 0.0
  %4984 = vmatpush1.msra.mxu0 0.0
  %4985 = vmatprep.subr.mxu0 0.0
  %4986 = vmatpush1.msra.mxu0 0.0
  %4987 = vmatprep.subr.mxu0 0.0
  %4988 = vmatpush1.msra.mxu0 0.0
  %4989 = vmatprep.subr.mxu0 0.0
  %4990 = vmatpush1.msra.mxu0 0.0
  %4991 = vmatprep.mubr.f32.mxu0 0.0
  %v4992 = vand.u32 %v4564, 4294901760
  %v4993 = vsub.f32 %v4564, %v4992
  %v4994 = vand.u32 %v4993, 4294901760
  %4995 = vmatmul.mubr.f32.gmra.mrb[0].mxu0 %v4994
  %v4996 = vpop.f32.mrb[0].mxu0
  %v4997 = vadd.f32 %v4908, %v4996
  %v4998 = vpop.f32.mrb[0].mxu0
  %4999 = vdwg.mxu0
  %5000 = vmatprep.subr.mxu0 0.0
  %v5001 = vand.u32 %v41, 4294901760
  %v5002 = vsub.f32 %v41, %v5001
  %v5003 = vand.u32 %v5002, 4294901760
  %5004 = vmatpush1.msra.mxu0 %v5003
  %5005 = vmatprep.subr.mxu0 0.0
  %v5006 = vand.u32 %v42, 4294901760
  %v5007 = vsub.f32 %v42, %v5006
  %v5008 = vand.u32 %v5007, 4294901760
  %5009 = vmatpush1.msra.mxu0 %v5008
  %5010 = vmatprep.subr.mxu0 0.0
  %v5011 = vand.u32 %v43, 4294901760
  %v5012 = vsub.f32 %v43, %v5011
  %v5013 = vand.u32 %v5012, 4294901760
  %5014 = vmatpush1.msra.mxu0 %v5013
  %5015 = vmatprep.subr.mxu0 0.0
  %v5016 = vand.u32 %v44, 4294901760
  %v5017 = vsub.f32 %v44, %v5016
  %v5018 = vand.u32 %v5017, 4294901760
  %5019 = vmatpush1.msra.mxu0 %v5018
  %5020 = vmatprep.subr.mxu0 0.0
  %v5021 = vand.u32 %v45, 4294901760
  %v5022 = vsub.f32 %v45, %v5021
  %v5023 = vand.u32 %v5022, 4294901760
  %5024 = vmatpush1.msra.mxu0 %v5023
  %5025 = vmatprep.subr.mxu0 0.0
  %v5026 = vand.u32 %v46, 4294901760
  %v5027 = vsub.f32 %v46, %v5026
  %v5028 = vand.u32 %v5027, 4294901760
  %5029 = vmatpush1.msra.mxu0 %v5028
  %5030 = vmatprep.subr.mxu0 0.0
  %v5031 = vand.u32 %v47, 4294901760
  %v5032 = vsub.f32 %v47, %v5031
  %v5033 = vand.u32 %v5032, 4294901760
  %5034 = vmatpush1.msra.mxu0 %v5033
  %5035 = vmatprep.subr.mxu0 0.0
  %v5036 = vand.u32 %v48, 4294901760
  %v5037 = vsub.f32 %v48, %v5036
  %v5038 = vand.u32 %v5037, 4294901760
  %5039 = vmatpush1.msra.mxu0 %v5038
  %5040 = vmatprep.subr.mxu0 0.0
  %v5041 = vand.u32 %v49, 4294901760
  %v5042 = vsub.f32 %v49, %v5041
  %v5043 = vand.u32 %v5042, 4294901760
  %5044 = vmatpush1.msra.mxu0 %v5043
  %5045 = vmatprep.subr.mxu0 0.0
  %v5046 = vand.u32 %v50, 4294901760
  %v5047 = vsub.f32 %v50, %v5046
  %v5048 = vand.u32 %v5047, 4294901760
  %5049 = vmatpush1.msra.mxu0 %v5048
  %5050 = vmatprep.subr.mxu0 0.0
  %v5051 = vand.u32 %v51, 4294901760
  %v5052 = vsub.f32 %v51, %v5051
  %v5053 = vand.u32 %v5052, 4294901760
  %5054 = vmatpush1.msra.mxu0 %v5053
  %5055 = vmatprep.subr.mxu0 0.0
  %v5056 = vand.u32 %v52, 4294901760
  %v5057 = vsub.f32 %v52, %v5056
  %v5058 = vand.u32 %v5057, 4294901760
  %5059 = vmatpush1.msra.mxu0 %v5058
  %5060 = vmatprep.subr.mxu0 0.0
  %v5061 = vand.u32 %v53, 4294901760
  %v5062 = vsub.f32 %v53, %v5061
  %v5063 = vand.u32 %v5062, 4294901760
  %5064 = vmatpush1.msra.mxu0 %v5063
  %5065 = vmatprep.subr.mxu0 0.0
  %v5066 = vand.u32 %v54, 4294901760
  %v5067 = vsub.f32 %v54, %v5066
  %v5068 = vand.u32 %v5067, 4294901760
  %5069 = vmatpush1.msra.mxu0 %v5068
  %5070 = vmatprep.subr.mxu0 0.0
  %v5071 = vand.u32 %v55, 4294901760
  %v5072 = vsub.f32 %v55, %v5071
  %v5073 = vand.u32 %v5072, 4294901760
  %5074 = vmatpush1.msra.mxu0 %v5073
  %5075 = vmatprep.subr.mxu0 0.0
  %v5076 = vand.u32 %v56, 4294901760
  %v5077 = vsub.f32 %v56, %v5076
  %v5078 = vand.u32 %v5077, 4294901760
  %5079 = vmatpush1.msra.mxu0 %v5078
  %5080 = vmatprep.subr.mxu0 0.0
  %5081 = vmatpush1.msra.mxu0 0.0
  %5082 = vmatprep.subr.mxu0 0.0
  %5083 = vmatpush1.msra.mxu0 0.0
  %5084 = vmatprep.subr.mxu0 0.0
  %5085 = vmatpush1.msra.mxu0 0.0
  %5086 = vmatprep.subr.mxu0 0.0
  %5087 = vmatpush1.msra.mxu0 0.0
  %5088 = vmatprep.subr.mxu0 0.0
  %5089 = vmatpush1.msra.mxu0 0.0
  %5090 = vmatprep.subr.mxu0 0.0
  %5091 = vmatpush1.msra.mxu0 0.0
  %5092 = vmatprep.subr.mxu0 0.0
  %5093 = vmatpush1.msra.mxu0 0.0
  %5094 = vmatprep.subr.mxu0 0.0
  %5095 = vmatpush1.msra.mxu0 0.0
  %5096 = vmatprep.subr.mxu0 0.0
  %5097 = vmatpush1.msra.mxu0 0.0
  %5098 = vmatprep.subr.mxu0 0.0
  %5099 = vmatpush1.msra.mxu0 0.0
  %5100 = vmatprep.subr.mxu0 0.0
  %5101 = vmatpush1.msra.mxu0 0.0
  %5102 = vmatprep.subr.mxu0 0.0
  %5103 = vmatpush1.msra.mxu0 0.0
  %5104 = vmatprep.subr.mxu0 0.0
  %5105 = vmatpush1.msra.mxu0 0.0
  %5106 = vmatprep.subr.mxu0 0.0
  %5107 = vmatpush1.msra.mxu0 0.0
  %5108 = vmatprep.subr.mxu0 0.0
  %5109 = vmatpush1.msra.mxu0 0.0
  %5110 = vmatprep.subr.mxu0 0.0
  %5111 = vmatpush1.msra.mxu0 0.0
  %5112 = vmatprep.mubr.f32.mxu0 0.0
  %v5113 = vand.u32 %v4564, 4294901760
  %5114 = vmatmul.mubr.f32.gmra.mrb[0].mxu0 %v5113
  %v5115 = vpop.f32.mrb[0].mxu0
  %v5116 = vadd.f32 %v4997, %v5115
  %v5117 = vpop.f32.mrb[0].mxu0
  %5118 = vdwg.mxu0
  %5119 = vmatprep.subr.mxu0 0.0
  %v5120 = vand.u32 %v41, 4294901760
  %5121 = vmatpush1.msra.mxu0 %v5120
  %5122 = vmatprep.subr.mxu0 0.0
  %v5123 = vand.u32 %v42, 4294901760
  %5124 = vmatpush1.msra.mxu0 %v5123
  %5125 = vmatprep.subr.mxu0 0.0
  %v5126 = vand.u32 %v43, 4294901760
  %5127 = vmatpush1.msra.mxu0 %v5126
  %5128 = vmatprep.subr.mxu0 0.0
  %v5129 = vand.u32 %v44, 4294901760
  %5130 = vmatpush1.msra.mxu0 %v5129
  %5131 = vmatprep.subr.mxu0 0.0
  %v5132 = vand.u32 %v45, 4294901760
  %5133 = vmatpush1.msra.mxu0 %v5132
  %5134 = vmatprep.subr.mxu0 0.0
  %v5135 = vand.u32 %v46, 4294901760
  %5136 = vmatpush1.msra.mxu0 %v5135
  %5137 = vmatprep.subr.mxu0 0.0
  %v5138 = vand.u32 %v47, 4294901760
  %5139 = vmatpush1.msra.mxu0 %v5138
  %5140 = vmatprep.subr.mxu0 0.0
  %v5141 = vand.u32 %v48, 4294901760
  %5142 = vmatpush1.msra.mxu0 %v5141
  %5143 = vmatprep.subr.mxu0 0.0
  %v5144 = vand.u32 %v49, 4294901760
  %5145 = vmatpush1.msra.mxu0 %v5144
  %5146 = vmatprep.subr.mxu0 0.0
  %v5147 = vand.u32 %v50, 4294901760
  %5148 = vmatpush1.msra.mxu0 %v5147
  %5149 = vmatprep.subr.mxu0 0.0
  %v5150 = vand.u32 %v51, 4294901760
  %5151 = vmatpush1.msra.mxu0 %v5150
  %5152 = vmatprep.subr.mxu0 0.0
  %v5153 = vand.u32 %v52, 4294901760
  %5154 = vmatpush1.msra.mxu0 %v5153
  %5155 = vmatprep.subr.mxu0 0.0
  %v5156 = vand.u32 %v53, 4294901760
  %5157 = vmatpush1.msra.mxu0 %v5156
  %5158 = vmatprep.subr.mxu0 0.0
  %v5159 = vand.u32 %v54, 4294901760
  %5160 = vmatpush1.msra.mxu0 %v5159
  %5161 = vmatprep.subr.mxu0 0.0
  %v5162 = vand.u32 %v55, 4294901760
  %5163 = vmatpush1.msra.mxu0 %v5162
  %5164 = vmatprep.subr.mxu0 0.0
  %v5165 = vand.u32 %v56, 4294901760
  %5166 = vmatpush1.msra.mxu0 %v5165
  %5167 = vmatprep.subr.mxu0 0.0
  %5168 = vmatpush1.msra.mxu0 0.0
  %5169 = vmatprep.subr.mxu0 0.0
  %5170 = vmatpush1.msra.mxu0 0.0
  %5171 = vmatprep.subr.mxu0 0.0
  %5172 = vmatpush1.msra.mxu0 0.0
  %5173 = vmatprep.subr.mxu0 0.0
  %5174 = vmatpush1.msra.mxu0 0.0
  %5175 = vmatprep.subr.mxu0 0.0
  %5176 = vmatpush1.msra.mxu0 0.0
  %5177 = vmatprep.subr.mxu0 0.0
  %5178 = vmatpush1.msra.mxu0 0.0
  %5179 = vmatprep.subr.mxu0 0.0
  %5180 = vmatpush1.msra.mxu0 0.0
  %5181 = vmatprep.subr.mxu0 0.0
  %5182 = vmatpush1.msra.mxu0 0.0
  %5183 = vmatprep.subr.mxu0 0.0
  %5184 = vmatpush1.msra.mxu0 0.0
  %5185 = vmatprep.subr.mxu0 0.0
  %5186 = vmatpush1.msra.mxu0 0.0
  %5187 = vmatprep.subr.mxu0 0.0
  %5188 = vmatpush1.msra.mxu0 0.0
  %5189 = vmatprep.subr.mxu0 0.0
  %5190 = vmatpush1.msra.mxu0 0.0
  %5191 = vmatprep.subr.mxu0 0.0
  %5192 = vmatpush1.msra.mxu0 0.0
  %5193 = vmatprep.subr.mxu0 0.0
  %5194 = vmatpush1.msra.mxu0 0.0
  %5195 = vmatprep.subr.mxu0 0.0
  %5196 = vmatpush1.msra.mxu0 0.0
  %5197 = vmatprep.subr.mxu0 0.0
  %5198 = vmatpush1.msra.mxu0 0.0
  %5199 = vmatprep.mubr.f32.mxu0 0.0
  %v5200 = vand.u32 %v4564, 4294901760
  %5201 = vmatmul.mubr.f32.gmra.mrb[0].mxu0 %v5200
  %v5202 = vpop.f32.mrb[0].mxu0
  %v5203 = vadd.f32 %v5116, %v5202
  %v5204 = vpop.f32.mrb[0].mxu0
  %5205 = vdwg.mxu0
  %s5206 = scalar_lea.vmem %s4, 24
  %5207 = vst [vmem:[%s5206] sm:$0xff] %v5203
  %s5208 = scalar_lea.vmem %s0, 32
  %v5209 = vld [vmem:[%s5208] sm:$0xff]
  %5210 = vmatprep.subr.mxu0 0.0
  %v5211 = vand.u32 %v25, 4294901760
  %5212 = vmatpush1.msra.mxu0 %v5211
  %5213 = vmatprep.subr.mxu0 0.0
  %v5214 = vand.u32 %v26, 4294901760
  %5215 = vmatpush1.msra.mxu0 %v5214
  %5216 = vmatprep.subr.mxu0 0.0
  %v5217 = vand.u32 %v27, 4294901760
  %5218 = vmatpush1.msra.mxu0 %v5217
  %5219 = vmatprep.subr.mxu0 0.0
  %v5220 = vand.u32 %v28, 4294901760
  %5221 = vmatpush1.msra.mxu0 %v5220
  %5222 = vmatprep.subr.mxu0 0.0
  %v5223 = vand.u32 %v29, 4294901760
  %5224 = vmatpush1.msra.mxu0 %v5223
  %5225 = vmatprep.subr.mxu0 0.0
  %v5226 = vand.u32 %v30, 4294901760
  %5227 = vmatpush1.msra.mxu0 %v5226
  %5228 = vmatprep.subr.mxu0 0.0
  %v5229 = vand.u32 %v31, 4294901760
  %5230 = vmatpush1.msra.mxu0 %v5229
  %5231 = vmatprep.subr.mxu0 0.0
  %v5232 = vand.u32 %v32, 4294901760
  %5233 = vmatpush1.msra.mxu0 %v5232
  %5234 = vmatprep.subr.mxu0 0.0
  %v5235 = vand.u32 %v33, 4294901760
  %5236 = vmatpush1.msra.mxu0 %v5235
  %5237 = vmatprep.subr.mxu0 0.0
  %v5238 = vand.u32 %v34, 4294901760
  %5239 = vmatpush1.msra.mxu0 %v5238
  %5240 = vmatprep.subr.mxu0 0.0
  %v5241 = vand.u32 %v35, 4294901760
  %5242 = vmatpush1.msra.mxu0 %v5241
  %5243 = vmatprep.subr.mxu0 0.0
  %v5244 = vand.u32 %v36, 4294901760
  %5245 = vmatpush1.msra.mxu0 %v5244
  %5246 = vmatprep.subr.mxu0 0.0
  %v5247 = vand.u32 %v37, 4294901760
  %5248 = vmatpush1.msra.mxu0 %v5247
  %5249 = vmatprep.subr.mxu0 0.0
  %v5250 = vand.u32 %v38, 4294901760
  %5251 = vmatpush1.msra.mxu0 %v5250
  %5252 = vmatprep.subr.mxu0 0.0
  %v5253 = vand.u32 %v39, 4294901760
  %5254 = vmatpush1.msra.mxu0 %v5253
  %5255 = vmatprep.subr.mxu0 0.0
  %v5256 = vand.u32 %v40, 4294901760
  %5257 = vmatpush1.msra.mxu0 %v5256
  %5258 = vmatprep.subr.mxu0 0.0
  %5259 = vmatpush1.msra.mxu0 0.0
  %5260 = vmatprep.subr.mxu0 0.0
  %5261 = vmatpush1.msra.mxu0 0.0
  %5262 = vmatprep.subr.mxu0 0.0
  %5263 = vmatpush1.msra.mxu0 0.0
  %5264 = vmatprep.subr.mxu0 0.0
  %5265 = vmatpush1.msra.mxu0 0.0
  %5266 = vmatprep.subr.mxu0 0.0
  %5267 = vmatpush1.msra.mxu0 0.0
  %5268 = vmatprep.subr.mxu0 0.0
  %5269 = vmatpush1.msra.mxu0 0.0
  %5270 = vmatprep.subr.mxu0 0.0
  %5271 = vmatpush1.msra.mxu0 0.0
  %5272 = vmatprep.subr.mxu0 0.0
  %5273 = vmatpush1.msra.mxu0 0.0
  %5274 = vmatprep.subr.mxu0 0.0
  %5275 = vmatpush1.msra.mxu0 0.0
  %5276 = vmatprep.subr.mxu0 0.0
  %5277 = vmatpush1.msra.mxu0 0.0
  %5278 = vmatprep.subr.mxu0 0.0
  %5279 = vmatpush1.msra.mxu0 0.0
  %5280 = vmatprep.subr.mxu0 0.0
  %5281 = vmatpush1.msra.mxu0 0.0
  %5282 = vmatprep.subr.mxu0 0.0
  %5283 = vmatpush1.msra.mxu0 0.0
  %5284 = vmatprep.subr.mxu0 0.0
  %5285 = vmatpush1.msra.mxu0 0.0
  %5286 = vmatprep.subr.mxu0 0.0
  %5287 = vmatpush1.msra.mxu0 0.0
  %5288 = vmatprep.subr.mxu0 0.0
  %5289 = vmatpush1.msra.mxu0 0.0
  %5290 = vmatprep.mubr.f32.mxu0 0.0
  %v5291 = vand.u32 %v4564, 4294901760
  %v5292 = vsub.f32 %v4564, %v5291
  %v5293 = vand.u32 %v5292, 4294901760
  %v5294 = vsub.f32 %v5292, %v5293
  %v5295 = vand.u32 %v5294, 4294901760
  %5296 = vmatmul.mubr.f32.gmra.mrb[0].mxu0 %v5295
  %v5297 = vpop.f32.mrb[0].mxu0
  %v5298 = vadd.f32 0.0, %v5297
  %v5299 = vpop.f32.mrb[0].mxu0
  %5300 = vdwg.mxu0
  %5301 = vmatprep.subr.mxu0 0.0
  %v5302 = vand.u32 %v25, 4294901760
  %v5303 = vsub.f32 %v25, %v5302
  %v5304 = vand.u32 %v5303, 4294901760
  %v5305 = vsub.f32 %v5303, %v5304
  %v5306 = vand.u32 %v5305, 4294901760
  %5307 = vmatpush1.msra.mxu0 %v5306
  %5308 = vmatprep.subr.mxu0 0.0
  %v5309 = vand.u32 %v26, 4294901760
  %v5310 = vsub.f32 %v26, %v5309
  %v5311 = vand.u32 %v5310, 4294901760
  %v5312 = vsub.f32 %v5310, %v5311
  %v5313 = vand.u32 %v5312, 4294901760
  %5314 = vmatpush1.msra.mxu0 %v5313
  %5315 = vmatprep.subr.mxu0 0.0
  %v5316 = vand.u32 %v27, 4294901760
  %v5317 = vsub.f32 %v27, %v5316
  %v5318 = vand.u32 %v5317, 4294901760
  %v5319 = vsub.f32 %v5317, %v5318
  %v5320 = vand.u32 %v5319, 4294901760
  %5321 = vmatpush1.msra.mxu0 %v5320
  %5322 = vmatprep.subr.mxu0 0.0
  %v5323 = vand.u32 %v28, 4294901760
  %v5324 = vsub.f32 %v28, %v5323
  %v5325 = vand.u32 %v5324, 4294901760
  %v5326 = vsub.f32 %v5324, %v5325
  %v5327 = vand.u32 %v5326, 4294901760
  %5328 = vmatpush1.msra.mxu0 %v5327
  %5329 = vmatprep.subr.mxu0 0.0
  %v5330 = vand.u32 %v29, 4294901760
  %v5331 = vsub.f32 %v29, %v5330
  %v5332 = vand.u32 %v5331, 4294901760
  %v5333 = vsub.f32 %v5331, %v5332
  %v5334 = vand.u32 %v5333, 4294901760
  %5335 = vmatpush1.msra.mxu0 %v5334
  %5336 = vmatprep.subr.mxu0 0.0
  %v5337 = vand.u32 %v30, 4294901760
  %v5338 = vsub.f32 %v30, %v5337
  %v5339 = vand.u32 %v5338, 4294901760
  %v5340 = vsub.f32 %v5338, %v5339
  %v5341 = vand.u32 %v5340, 4294901760
  %5342 = vmatpush1.msra.mxu0 %v5341
  %5343 = vmatprep.subr.mxu0 0.0
  %v5344 = vand.u32 %v31, 4294901760
  %v5345 = vsub.f32 %v31, %v5344
  %v5346 = vand.u32 %v5345, 4294901760
  %v5347 = vsub.f32 %v5345, %v5346
  %v5348 = vand.u32 %v5347, 4294901760
  %5349 = vmatpush1.msra.mxu0 %v5348
  %5350 = vmatprep.subr.mxu0 0.0
  %v5351 = vand.u32 %v32, 4294901760
  %v5352 = vsub.f32 %v32, %v5351
  %v5353 = vand.u32 %v5352, 4294901760
  %v5354 = vsub.f32 %v5352, %v5353
  %v5355 = vand.u32 %v5354, 4294901760
  %5356 = vmatpush1.msra.mxu0 %v5355
  %5357 = vmatprep.subr.mxu0 0.0
  %v5358 = vand.u32 %v33, 4294901760
  %v5359 = vsub.f32 %v33, %v5358
  %v5360 = vand.u32 %v5359, 4294901760
  %v5361 = vsub.f32 %v5359, %v5360
  %v5362 = vand.u32 %v5361, 4294901760
  %5363 = vmatpush1.msra.mxu0 %v5362
  %5364 = vmatprep.subr.mxu0 0.0
  %v5365 = vand.u32 %v34, 4294901760
  %v5366 = vsub.f32 %v34, %v5365
  %v5367 = vand.u32 %v5366, 4294901760
  %v5368 = vsub.f32 %v5366, %v5367
  %v5369 = vand.u32 %v5368, 4294901760
  %5370 = vmatpush1.msra.mxu0 %v5369
  %5371 = vmatprep.subr.mxu0 0.0
  %v5372 = vand.u32 %v35, 4294901760
  %v5373 = vsub.f32 %v35, %v5372
  %v5374 = vand.u32 %v5373, 4294901760
  %v5375 = vsub.f32 %v5373, %v5374
  %v5376 = vand.u32 %v5375, 4294901760
  %5377 = vmatpush1.msra.mxu0 %v5376
  %5378 = vmatprep.subr.mxu0 0.0
  %v5379 = vand.u32 %v36, 4294901760
  %v5380 = vsub.f32 %v36, %v5379
  %v5381 = vand.u32 %v5380, 4294901760
  %v5382 = vsub.f32 %v5380, %v5381
  %v5383 = vand.u32 %v5382, 4294901760
  %5384 = vmatpush1.msra.mxu0 %v5383
  %5385 = vmatprep.subr.mxu0 0.0
  %v5386 = vand.u32 %v37, 4294901760
  %v5387 = vsub.f32 %v37, %v5386
  %v5388 = vand.u32 %v5387, 4294901760
  %v5389 = vsub.f32 %v5387, %v5388
  %v5390 = vand.u32 %v5389, 4294901760
  %5391 = vmatpush1.msra.mxu0 %v5390
  %5392 = vmatprep.subr.mxu0 0.0
  %v5393 = vand.u32 %v38, 4294901760
  %v5394 = vsub.f32 %v38, %v5393
  %v5395 = vand.u32 %v5394, 4294901760
  %v5396 = vsub.f32 %v5394, %v5395
  %v5397 = vand.u32 %v5396, 4294901760
  %5398 = vmatpush1.msra.mxu0 %v5397
  %5399 = vmatprep.subr.mxu0 0.0
  %v5400 = vand.u32 %v39, 4294901760
  %v5401 = vsub.f32 %v39, %v5400
  %v5402 = vand.u32 %v5401, 4294901760
  %v5403 = vsub.f32 %v5401, %v5402
  %v5404 = vand.u32 %v5403, 4294901760
  %5405 = vmatpush1.msra.mxu0 %v5404
  %5406 = vmatprep.subr.mxu0 0.0
  %v5407 = vand.u32 %v40, 4294901760
  %v5408 = vsub.f32 %v40, %v5407
  %v5409 = vand.u32 %v5408, 4294901760
  %v5410 = vsub.f32 %v5408, %v5409
  %v5411 = vand.u32 %v5410, 4294901760
  %5412 = vmatpush1.msra.mxu0 %v5411
  %5413 = vmatprep.subr.mxu0 0.0
  %5414 = vmatpush1.msra.mxu0 0.0
  %5415 = vmatprep.subr.mxu0 0.0
  %5416 = vmatpush1.msra.mxu0 0.0
  %5417 = vmatprep.subr.mxu0 0.0
  %5418 = vmatpush1.msra.mxu0 0.0
  %5419 = vmatprep.subr.mxu0 0.0
  %5420 = vmatpush1.msra.mxu0 0.0
  %5421 = vmatprep.subr.mxu0 0.0
  %5422 = vmatpush1.msra.mxu0 0.0
  %5423 = vmatprep.subr.mxu0 0.0
  %5424 = vmatpush1.msra.mxu0 0.0
  %5425 = vmatprep.subr.mxu0 0.0
  %5426 = vmatpush1.msra.mxu0 0.0
  %5427 = vmatprep.subr.mxu0 0.0
  %5428 = vmatpush1.msra.mxu0 0.0
  %5429 = vmatprep.subr.mxu0 0.0
  %5430 = vmatpush1.msra.mxu0 0.0
  %5431 = vmatprep.subr.mxu0 0.0
  %5432 = vmatpush1.msra.mxu0 0.0
  %5433 = vmatprep.subr.mxu0 0.0
  %5434 = vmatpush1.msra.mxu0 0.0
  %5435 = vmatprep.subr.mxu0 0.0
  %5436 = vmatpush1.msra.mxu0 0.0
  %5437 = vmatprep.subr.mxu0 0.0
  %5438 = vmatpush1.msra.mxu0 0.0
  %5439 = vmatprep.subr.mxu0 0.0
  %5440 = vmatpush1.msra.mxu0 0.0
  %5441 = vmatprep.subr.mxu0 0.0
  %5442 = vmatpush1.msra.mxu0 0.0
  %5443 = vmatprep.subr.mxu0 0.0
  %5444 = vmatpush1.msra.mxu0 0.0
  %5445 = vmatprep.mubr.f32.mxu0 0.0
  %v5446 = vand.u32 %v4564, 4294901760
  %5447 = vmatmul.mubr.f32.gmra.mrb[0].mxu0 %v5446
  %v5448 = vpop.f32.mrb[0].mxu0
  %v5449 = vadd.f32 %v5298, %v5448
  %v5450 = vpop.f32.mrb[0].mxu0
  %5451 = vdwg.mxu0
  %5452 = vmatprep.subr.mxu0 0.0
  %v5453 = vand.u32 %v25, 4294901760
  %v5454 = vsub.f32 %v25, %v5453
  %5455 = vmatpush1.msra.mxu0 %v5454
  %5456 = vmatprep.subr.mxu0 0.0
  %v5457 = vand.u32 %v26, 4294901760
  %v5458 = vsub.f32 %v26, %v5457
  %5459 = vmatpush1.msra.mxu0 %v5458
  %5460 = vmatprep.subr.mxu0 0.0
  %v5461 = vand.u32 %v27, 4294901760
  %v5462 = vsub.f32 %v27, %v5461
  %5463 = vmatpush1.msra.mxu0 %v5462
  %5464 = vmatprep.subr.mxu0 0.0
  %v5465 = vand.u32 %v28, 4294901760
  %v5466 = vsub.f32 %v28, %v5465
  %5467 = vmatpush1.msra.mxu0 %v5466
  %5468 = vmatprep.subr.mxu0 0.0
  %v5469 = vand.u32 %v29, 4294901760
  %v5470 = vsub.f32 %v29, %v5469
  %5471 = vmatpush1.msra.mxu0 %v5470
  %5472 = vmatprep.subr.mxu0 0.0
  %v5473 = vand.u32 %v30, 4294901760
  %v5474 = vsub.f32 %v30, %v5473
  %5475 = vmatpush1.msra.mxu0 %v5474
  %5476 = vmatprep.subr.mxu0 0.0
  %v5477 = vand.u32 %v31, 4294901760
  %v5478 = vsub.f32 %v31, %v5477
  %5479 = vmatpush1.msra.mxu0 %v5478
  %5480 = vmatprep.subr.mxu0 0.0
  %v5481 = vand.u32 %v32, 4294901760
  %v5482 = vsub.f32 %v32, %v5481
  %5483 = vmatpush1.msra.mxu0 %v5482
  %5484 = vmatprep.subr.mxu0 0.0
  %v5485 = vand.u32 %v33, 4294901760
  %v5486 = vsub.f32 %v33, %v5485
  %5487 = vmatpush1.msra.mxu0 %v5486
  %5488 = vmatprep.subr.mxu0 0.0
  %v5489 = vand.u32 %v34, 4294901760
  %v5490 = vsub.f32 %v34, %v5489
  %5491 = vmatpush1.msra.mxu0 %v5490
  %5492 = vmatprep.subr.mxu0 0.0
  %v5493 = vand.u32 %v35, 4294901760
  %v5494 = vsub.f32 %v35, %v5493
  %5495 = vmatpush1.msra.mxu0 %v5494
  %5496 = vmatprep.subr.mxu0 0.0
  %v5497 = vand.u32 %v36, 4294901760
  %v5498 = vsub.f32 %v36, %v5497
  %5499 = vmatpush1.msra.mxu0 %v5498
  %5500 = vmatprep.subr.mxu0 0.0
  %v5501 = vand.u32 %v37, 4294901760
  %v5502 = vsub.f32 %v37, %v5501
  %5503 = vmatpush1.msra.mxu0 %v5502
  %5504 = vmatprep.subr.mxu0 0.0
  %v5505 = vand.u32 %v38, 4294901760
  %v5506 = vsub.f32 %v38, %v5505
  %5507 = vmatpush1.msra.mxu0 %v5506
  %5508 = vmatprep.subr.mxu0 0.0
  %v5509 = vand.u32 %v39, 4294901760
  %v5510 = vsub.f32 %v39, %v5509
  %5511 = vmatpush1.msra.mxu0 %v5510
  %5512 = vmatprep.subr.mxu0 0.0
  %v5513 = vand.u32 %v40, 4294901760
  %v5514 = vsub.f32 %v40, %v5513
  %5515 = vmatpush1.msra.mxu0 %v5514
  %5516 = vmatprep.subr.mxu0 0.0
  %5517 = vmatpush1.msra.mxu0 0.0
  %5518 = vmatprep.subr.mxu0 0.0
  %5519 = vmatpush1.msra.mxu0 0.0
  %5520 = vmatprep.subr.mxu0 0.0
  %5521 = vmatpush1.msra.mxu0 0.0
  %5522 = vmatprep.subr.mxu0 0.0
  %5523 = vmatpush1.msra.mxu0 0.0
  %5524 = vmatprep.subr.mxu0 0.0
  %5525 = vmatpush1.msra.mxu0 0.0
  %5526 = vmatprep.subr.mxu0 0.0
  %5527 = vmatpush1.msra.mxu0 0.0
  %5528 = vmatprep.subr.mxu0 0.0
  %5529 = vmatpush1.msra.mxu0 0.0
  %5530 = vmatprep.subr.mxu0 0.0
  %5531 = vmatpush1.msra.mxu0 0.0
  %5532 = vmatprep.subr.mxu0 0.0
  %5533 = vmatpush1.msra.mxu0 0.0
  %5534 = vmatprep.subr.mxu0 0.0
  %5535 = vmatpush1.msra.mxu0 0.0
  %5536 = vmatprep.subr.mxu0 0.0
  %5537 = vmatpush1.msra.mxu0 0.0
  %5538 = vmatprep.subr.mxu0 0.0
  %5539 = vmatpush1.msra.mxu0 0.0
  %5540 = vmatprep.subr.mxu0 0.0
  %5541 = vmatpush1.msra.mxu0 0.0
  %5542 = vmatprep.subr.mxu0 0.0
  %5543 = vmatpush1.msra.mxu0 0.0
  %5544 = vmatprep.subr.mxu0 0.0
  %5545 = vmatpush1.msra.mxu0 0.0
  %5546 = vmatprep.subr.mxu0 0.0
  %5547 = vmatpush1.msra.mxu0 0.0
  %5548 = vmatprep.mubr.f32.mxu0 0.0
  %v5549 = vand.u32 %v4564, 4294901760
  %v5550 = vsub.f32 %v4564, %v5549
  %5551 = vmatmul.mubr.f32.gmra.mrb[0].mxu0 %v5550
  %v5552 = vpop.f32.mrb[0].mxu0
  %v5553 = vadd.f32 %v5449, %v5552
  %v5554 = vpop.f32.mrb[0].mxu0
  %5555 = vdwg.mxu0
  %5556 = vmatprep.subr.mxu0 0.0
  %v5557 = vand.u32 %v25, 4294901760
  %5558 = vmatpush1.msra.mxu0 %v5557
  %5559 = vmatprep.subr.mxu0 0.0
  %v5560 = vand.u32 %v26, 4294901760
  %5561 = vmatpush1.msra.mxu0 %v5560
  %5562 = vmatprep.subr.mxu0 0.0
  %v5563 = vand.u32 %v27, 4294901760
  %5564 = vmatpush1.msra.mxu0 %v5563
  %5565 = vmatprep.subr.mxu0 0.0
  %v5566 = vand.u32 %v28, 4294901760
  %5567 = vmatpush1.msra.mxu0 %v5566
  %5568 = vmatprep.subr.mxu0 0.0
  %v5569 = vand.u32 %v29, 4294901760
  %5570 = vmatpush1.msra.mxu0 %v5569
  %5571 = vmatprep.subr.mxu0 0.0
  %v5572 = vand.u32 %v30, 4294901760
  %5573 = vmatpush1.msra.mxu0 %v5572
  %5574 = vmatprep.subr.mxu0 0.0
  %v5575 = vand.u32 %v31, 4294901760
  %5576 = vmatpush1.msra.mxu0 %v5575
  %5577 = vmatprep.subr.mxu0 0.0
  %v5578 = vand.u32 %v32, 4294901760
  %5579 = vmatpush1.msra.mxu0 %v5578
  %5580 = vmatprep.subr.mxu0 0.0
  %v5581 = vand.u32 %v33, 4294901760
  %5582 = vmatpush1.msra.mxu0 %v5581
  %5583 = vmatprep.subr.mxu0 0.0
  %v5584 = vand.u32 %v34, 4294901760
  %5585 = vmatpush1.msra.mxu0 %v5584
  %5586 = vmatprep.subr.mxu0 0.0
  %v5587 = vand.u32 %v35, 4294901760
  %5588 = vmatpush1.msra.mxu0 %v5587
  %5589 = vmatprep.subr.mxu0 0.0
  %v5590 = vand.u32 %v36, 4294901760
  %5591 = vmatpush1.msra.mxu0 %v5590
  %5592 = vmatprep.subr.mxu0 0.0
  %v5593 = vand.u32 %v37, 4294901760
  %5594 = vmatpush1.msra.mxu0 %v5593
  %5595 = vmatprep.subr.mxu0 0.0
  %v5596 = vand.u32 %v38, 4294901760
  %5597 = vmatpush1.msra.mxu0 %v5596
  %5598 = vmatprep.subr.mxu0 0.0
  %v5599 = vand.u32 %v39, 4294901760
  %5600 = vmatpush1.msra.mxu0 %v5599
  %5601 = vmatprep.subr.mxu0 0.0
  %v5602 = vand.u32 %v40, 4294901760
  %5603 = vmatpush1.msra.mxu0 %v5602
  %5604 = vmatprep.subr.mxu0 0.0
  %5605 = vmatpush1.msra.mxu0 0.0
  %5606 = vmatprep.subr.mxu0 0.0
  %5607 = vmatpush1.msra.mxu0 0.0
  %5608 = vmatprep.subr.mxu0 0.0
  %5609 = vmatpush1.msra.mxu0 0.0
  %5610 = vmatprep.subr.mxu0 0.0
  %5611 = vmatpush1.msra.mxu0 0.0
  %5612 = vmatprep.subr.mxu0 0.0
  %5613 = vmatpush1.msra.mxu0 0.0
  %5614 = vmatprep.subr.mxu0 0.0
  %5615 = vmatpush1.msra.mxu0 0.0
  %5616 = vmatprep.subr.mxu0 0.0
  %5617 = vmatpush1.msra.mxu0 0.0
  %5618 = vmatprep.subr.mxu0 0.0
  %5619 = vmatpush1.msra.mxu0 0.0
  %5620 = vmatprep.subr.mxu0 0.0
  %5621 = vmatpush1.msra.mxu0 0.0
  %5622 = vmatprep.subr.mxu0 0.0
  %5623 = vmatpush1.msra.mxu0 0.0
  %5624 = vmatprep.subr.mxu0 0.0
  %5625 = vmatpush1.msra.mxu0 0.0
  %5626 = vmatprep.subr.mxu0 0.0
  %5627 = vmatpush1.msra.mxu0 0.0
  %5628 = vmatprep.subr.mxu0 0.0
  %5629 = vmatpush1.msra.mxu0 0.0
  %5630 = vmatprep.subr.mxu0 0.0
  %5631 = vmatpush1.msra.mxu0 0.0
  %5632 = vmatprep.subr.mxu0 0.0
  %5633 = vmatpush1.msra.mxu0 0.0
  %5634 = vmatprep.subr.mxu0 0.0
  %5635 = vmatpush1.msra.mxu0 0.0
  %5636 = vmatprep.mubr.f32.mxu0 0.0
  %v5637 = vand.u32 %v4564, 4294901760
  %v5638 = vsub.f32 %v4564, %v5637
  %v5639 = vand.u32 %v5638, 4294901760
  %5640 = vmatmul.mubr.f32.gmra.mrb[0].mxu0 %v5639
  %v5641 = vpop.f32.mrb[0].mxu0
  %v5642 = vadd.f32 %v5553, %v5641
  %v5643 = vpop.f32.mrb[0].mxu0
  %5644 = vdwg.mxu0
  %5645 = vmatprep.subr.mxu0 0.0
  %v5646 = vand.u32 %v25, 4294901760
  %v5647 = vsub.f32 %v25, %v5646
  %v5648 = vand.u32 %v5647, 4294901760
  %5649 = vmatpush1.msra.mxu0 %v5648
  %5650 = vmatprep.subr.mxu0 0.0
  %v5651 = vand.u32 %v26, 4294901760
  %v5652 = vsub.f32 %v26, %v5651
  %v5653 = vand.u32 %v5652, 4294901760
  %5654 = vmatpush1.msra.mxu0 %v5653
  %5655 = vmatprep.subr.mxu0 0.0
  %v5656 = vand.u32 %v27, 4294901760
  %v5657 = vsub.f32 %v27, %v5656
  %v5658 = vand.u32 %v5657, 4294901760
  %5659 = vmatpush1.msra.mxu0 %v5658
  %5660 = vmatprep.subr.mxu0 0.0
  %v5661 = vand.u32 %v28, 4294901760
  %v5662 = vsub.f32 %v28, %v5661
  %v5663 = vand.u32 %v5662, 4294901760
  %5664 = vmatpush1.msra.mxu0 %v5663
  %5665 = vmatprep.subr.mxu0 0.0
  %v5666 = vand.u32 %v29, 4294901760
  %v5667 = vsub.f32 %v29, %v5666
  %v5668 = vand.u32 %v5667, 4294901760
  %5669 = vmatpush1.msra.mxu0 %v5668
  %5670 = vmatprep.subr.mxu0 0.0
  %v5671 = vand.u32 %v30, 4294901760
  %v5672 = vsub.f32 %v30, %v5671
  %v5673 = vand.u32 %v5672, 4294901760
  %5674 = vmatpush1.msra.mxu0 %v5673
  %5675 = vmatprep.subr.mxu0 0.0
  %v5676 = vand.u32 %v31, 4294901760
  %v5677 = vsub.f32 %v31, %v5676
  %v5678 = vand.u32 %v5677, 4294901760
  %5679 = vmatpush1.msra.mxu0 %v5678
  %5680 = vmatprep.subr.mxu0 0.0
  %v5681 = vand.u32 %v32, 4294901760
  %v5682 = vsub.f32 %v32, %v5681
  %v5683 = vand.u32 %v5682, 4294901760
  %5684 = vmatpush1.msra.mxu0 %v5683
  %5685 = vmatprep.subr.mxu0 0.0
  %v5686 = vand.u32 %v33, 4294901760
  %v5687 = vsub.f32 %v33, %v5686
  %v5688 = vand.u32 %v5687, 4294901760
  %5689 = vmatpush1.msra.mxu0 %v5688
  %5690 = vmatprep.subr.mxu0 0.0
  %v5691 = vand.u32 %v34, 4294901760
  %v5692 = vsub.f32 %v34, %v5691
  %v5693 = vand.u32 %v5692, 4294901760
  %5694 = vmatpush1.msra.mxu0 %v5693
  %5695 = vmatprep.subr.mxu0 0.0
  %v5696 = vand.u32 %v35, 4294901760
  %v5697 = vsub.f32 %v35, %v5696
  %v5698 = vand.u32 %v5697, 4294901760
  %5699 = vmatpush1.msra.mxu0 %v5698
  %5700 = vmatprep.subr.mxu0 0.0
  %v5701 = vand.u32 %v36, 4294901760
  %v5702 = vsub.f32 %v36, %v5701
  %v5703 = vand.u32 %v5702, 4294901760
  %5704 = vmatpush1.msra.mxu0 %v5703
  %5705 = vmatprep.subr.mxu0 0.0
  %v5706 = vand.u32 %v37, 4294901760
  %v5707 = vsub.f32 %v37, %v5706
  %v5708 = vand.u32 %v5707, 4294901760
  %5709 = vmatpush1.msra.mxu0 %v5708
  %5710 = vmatprep.subr.mxu0 0.0
  %v5711 = vand.u32 %v38, 4294901760
  %v5712 = vsub.f32 %v38, %v5711
  %v5713 = vand.u32 %v5712, 4294901760
  %5714 = vmatpush1.msra.mxu0 %v5713
  %5715 = vmatprep.subr.mxu0 0.0
  %v5716 = vand.u32 %v39, 4294901760
  %v5717 = vsub.f32 %v39, %v5716
  %v5718 = vand.u32 %v5717, 4294901760
  %5719 = vmatpush1.msra.mxu0 %v5718
  %5720 = vmatprep.subr.mxu0 0.0
  %v5721 = vand.u32 %v40, 4294901760
  %v5722 = vsub.f32 %v40, %v5721
  %v5723 = vand.u32 %v5722, 4294901760
  %5724 = vmatpush1.msra.mxu0 %v5723
  %5725 = vmatprep.subr.mxu0 0.0
  %5726 = vmatpush1.msra.mxu0 0.0
  %5727 = vmatprep.subr.mxu0 0.0
  %5728 = vmatpush1.msra.mxu0 0.0
  %5729 = vmatprep.subr.mxu0 0.0
  %5730 = vmatpush1.msra.mxu0 0.0
  %5731 = vmatprep.subr.mxu0 0.0
  %5732 = vmatpush1.msra.mxu0 0.0
  %5733 = vmatprep.subr.mxu0 0.0
  %5734 = vmatpush1.msra.mxu0 0.0
  %5735 = vmatprep.subr.mxu0 0.0
  %5736 = vmatpush1.msra.mxu0 0.0
  %5737 = vmatprep.subr.mxu0 0.0
  %5738 = vmatpush1.msra.mxu0 0.0
  %5739 = vmatprep.subr.mxu0 0.0
  %5740 = vmatpush1.msra.mxu0 0.0
  %5741 = vmatprep.subr.mxu0 0.0
  %5742 = vmatpush1.msra.mxu0 0.0
  %5743 = vmatprep.subr.mxu0 0.0
  %5744 = vmatpush1.msra.mxu0 0.0
  %5745 = vmatprep.subr.mxu0 0.0
  %5746 = vmatpush1.msra.mxu0 0.0
  %5747 = vmatprep.subr.mxu0 0.0
  %5748 = vmatpush1.msra.mxu0 0.0
  %5749 = vmatprep.subr.mxu0 0.0
  %5750 = vmatpush1.msra.mxu0 0.0
  %5751 = vmatprep.subr.mxu0 0.0
  %5752 = vmatpush1.msra.mxu0 0.0
  %5753 = vmatprep.subr.mxu0 0.0
  %5754 = vmatpush1.msra.mxu0 0.0
  %5755 = vmatprep.subr.mxu0 0.0
  %5756 = vmatpush1.msra.mxu0 0.0
  %5757 = vmatprep.mubr.f32.mxu0 0.0
  %v5758 = vand.u32 %v4564, 4294901760
  %5759 = vmatmul.mubr.f32.gmra.mrb[0].mxu0 %v5758
  %v5760 = vpop.f32.mrb[0].mxu0
  %v5761 = vadd.f32 %v5642, %v5760
  %v5762 = vpop.f32.mrb[0].mxu0
  %5763 = vdwg.mxu0
  %5764 = vmatprep.subr.mxu0 0.0
  %v5765 = vand.u32 %v25, 4294901760
  %5766 = vmatpush1.msra.mxu0 %v5765
  %5767 = vmatprep.subr.mxu0 0.0
  %v5768 = vand.u32 %v26, 4294901760
  %5769 = vmatpush1.msra.mxu0 %v5768
  %5770 = vmatprep.subr.mxu0 0.0
  %v5771 = vand.u32 %v27, 4294901760
  %5772 = vmatpush1.msra.mxu0 %v5771
  %5773 = vmatprep.subr.mxu0 0.0
  %v5774 = vand.u32 %v28, 4294901760
  %5775 = vmatpush1.msra.mxu0 %v5774
  %5776 = vmatprep.subr.mxu0 0.0
  %v5777 = vand.u32 %v29, 4294901760
  %5778 = vmatpush1.msra.mxu0 %v5777
  %5779 = vmatprep.subr.mxu0 0.0
  %v5780 = vand.u32 %v30, 4294901760
  %5781 = vmatpush1.msra.mxu0 %v5780
  %5782 = vmatprep.subr.mxu0 0.0
  %v5783 = vand.u32 %v31, 4294901760
  %5784 = vmatpush1.msra.mxu0 %v5783
  %5785 = vmatprep.subr.mxu0 0.0
  %v5786 = vand.u32 %v32, 4294901760
  %5787 = vmatpush1.msra.mxu0 %v5786
  %5788 = vmatprep.subr.mxu0 0.0
  %v5789 = vand.u32 %v33, 4294901760
  %5790 = vmatpush1.msra.mxu0 %v5789
  %5791 = vmatprep.subr.mxu0 0.0
  %v5792 = vand.u32 %v34, 4294901760
  %5793 = vmatpush1.msra.mxu0 %v5792
  %5794 = vmatprep.subr.mxu0 0.0
  %v5795 = vand.u32 %v35, 4294901760
  %5796 = vmatpush1.msra.mxu0 %v5795
  %5797 = vmatprep.subr.mxu0 0.0
  %v5798 = vand.u32 %v36, 4294901760
  %5799 = vmatpush1.msra.mxu0 %v5798
  %5800 = vmatprep.subr.mxu0 0.0
  %v5801 = vand.u32 %v37, 4294901760
  %5802 = vmatpush1.msra.mxu0 %v5801
  %5803 = vmatprep.subr.mxu0 0.0
  %v5804 = vand.u32 %v38, 4294901760
  %5805 = vmatpush1.msra.mxu0 %v5804
  %5806 = vmatprep.subr.mxu0 0.0
  %v5807 = vand.u32 %v39, 4294901760
  %5808 = vmatpush1.msra.mxu0 %v5807
  %5809 = vmatprep.subr.mxu0 0.0
  %v5810 = vand.u32 %v40, 4294901760
  %5811 = vmatpush1.msra.mxu0 %v5810
  %5812 = vmatprep.subr.mxu0 0.0
  %5813 = vmatpush1.msra.mxu0 0.0
  %5814 = vmatprep.subr.mxu0 0.0
  %5815 = vmatpush1.msra.mxu0 0.0
  %5816 = vmatprep.subr.mxu0 0.0
  %5817 = vmatpush1.msra.mxu0 0.0
  %5818 = vmatprep.subr.mxu0 0.0
  %5819 = vmatpush1.msra.mxu0 0.0
  %5820 = vmatprep.subr.mxu0 0.0
  %5821 = vmatpush1.msra.mxu0 0.0
  %5822 = vmatprep.subr.mxu0 0.0
  %5823 = vmatpush1.msra.mxu0 0.0
  %5824 = vmatprep.subr.mxu0 0.0
  %5825 = vmatpush1.msra.mxu0 0.0
  %5826 = vmatprep.subr.mxu0 0.0
  %5827 = vmatpush1.msra.mxu0 0.0
  %5828 = vmatprep.subr.mxu0 0.0
  %5829 = vmatpush1.msra.mxu0 0.0
  %5830 = vmatprep.subr.mxu0 0.0
  %5831 = vmatpush1.msra.mxu0 0.0
  %5832 = vmatprep.subr.mxu0 0.0
  %5833 = vmatpush1.msra.mxu0 0.0
  %5834 = vmatprep.subr.mxu0 0.0
  %5835 = vmatpush1.msra.mxu0 0.0
  %5836 = vmatprep.subr.mxu0 0.0
  %5837 = vmatpush1.msra.mxu0 0.0
  %5838 = vmatprep.subr.mxu0 0.0
  %5839 = vmatpush1.msra.mxu0 0.0
  %5840 = vmatprep.subr.mxu0 0.0
  %5841 = vmatpush1.msra.mxu0 0.0
  %5842 = vmatprep.subr.mxu0 0.0
  %5843 = vmatpush1.msra.mxu0 0.0
  %5844 = vmatprep.mubr.f32.mxu0 0.0
  %v5845 = vand.u32 %v4564, 4294901760
  %5846 = vmatmul.mubr.f32.gmra.mrb[0].mxu0 %v5845
  %v5847 = vpop.f32.mrb[0].mxu0
  %v5848 = vadd.f32 %v5761, %v5847
  %v5849 = vpop.f32.mrb[0].mxu0
  %5850 = vdwg.mxu0
  %v5851 = vadd.f32 %v5209, %v5848
  %v5852 = vtanh.pop %v5851
  %5853 = vmatprep.subr.mxu0 0.0
  %v5854 = vand.u32 %v41, 4294901760
  %5855 = vmatpush1.msra.mxu0 %v5854
  %5856 = vmatprep.subr.mxu0 0.0
  %v5857 = vand.u32 %v42, 4294901760
  %5858 = vmatpush1.msra.mxu0 %v5857
  %5859 = vmatprep.subr.mxu0 0.0
  %v5860 = vand.u32 %v43, 4294901760
  %5861 = vmatpush1.msra.mxu0 %v5860
  %5862 = vmatprep.subr.mxu0 0.0
  %v5863 = vand.u32 %v44, 4294901760
  %5864 = vmatpush1.msra.mxu0 %v5863
  %5865 = vmatprep.subr.mxu0 0.0
  %v5866 = vand.u32 %v45, 4294901760
  %5867 = vmatpush1.msra.mxu0 %v5866
  %5868 = vmatprep.subr.mxu0 0.0
  %v5869 = vand.u32 %v46, 4294901760
  %5870 = vmatpush1.msra.mxu0 %v5869
  %5871 = vmatprep.subr.mxu0 0.0
  %v5872 = vand.u32 %v47, 4294901760
  %5873 = vmatpush1.msra.mxu0 %v5872
  %5874 = vmatprep.subr.mxu0 0.0
  %v5875 = vand.u32 %v48, 4294901760
  %5876 = vmatpush1.msra.mxu0 %v5875
  %5877 = vmatprep.subr.mxu0 0.0
  %v5878 = vand.u32 %v49, 4294901760
  %5879 = vmatpush1.msra.mxu0 %v5878
  %5880 = vmatprep.subr.mxu0 0.0
  %v5881 = vand.u32 %v50, 4294901760
  %5882 = vmatpush1.msra.mxu0 %v5881
  %5883 = vmatprep.subr.mxu0 0.0
  %v5884 = vand.u32 %v51, 4294901760
  %5885 = vmatpush1.msra.mxu0 %v5884
  %5886 = vmatprep.subr.mxu0 0.0
  %v5887 = vand.u32 %v52, 4294901760
  %5888 = vmatpush1.msra.mxu0 %v5887
  %5889 = vmatprep.subr.mxu0 0.0
  %v5890 = vand.u32 %v53, 4294901760
  %5891 = vmatpush1.msra.mxu0 %v5890
  %5892 = vmatprep.subr.mxu0 0.0
  %v5893 = vand.u32 %v54, 4294901760
  %5894 = vmatpush1.msra.mxu0 %v5893
  %5895 = vmatprep.subr.mxu0 0.0
  %v5896 = vand.u32 %v55, 4294901760
  %5897 = vmatpush1.msra.mxu0 %v5896
  %5898 = vmatprep.subr.mxu0 0.0
  %v5899 = vand.u32 %v56, 4294901760
  %5900 = vmatpush1.msra.mxu0 %v5899
  %5901 = vmatprep.subr.mxu0 0.0
  %5902 = vmatpush1.msra.mxu0 0.0
  %5903 = vmatprep.subr.mxu0 0.0
  %5904 = vmatpush1.msra.mxu0 0.0
  %5905 = vmatprep.subr.mxu0 0.0
  %5906 = vmatpush1.msra.mxu0 0.0
  %5907 = vmatprep.subr.mxu0 0.0
  %5908 = vmatpush1.msra.mxu0 0.0
  %5909 = vmatprep.subr.mxu0 0.0
  %5910 = vmatpush1.msra.mxu0 0.0
  %5911 = vmatprep.subr.mxu0 0.0
  %5912 = vmatpush1.msra.mxu0 0.0
  %5913 = vmatprep.subr.mxu0 0.0
  %5914 = vmatpush1.msra.mxu0 0.0
  %5915 = vmatprep.subr.mxu0 0.0
  %5916 = vmatpush1.msra.mxu0 0.0
  %5917 = vmatprep.subr.mxu0 0.0
  %5918 = vmatpush1.msra.mxu0 0.0
  %5919 = vmatprep.subr.mxu0 0.0
  %5920 = vmatpush1.msra.mxu0 0.0
  %5921 = vmatprep.subr.mxu0 0.0
  %5922 = vmatpush1.msra.mxu0 0.0
  %5923 = vmatprep.subr.mxu0 0.0
  %5924 = vmatpush1.msra.mxu0 0.0
  %5925 = vmatprep.subr.mxu0 0.0
  %5926 = vmatpush1.msra.mxu0 0.0
  %5927 = vmatprep.subr.mxu0 0.0
  %5928 = vmatpush1.msra.mxu0 0.0
  %5929 = vmatprep.subr.mxu0 0.0
  %5930 = vmatpush1.msra.mxu0 0.0
  %5931 = vmatprep.subr.mxu0 0.0
  %5932 = vmatpush1.msra.mxu0 0.0
  %5933 = vmatprep.mubr.f32.mxu0 0.0
  %v5934 = vand.u32 %v5852, 4294901760
  %v5935 = vsub.f32 %v5852, %v5934
  %v5936 = vand.u32 %v5935, 4294901760
  %v5937 = vsub.f32 %v5935, %v5936
  %v5938 = vand.u32 %v5937, 4294901760
  %5939 = vmatmul.mubr.f32.gmra.mrb[0].mxu0 %v5938
  %v5940 = vpop.f32.mrb[0].mxu0
  %v5941 = vadd.f32 0.0, %v5940
  %v5942 = vpop.f32.mrb[0].mxu0
  %5943 = vdwg.mxu0
  %5944 = vmatprep.subr.mxu0 0.0
  %v5945 = vand.u32 %v41, 4294901760
  %v5946 = vsub.f32 %v41, %v5945
  %v5947 = vand.u32 %v5946, 4294901760
  %v5948 = vsub.f32 %v5946, %v5947
  %v5949 = vand.u32 %v5948, 4294901760
  %5950 = vmatpush1.msra.mxu0 %v5949
  %5951 = vmatprep.subr.mxu0 0.0
  %v5952 = vand.u32 %v42, 4294901760
  %v5953 = vsub.f32 %v42, %v5952
  %v5954 = vand.u32 %v5953, 4294901760
  %v5955 = vsub.f32 %v5953, %v5954
  %v5956 = vand.u32 %v5955, 4294901760
  %5957 = vmatpush1.msra.mxu0 %v5956
  %5958 = vmatprep.subr.mxu0 0.0
  %v5959 = vand.u32 %v43, 4294901760
  %v5960 = vsub.f32 %v43, %v5959
  %v5961 = vand.u32 %v5960, 4294901760
  %v5962 = vsub.f32 %v5960, %v5961
  %v5963 = vand.u32 %v5962, 4294901760
  %5964 = vmatpush1.msra.mxu0 %v5963
  %5965 = vmatprep.subr.mxu0 0.0
  %v5966 = vand.u32 %v44, 4294901760
  %v5967 = vsub.f32 %v44, %v5966
  %v5968 = vand.u32 %v5967, 4294901760
  %v5969 = vsub.f32 %v5967, %v5968
  %v5970 = vand.u32 %v5969, 4294901760
  %5971 = vmatpush1.msra.mxu0 %v5970
  %5972 = vmatprep.subr.mxu0 0.0
  %v5973 = vand.u32 %v45, 4294901760
  %v5974 = vsub.f32 %v45, %v5973
  %v5975 = vand.u32 %v5974, 4294901760
  %v5976 = vsub.f32 %v5974, %v5975
  %v5977 = vand.u32 %v5976, 4294901760
  %5978 = vmatpush1.msra.mxu0 %v5977
  %5979 = vmatprep.subr.mxu0 0.0
  %v5980 = vand.u32 %v46, 4294901760
  %v5981 = vsub.f32 %v46, %v5980
  %v5982 = vand.u32 %v5981, 4294901760
  %v5983 = vsub.f32 %v5981, %v5982
  %v5984 = vand.u32 %v5983, 4294901760
  %5985 = vmatpush1.msra.mxu0 %v5984
  %5986 = vmatprep.subr.mxu0 0.0
  %v5987 = vand.u32 %v47, 4294901760
  %v5988 = vsub.f32 %v47, %v5987
  %v5989 = vand.u32 %v5988, 4294901760
  %v5990 = vsub.f32 %v5988, %v5989
  %v5991 = vand.u32 %v5990, 4294901760
  %5992 = vmatpush1.msra.mxu0 %v5991
  %5993 = vmatprep.subr.mxu0 0.0
  %v5994 = vand.u32 %v48, 4294901760
  %v5995 = vsub.f32 %v48, %v5994
  %v5996 = vand.u32 %v5995, 4294901760
  %v5997 = vsub.f32 %v5995, %v5996
  %v5998 = vand.u32 %v5997, 4294901760
  %5999 = vmatpush1.msra.mxu0 %v5998
  %6000 = vmatprep.subr.mxu0 0.0
  %v6001 = vand.u32 %v49, 4294901760
  %v6002 = vsub.f32 %v49, %v6001
  %v6003 = vand.u32 %v6002, 4294901760
  %v6004 = vsub.f32 %v6002, %v6003
  %v6005 = vand.u32 %v6004, 4294901760
  %6006 = vmatpush1.msra.mxu0 %v6005
  %6007 = vmatprep.subr.mxu0 0.0
  %v6008 = vand.u32 %v50, 4294901760
  %v6009 = vsub.f32 %v50, %v6008
  %v6010 = vand.u32 %v6009, 4294901760
  %v6011 = vsub.f32 %v6009, %v6010
  %v6012 = vand.u32 %v6011, 4294901760
  %6013 = vmatpush1.msra.mxu0 %v6012
  %6014 = vmatprep.subr.mxu0 0.0
  %v6015 = vand.u32 %v51, 4294901760
  %v6016 = vsub.f32 %v51, %v6015
  %v6017 = vand.u32 %v6016, 4294901760
  %v6018 = vsub.f32 %v6016, %v6017
  %v6019 = vand.u32 %v6018, 4294901760
  %6020 = vmatpush1.msra.mxu0 %v6019
  %6021 = vmatprep.subr.mxu0 0.0
  %v6022 = vand.u32 %v52, 4294901760
  %v6023 = vsub.f32 %v52, %v6022
  %v6024 = vand.u32 %v6023, 4294901760
  %v6025 = vsub.f32 %v6023, %v6024
  %v6026 = vand.u32 %v6025, 4294901760
  %6027 = vmatpush1.msra.mxu0 %v6026
  %6028 = vmatprep.subr.mxu0 0.0
  %v6029 = vand.u32 %v53, 4294901760
  %v6030 = vsub.f32 %v53, %v6029
  %v6031 = vand.u32 %v6030, 4294901760
  %v6032 = vsub.f32 %v6030, %v6031
  %v6033 = vand.u32 %v6032, 4294901760
  %6034 = vmatpush1.msra.mxu0 %v6033
  %6035 = vmatprep.subr.mxu0 0.0
  %v6036 = vand.u32 %v54, 4294901760
  %v6037 = vsub.f32 %v54, %v6036
  %v6038 = vand.u32 %v6037, 4294901760
  %v6039 = vsub.f32 %v6037, %v6038
  %v6040 = vand.u32 %v6039, 4294901760
  %6041 = vmatpush1.msra.mxu0 %v6040
  %6042 = vmatprep.subr.mxu0 0.0
  %v6043 = vand.u32 %v55, 4294901760
  %v6044 = vsub.f32 %v55, %v6043
  %v6045 = vand.u32 %v6044, 4294901760
  %v6046 = vsub.f32 %v6044, %v6045
  %v6047 = vand.u32 %v6046, 4294901760
  %6048 = vmatpush1.msra.mxu0 %v6047
  %6049 = vmatprep.subr.mxu0 0.0
  %v6050 = vand.u32 %v56, 4294901760
  %v6051 = vsub.f32 %v56, %v6050
  %v6052 = vand.u32 %v6051, 4294901760
  %v6053 = vsub.f32 %v6051, %v6052
  %v6054 = vand.u32 %v6053, 4294901760
  %6055 = vmatpush1.msra.mxu0 %v6054
  %6056 = vmatprep.subr.mxu0 0.0
  %6057 = vmatpush1.msra.mxu0 0.0
  %6058 = vmatprep.subr.mxu0 0.0
  %6059 = vmatpush1.msra.mxu0 0.0
  %6060 = vmatprep.subr.mxu0 0.0
  %6061 = vmatpush1.msra.mxu0 0.0
  %6062 = vmatprep.subr.mxu0 0.0
  %6063 = vmatpush1.msra.mxu0 0.0
  %6064 = vmatprep.subr.mxu0 0.0
  %6065 = vmatpush1.msra.mxu0 0.0
  %6066 = vmatprep.subr.mxu0 0.0
  %6067 = vmatpush1.msra.mxu0 0.0
  %6068 = vmatprep.subr.mxu0 0.0
  %6069 = vmatpush1.msra.mxu0 0.0
  %6070 = vmatprep.subr.mxu0 0.0
  %6071 = vmatpush1.msra.mxu0 0.0
  %6072 = vmatprep.subr.mxu0 0.0
  %6073 = vmatpush1.msra.mxu0 0.0
  %6074 = vmatprep.subr.mxu0 0.0
  %6075 = vmatpush1.msra.mxu0 0.0
  %6076 = vmatprep.subr.mxu0 0.0
  %6077 = vmatpush1.msra.mxu0 0.0
  %6078 = vmatprep.subr.mxu0 0.0
  %6079 = vmatpush1.msra.mxu0 0.0
  %6080 = vmatprep.subr.mxu0 0.0
  %6081 = vmatpush1.msra.mxu0 0.0
  %6082 = vmatprep.subr.mxu0 0.0
  %6083 = vmatpush1.msra.mxu0 0.0
  %6084 = vmatprep.subr.mxu0 0.0
  %6085 = vmatpush1.msra.mxu0 0.0
  %6086 = vmatprep.subr.mxu0 0.0
  %6087 = vmatpush1.msra.mxu0 0.0
  %6088 = vmatprep.mubr.f32.mxu0 0.0
  %v6089 = vand.u32 %v5852, 4294901760
  %6090 = vmatmul.mubr.f32.gmra.mrb[0].mxu0 %v6089
  %v6091 = vpop.f32.mrb[0].mxu0
  %v6092 = vadd.f32 %v5941, %v6091
  %v6093 = vpop.f32.mrb[0].mxu0
  %6094 = vdwg.mxu0
  %6095 = vmatprep.subr.mxu0 0.0
  %v6096 = vand.u32 %v41, 4294901760
  %v6097 = vsub.f32 %v41, %v6096
  %6098 = vmatpush1.msra.mxu0 %v6097
  %6099 = vmatprep.subr.mxu0 0.0
  %v6100 = vand.u32 %v42, 4294901760
  %v6101 = vsub.f32 %v42, %v6100
  %6102 = vmatpush1.msra.mxu0 %v6101
  %6103 = vmatprep.subr.mxu0 0.0
  %v6104 = vand.u32 %v43, 4294901760
  %v6105 = vsub.f32 %v43, %v6104
  %6106 = vmatpush1.msra.mxu0 %v6105
  %6107 = vmatprep.subr.mxu0 0.0
  %v6108 = vand.u32 %v44, 4294901760
  %v6109 = vsub.f32 %v44, %v6108
  %6110 = vmatpush1.msra.mxu0 %v6109
  %6111 = vmatprep.subr.mxu0 0.0
  %v6112 = vand.u32 %v45, 4294901760
  %v6113 = vsub.f32 %v45, %v6112
  %6114 = vmatpush1.msra.mxu0 %v6113
  %6115 = vmatprep.subr.mxu0 0.0
  %v6116 = vand.u32 %v46, 4294901760
  %v6117 = vsub.f32 %v46, %v6116
  %6118 = vmatpush1.msra.mxu0 %v6117
  %6119 = vmatprep.subr.mxu0 0.0
  %v6120 = vand.u32 %v47, 4294901760
  %v6121 = vsub.f32 %v47, %v6120
  %6122 = vmatpush1.msra.mxu0 %v6121
  %6123 = vmatprep.subr.mxu0 0.0
  %v6124 = vand.u32 %v48, 4294901760
  %v6125 = vsub.f32 %v48, %v6124
  %6126 = vmatpush1.msra.mxu0 %v6125
  %6127 = vmatprep.subr.mxu0 0.0
  %v6128 = vand.u32 %v49, 4294901760
  %v6129 = vsub.f32 %v49, %v6128
  %6130 = vmatpush1.msra.mxu0 %v6129
  %6131 = vmatprep.subr.mxu0 0.0
  %v6132 = vand.u32 %v50, 4294901760
  %v6133 = vsub.f32 %v50, %v6132
  %6134 = vmatpush1.msra.mxu0 %v6133
  %6135 = vmatprep.subr.mxu0 0.0
  %v6136 = vand.u32 %v51, 4294901760
  %v6137 = vsub.f32 %v51, %v6136
  %6138 = vmatpush1.msra.mxu0 %v6137
  %6139 = vmatprep.subr.mxu0 0.0
  %v6140 = vand.u32 %v52, 4294901760
  %v6141 = vsub.f32 %v52, %v6140
  %6142 = vmatpush1.msra.mxu0 %v6141
  %6143 = vmatprep.subr.mxu0 0.0
  %v6144 = vand.u32 %v53, 4294901760
  %v6145 = vsub.f32 %v53, %v6144
  %6146 = vmatpush1.msra.mxu0 %v6145
  %6147 = vmatprep.subr.mxu0 0.0
  %v6148 = vand.u32 %v54, 4294901760
  %v6149 = vsub.f32 %v54, %v6148
  %6150 = vmatpush1.msra.mxu0 %v6149
  %6151 = vmatprep.subr.mxu0 0.0
  %v6152 = vand.u32 %v55, 4294901760
  %v6153 = vsub.f32 %v55, %v6152
  %6154 = vmatpush1.msra.mxu0 %v6153
  %6155 = vmatprep.subr.mxu0 0.0
  %v6156 = vand.u32 %v56, 4294901760
  %v6157 = vsub.f32 %v56, %v6156
  %6158 = vmatpush1.msra.mxu0 %v6157
  %6159 = vmatprep.subr.mxu0 0.0
  %6160 = vmatpush1.msra.mxu0 0.0
  %6161 = vmatprep.subr.mxu0 0.0
  %6162 = vmatpush1.msra.mxu0 0.0
  %6163 = vmatprep.subr.mxu0 0.0
  %6164 = vmatpush1.msra.mxu0 0.0
  %6165 = vmatprep.subr.mxu0 0.0
  %6166 = vmatpush1.msra.mxu0 0.0
  %6167 = vmatprep.subr.mxu0 0.0
  %6168 = vmatpush1.msra.mxu0 0.0
  %6169 = vmatprep.subr.mxu0 0.0
  %6170 = vmatpush1.msra.mxu0 0.0
  %6171 = vmatprep.subr.mxu0 0.0
  %6172 = vmatpush1.msra.mxu0 0.0
  %6173 = vmatprep.subr.mxu0 0.0
  %6174 = vmatpush1.msra.mxu0 0.0
  %6175 = vmatprep.subr.mxu0 0.0
  %6176 = vmatpush1.msra.mxu0 0.0
  %6177 = vmatprep.subr.mxu0 0.0
  %6178 = vmatpush1.msra.mxu0 0.0
  %6179 = vmatprep.subr.mxu0 0.0
  %6180 = vmatpush1.msra.mxu0 0.0
  %6181 = vmatprep.subr.mxu0 0.0
  %6182 = vmatpush1.msra.mxu0 0.0
  %6183 = vmatprep.subr.mxu0 0.0
  %6184 = vmatpush1.msra.mxu0 0.0
  %6185 = vmatprep.subr.mxu0 0.0
  %6186 = vmatpush1.msra.mxu0 0.0
  %6187 = vmatprep.subr.mxu0 0.0
  %6188 = vmatpush1.msra.mxu0 0.0
  %6189 = vmatprep.subr.mxu0 0.0
  %6190 = vmatpush1.msra.mxu0 0.0
  %6191 = vmatprep.mubr.f32.mxu0 0.0
  %v6192 = vand.u32 %v5852, 4294901760
  %v6193 = vsub.f32 %v5852, %v6192
  %6194 = vmatmul.mubr.f32.gmra.mrb[0].mxu0 %v6193
  %v6195 = vpop.f32.mrb[0].mxu0
  %v6196 = vadd.f32 %v6092, %v6195
  %v6197 = vpop.f32.mrb[0].mxu0
  %6198 = vdwg.mxu0
  %6199 = vmatprep.subr.mxu0 0.0
  %v6200 = vand.u32 %v41, 4294901760
  %6201 = vmatpush1.msra.mxu0 %v6200
  %6202 = vmatprep.subr.mxu0 0.0
  %v6203 = vand.u32 %v42, 4294901760
  %6204 = vmatpush1.msra.mxu0 %v6203
  %6205 = vmatprep.subr.mxu0 0.0
  %v6206 = vand.u32 %v43, 4294901760
  %6207 = vmatpush1.msra.mxu0 %v6206
  %6208 = vmatprep.subr.mxu0 0.0
  %v6209 = vand.u32 %v44, 4294901760
  %6210 = vmatpush1.msra.mxu0 %v6209
  %6211 = vmatprep.subr.mxu0 0.0
  %v6212 = vand.u32 %v45, 4294901760
  %6213 = vmatpush1.msra.mxu0 %v6212
  %6214 = vmatprep.subr.mxu0 0.0
  %v6215 = vand.u32 %v46, 4294901760
  %6216 = vmatpush1.msra.mxu0 %v6215
  %6217 = vmatprep.subr.mxu0 0.0
  %v6218 = vand.u32 %v47, 4294901760
  %6219 = vmatpush1.msra.mxu0 %v6218
  %6220 = vmatprep.subr.mxu0 0.0
  %v6221 = vand.u32 %v48, 4294901760
  %6222 = vmatpush1.msra.mxu0 %v6221
  %6223 = vmatprep.subr.mxu0 0.0
  %v6224 = vand.u32 %v49, 4294901760
  %6225 = vmatpush1.msra.mxu0 %v6224
  %6226 = vmatprep.subr.mxu0 0.0
  %v6227 = vand.u32 %v50, 4294901760
  %6228 = vmatpush1.msra.mxu0 %v6227
  %6229 = vmatprep.subr.mxu0 0.0
  %v6230 = vand.u32 %v51, 4294901760
  %6231 = vmatpush1.msra.mxu0 %v6230
  %6232 = vmatprep.subr.mxu0 0.0
  %v6233 = vand.u32 %v52, 4294901760
  %6234 = vmatpush1.msra.mxu0 %v6233
  %6235 = vmatprep.subr.mxu0 0.0
  %v6236 = vand.u32 %v53, 4294901760
  %6237 = vmatpush1.msra.mxu0 %v6236
  %6238 = vmatprep.subr.mxu0 0.0
  %v6239 = vand.u32 %v54, 4294901760
  %6240 = vmatpush1.msra.mxu0 %v6239
  %6241 = vmatprep.subr.mxu0 0.0
  %v6242 = vand.u32 %v55, 4294901760
  %6243 = vmatpush1.msra.mxu0 %v6242
  %6244 = vmatprep.subr.mxu0 0.0
  %v6245 = vand.u32 %v56, 4294901760
  %6246 = vmatpush1.msra.mxu0 %v6245
  %6247 = vmatprep.subr.mxu0 0.0
  %6248 = vmatpush1.msra.mxu0 0.0
  %6249 = vmatprep.subr.mxu0 0.0
  %6250 = vmatpush1.msra.mxu0 0.0
  %6251 = vmatprep.subr.mxu0 0.0
  %6252 = vmatpush1.msra.mxu0 0.0
  %6253 = vmatprep.subr.mxu0 0.0
  %6254 = vmatpush1.msra.mxu0 0.0
  %6255 = vmatprep.subr.mxu0 0.0
  %6256 = vmatpush1.msra.mxu0 0.0
  %6257 = vmatprep.subr.mxu0 0.0
  %6258 = vmatpush1.msra.mxu0 0.0
  %6259 = vmatprep.subr.mxu0 0.0
  %6260 = vmatpush1.msra.mxu0 0.0
  %6261 = vmatprep.subr.mxu0 0.0
  %6262 = vmatpush1.msra.mxu0 0.0
  %6263 = vmatprep.subr.mxu0 0.0
  %6264 = vmatpush1.msra.mxu0 0.0
  %6265 = vmatprep.subr.mxu0 0.0
  %6266 = vmatpush1.msra.mxu0 0.0
  %6267 = vmatprep.subr.mxu0 0.0
  %6268 = vmatpush1.msra.mxu0 0.0
  %6269 = vmatprep.subr.mxu0 0.0
  %6270 = vmatpush1.msra.mxu0 0.0
  %6271 = vmatprep.subr.mxu0 0.0
  %6272 = vmatpush1.msra.mxu0 0.0
  %6273 = vmatprep.subr.mxu0 0.0
  %6274 = vmatpush1.msra.mxu0 0.0
  %6275 = vmatprep.subr.mxu0 0.0
  %6276 = vmatpush1.msra.mxu0 0.0
  %6277 = vmatprep.subr.mxu0 0.0
  %6278 = vmatpush1.msra.mxu0 0.0
  %6279 = vmatprep.mubr.f32.mxu0 0.0
  %v6280 = vand.u32 %v5852, 4294901760
  %v6281 = vsub.f32 %v5852, %v6280
  %v6282 = vand.u32 %v6281, 4294901760
  %6283 = vmatmul.mubr.f32.gmra.mrb[0].mxu0 %v6282
  %v6284 = vpop.f32.mrb[0].mxu0
  %v6285 = vadd.f32 %v6196, %v6284
  %v6286 = vpop.f32.mrb[0].mxu0
  %6287 = vdwg.mxu0
  %6288 = vmatprep.subr.mxu0 0.0
  %v6289 = vand.u32 %v41, 4294901760
  %v6290 = vsub.f32 %v41, %v6289
  %v6291 = vand.u32 %v6290, 4294901760
  %6292 = vmatpush1.msra.mxu0 %v6291
  %6293 = vmatprep.subr.mxu0 0.0
  %v6294 = vand.u32 %v42, 4294901760
  %v6295 = vsub.f32 %v42, %v6294
  %v6296 = vand.u32 %v6295, 4294901760
  %6297 = vmatpush1.msra.mxu0 %v6296
  %6298 = vmatprep.subr.mxu0 0.0
  %v6299 = vand.u32 %v43, 4294901760
  %v6300 = vsub.f32 %v43, %v6299
  %v6301 = vand.u32 %v6300, 4294901760
  %6302 = vmatpush1.msra.mxu0 %v6301
  %6303 = vmatprep.subr.mxu0 0.0
  %v6304 = vand.u32 %v44, 4294901760
  %v6305 = vsub.f32 %v44, %v6304
  %v6306 = vand.u32 %v6305, 4294901760
  %6307 = vmatpush1.msra.mxu0 %v6306
  %6308 = vmatprep.subr.mxu0 0.0
  %v6309 = vand.u32 %v45, 4294901760
  %v6310 = vsub.f32 %v45, %v6309
  %v6311 = vand.u32 %v6310, 4294901760
  %6312 = vmatpush1.msra.mxu0 %v6311
  %6313 = vmatprep.subr.mxu0 0.0
  %v6314 = vand.u32 %v46, 4294901760
  %v6315 = vsub.f32 %v46, %v6314
  %v6316 = vand.u32 %v6315, 4294901760
  %6317 = vmatpush1.msra.mxu0 %v6316
  %6318 = vmatprep.subr.mxu0 0.0
  %v6319 = vand.u32 %v47, 4294901760
  %v6320 = vsub.f32 %v47, %v6319
  %v6321 = vand.u32 %v6320, 4294901760
  %6322 = vmatpush1.msra.mxu0 %v6321
  %6323 = vmatprep.subr.mxu0 0.0
  %v6324 = vand.u32 %v48, 4294901760
  %v6325 = vsub.f32 %v48, %v6324
  %v6326 = vand.u32 %v6325, 4294901760
  %6327 = vmatpush1.msra.mxu0 %v6326
  %6328 = vmatprep.subr.mxu0 0.0
  %v6329 = vand.u32 %v49, 4294901760
  %v6330 = vsub.f32 %v49, %v6329
  %v6331 = vand.u32 %v6330, 4294901760
  %6332 = vmatpush1.msra.mxu0 %v6331
  %6333 = vmatprep.subr.mxu0 0.0
  %v6334 = vand.u32 %v50, 4294901760
  %v6335 = vsub.f32 %v50, %v6334
  %v6336 = vand.u32 %v6335, 4294901760
  %6337 = vmatpush1.msra.mxu0 %v6336
  %6338 = vmatprep.subr.mxu0 0.0
  %v6339 = vand.u32 %v51, 4294901760
  %v6340 = vsub.f32 %v51, %v6339
  %v6341 = vand.u32 %v6340, 4294901760
  %6342 = vmatpush1.msra.mxu0 %v6341
  %6343 = vmatprep.subr.mxu0 0.0
  %v6344 = vand.u32 %v52, 4294901760
  %v6345 = vsub.f32 %v52, %v6344
  %v6346 = vand.u32 %v6345, 4294901760
  %6347 = vmatpush1.msra.mxu0 %v6346
  %6348 = vmatprep.subr.mxu0 0.0
  %v6349 = vand.u32 %v53, 4294901760
  %v6350 = vsub.f32 %v53, %v6349
  %v6351 = vand.u32 %v6350, 4294901760
  %6352 = vmatpush1.msra.mxu0 %v6351
  %6353 = vmatprep.subr.mxu0 0.0
  %v6354 = vand.u32 %v54, 4294901760
  %v6355 = vsub.f32 %v54, %v6354
  %v6356 = vand.u32 %v6355, 4294901760
  %6357 = vmatpush1.msra.mxu0 %v6356
  %6358 = vmatprep.subr.mxu0 0.0
  %v6359 = vand.u32 %v55, 4294901760
  %v6360 = vsub.f32 %v55, %v6359
  %v6361 = vand.u32 %v6360, 4294901760
  %6362 = vmatpush1.msra.mxu0 %v6361
  %6363 = vmatprep.subr.mxu0 0.0
  %v6364 = vand.u32 %v56, 4294901760
  %v6365 = vsub.f32 %v56, %v6364
  %v6366 = vand.u32 %v6365, 4294901760
  %6367 = vmatpush1.msra.mxu0 %v6366
  %6368 = vmatprep.subr.mxu0 0.0
  %6369 = vmatpush1.msra.mxu0 0.0
  %6370 = vmatprep.subr.mxu0 0.0
  %6371 = vmatpush1.msra.mxu0 0.0
  %6372 = vmatprep.subr.mxu0 0.0
  %6373 = vmatpush1.msra.mxu0 0.0
  %6374 = vmatprep.subr.mxu0 0.0
  %6375 = vmatpush1.msra.mxu0 0.0
  %6376 = vmatprep.subr.mxu0 0.0
  %6377 = vmatpush1.msra.mxu0 0.0
  %6378 = vmatprep.subr.mxu0 0.0
  %6379 = vmatpush1.msra.mxu0 0.0
  %6380 = vmatprep.subr.mxu0 0.0
  %6381 = vmatpush1.msra.mxu0 0.0
  %6382 = vmatprep.subr.mxu0 0.0
  %6383 = vmatpush1.msra.mxu0 0.0
  %6384 = vmatprep.subr.mxu0 0.0
  %6385 = vmatpush1.msra.mxu0 0.0
  %6386 = vmatprep.subr.mxu0 0.0
  %6387 = vmatpush1.msra.mxu0 0.0
  %6388 = vmatprep.subr.mxu0 0.0
  %6389 = vmatpush1.msra.mxu0 0.0
  %6390 = vmatprep.subr.mxu0 0.0
  %6391 = vmatpush1.msra.mxu0 0.0
  %6392 = vmatprep.subr.mxu0 0.0
  %6393 = vmatpush1.msra.mxu0 0.0
  %6394 = vmatprep.subr.mxu0 0.0
  %6395 = vmatpush1.msra.mxu0 0.0
  %6396 = vmatprep.subr.mxu0 0.0
  %6397 = vmatpush1.msra.mxu0 0.0
  %6398 = vmatprep.subr.mxu0 0.0
  %6399 = vmatpush1.msra.mxu0 0.0
  %6400 = vmatprep.mubr.f32.mxu0 0.0
  %v6401 = vand.u32 %v5852, 4294901760
  %6402 = vmatmul.mubr.f32.gmra.mrb[0].mxu0 %v6401
  %v6403 = vpop.f32.mrb[0].mxu0
  %v6404 = vadd.f32 %v6285, %v6403
  %v6405 = vpop.f32.mrb[0].mxu0
  %6406 = vdwg.mxu0
  %6407 = vmatprep.subr.mxu0 0.0
  %v6408 = vand.u32 %v41, 4294901760
  %6409 = vmatpush1.msra.mxu0 %v6408
  %6410 = vmatprep.subr.mxu0 0.0
  %v6411 = vand.u32 %v42, 4294901760
  %6412 = vmatpush1.msra.mxu0 %v6411
  %6413 = vmatprep.subr.mxu0 0.0
  %v6414 = vand.u32 %v43, 4294901760
  %6415 = vmatpush1.msra.mxu0 %v6414
  %6416 = vmatprep.subr.mxu0 0.0
  %v6417 = vand.u32 %v44, 4294901760
  %6418 = vmatpush1.msra.mxu0 %v6417
  %6419 = vmatprep.subr.mxu0 0.0
  %v6420 = vand.u32 %v45, 4294901760
  %6421 = vmatpush1.msra.mxu0 %v6420
  %6422 = vmatprep.subr.mxu0 0.0
  %v6423 = vand.u32 %v46, 4294901760
  %6424 = vmatpush1.msra.mxu0 %v6423
  %6425 = vmatprep.subr.mxu0 0.0
  %v6426 = vand.u32 %v47, 4294901760
  %6427 = vmatpush1.msra.mxu0 %v6426
  %6428 = vmatprep.subr.mxu0 0.0
  %v6429 = vand.u32 %v48, 4294901760
  %6430 = vmatpush1.msra.mxu0 %v6429
  %6431 = vmatprep.subr.mxu0 0.0
  %v6432 = vand.u32 %v49, 4294901760
  %6433 = vmatpush1.msra.mxu0 %v6432
  %6434 = vmatprep.subr.mxu0 0.0
  %v6435 = vand.u32 %v50, 4294901760
  %6436 = vmatpush1.msra.mxu0 %v6435
  %6437 = vmatprep.subr.mxu0 0.0
  %v6438 = vand.u32 %v51, 4294901760
  %6439 = vmatpush1.msra.mxu0 %v6438
  %6440 = vmatprep.subr.mxu0 0.0
  %v6441 = vand.u32 %v52, 4294901760
  %6442 = vmatpush1.msra.mxu0 %v6441
  %6443 = vmatprep.subr.mxu0 0.0
  %v6444 = vand.u32 %v53, 4294901760
  %6445 = vmatpush1.msra.mxu0 %v6444
  %6446 = vmatprep.subr.mxu0 0.0
  %v6447 = vand.u32 %v54, 4294901760
  %6448 = vmatpush1.msra.mxu0 %v6447
  %6449 = vmatprep.subr.mxu0 0.0
  %v6450 = vand.u32 %v55, 4294901760
  %6451 = vmatpush1.msra.mxu0 %v6450
  %6452 = vmatprep.subr.mxu0 0.0
  %v6453 = vand.u32 %v56, 4294901760
  %6454 = vmatpush1.msra.mxu0 %v6453
  %6455 = vmatprep.subr.mxu0 0.0
  %6456 = vmatpush1.msra.mxu0 0.0
  %6457 = vmatprep.subr.mxu0 0.0
  %6458 = vmatpush1.msra.mxu0 0.0
  %6459 = vmatprep.subr.mxu0 0.0
  %6460 = vmatpush1.msra.mxu0 0.0
  %6461 = vmatprep.subr.mxu0 0.0
  %6462 = vmatpush1.msra.mxu0 0.0
  %6463 = vmatprep.subr.mxu0 0.0
  %6464 = vmatpush1.msra.mxu0 0.0
  %6465 = vmatprep.subr.mxu0 0.0
  %6466 = vmatpush1.msra.mxu0 0.0
  %6467 = vmatprep.subr.mxu0 0.0
  %6468 = vmatpush1.msra.mxu0 0.0
  %6469 = vmatprep.subr.mxu0 0.0
  %6470 = vmatpush1.msra.mxu0 0.0
  %6471 = vmatprep.subr.mxu0 0.0
  %6472 = vmatpush1.msra.mxu0 0.0
  %6473 = vmatprep.subr.mxu0 0.0
  %6474 = vmatpush1.msra.mxu0 0.0
  %6475 = vmatprep.subr.mxu0 0.0
  %6476 = vmatpush1.msra.mxu0 0.0
  %6477 = vmatprep.subr.mxu0 0.0
  %6478 = vmatpush1.msra.mxu0 0.0
  %6479 = vmatprep.subr.mxu0 0.0
  %6480 = vmatpush1.msra.mxu0 0.0
  %6481 = vmatprep.subr.mxu0 0.0
  %6482 = vmatpush1.msra.mxu0 0.0
  %6483 = vmatprep.subr.mxu0 0.0
  %6484 = vmatpush1.msra.mxu0 0.0
  %6485 = vmatprep.subr.mxu0 0.0
  %6486 = vmatpush1.msra.mxu0 0.0
  %6487 = vmatprep.mubr.f32.mxu0 0.0
  %v6488 = vand.u32 %v5852, 4294901760
  %6489 = vmatmul.mubr.f32.gmra.mrb[0].mxu0 %v6488
  %v6490 = vpop.f32.mrb[0].mxu0
  %v6491 = vadd.f32 %v6404, %v6490
  %v6492 = vpop.f32.mrb[0].mxu0
  %6493 = vdwg.mxu0
  %s6494 = scalar_lea.vmem %s4, 32
  %6495 = vst [vmem:[%s6494] sm:$0xff] %v6491
  %s6496 = scalar_lea.vmem %s0, 40
  %v6497 = vld [vmem:[%s6496] sm:$0xff]
  %6498 = vmatprep.subr.mxu0 0.0
  %v6499 = vand.u32 %v25, 4294901760
  %6500 = vmatpush1.msra.mxu0 %v6499
  %6501 = vmatprep.subr.mxu0 0.0
  %v6502 = vand.u32 %v26, 4294901760
  %6503 = vmatpush1.msra.mxu0 %v6502
  %6504 = vmatprep.subr.mxu0 0.0
  %v6505 = vand.u32 %v27, 4294901760
  %6506 = vmatpush1.msra.mxu0 %v6505
  %6507 = vmatprep.subr.mxu0 0.0
  %v6508 = vand.u32 %v28, 4294901760
  %6509 = vmatpush1.msra.mxu0 %v6508
  %6510 = vmatprep.subr.mxu0 0.0
  %v6511 = vand.u32 %v29, 4294901760
  %6512 = vmatpush1.msra.mxu0 %v6511
  %6513 = vmatprep.subr.mxu0 0.0
  %v6514 = vand.u32 %v30, 4294901760
  %6515 = vmatpush1.msra.mxu0 %v6514
  %6516 = vmatprep.subr.mxu0 0.0
  %v6517 = vand.u32 %v31, 4294901760
  %6518 = vmatpush1.msra.mxu0 %v6517
  %6519 = vmatprep.subr.mxu0 0.0
  %v6520 = vand.u32 %v32, 4294901760
  %6521 = vmatpush1.msra.mxu0 %v6520
  %6522 = vmatprep.subr.mxu0 0.0
  %v6523 = vand.u32 %v33, 4294901760
  %6524 = vmatpush1.msra.mxu0 %v6523
  %6525 = vmatprep.subr.mxu0 0.0
  %v6526 = vand.u32 %v34, 4294901760
  %6527 = vmatpush1.msra.mxu0 %v6526
  %6528 = vmatprep.subr.mxu0 0.0
  %v6529 = vand.u32 %v35, 4294901760
  %6530 = vmatpush1.msra.mxu0 %v6529
  %6531 = vmatprep.subr.mxu0 0.0
  %v6532 = vand.u32 %v36, 4294901760
  %6533 = vmatpush1.msra.mxu0 %v6532
  %6534 = vmatprep.subr.mxu0 0.0
  %v6535 = vand.u32 %v37, 4294901760
  %6536 = vmatpush1.msra.mxu0 %v6535
  %6537 = vmatprep.subr.mxu0 0.0
  %v6538 = vand.u32 %v38, 4294901760
  %6539 = vmatpush1.msra.mxu0 %v6538
  %6540 = vmatprep.subr.mxu0 0.0
  %v6541 = vand.u32 %v39, 4294901760
  %6542 = vmatpush1.msra.mxu0 %v6541
  %6543 = vmatprep.subr.mxu0 0.0
  %v6544 = vand.u32 %v40, 4294901760
  %6545 = vmatpush1.msra.mxu0 %v6544
  %6546 = vmatprep.subr.mxu0 0.0
  %6547 = vmatpush1.msra.mxu0 0.0
  %6548 = vmatprep.subr.mxu0 0.0
  %6549 = vmatpush1.msra.mxu0 0.0
  %6550 = vmatprep.subr.mxu0 0.0
  %6551 = vmatpush1.msra.mxu0 0.0
  %6552 = vmatprep.subr.mxu0 0.0
  %6553 = vmatpush1.msra.mxu0 0.0
  %6554 = vmatprep.subr.mxu0 0.0
  %6555 = vmatpush1.msra.mxu0 0.0
  %6556 = vmatprep.subr.mxu0 0.0
  %6557 = vmatpush1.msra.mxu0 0.0
  %6558 = vmatprep.subr.mxu0 0.0
  %6559 = vmatpush1.msra.mxu0 0.0
  %6560 = vmatprep.subr.mxu0 0.0
  %6561 = vmatpush1.msra.mxu0 0.0
  %6562 = vmatprep.subr.mxu0 0.0
  %6563 = vmatpush1.msra.mxu0 0.0
  %6564 = vmatprep.subr.mxu0 0.0
  %6565 = vmatpush1.msra.mxu0 0.0
  %6566 = vmatprep.subr.mxu0 0.0
  %6567 = vmatpush1.msra.mxu0 0.0
  %6568 = vmatprep.subr.mxu0 0.0
  %6569 = vmatpush1.msra.mxu0 0.0
  %6570 = vmatprep.subr.mxu0 0.0
  %6571 = vmatpush1.msra.mxu0 0.0
  %6572 = vmatprep.subr.mxu0 0.0
  %6573 = vmatpush1.msra.mxu0 0.0
  %6574 = vmatprep.subr.mxu0 0.0
  %6575 = vmatpush1.msra.mxu0 0.0
  %6576 = vmatprep.subr.mxu0 0.0
  %6577 = vmatpush1.msra.mxu0 0.0
  %6578 = vmatprep.mubr.f32.mxu0 0.0
  %v6579 = vand.u32 %v5852, 4294901760
  %v6580 = vsub.f32 %v5852, %v6579
  %v6581 = vand.u32 %v6580, 4294901760
  %v6582 = vsub.f32 %v6580, %v6581
  %v6583 = vand.u32 %v6582, 4294901760
  %6584 = vmatmul.mubr.f32.gmra.mrb[0].mxu0 %v6583
  %v6585 = vpop.f32.mrb[0].mxu0
  %v6586 = vadd.f32 0.0, %v6585
  %v6587 = vpop.f32.mrb[0].mxu0
  %6588 = vdwg.mxu0
  %6589 = vmatprep.subr.mxu0 0.0
  %v6590 = vand.u32 %v25, 4294901760
  %v6591 = vsub.f32 %v25, %v6590
  %v6592 = vand.u32 %v6591, 4294901760
  %v6593 = vsub.f32 %v6591, %v6592
  %v6594 = vand.u32 %v6593, 4294901760
  %6595 = vmatpush1.msra.mxu0 %v6594
  %6596 = vmatprep.subr.mxu0 0.0
  %v6597 = vand.u32 %v26, 4294901760
  %v6598 = vsub.f32 %v26, %v6597
  %v6599 = vand.u32 %v6598, 4294901760
  %v6600 = vsub.f32 %v6598, %v6599
  %v6601 = vand.u32 %v6600, 4294901760
  %6602 = vmatpush1.msra.mxu0 %v6601
  %6603 = vmatprep.subr.mxu0 0.0
  %v6604 = vand.u32 %v27, 4294901760
  %v6605 = vsub.f32 %v27, %v6604
  %v6606 = vand.u32 %v6605, 4294901760
  %v6607 = vsub.f32 %v6605, %v6606
  %v6608 = vand.u32 %v6607, 4294901760
  %6609 = vmatpush1.msra.mxu0 %v6608
  %6610 = vmatprep.subr.mxu0 0.0
  %v6611 = vand.u32 %v28, 4294901760
  %v6612 = vsub.f32 %v28, %v6611
  %v6613 = vand.u32 %v6612, 4294901760
  %v6614 = vsub.f32 %v6612, %v6613
  %v6615 = vand.u32 %v6614, 4294901760
  %6616 = vmatpush1.msra.mxu0 %v6615
  %6617 = vmatprep.subr.mxu0 0.0
  %v6618 = vand.u32 %v29, 4294901760
  %v6619 = vsub.f32 %v29, %v6618
  %v6620 = vand.u32 %v6619, 4294901760
  %v6621 = vsub.f32 %v6619, %v6620
  %v6622 = vand.u32 %v6621, 4294901760
  %6623 = vmatpush1.msra.mxu0 %v6622
  %6624 = vmatprep.subr.mxu0 0.0
  %v6625 = vand.u32 %v30, 4294901760
  %v6626 = vsub.f32 %v30, %v6625
  %v6627 = vand.u32 %v6626, 4294901760
  %v6628 = vsub.f32 %v6626, %v6627
  %v6629 = vand.u32 %v6628, 4294901760
  %6630 = vmatpush1.msra.mxu0 %v6629
  %6631 = vmatprep.subr.mxu0 0.0
  %v6632 = vand.u32 %v31, 4294901760
  %v6633 = vsub.f32 %v31, %v6632
  %v6634 = vand.u32 %v6633, 4294901760
  %v6635 = vsub.f32 %v6633, %v6634
  %v6636 = vand.u32 %v6635, 4294901760
  %6637 = vmatpush1.msra.mxu0 %v6636
  %6638 = vmatprep.subr.mxu0 0.0
  %v6639 = vand.u32 %v32, 4294901760
  %v6640 = vsub.f32 %v32, %v6639
  %v6641 = vand.u32 %v6640, 4294901760
  %v6642 = vsub.f32 %v6640, %v6641
  %v6643 = vand.u32 %v6642, 4294901760
  %6644 = vmatpush1.msra.mxu0 %v6643
  %6645 = vmatprep.subr.mxu0 0.0
  %v6646 = vand.u32 %v33, 4294901760
  %v6647 = vsub.f32 %v33, %v6646
  %v6648 = vand.u32 %v6647, 4294901760
  %v6649 = vsub.f32 %v6647, %v6648
  %v6650 = vand.u32 %v6649, 4294901760
  %6651 = vmatpush1.msra.mxu0 %v6650
  %6652 = vmatprep.subr.mxu0 0.0
  %v6653 = vand.u32 %v34, 4294901760
  %v6654 = vsub.f32 %v34, %v6653
  %v6655 = vand.u32 %v6654, 4294901760
  %v6656 = vsub.f32 %v6654, %v6655
  %v6657 = vand.u32 %v6656, 4294901760
  %6658 = vmatpush1.msra.mxu0 %v6657
  %6659 = vmatprep.subr.mxu0 0.0
  %v6660 = vand.u32 %v35, 4294901760
  %v6661 = vsub.f32 %v35, %v6660
  %v6662 = vand.u32 %v6661, 4294901760
  %v6663 = vsub.f32 %v6661, %v6662
  %v6664 = vand.u32 %v6663, 4294901760
  %6665 = vmatpush1.msra.mxu0 %v6664
  %6666 = vmatprep.subr.mxu0 0.0
  %v6667 = vand.u32 %v36, 4294901760
  %v6668 = vsub.f32 %v36, %v6667
  %v6669 = vand.u32 %v6668, 4294901760
  %v6670 = vsub.f32 %v6668, %v6669
  %v6671 = vand.u32 %v6670, 4294901760
  %6672 = vmatpush1.msra.mxu0 %v6671
  %6673 = vmatprep.subr.mxu0 0.0
  %v6674 = vand.u32 %v37, 4294901760
  %v6675 = vsub.f32 %v37, %v6674
  %v6676 = vand.u32 %v6675, 4294901760
  %v6677 = vsub.f32 %v6675, %v6676
  %v6678 = vand.u32 %v6677, 4294901760
  %6679 = vmatpush1.msra.mxu0 %v6678
  %6680 = vmatprep.subr.mxu0 0.0
  %v6681 = vand.u32 %v38, 4294901760
  %v6682 = vsub.f32 %v38, %v6681
  %v6683 = vand.u32 %v6682, 4294901760
  %v6684 = vsub.f32 %v6682, %v6683
  %v6685 = vand.u32 %v6684, 4294901760
  %6686 = vmatpush1.msra.mxu0 %v6685
  %6687 = vmatprep.subr.mxu0 0.0
  %v6688 = vand.u32 %v39, 4294901760
  %v6689 = vsub.f32 %v39, %v6688
  %v6690 = vand.u32 %v6689, 4294901760
  %v6691 = vsub.f32 %v6689, %v6690
  %v6692 = vand.u32 %v6691, 4294901760
  %6693 = vmatpush1.msra.mxu0 %v6692
  %6694 = vmatprep.subr.mxu0 0.0
  %v6695 = vand.u32 %v40, 4294901760
  %v6696 = vsub.f32 %v40, %v6695
  %v6697 = vand.u32 %v6696, 4294901760
  %v6698 = vsub.f32 %v6696, %v6697
  %v6699 = vand.u32 %v6698, 4294901760
  %6700 = vmatpush1.msra.mxu0 %v6699
  %6701 = vmatprep.subr.mxu0 0.0
  %6702 = vmatpush1.msra.mxu0 0.0
  %6703 = vmatprep.subr.mxu0 0.0
  %6704 = vmatpush1.msra.mxu0 0.0
  %6705 = vmatprep.subr.mxu0 0.0
  %6706 = vmatpush1.msra.mxu0 0.0
  %6707 = vmatprep.subr.mxu0 0.0
  %6708 = vmatpush1.msra.mxu0 0.0
  %6709 = vmatprep.subr.mxu0 0.0
  %6710 = vmatpush1.msra.mxu0 0.0
  %6711 = vmatprep.subr.mxu0 0.0
  %6712 = vmatpush1.msra.mxu0 0.0
  %6713 = vmatprep.subr.mxu0 0.0
  %6714 = vmatpush1.msra.mxu0 0.0
  %6715 = vmatprep.subr.mxu0 0.0
  %6716 = vmatpush1.msra.mxu0 0.0
  %6717 = vmatprep.subr.mxu0 0.0
  %6718 = vmatpush1.msra.mxu0 0.0
  %6719 = vmatprep.subr.mxu0 0.0
  %6720 = vmatpush1.msra.mxu0 0.0
  %6721 = vmatprep.subr.mxu0 0.0
  %6722 = vmatpush1.msra.mxu0 0.0
  %6723 = vmatprep.subr.mxu0 0.0
  %6724 = vmatpush1.msra.mxu0 0.0
  %6725 = vmatprep.subr.mxu0 0.0
  %6726 = vmatpush1.msra.mxu0 0.0
  %6727 = vmatprep.subr.mxu0 0.0
  %6728 = vmatpush1.msra.mxu0 0.0
  %6729 = vmatprep.subr.mxu0 0.0
  %6730 = vmatpush1.msra.mxu0 0.0
  %6731 = vmatprep.subr.mxu0 0.0
  %6732 = vmatpush1.msra.mxu0 0.0
  %6733 = vmatprep.mubr.f32.mxu0 0.0
  %v6734 = vand.u32 %v5852, 4294901760
  %6735 = vmatmul.mubr.f32.gmra.mrb[0].mxu0 %v6734
  %v6736 = vpop.f32.mrb[0].mxu0
  %v6737 = vadd.f32 %v6586, %v6736
  %v6738 = vpop.f32.mrb[0].mxu0
  %6739 = vdwg.mxu0
  %6740 = vmatprep.subr.mxu0 0.0
  %v6741 = vand.u32 %v25, 4294901760
  %v6742 = vsub.f32 %v25, %v6741
  %6743 = vmatpush1.msra.mxu0 %v6742
  %6744 = vmatprep.subr.mxu0 0.0
  %v6745 = vand.u32 %v26, 4294901760
  %v6746 = vsub.f32 %v26, %v6745
  %6747 = vmatpush1.msra.mxu0 %v6746
  %6748 = vmatprep.subr.mxu0 0.0
  %v6749 = vand.u32 %v27, 4294901760
  %v6750 = vsub.f32 %v27, %v6749
  %6751 = vmatpush1.msra.mxu0 %v6750
  %6752 = vmatprep.subr.mxu0 0.0
  %v6753 = vand.u32 %v28, 4294901760
  %v6754 = vsub.f32 %v28, %v6753
  %6755 = vmatpush1.msra.mxu0 %v6754
  %6756 = vmatprep.subr.mxu0 0.0
  %v6757 = vand.u32 %v29, 4294901760
  %v6758 = vsub.f32 %v29, %v6757
  %6759 = vmatpush1.msra.mxu0 %v6758
  %6760 = vmatprep.subr.mxu0 0.0
  %v6761 = vand.u32 %v30, 4294901760
  %v6762 = vsub.f32 %v30, %v6761
  %6763 = vmatpush1.msra.mxu0 %v6762
  %6764 = vmatprep.subr.mxu0 0.0
  %v6765 = vand.u32 %v31, 4294901760
  %v6766 = vsub.f32 %v31, %v6765
  %6767 = vmatpush1.msra.mxu0 %v6766
  %6768 = vmatprep.subr.mxu0 0.0
  %v6769 = vand.u32 %v32, 4294901760
  %v6770 = vsub.f32 %v32, %v6769
  %6771 = vmatpush1.msra.mxu0 %v6770
  %6772 = vmatprep.subr.mxu0 0.0
  %v6773 = vand.u32 %v33, 4294901760
  %v6774 = vsub.f32 %v33, %v6773
  %6775 = vmatpush1.msra.mxu0 %v6774
  %6776 = vmatprep.subr.mxu0 0.0
  %v6777 = vand.u32 %v34, 4294901760
  %v6778 = vsub.f32 %v34, %v6777
  %6779 = vmatpush1.msra.mxu0 %v6778
  %6780 = vmatprep.subr.mxu0 0.0
  %v6781 = vand.u32 %v35, 4294901760
  %v6782 = vsub.f32 %v35, %v6781
  %6783 = vmatpush1.msra.mxu0 %v6782
  %6784 = vmatprep.subr.mxu0 0.0
  %v6785 = vand.u32 %v36, 4294901760
  %v6786 = vsub.f32 %v36, %v6785
  %6787 = vmatpush1.msra.mxu0 %v6786
  %6788 = vmatprep.subr.mxu0 0.0
  %v6789 = vand.u32 %v37, 4294901760
  %v6790 = vsub.f32 %v37, %v6789
  %6791 = vmatpush1.msra.mxu0 %v6790
  %6792 = vmatprep.subr.mxu0 0.0
  %v6793 = vand.u32 %v38, 4294901760
  %v6794 = vsub.f32 %v38, %v6793
  %6795 = vmatpush1.msra.mxu0 %v6794
  %6796 = vmatprep.subr.mxu0 0.0
  %v6797 = vand.u32 %v39, 4294901760
  %v6798 = vsub.f32 %v39, %v6797
  %6799 = vmatpush1.msra.mxu0 %v6798
  %6800 = vmatprep.subr.mxu0 0.0
  %v6801 = vand.u32 %v40, 4294901760
  %v6802 = vsub.f32 %v40, %v6801
  %6803 = vmatpush1.msra.mxu0 %v6802
  %6804 = vmatprep.subr.mxu0 0.0
  %6805 = vmatpush1.msra.mxu0 0.0
  %6806 = vmatprep.subr.mxu0 0.0
  %6807 = vmatpush1.msra.mxu0 0.0
  %6808 = vmatprep.subr.mxu0 0.0
  %6809 = vmatpush1.msra.mxu0 0.0
  %6810 = vmatprep.subr.mxu0 0.0
  %6811 = vmatpush1.msra.mxu0 0.0
  %6812 = vmatprep.subr.mxu0 0.0
  %6813 = vmatpush1.msra.mxu0 0.0
  %6814 = vmatprep.subr.mxu0 0.0
  %6815 = vmatpush1.msra.mxu0 0.0
  %6816 = vmatprep.subr.mxu0 0.0
  %6817 = vmatpush1.msra.mxu0 0.0
  %6818 = vmatprep.subr.mxu0 0.0
  %6819 = vmatpush1.msra.mxu0 0.0
  %6820 = vmatprep.subr.mxu0 0.0
  %6821 = vmatpush1.msra.mxu0 0.0
  %6822 = vmatprep.subr.mxu0 0.0
  %6823 = vmatpush1.msra.mxu0 0.0
  %6824 = vmatprep.subr.mxu0 0.0
  %6825 = vmatpush1.msra.mxu0 0.0
  %6826 = vmatprep.subr.mxu0 0.0
  %6827 = vmatpush1.msra.mxu0 0.0
  %6828 = vmatprep.subr.mxu0 0.0
  %6829 = vmatpush1.msra.mxu0 0.0
  %6830 = vmatprep.subr.mxu0 0.0
  %6831 = vmatpush1.msra.mxu0 0.0
  %6832 = vmatprep.subr.mxu0 0.0
  %6833 = vmatpush1.msra.mxu0 0.0
  %6834 = vmatprep.subr.mxu0 0.0
  %6835 = vmatpush1.msra.mxu0 0.0
  %6836 = vmatprep.mubr.f32.mxu0 0.0
  %v6837 = vand.u32 %v5852, 4294901760
  %v6838 = vsub.f32 %v5852, %v6837
  %6839 = vmatmul.mubr.f32.gmra.mrb[0].mxu0 %v6838
  %v6840 = vpop.f32.mrb[0].mxu0
  %v6841 = vadd.f32 %v6737, %v6840
  %v6842 = vpop.f32.mrb[0].mxu0
  %6843 = vdwg.mxu0
  %6844 = vmatprep.subr.mxu0 0.0
  %v6845 = vand.u32 %v25, 4294901760
  %6846 = vmatpush1.msra.mxu0 %v6845
  %6847 = vmatprep.subr.mxu0 0.0
  %v6848 = vand.u32 %v26, 4294901760
  %6849 = vmatpush1.msra.mxu0 %v6848
  %6850 = vmatprep.subr.mxu0 0.0
  %v6851 = vand.u32 %v27, 4294901760
  %6852 = vmatpush1.msra.mxu0 %v6851
  %6853 = vmatprep.subr.mxu0 0.0
  %v6854 = vand.u32 %v28, 4294901760
  %6855 = vmatpush1.msra.mxu0 %v6854
  %6856 = vmatprep.subr.mxu0 0.0
  %v6857 = vand.u32 %v29, 4294901760
  %6858 = vmatpush1.msra.mxu0 %v6857
  %6859 = vmatprep.subr.mxu0 0.0
  %v6860 = vand.u32 %v30, 4294901760
  %6861 = vmatpush1.msra.mxu0 %v6860
  %6862 = vmatprep.subr.mxu0 0.0
  %v6863 = vand.u32 %v31, 4294901760
  %6864 = vmatpush1.msra.mxu0 %v6863
  %6865 = vmatprep.subr.mxu0 0.0
  %v6866 = vand.u32 %v32, 4294901760
  %6867 = vmatpush1.msra.mxu0 %v6866
  %6868 = vmatprep.subr.mxu0 0.0
  %v6869 = vand.u32 %v33, 4294901760
  %6870 = vmatpush1.msra.mxu0 %v6869
  %6871 = vmatprep.subr.mxu0 0.0
  %v6872 = vand.u32 %v34, 4294901760
  %6873 = vmatpush1.msra.mxu0 %v6872
  %6874 = vmatprep.subr.mxu0 0.0
  %v6875 = vand.u32 %v35, 4294901760
  %6876 = vmatpush1.msra.mxu0 %v6875
  %6877 = vmatprep.subr.mxu0 0.0
  %v6878 = vand.u32 %v36, 4294901760
  %6879 = vmatpush1.msra.mxu0 %v6878
  %6880 = vmatprep.subr.mxu0 0.0
  %v6881 = vand.u32 %v37, 4294901760
  %6882 = vmatpush1.msra.mxu0 %v6881
  %6883 = vmatprep.subr.mxu0 0.0
  %v6884 = vand.u32 %v38, 4294901760
  %6885 = vmatpush1.msra.mxu0 %v6884
  %6886 = vmatprep.subr.mxu0 0.0
  %v6887 = vand.u32 %v39, 4294901760
  %6888 = vmatpush1.msra.mxu0 %v6887
  %6889 = vmatprep.subr.mxu0 0.0
  %v6890 = vand.u32 %v40, 4294901760
  %6891 = vmatpush1.msra.mxu0 %v6890
  %6892 = vmatprep.subr.mxu0 0.0
  %6893 = vmatpush1.msra.mxu0 0.0
  %6894 = vmatprep.subr.mxu0 0.0
  %6895 = vmatpush1.msra.mxu0 0.0
  %6896 = vmatprep.subr.mxu0 0.0
  %6897 = vmatpush1.msra.mxu0 0.0
  %6898 = vmatprep.subr.mxu0 0.0
  %6899 = vmatpush1.msra.mxu0 0.0
  %6900 = vmatprep.subr.mxu0 0.0
  %6901 = vmatpush1.msra.mxu0 0.0
  %6902 = vmatprep.subr.mxu0 0.0
  %6903 = vmatpush1.msra.mxu0 0.0
  %6904 = vmatprep.subr.mxu0 0.0
  %6905 = vmatpush1.msra.mxu0 0.0
  %6906 = vmatprep.subr.mxu0 0.0
  %6907 = vmatpush1.msra.mxu0 0.0
  %6908 = vmatprep.subr.mxu0 0.0
  %6909 = vmatpush1.msra.mxu0 0.0
  %6910 = vmatprep.subr.mxu0 0.0
  %6911 = vmatpush1.msra.mxu0 0.0
  %6912 = vmatprep.subr.mxu0 0.0
  %6913 = vmatpush1.msra.mxu0 0.0
  %6914 = vmatprep.subr.mxu0 0.0
  %6915 = vmatpush1.msra.mxu0 0.0
  %6916 = vmatprep.subr.mxu0 0.0
  %6917 = vmatpush1.msra.mxu0 0.0
  %6918 = vmatprep.subr.mxu0 0.0
  %6919 = vmatpush1.msra.mxu0 0.0
  %6920 = vmatprep.subr.mxu0 0.0
  %6921 = vmatpush1.msra.mxu0 0.0
  %6922 = vmatprep.subr.mxu0 0.0
  %6923 = vmatpush1.msra.mxu0 0.0
  %6924 = vmatprep.mubr.f32.mxu0 0.0
  %v6925 = vand.u32 %v5852, 4294901760
  %v6926 = vsub.f32 %v5852, %v6925
  %v6927 = vand.u32 %v6926, 4294901760
  %6928 = vmatmul.mubr.f32.gmra.mrb[0].mxu0 %v6927
  %v6929 = vpop.f32.mrb[0].mxu0
  %v6930 = vadd.f32 %v6841, %v6929
  %v6931 = vpop.f32.mrb[0].mxu0
  %6932 = vdwg.mxu0
  %6933 = vmatprep.subr.mxu0 0.0
  %v6934 = vand.u32 %v25, 4294901760
  %v6935 = vsub.f32 %v25, %v6934
  %v6936 = vand.u32 %v6935, 4294901760
  %6937 = vmatpush1.msra.mxu0 %v6936
  %6938 = vmatprep.subr.mxu0 0.0
  %v6939 = vand.u32 %v26, 4294901760
  %v6940 = vsub.f32 %v26, %v6939
  %v6941 = vand.u32 %v6940, 4294901760
  %6942 = vmatpush1.msra.mxu0 %v6941
  %6943 = vmatprep.subr.mxu0 0.0
  %v6944 = vand.u32 %v27, 4294901760
  %v6945 = vsub.f32 %v27, %v6944
  %v6946 = vand.u32 %v6945, 4294901760
  %6947 = vmatpush1.msra.mxu0 %v6946
  %6948 = vmatprep.subr.mxu0 0.0
  %v6949 = vand.u32 %v28, 4294901760
  %v6950 = vsub.f32 %v28, %v6949
  %v6951 = vand.u32 %v6950, 4294901760
  %6952 = vmatpush1.msra.mxu0 %v6951
  %6953 = vmatprep.subr.mxu0 0.0
  %v6954 = vand.u32 %v29, 4294901760
  %v6955 = vsub.f32 %v29, %v6954
  %v6956 = vand.u32 %v6955, 4294901760
  %6957 = vmatpush1.msra.mxu0 %v6956
  %6958 = vmatprep.subr.mxu0 0.0
  %v6959 = vand.u32 %v30, 4294901760
  %v6960 = vsub.f32 %v30, %v6959
  %v6961 = vand.u32 %v6960, 4294901760
  %6962 = vmatpush1.msra.mxu0 %v6961
  %6963 = vmatprep.subr.mxu0 0.0
  %v6964 = vand.u32 %v31, 4294901760
  %v6965 = vsub.f32 %v31, %v6964
  %v6966 = vand.u32 %v6965, 4294901760
  %6967 = vmatpush1.msra.mxu0 %v6966
  %6968 = vmatprep.subr.mxu0 0.0
  %v6969 = vand.u32 %v32, 4294901760
  %v6970 = vsub.f32 %v32, %v6969
  %v6971 = vand.u32 %v6970, 4294901760
  %6972 = vmatpush1.msra.mxu0 %v6971
  %6973 = vmatprep.subr.mxu0 0.0
  %v6974 = vand.u32 %v33, 4294901760
  %v6975 = vsub.f32 %v33, %v6974
  %v6976 = vand.u32 %v6975, 4294901760
  %6977 = vmatpush1.msra.mxu0 %v6976
  %6978 = vmatprep.subr.mxu0 0.0
  %v6979 = vand.u32 %v34, 4294901760
  %v6980 = vsub.f32 %v34, %v6979
  %v6981 = vand.u32 %v6980, 4294901760
  %6982 = vmatpush1.msra.mxu0 %v6981
  %6983 = vmatprep.subr.mxu0 0.0
  %v6984 = vand.u32 %v35, 4294901760
  %v6985 = vsub.f32 %v35, %v6984
  %v6986 = vand.u32 %v6985, 4294901760
  %6987 = vmatpush1.msra.mxu0 %v6986
  %6988 = vmatprep.subr.mxu0 0.0
  %v6989 = vand.u32 %v36, 4294901760
  %v6990 = vsub.f32 %v36, %v6989
  %v6991 = vand.u32 %v6990, 4294901760
  %6992 = vmatpush1.msra.mxu0 %v6991
  %6993 = vmatprep.subr.mxu0 0.0
  %v6994 = vand.u32 %v37, 4294901760
  %v6995 = vsub.f32 %v37, %v6994
  %v6996 = vand.u32 %v6995, 4294901760
  %6997 = vmatpush1.msra.mxu0 %v6996
  %6998 = vmatprep.subr.mxu0 0.0
  %v6999 = vand.u32 %v38, 4294901760
  %v7000 = vsub.f32 %v38, %v6999
  %v7001 = vand.u32 %v7000, 4294901760
  %7002 = vmatpush1.msra.mxu0 %v7001
  %7003 = vmatprep.subr.mxu0 0.0
  %v7004 = vand.u32 %v39, 4294901760
  %v7005 = vsub.f32 %v39, %v7004
  %v7006 = vand.u32 %v7005, 4294901760
  %7007 = vmatpush1.msra.mxu0 %v7006
  %7008 = vmatprep.subr.mxu0 0.0
  %v7009 = vand.u32 %v40, 4294901760
  %v7010 = vsub.f32 %v40, %v7009
  %v7011 = vand.u32 %v7010, 4294901760
  %7012 = vmatpush1.msra.mxu0 %v7011
  %7013 = vmatprep.subr.mxu0 0.0
  %7014 = vmatpush1.msra.mxu0 0.0
  %7015 = vmatprep.subr.mxu0 0.0
  %7016 = vmatpush1.msra.mxu0 0.0
  %7017 = vmatprep.subr.mxu0 0.0
  %7018 = vmatpush1.msra.mxu0 0.0
  %7019 = vmatprep.subr.mxu0 0.0
  %7020 = vmatpush1.msra.mxu0 0.0
  %7021 = vmatprep.subr.mxu0 0.0
  %7022 = vmatpush1.msra.mxu0 0.0
  %7023 = vmatprep.subr.mxu0 0.0
  %7024 = vmatpush1.msra.mxu0 0.0
  %7025 = vmatprep.subr.mxu0 0.0
  %7026 = vmatpush1.msra.mxu0 0.0
  %7027 = vmatprep.subr.mxu0 0.0
  %7028 = vmatpush1.msra.mxu0 0.0
  %7029 = vmatprep.subr.mxu0 0.0
  %7030 = vmatpush1.msra.mxu0 0.0
  %7031 = vmatprep.subr.mxu0 0.0
  %7032 = vmatpush1.msra.mxu0 0.0
  %7033 = vmatprep.subr.mxu0 0.0
  %7034 = vmatpush1.msra.mxu0 0.0
  %7035 = vmatprep.subr.mxu0 0.0
  %7036 = vmatpush1.msra.mxu0 0.0
  %7037 = vmatprep.subr.mxu0 0.0
  %7038 = vmatpush1.msra.mxu0 0.0
  %7039 = vmatprep.subr.mxu0 0.0
  %7040 = vmatpush1.msra.mxu0 0.0
  %7041 = vmatprep.subr.mxu0 0.0
  %7042 = vmatpush1.msra.mxu0 0.0
  %7043 = vmatprep.subr.mxu0 0.0
  %7044 = vmatpush1.msra.mxu0 0.0
  %7045 = vmatprep.mubr.f32.mxu0 0.0
  %v7046 = vand.u32 %v5852, 4294901760
  %7047 = vmatmul.mubr.f32.gmra.mrb[0].mxu0 %v7046
  %v7048 = vpop.f32.mrb[0].mxu0
  %v7049 = vadd.f32 %v6930, %v7048
  %v7050 = vpop.f32.mrb[0].mxu0
  %7051 = vdwg.mxu0
  %7052 = vmatprep.subr.mxu0 0.0
  %v7053 = vand.u32 %v25, 4294901760
  %7054 = vmatpush1.msra.mxu0 %v7053
  %7055 = vmatprep.subr.mxu0 0.0
  %v7056 = vand.u32 %v26, 4294901760
  %7057 = vmatpush1.msra.mxu0 %v7056
  %7058 = vmatprep.subr.mxu0 0.0
  %v7059 = vand.u32 %v27, 4294901760
  %7060 = vmatpush1.msra.mxu0 %v7059
  %7061 = vmatprep.subr.mxu0 0.0
  %v7062 = vand.u32 %v28, 4294901760
  %7063 = vmatpush1.msra.mxu0 %v7062
  %7064 = vmatprep.subr.mxu0 0.0
  %v7065 = vand.u32 %v29, 4294901760
  %7066 = vmatpush1.msra.mxu0 %v7065
  %7067 = vmatprep.subr.mxu0 0.0
  %v7068 = vand.u32 %v30, 4294901760
  %7069 = vmatpush1.msra.mxu0 %v7068
  %7070 = vmatprep.subr.mxu0 0.0
  %v7071 = vand.u32 %v31, 4294901760
  %7072 = vmatpush1.msra.mxu0 %v7071
  %7073 = vmatprep.subr.mxu0 0.0
  %v7074 = vand.u32 %v32, 4294901760
  %7075 = vmatpush1.msra.mxu0 %v7074
  %7076 = vmatprep.subr.mxu0 0.0
  %v7077 = vand.u32 %v33, 4294901760
  %7078 = vmatpush1.msra.mxu0 %v7077
  %7079 = vmatprep.subr.mxu0 0.0
  %v7080 = vand.u32 %v34, 4294901760
  %7081 = vmatpush1.msra.mxu0 %v7080
  %7082 = vmatprep.subr.mxu0 0.0
  %v7083 = vand.u32 %v35, 4294901760
  %7084 = vmatpush1.msra.mxu0 %v7083
  %7085 = vmatprep.subr.mxu0 0.0
  %v7086 = vand.u32 %v36, 4294901760
  %7087 = vmatpush1.msra.mxu0 %v7086
  %7088 = vmatprep.subr.mxu0 0.0
  %v7089 = vand.u32 %v37, 4294901760
  %7090 = vmatpush1.msra.mxu0 %v7089
  %7091 = vmatprep.subr.mxu0 0.0
  %v7092 = vand.u32 %v38, 4294901760
  %7093 = vmatpush1.msra.mxu0 %v7092
  %7094 = vmatprep.subr.mxu0 0.0
  %v7095 = vand.u32 %v39, 4294901760
  %7096 = vmatpush1.msra.mxu0 %v7095
  %7097 = vmatprep.subr.mxu0 0.0
  %v7098 = vand.u32 %v40, 4294901760
  %7099 = vmatpush1.msra.mxu0 %v7098
  %7100 = vmatprep.subr.mxu0 0.0
  %7101 = vmatpush1.msra.mxu0 0.0
  %7102 = vmatprep.subr.mxu0 0.0
  %7103 = vmatpush1.msra.mxu0 0.0
  %7104 = vmatprep.subr.mxu0 0.0
  %7105 = vmatpush1.msra.mxu0 0.0
  %7106 = vmatprep.subr.mxu0 0.0
  %7107 = vmatpush1.msra.mxu0 0.0
  %7108 = vmatprep.subr.mxu0 0.0
  %7109 = vmatpush1.msra.mxu0 0.0
  %7110 = vmatprep.subr.mxu0 0.0
  %7111 = vmatpush1.msra.mxu0 0.0
  %7112 = vmatprep.subr.mxu0 0.0
  %7113 = vmatpush1.msra.mxu0 0.0
  %7114 = vmatprep.subr.mxu0 0.0
  %7115 = vmatpush1.msra.mxu0 0.0
  %7116 = vmatprep.subr.mxu0 0.0
  %7117 = vmatpush1.msra.mxu0 0.0
  %7118 = vmatprep.subr.mxu0 0.0
  %7119 = vmatpush1.msra.mxu0 0.0
  %7120 = vmatprep.subr.mxu0 0.0
  %7121 = vmatpush1.msra.mxu0 0.0
  %7122 = vmatprep.subr.mxu0 0.0
  %7123 = vmatpush1.msra.mxu0 0.0
  %7124 = vmatprep.subr.mxu0 0.0
  %7125 = vmatpush1.msra.mxu0 0.0
  %7126 = vmatprep.subr.mxu0 0.0
  %7127 = vmatpush1.msra.mxu0 0.0
  %7128 = vmatprep.subr.mxu0 0.0
  %7129 = vmatpush1.msra.mxu0 0.0
  %7130 = vmatprep.subr.mxu0 0.0
  %7131 = vmatpush1.msra.mxu0 0.0
  %7132 = vmatprep.mubr.f32.mxu0 0.0
  %v7133 = vand.u32 %v5852, 4294901760
  %7134 = vmatmul.mubr.f32.gmra.mrb[0].mxu0 %v7133
  %v7135 = vpop.f32.mrb[0].mxu0
  %v7136 = vadd.f32 %v7049, %v7135
  %v7137 = vpop.f32.mrb[0].mxu0
  %7138 = vdwg.mxu0
  %v7139 = vadd.f32 %v6497, %v7136
  %v7140 = vtanh.pop %v7139
  %7141 = vmatprep.subr.mxu0 0.0
  %v7142 = vand.u32 %v41, 4294901760
  %7143 = vmatpush1.msra.mxu0 %v7142
  %7144 = vmatprep.subr.mxu0 0.0
  %v7145 = vand.u32 %v42, 4294901760
  %7146 = vmatpush1.msra.mxu0 %v7145
  %7147 = vmatprep.subr.mxu0 0.0
  %v7148 = vand.u32 %v43, 4294901760
  %7149 = vmatpush1.msra.mxu0 %v7148
  %7150 = vmatprep.subr.mxu0 0.0
  %v7151 = vand.u32 %v44, 4294901760
  %7152 = vmatpush1.msra.mxu0 %v7151
  %7153 = vmatprep.subr.mxu0 0.0
  %v7154 = vand.u32 %v45, 4294901760
  %7155 = vmatpush1.msra.mxu0 %v7154
  %7156 = vmatprep.subr.mxu0 0.0
  %v7157 = vand.u32 %v46, 4294901760
  %7158 = vmatpush1.msra.mxu0 %v7157
  %7159 = vmatprep.subr.mxu0 0.0
  %v7160 = vand.u32 %v47, 4294901760
  %7161 = vmatpush1.msra.mxu0 %v7160
  %7162 = vmatprep.subr.mxu0 0.0
  %v7163 = vand.u32 %v48, 4294901760
  %7164 = vmatpush1.msra.mxu0 %v7163
  %7165 = vmatprep.subr.mxu0 0.0
  %v7166 = vand.u32 %v49, 4294901760
  %7167 = vmatpush1.msra.mxu0 %v7166
  %7168 = vmatprep.subr.mxu0 0.0
  %v7169 = vand.u32 %v50, 4294901760
  %7170 = vmatpush1.msra.mxu0 %v7169
  %7171 = vmatprep.subr.mxu0 0.0
  %v7172 = vand.u32 %v51, 4294901760
  %7173 = vmatpush1.msra.mxu0 %v7172
  %7174 = vmatprep.subr.mxu0 0.0
  %v7175 = vand.u32 %v52, 4294901760
  %7176 = vmatpush1.msra.mxu0 %v7175
  %7177 = vmatprep.subr.mxu0 0.0
  %v7178 = vand.u32 %v53, 4294901760
  %7179 = vmatpush1.msra.mxu0 %v7178
  %7180 = vmatprep.subr.mxu0 0.0
  %v7181 = vand.u32 %v54, 4294901760
  %7182 = vmatpush1.msra.mxu0 %v7181
  %7183 = vmatprep.subr.mxu0 0.0
  %v7184 = vand.u32 %v55, 4294901760
  %7185 = vmatpush1.msra.mxu0 %v7184
  %7186 = vmatprep.subr.mxu0 0.0
  %v7187 = vand.u32 %v56, 4294901760
  %7188 = vmatpush1.msra.mxu0 %v7187
  %7189 = vmatprep.subr.mxu0 0.0
  %7190 = vmatpush1.msra.mxu0 0.0
  %7191 = vmatprep.subr.mxu0 0.0
  %7192 = vmatpush1.msra.mxu0 0.0
  %7193 = vmatprep.subr.mxu0 0.0
  %7194 = vmatpush1.msra.mxu0 0.0
  %7195 = vmatprep.subr.mxu0 0.0
  %7196 = vmatpush1.msra.mxu0 0.0
  %7197 = vmatprep.subr.mxu0 0.0
  %7198 = vmatpush1.msra.mxu0 0.0
  %7199 = vmatprep.subr.mxu0 0.0
  %7200 = vmatpush1.msra.mxu0 0.0
  %7201 = vmatprep.subr.mxu0 0.0
  %7202 = vmatpush1.msra.mxu0 0.0
  %7203 = vmatprep.subr.mxu0 0.0
  %7204 = vmatpush1.msra.mxu0 0.0
  %7205 = vmatprep.subr.mxu0 0.0
  %7206 = vmatpush1.msra.mxu0 0.0
  %7207 = vmatprep.subr.mxu0 0.0
  %7208 = vmatpush1.msra.mxu0 0.0
  %7209 = vmatprep.subr.mxu0 0.0
  %7210 = vmatpush1.msra.mxu0 0.0
  %7211 = vmatprep.subr.mxu0 0.0
  %7212 = vmatpush1.msra.mxu0 0.0
  %7213 = vmatprep.subr.mxu0 0.0
  %7214 = vmatpush1.msra.mxu0 0.0
  %7215 = vmatprep.subr.mxu0 0.0
  %7216 = vmatpush1.msra.mxu0 0.0
  %7217 = vmatprep.subr.mxu0 0.0
  %7218 = vmatpush1.msra.mxu0 0.0
  %7219 = vmatprep.subr.mxu0 0.0
  %7220 = vmatpush1.msra.mxu0 0.0
  %7221 = vmatprep.mubr.f32.mxu0 0.0
  %v7222 = vand.u32 %v7140, 4294901760
  %v7223 = vsub.f32 %v7140, %v7222
  %v7224 = vand.u32 %v7223, 4294901760
  %v7225 = vsub.f32 %v7223, %v7224
  %v7226 = vand.u32 %v7225, 4294901760
  %7227 = vmatmul.mubr.f32.gmra.mrb[0].mxu0 %v7226
  %v7228 = vpop.f32.mrb[0].mxu0
  %v7229 = vadd.f32 0.0, %v7228
  %v7230 = vpop.f32.mrb[0].mxu0
  %7231 = vdwg.mxu0
  %7232 = vmatprep.subr.mxu0 0.0
  %v7233 = vand.u32 %v41, 4294901760
  %v7234 = vsub.f32 %v41, %v7233
  %v7235 = vand.u32 %v7234, 4294901760
  %v7236 = vsub.f32 %v7234, %v7235
  %v7237 = vand.u32 %v7236, 4294901760
  %7238 = vmatpush1.msra.mxu0 %v7237
  %7239 = vmatprep.subr.mxu0 0.0
  %v7240 = vand.u32 %v42, 4294901760
  %v7241 = vsub.f32 %v42, %v7240
  %v7242 = vand.u32 %v7241, 4294901760
  %v7243 = vsub.f32 %v7241, %v7242
  %v7244 = vand.u32 %v7243, 4294901760
  %7245 = vmatpush1.msra.mxu0 %v7244
  %7246 = vmatprep.subr.mxu0 0.0
  %v7247 = vand.u32 %v43, 4294901760
  %v7248 = vsub.f32 %v43, %v7247
  %v7249 = vand.u32 %v7248, 4294901760
  %v7250 = vsub.f32 %v7248, %v7249
  %v7251 = vand.u32 %v7250, 4294901760
  %7252 = vmatpush1.msra.mxu0 %v7251
  %7253 = vmatprep.subr.mxu0 0.0
  %v7254 = vand.u32 %v44, 4294901760
  %v7255 = vsub.f32 %v44, %v7254
  %v7256 = vand.u32 %v7255, 4294901760
  %v7257 = vsub.f32 %v7255, %v7256
  %v7258 = vand.u32 %v7257, 4294901760
  %7259 = vmatpush1.msra.mxu0 %v7258
  %7260 = vmatprep.subr.mxu0 0.0
  %v7261 = vand.u32 %v45, 4294901760
  %v7262 = vsub.f32 %v45, %v7261
  %v7263 = vand.u32 %v7262, 4294901760
  %v7264 = vsub.f32 %v7262, %v7263
  %v7265 = vand.u32 %v7264, 4294901760
  %7266 = vmatpush1.msra.mxu0 %v7265
  %7267 = vmatprep.subr.mxu0 0.0
  %v7268 = vand.u32 %v46, 4294901760
  %v7269 = vsub.f32 %v46, %v7268
  %v7270 = vand.u32 %v7269, 4294901760
  %v7271 = vsub.f32 %v7269, %v7270
  %v7272 = vand.u32 %v7271, 4294901760
  %7273 = vmatpush1.msra.mxu0 %v7272
  %7274 = vmatprep.subr.mxu0 0.0
  %v7275 = vand.u32 %v47, 4294901760
  %v7276 = vsub.f32 %v47, %v7275
  %v7277 = vand.u32 %v7276, 4294901760
  %v7278 = vsub.f32 %v7276, %v7277
  %v7279 = vand.u32 %v7278, 4294901760
  %7280 = vmatpush1.msra.mxu0 %v7279
  %7281 = vmatprep.subr.mxu0 0.0
  %v7282 = vand.u32 %v48, 4294901760
  %v7283 = vsub.f32 %v48, %v7282
  %v7284 = vand.u32 %v7283, 4294901760
  %v7285 = vsub.f32 %v7283, %v7284
  %v7286 = vand.u32 %v7285, 4294901760
  %7287 = vmatpush1.msra.mxu0 %v7286
  %7288 = vmatprep.subr.mxu0 0.0
  %v7289 = vand.u32 %v49, 4294901760
  %v7290 = vsub.f32 %v49, %v7289
  %v7291 = vand.u32 %v7290, 4294901760
  %v7292 = vsub.f32 %v7290, %v7291
  %v7293 = vand.u32 %v7292, 4294901760
  %7294 = vmatpush1.msra.mxu0 %v7293
  %7295 = vmatprep.subr.mxu0 0.0
  %v7296 = vand.u32 %v50, 4294901760
  %v7297 = vsub.f32 %v50, %v7296
  %v7298 = vand.u32 %v7297, 4294901760
  %v7299 = vsub.f32 %v7297, %v7298
  %v7300 = vand.u32 %v7299, 4294901760
  %7301 = vmatpush1.msra.mxu0 %v7300
  %7302 = vmatprep.subr.mxu0 0.0
  %v7303 = vand.u32 %v51, 4294901760
  %v7304 = vsub.f32 %v51, %v7303
  %v7305 = vand.u32 %v7304, 4294901760
  %v7306 = vsub.f32 %v7304, %v7305
  %v7307 = vand.u32 %v7306, 4294901760
  %7308 = vmatpush1.msra.mxu0 %v7307
  %7309 = vmatprep.subr.mxu0 0.0
  %v7310 = vand.u32 %v52, 4294901760
  %v7311 = vsub.f32 %v52, %v7310
  %v7312 = vand.u32 %v7311, 4294901760
  %v7313 = vsub.f32 %v7311, %v7312
  %v7314 = vand.u32 %v7313, 4294901760
  %7315 = vmatpush1.msra.mxu0 %v7314
  %7316 = vmatprep.subr.mxu0 0.0
  %v7317 = vand.u32 %v53, 4294901760
  %v7318 = vsub.f32 %v53, %v7317
  %v7319 = vand.u32 %v7318, 4294901760
  %v7320 = vsub.f32 %v7318, %v7319
  %v7321 = vand.u32 %v7320, 4294901760
  %7322 = vmatpush1.msra.mxu0 %v7321
  %7323 = vmatprep.subr.mxu0 0.0
  %v7324 = vand.u32 %v54, 4294901760
  %v7325 = vsub.f32 %v54, %v7324
  %v7326 = vand.u32 %v7325, 4294901760
  %v7327 = vsub.f32 %v7325, %v7326
  %v7328 = vand.u32 %v7327, 4294901760
  %7329 = vmatpush1.msra.mxu0 %v7328
  %7330 = vmatprep.subr.mxu0 0.0
  %v7331 = vand.u32 %v55, 4294901760
  %v7332 = vsub.f32 %v55, %v7331
  %v7333 = vand.u32 %v7332, 4294901760
  %v7334 = vsub.f32 %v7332, %v7333
  %v7335 = vand.u32 %v7334, 4294901760
  %7336 = vmatpush1.msra.mxu0 %v7335
  %7337 = vmatprep.subr.mxu0 0.0
  %v7338 = vand.u32 %v56, 4294901760
  %v7339 = vsub.f32 %v56, %v7338
  %v7340 = vand.u32 %v7339, 4294901760
  %v7341 = vsub.f32 %v7339, %v7340
  %v7342 = vand.u32 %v7341, 4294901760
  %7343 = vmatpush1.msra.mxu0 %v7342
  %7344 = vmatprep.subr.mxu0 0.0
  %7345 = vmatpush1.msra.mxu0 0.0
  %7346 = vmatprep.subr.mxu0 0.0
  %7347 = vmatpush1.msra.mxu0 0.0
  %7348 = vmatprep.subr.mxu0 0.0
  %7349 = vmatpush1.msra.mxu0 0.0
  %7350 = vmatprep.subr.mxu0 0.0
  %7351 = vmatpush1.msra.mxu0 0.0
  %7352 = vmatprep.subr.mxu0 0.0
  %7353 = vmatpush1.msra.mxu0 0.0
  %7354 = vmatprep.subr.mxu0 0.0
  %7355 = vmatpush1.msra.mxu0 0.0
  %7356 = vmatprep.subr.mxu0 0.0
  %7357 = vmatpush1.msra.mxu0 0.0
  %7358 = vmatprep.subr.mxu0 0.0
  %7359 = vmatpush1.msra.mxu0 0.0
  %7360 = vmatprep.subr.mxu0 0.0
  %7361 = vmatpush1.msra.mxu0 0.0
  %7362 = vmatprep.subr.mxu0 0.0
  %7363 = vmatpush1.msra.mxu0 0.0
  %7364 = vmatprep.subr.mxu0 0.0
  %7365 = vmatpush1.msra.mxu0 0.0
  %7366 = vmatprep.subr.mxu0 0.0
  %7367 = vmatpush1.msra.mxu0 0.0
  %7368 = vmatprep.subr.mxu0 0.0
  %7369 = vmatpush1.msra.mxu0 0.0
  %7370 = vmatprep.subr.mxu0 0.0
  %7371 = vmatpush1.msra.mxu0 0.0
  %7372 = vmatprep.subr.mxu0 0.0
  %7373 = vmatpush1.msra.mxu0 0.0
  %7374 = vmatprep.subr.mxu0 0.0
  %7375 = vmatpush1.msra.mxu0 0.0
  %7376 = vmatprep.mubr.f32.mxu0 0.0
  %v7377 = vand.u32 %v7140, 4294901760
  %7378 = vmatmul.mubr.f32.gmra.mrb[0].mxu0 %v7377
  %v7379 = vpop.f32.mrb[0].mxu0
  %v7380 = vadd.f32 %v7229, %v7379
  %v7381 = vpop.f32.mrb[0].mxu0
  %7382 = vdwg.mxu0
  %7383 = vmatprep.subr.mxu0 0.0
  %v7384 = vand.u32 %v41, 4294901760
  %v7385 = vsub.f32 %v41, %v7384
  %7386 = vmatpush1.msra.mxu0 %v7385
  %7387 = vmatprep.subr.mxu0 0.0
  %v7388 = vand.u32 %v42, 4294901760
  %v7389 = vsub.f32 %v42, %v7388
  %7390 = vmatpush1.msra.mxu0 %v7389
  %7391 = vmatprep.subr.mxu0 0.0
  %v7392 = vand.u32 %v43, 4294901760
  %v7393 = vsub.f32 %v43, %v7392
  %7394 = vmatpush1.msra.mxu0 %v7393
  %7395 = vmatprep.subr.mxu0 0.0
  %v7396 = vand.u32 %v44, 4294901760
  %v7397 = vsub.f32 %v44, %v7396
  %7398 = vmatpush1.msra.mxu0 %v7397
  %7399 = vmatprep.subr.mxu0 0.0
  %v7400 = vand.u32 %v45, 4294901760
  %v7401 = vsub.f32 %v45, %v7400
  %7402 = vmatpush1.msra.mxu0 %v7401
  %7403 = vmatprep.subr.mxu0 0.0
  %v7404 = vand.u32 %v46, 4294901760
  %v7405 = vsub.f32 %v46, %v7404
  %7406 = vmatpush1.msra.mxu0 %v7405
  %7407 = vmatprep.subr.mxu0 0.0
  %v7408 = vand.u32 %v47, 4294901760
  %v7409 = vsub.f32 %v47, %v7408
  %7410 = vmatpush1.msra.mxu0 %v7409
  %7411 = vmatprep.subr.mxu0 0.0
  %v7412 = vand.u32 %v48, 4294901760
  %v7413 = vsub.f32 %v48, %v7412
  %7414 = vmatpush1.msra.mxu0 %v7413
  %7415 = vmatprep.subr.mxu0 0.0
  %v7416 = vand.u32 %v49, 4294901760
  %v7417 = vsub.f32 %v49, %v7416
  %7418 = vmatpush1.msra.mxu0 %v7417
  %7419 = vmatprep.subr.mxu0 0.0
  %v7420 = vand.u32 %v50, 4294901760
  %v7421 = vsub.f32 %v50, %v7420
  %7422 = vmatpush1.msra.mxu0 %v7421
  %7423 = vmatprep.subr.mxu0 0.0
  %v7424 = vand.u32 %v51, 4294901760
  %v7425 = vsub.f32 %v51, %v7424
  %7426 = vmatpush1.msra.mxu0 %v7425
  %7427 = vmatprep.subr.mxu0 0.0
  %v7428 = vand.u32 %v52, 4294901760
  %v7429 = vsub.f32 %v52, %v7428
  %7430 = vmatpush1.msra.mxu0 %v7429
  %7431 = vmatprep.subr.mxu0 0.0
  %v7432 = vand.u32 %v53, 4294901760
  %v7433 = vsub.f32 %v53, %v7432
  %7434 = vmatpush1.msra.mxu0 %v7433
  %7435 = vmatprep.subr.mxu0 0.0
  %v7436 = vand.u32 %v54, 4294901760
  %v7437 = vsub.f32 %v54, %v7436
  %7438 = vmatpush1.msra.mxu0 %v7437
  %7439 = vmatprep.subr.mxu0 0.0
  %v7440 = vand.u32 %v55, 4294901760
  %v7441 = vsub.f32 %v55, %v7440
  %7442 = vmatpush1.msra.mxu0 %v7441
  %7443 = vmatprep.subr.mxu0 0.0
  %v7444 = vand.u32 %v56, 4294901760
  %v7445 = vsub.f32 %v56, %v7444
  %7446 = vmatpush1.msra.mxu0 %v7445
  %7447 = vmatprep.subr.mxu0 0.0
  %7448 = vmatpush1.msra.mxu0 0.0
  %7449 = vmatprep.subr.mxu0 0.0
  %7450 = vmatpush1.msra.mxu0 0.0
  %7451 = vmatprep.subr.mxu0 0.0
  %7452 = vmatpush1.msra.mxu0 0.0
  %7453 = vmatprep.subr.mxu0 0.0
  %7454 = vmatpush1.msra.mxu0 0.0
  %7455 = vmatprep.subr.mxu0 0.0
  %7456 = vmatpush1.msra.mxu0 0.0
  %7457 = vmatprep.subr.mxu0 0.0
  %7458 = vmatpush1.msra.mxu0 0.0
  %7459 = vmatprep.subr.mxu0 0.0
  %7460 = vmatpush1.msra.mxu0 0.0
  %7461 = vmatprep.subr.mxu0 0.0
  %7462 = vmatpush1.msra.mxu0 0.0
  %7463 = vmatprep.subr.mxu0 0.0
  %7464 = vmatpush1.msra.mxu0 0.0
  %7465 = vmatprep.subr.mxu0 0.0
  %7466 = vmatpush1.msra.mxu0 0.0
  %7467 = vmatprep.subr.mxu0 0.0
  %7468 = vmatpush1.msra.mxu0 0.0
  %7469 = vmatprep.subr.mxu0 0.0
  %7470 = vmatpush1.msra.mxu0 0.0
  %7471 = vmatprep.subr.mxu0 0.0
  %7472 = vmatpush1.msra.mxu0 0.0
  %7473 = vmatprep.subr.mxu0 0.0
  %7474 = vmatpush1.msra.mxu0 0.0
  %7475 = vmatprep.subr.mxu0 0.0
  %7476 = vmatpush1.msra.mxu0 0.0
  %7477 = vmatprep.subr.mxu0 0.0
  %7478 = vmatpush1.msra.mxu0 0.0
  %7479 = vmatprep.mubr.f32.mxu0 0.0
  %v7480 = vand.u32 %v7140, 4294901760
  %v7481 = vsub.f32 %v7140, %v7480
  %7482 = vmatmul.mubr.f32.gmra.mrb[0].mxu0 %v7481
  %v7483 = vpop.f32.mrb[0].mxu0
  %v7484 = vadd.f32 %v7380, %v7483
  %v7485 = vpop.f32.mrb[0].mxu0
  %7486 = vdwg.mxu0
  %7487 = vmatprep.subr.mxu0 0.0
  %v7488 = vand.u32 %v41, 4294901760
  %7489 = vmatpush1.msra.mxu0 %v7488
  %7490 = vmatprep.subr.mxu0 0.0
  %v7491 = vand.u32 %v42, 4294901760
  %7492 = vmatpush1.msra.mxu0 %v7491
  %7493 = vmatprep.subr.mxu0 0.0
  %v7494 = vand.u32 %v43, 4294901760
  %7495 = vmatpush1.msra.mxu0 %v7494
  %7496 = vmatprep.subr.mxu0 0.0
  %v7497 = vand.u32 %v44, 4294901760
  %7498 = vmatpush1.msra.mxu0 %v7497
  %7499 = vmatprep.subr.mxu0 0.0
  %v7500 = vand.u32 %v45, 4294901760
  %7501 = vmatpush1.msra.mxu0 %v7500
  %7502 = vmatprep.subr.mxu0 0.0
  %v7503 = vand.u32 %v46, 4294901760
  %7504 = vmatpush1.msra.mxu0 %v7503
  %7505 = vmatprep.subr.mxu0 0.0
  %v7506 = vand.u32 %v47, 4294901760
  %7507 = vmatpush1.msra.mxu0 %v7506
  %7508 = vmatprep.subr.mxu0 0.0
  %v7509 = vand.u32 %v48, 4294901760
  %7510 = vmatpush1.msra.mxu0 %v7509
  %7511 = vmatprep.subr.mxu0 0.0
  %v7512 = vand.u32 %v49, 4294901760
  %7513 = vmatpush1.msra.mxu0 %v7512
  %7514 = vmatprep.subr.mxu0 0.0
  %v7515 = vand.u32 %v50, 4294901760
  %7516 = vmatpush1.msra.mxu0 %v7515
  %7517 = vmatprep.subr.mxu0 0.0
  %v7518 = vand.u32 %v51, 4294901760
  %7519 = vmatpush1.msra.mxu0 %v7518
  %7520 = vmatprep.subr.mxu0 0.0
  %v7521 = vand.u32 %v52, 4294901760
  %7522 = vmatpush1.msra.mxu0 %v7521
  %7523 = vmatprep.subr.mxu0 0.0
  %v7524 = vand.u32 %v53, 4294901760
  %7525 = vmatpush1.msra.mxu0 %v7524
  %7526 = vmatprep.subr.mxu0 0.0
  %v7527 = vand.u32 %v54, 4294901760
  %7528 = vmatpush1.msra.mxu0 %v7527
  %7529 = vmatprep.subr.mxu0 0.0
  %v7530 = vand.u32 %v55, 4294901760
  %7531 = vmatpush1.msra.mxu0 %v7530
  %7532 = vmatprep.subr.mxu0 0.0
  %v7533 = vand.u32 %v56, 4294901760
  %7534 = vmatpush1.msra.mxu0 %v7533
  %7535 = vmatprep.subr.mxu0 0.0
  %7536 = vmatpush1.msra.mxu0 0.0
  %7537 = vmatprep.subr.mxu0 0.0
  %7538 = vmatpush1.msra.mxu0 0.0
  %7539 = vmatprep.subr.mxu0 0.0
  %7540 = vmatpush1.msra.mxu0 0.0
  %7541 = vmatprep.subr.mxu0 0.0
  %7542 = vmatpush1.msra.mxu0 0.0
  %7543 = vmatprep.subr.mxu0 0.0
  %7544 = vmatpush1.msra.mxu0 0.0
  %7545 = vmatprep.subr.mxu0 0.0
  %7546 = vmatpush1.msra.mxu0 0.0
  %7547 = vmatprep.subr.mxu0 0.0
  %7548 = vmatpush1.msra.mxu0 0.0
  %7549 = vmatprep.subr.mxu0 0.0
  %7550 = vmatpush1.msra.mxu0 0.0
  %7551 = vmatprep.subr.mxu0 0.0
  %7552 = vmatpush1.msra.mxu0 0.0
  %7553 = vmatprep.subr.mxu0 0.0
  %7554 = vmatpush1.msra.mxu0 0.0
  %7555 = vmatprep.subr.mxu0 0.0
  %7556 = vmatpush1.msra.mxu0 0.0
  %7557 = vmatprep.subr.mxu0 0.0
  %7558 = vmatpush1.msra.mxu0 0.0
  %7559 = vmatprep.subr.mxu0 0.0
  %7560 = vmatpush1.msra.mxu0 0.0
  %7561 = vmatprep.subr.mxu0 0.0
  %7562 = vmatpush1.msra.mxu0 0.0
  %7563 = vmatprep.subr.mxu0 0.0
  %7564 = vmatpush1.msra.mxu0 0.0
  %7565 = vmatprep.subr.mxu0 0.0
  %7566 = vmatpush1.msra.mxu0 0.0
  %7567 = vmatprep.mubr.f32.mxu0 0.0
  %v7568 = vand.u32 %v7140, 4294901760
  %v7569 = vsub.f32 %v7140, %v7568
  %v7570 = vand.u32 %v7569, 4294901760
  %7571 = vmatmul.mubr.f32.gmra.mrb[0].mxu0 %v7570
  %v7572 = vpop.f32.mrb[0].mxu0
  %v7573 = vadd.f32 %v7484, %v7572
  %v7574 = vpop.f32.mrb[0].mxu0
  %7575 = vdwg.mxu0
  %7576 = vmatprep.subr.mxu0 0.0
  %v7577 = vand.u32 %v41, 4294901760
  %v7578 = vsub.f32 %v41, %v7577
  %v7579 = vand.u32 %v7578, 4294901760
  %7580 = vmatpush1.msra.mxu0 %v7579
  %7581 = vmatprep.subr.mxu0 0.0
  %v7582 = vand.u32 %v42, 4294901760
  %v7583 = vsub.f32 %v42, %v7582
  %v7584 = vand.u32 %v7583, 4294901760
  %7585 = vmatpush1.msra.mxu0 %v7584
  %7586 = vmatprep.subr.mxu0 0.0
  %v7587 = vand.u32 %v43, 4294901760
  %v7588 = vsub.f32 %v43, %v7587
  %v7589 = vand.u32 %v7588, 4294901760
  %7590 = vmatpush1.msra.mxu0 %v7589
  %7591 = vmatprep.subr.mxu0 0.0
  %v7592 = vand.u32 %v44, 4294901760
  %v7593 = vsub.f32 %v44, %v7592
  %v7594 = vand.u32 %v7593, 4294901760
  %7595 = vmatpush1.msra.mxu0 %v7594
  %7596 = vmatprep.subr.mxu0 0.0
  %v7597 = vand.u32 %v45, 4294901760
  %v7598 = vsub.f32 %v45, %v7597
  %v7599 = vand.u32 %v7598, 4294901760
  %7600 = vmatpush1.msra.mxu0 %v7599
  %7601 = vmatprep.subr.mxu0 0.0
  %v7602 = vand.u32 %v46, 4294901760
  %v7603 = vsub.f32 %v46, %v7602
  %v7604 = vand.u32 %v7603, 4294901760
  %7605 = vmatpush1.msra.mxu0 %v7604
  %7606 = vmatprep.subr.mxu0 0.0
  %v7607 = vand.u32 %v47, 4294901760
  %v7608 = vsub.f32 %v47, %v7607
  %v7609 = vand.u32 %v7608, 4294901760
  %7610 = vmatpush1.msra.mxu0 %v7609
  %7611 = vmatprep.subr.mxu0 0.0
  %v7612 = vand.u32 %v48, 4294901760
  %v7613 = vsub.f32 %v48, %v7612
  %v7614 = vand.u32 %v7613, 4294901760
  %7615 = vmatpush1.msra.mxu0 %v7614
  %7616 = vmatprep.subr.mxu0 0.0
  %v7617 = vand.u32 %v49, 4294901760
  %v7618 = vsub.f32 %v49, %v7617
  %v7619 = vand.u32 %v7618, 4294901760
  %7620 = vmatpush1.msra.mxu0 %v7619
  %7621 = vmatprep.subr.mxu0 0.0
  %v7622 = vand.u32 %v50, 4294901760
  %v7623 = vsub.f32 %v50, %v7622
  %v7624 = vand.u32 %v7623, 4294901760
  %7625 = vmatpush1.msra.mxu0 %v7624
  %7626 = vmatprep.subr.mxu0 0.0
  %v7627 = vand.u32 %v51, 4294901760
  %v7628 = vsub.f32 %v51, %v7627
  %v7629 = vand.u32 %v7628, 4294901760
  %7630 = vmatpush1.msra.mxu0 %v7629
  %7631 = vmatprep.subr.mxu0 0.0
  %v7632 = vand.u32 %v52, 4294901760
  %v7633 = vsub.f32 %v52, %v7632
  %v7634 = vand.u32 %v7633, 4294901760
  %7635 = vmatpush1.msra.mxu0 %v7634
  %7636 = vmatprep.subr.mxu0 0.0
  %v7637 = vand.u32 %v53, 4294901760
  %v7638 = vsub.f32 %v53, %v7637
  %v7639 = vand.u32 %v7638, 4294901760
  %7640 = vmatpush1.msra.mxu0 %v7639
  %7641 = vmatprep.subr.mxu0 0.0
  %v7642 = vand.u32 %v54, 4294901760
  %v7643 = vsub.f32 %v54, %v7642
  %v7644 = vand.u32 %v7643, 4294901760
  %7645 = vmatpush1.msra.mxu0 %v7644
  %7646 = vmatprep.subr.mxu0 0.0
  %v7647 = vand.u32 %v55, 4294901760
  %v7648 = vsub.f32 %v55, %v7647
  %v7649 = vand.u32 %v7648, 4294901760
  %7650 = vmatpush1.msra.mxu0 %v7649
  %7651 = vmatprep.subr.mxu0 0.0
  %v7652 = vand.u32 %v56, 4294901760
  %v7653 = vsub.f32 %v56, %v7652
  %v7654 = vand.u32 %v7653, 4294901760
  %7655 = vmatpush1.msra.mxu0 %v7654
  %7656 = vmatprep.subr.mxu0 0.0
  %7657 = vmatpush1.msra.mxu0 0.0
  %7658 = vmatprep.subr.mxu0 0.0
  %7659 = vmatpush1.msra.mxu0 0.0
  %7660 = vmatprep.subr.mxu0 0.0
  %7661 = vmatpush1.msra.mxu0 0.0
  %7662 = vmatprep.subr.mxu0 0.0
  %7663 = vmatpush1.msra.mxu0 0.0
  %7664 = vmatprep.subr.mxu0 0.0
  %7665 = vmatpush1.msra.mxu0 0.0
  %7666 = vmatprep.subr.mxu0 0.0
  %7667 = vmatpush1.msra.mxu0 0.0
  %7668 = vmatprep.subr.mxu0 0.0
  %7669 = vmatpush1.msra.mxu0 0.0
  %7670 = vmatprep.subr.mxu0 0.0
  %7671 = vmatpush1.msra.mxu0 0.0
  %7672 = vmatprep.subr.mxu0 0.0
  %7673 = vmatpush1.msra.mxu0 0.0
  %7674 = vmatprep.subr.mxu0 0.0
  %7675 = vmatpush1.msra.mxu0 0.0
  %7676 = vmatprep.subr.mxu0 0.0
  %7677 = vmatpush1.msra.mxu0 0.0
  %7678 = vmatprep.subr.mxu0 0.0
  %7679 = vmatpush1.msra.mxu0 0.0
  %7680 = vmatprep.subr.mxu0 0.0
  %7681 = vmatpush1.msra.mxu0 0.0
  %7682 = vmatprep.subr.mxu0 0.0
  %7683 = vmatpush1.msra.mxu0 0.0
  %7684 = vmatprep.subr.mxu0 0.0
  %7685 = vmatpush1.msra.mxu0 0.0
  %7686 = vmatprep.subr.mxu0 0.0
  %7687 = vmatpush1.msra.mxu0 0.0
  %7688 = vmatprep.mubr.f32.mxu0 0.0
  %v7689 = vand.u32 %v7140, 4294901760
  %7690 = vmatmul.mubr.f32.gmra.mrb[0].mxu0 %v7689
  %v7691 = vpop.f32.mrb[0].mxu0
  %v7692 = vadd.f32 %v7573, %v7691
  %v7693 = vpop.f32.mrb[0].mxu0
  %7694 = vdwg.mxu0
  %7695 = vmatprep.subr.mxu0 0.0
  %v7696 = vand.u32 %v41, 4294901760
  %7697 = vmatpush1.msra.mxu0 %v7696
  %7698 = vmatprep.subr.mxu0 0.0
  %v7699 = vand.u32 %v42, 4294901760
  %7700 = vmatpush1.msra.mxu0 %v7699
  %7701 = vmatprep.subr.mxu0 0.0
  %v7702 = vand.u32 %v43, 4294901760
  %7703 = vmatpush1.msra.mxu0 %v7702
  %7704 = vmatprep.subr.mxu0 0.0
  %v7705 = vand.u32 %v44, 4294901760
  %7706 = vmatpush1.msra.mxu0 %v7705
  %7707 = vmatprep.subr.mxu0 0.0
  %v7708 = vand.u32 %v45, 4294901760
  %7709 = vmatpush1.msra.mxu0 %v7708
  %7710 = vmatprep.subr.mxu0 0.0
  %v7711 = vand.u32 %v46, 4294901760
  %7712 = vmatpush1.msra.mxu0 %v7711
  %7713 = vmatprep.subr.mxu0 0.0
  %v7714 = vand.u32 %v47, 4294901760
  %7715 = vmatpush1.msra.mxu0 %v7714
  %7716 = vmatprep.subr.mxu0 0.0
  %v7717 = vand.u32 %v48, 4294901760
  %7718 = vmatpush1.msra.mxu0 %v7717
  %7719 = vmatprep.subr.mxu0 0.0
  %v7720 = vand.u32 %v49, 4294901760
  %7721 = vmatpush1.msra.mxu0 %v7720
  %7722 = vmatprep.subr.mxu0 0.0
  %v7723 = vand.u32 %v50, 4294901760
  %7724 = vmatpush1.msra.mxu0 %v7723
  %7725 = vmatprep.subr.mxu0 0.0
  %v7726 = vand.u32 %v51, 4294901760
  %7727 = vmatpush1.msra.mxu0 %v7726
  %7728 = vmatprep.subr.mxu0 0.0
  %v7729 = vand.u32 %v52, 4294901760
  %7730 = vmatpush1.msra.mxu0 %v7729
  %7731 = vmatprep.subr.mxu0 0.0
  %v7732 = vand.u32 %v53, 4294901760
  %7733 = vmatpush1.msra.mxu0 %v7732
  %7734 = vmatprep.subr.mxu0 0.0
  %v7735 = vand.u32 %v54, 4294901760
  %7736 = vmatpush1.msra.mxu0 %v7735
  %7737 = vmatprep.subr.mxu0 0.0
  %v7738 = vand.u32 %v55, 4294901760
  %7739 = vmatpush1.msra.mxu0 %v7738
  %7740 = vmatprep.subr.mxu0 0.0
  %v7741 = vand.u32 %v56, 4294901760
  %7742 = vmatpush1.msra.mxu0 %v7741
  %7743 = vmatprep.subr.mxu0 0.0
  %7744 = vmatpush1.msra.mxu0 0.0
  %7745 = vmatprep.subr.mxu0 0.0
  %7746 = vmatpush1.msra.mxu0 0.0
  %7747 = vmatprep.subr.mxu0 0.0
  %7748 = vmatpush1.msra.mxu0 0.0
  %7749 = vmatprep.subr.mxu0 0.0
  %7750 = vmatpush1.msra.mxu0 0.0
  %7751 = vmatprep.subr.mxu0 0.0
  %7752 = vmatpush1.msra.mxu0 0.0
  %7753 = vmatprep.subr.mxu0 0.0
  %7754 = vmatpush1.msra.mxu0 0.0
  %7755 = vmatprep.subr.mxu0 0.0
  %7756 = vmatpush1.msra.mxu0 0.0
  %7757 = vmatprep.subr.mxu0 0.0
  %7758 = vmatpush1.msra.mxu0 0.0
  %7759 = vmatprep.subr.mxu0 0.0
  %7760 = vmatpush1.msra.mxu0 0.0
  %7761 = vmatprep.subr.mxu0 0.0
  %7762 = vmatpush1.msra.mxu0 0.0
  %7763 = vmatprep.subr.mxu0 0.0
  %7764 = vmatpush1.msra.mxu0 0.0
  %7765 = vmatprep.subr.mxu0 0.0
  %7766 = vmatpush1.msra.mxu0 0.0
  %7767 = vmatprep.subr.mxu0 0.0
  %7768 = vmatpush1.msra.mxu0 0.0
  %7769 = vmatprep.subr.mxu0 0.0
  %7770 = vmatpush1.msra.mxu0 0.0
  %7771 = vmatprep.subr.mxu0 0.0
  %7772 = vmatpush1.msra.mxu0 0.0
  %7773 = vmatprep.subr.mxu0 0.0
  %7774 = vmatpush1.msra.mxu0 0.0
  %7775 = vmatprep.mubr.f32.mxu0 0.0
  %v7776 = vand.u32 %v7140, 4294901760
  %7777 = vmatmul.mubr.f32.gmra.mrb[0].mxu0 %v7776
  %v7778 = vpop.f32.mrb[0].mxu0
  %v7779 = vadd.f32 %v7692, %v7778
  %v7780 = vpop.f32.mrb[0].mxu0
  %7781 = vdwg.mxu0
  %s7782 = scalar_lea.vmem %s4, 40
  %7783 = vst [vmem:[%s7782] sm:$0xff] %v7779
  %s7784 = scalar_lea.vmem %s0, 48
  %v7785 = vld [vmem:[%s7784] sm:$0xff]
  %7786 = vmatprep.subr.mxu0 0.0
  %v7787 = vand.u32 %v25, 4294901760
  %7788 = vmatpush1.msra.mxu0 %v7787
  %7789 = vmatprep.subr.mxu0 0.0
  %v7790 = vand.u32 %v26, 4294901760
  %7791 = vmatpush1.msra.mxu0 %v7790
  %7792 = vmatprep.subr.mxu0 0.0
  %v7793 = vand.u32 %v27, 4294901760
  %7794 = vmatpush1.msra.mxu0 %v7793
  %7795 = vmatprep.subr.mxu0 0.0
  %v7796 = vand.u32 %v28, 4294901760
  %7797 = vmatpush1.msra.mxu0 %v7796
  %7798 = vmatprep.subr.mxu0 0.0
  %v7799 = vand.u32 %v29, 4294901760
  %7800 = vmatpush1.msra.mxu0 %v7799
  %7801 = vmatprep.subr.mxu0 0.0
  %v7802 = vand.u32 %v30, 4294901760
  %7803 = vmatpush1.msra.mxu0 %v7802
  %7804 = vmatprep.subr.mxu0 0.0
  %v7805 = vand.u32 %v31, 4294901760
  %7806 = vmatpush1.msra.mxu0 %v7805
  %7807 = vmatprep.subr.mxu0 0.0
  %v7808 = vand.u32 %v32, 4294901760
  %7809 = vmatpush1.msra.mxu0 %v7808
  %7810 = vmatprep.subr.mxu0 0.0
  %v7811 = vand.u32 %v33, 4294901760
  %7812 = vmatpush1.msra.mxu0 %v7811
  %7813 = vmatprep.subr.mxu0 0.0
  %v7814 = vand.u32 %v34, 4294901760
  %7815 = vmatpush1.msra.mxu0 %v7814
  %7816 = vmatprep.subr.mxu0 0.0
  %v7817 = vand.u32 %v35, 4294901760
  %7818 = vmatpush1.msra.mxu0 %v7817
  %7819 = vmatprep.subr.mxu0 0.0
  %v7820 = vand.u32 %v36, 4294901760
  %7821 = vmatpush1.msra.mxu0 %v7820
  %7822 = vmatprep.subr.mxu0 0.0
  %v7823 = vand.u32 %v37, 4294901760
  %7824 = vmatpush1.msra.mxu0 %v7823
  %7825 = vmatprep.subr.mxu0 0.0
  %v7826 = vand.u32 %v38, 4294901760
  %7827 = vmatpush1.msra.mxu0 %v7826
  %7828 = vmatprep.subr.mxu0 0.0
  %v7829 = vand.u32 %v39, 4294901760
  %7830 = vmatpush1.msra.mxu0 %v7829
  %7831 = vmatprep.subr.mxu0 0.0
  %v7832 = vand.u32 %v40, 4294901760
  %7833 = vmatpush1.msra.mxu0 %v7832
  %7834 = vmatprep.subr.mxu0 0.0
  %7835 = vmatpush1.msra.mxu0 0.0
  %7836 = vmatprep.subr.mxu0 0.0
  %7837 = vmatpush1.msra.mxu0 0.0
  %7838 = vmatprep.subr.mxu0 0.0
  %7839 = vmatpush1.msra.mxu0 0.0
  %7840 = vmatprep.subr.mxu0 0.0
  %7841 = vmatpush1.msra.mxu0 0.0
  %7842 = vmatprep.subr.mxu0 0.0
  %7843 = vmatpush1.msra.mxu0 0.0
  %7844 = vmatprep.subr.mxu0 0.0
  %7845 = vmatpush1.msra.mxu0 0.0
  %7846 = vmatprep.subr.mxu0 0.0
  %7847 = vmatpush1.msra.mxu0 0.0
  %7848 = vmatprep.subr.mxu0 0.0
  %7849 = vmatpush1.msra.mxu0 0.0
  %7850 = vmatprep.subr.mxu0 0.0
  %7851 = vmatpush1.msra.mxu0 0.0
  %7852 = vmatprep.subr.mxu0 0.0
  %7853 = vmatpush1.msra.mxu0 0.0
  %7854 = vmatprep.subr.mxu0 0.0
  %7855 = vmatpush1.msra.mxu0 0.0
  %7856 = vmatprep.subr.mxu0 0.0
  %7857 = vmatpush1.msra.mxu0 0.0
  %7858 = vmatprep.subr.mxu0 0.0
  %7859 = vmatpush1.msra.mxu0 0.0
  %7860 = vmatprep.subr.mxu0 0.0
  %7861 = vmatpush1.msra.mxu0 0.0
  %7862 = vmatprep.subr.mxu0 0.0
  %7863 = vmatpush1.msra.mxu0 0.0
  %7864 = vmatprep.subr.mxu0 0.0
  %7865 = vmatpush1.msra.mxu0 0.0
  %7866 = vmatprep.mubr.f32.mxu0 0.0
  %v7867 = vand.u32 %v7140, 4294901760
  %v7868 = vsub.f32 %v7140, %v7867
  %v7869 = vand.u32 %v7868, 4294901760
  %v7870 = vsub.f32 %v7868, %v7869
  %v7871 = vand.u32 %v7870, 4294901760
  %7872 = vmatmul.mubr.f32.gmra.mrb[0].mxu0 %v7871
  %v7873 = vpop.f32.mrb[0].mxu0
  %v7874 = vadd.f32 0.0, %v7873
  %v7875 = vpop.f32.mrb[0].mxu0
  %7876 = vdwg.mxu0
  %7877 = vmatprep.subr.mxu0 0.0
  %v7878 = vand.u32 %v25, 4294901760
  %v7879 = vsub.f32 %v25, %v7878
  %v7880 = vand.u32 %v7879, 4294901760
  %v7881 = vsub.f32 %v7879, %v7880
  %v7882 = vand.u32 %v7881, 4294901760
  %7883 = vmatpush1.msra.mxu0 %v7882
  %7884 = vmatprep.subr.mxu0 0.0
  %v7885 = vand.u32 %v26, 4294901760
  %v7886 = vsub.f32 %v26, %v7885
  %v7887 = vand.u32 %v7886, 4294901760
  %v7888 = vsub.f32 %v7886, %v7887
  %v7889 = vand.u32 %v7888, 4294901760
  %7890 = vmatpush1.msra.mxu0 %v7889
  %7891 = vmatprep.subr.mxu0 0.0
  %v7892 = vand.u32 %v27, 4294901760
  %v7893 = vsub.f32 %v27, %v7892
  %v7894 = vand.u32 %v7893, 4294901760
  %v7895 = vsub.f32 %v7893, %v7894
  %v7896 = vand.u32 %v7895, 4294901760
  %7897 = vmatpush1.msra.mxu0 %v7896
  %7898 = vmatprep.subr.mxu0 0.0
  %v7899 = vand.u32 %v28, 4294901760
  %v7900 = vsub.f32 %v28, %v7899
  %v7901 = vand.u32 %v7900, 4294901760
  %v7902 = vsub.f32 %v7900, %v7901
  %v7903 = vand.u32 %v7902, 4294901760
  %7904 = vmatpush1.msra.mxu0 %v7903
  %7905 = vmatprep.subr.mxu0 0.0
  %v7906 = vand.u32 %v29, 4294901760
  %v7907 = vsub.f32 %v29, %v7906
  %v7908 = vand.u32 %v7907, 4294901760
  %v7909 = vsub.f32 %v7907, %v7908
  %v7910 = vand.u32 %v7909, 4294901760
  %7911 = vmatpush1.msra.mxu0 %v7910
  %7912 = vmatprep.subr.mxu0 0.0
  %v7913 = vand.u32 %v30, 4294901760
  %v7914 = vsub.f32 %v30, %v7913
  %v7915 = vand.u32 %v7914, 4294901760
  %v7916 = vsub.f32 %v7914, %v7915
  %v7917 = vand.u32 %v7916, 4294901760
  %7918 = vmatpush1.msra.mxu0 %v7917
  %7919 = vmatprep.subr.mxu0 0.0
  %v7920 = vand.u32 %v31, 4294901760
  %v7921 = vsub.f32 %v31, %v7920
  %v7922 = vand.u32 %v7921, 4294901760
  %v7923 = vsub.f32 %v7921, %v7922
  %v7924 = vand.u32 %v7923, 4294901760
  %7925 = vmatpush1.msra.mxu0 %v7924
  %7926 = vmatprep.subr.mxu0 0.0
  %v7927 = vand.u32 %v32, 4294901760
  %v7928 = vsub.f32 %v32, %v7927
  %v7929 = vand.u32 %v7928, 4294901760
  %v7930 = vsub.f32 %v7928, %v7929
  %v7931 = vand.u32 %v7930, 4294901760
  %7932 = vmatpush1.msra.mxu0 %v7931
  %7933 = vmatprep.subr.mxu0 0.0
  %v7934 = vand.u32 %v33, 4294901760
  %v7935 = vsub.f32 %v33, %v7934
  %v7936 = vand.u32 %v7935, 4294901760
  %v7937 = vsub.f32 %v7935, %v7936
  %v7938 = vand.u32 %v7937, 4294901760
  %7939 = vmatpush1.msra.mxu0 %v7938
  %7940 = vmatprep.subr.mxu0 0.0
  %v7941 = vand.u32 %v34, 4294901760
  %v7942 = vsub.f32 %v34, %v7941
  %v7943 = vand.u32 %v7942, 4294901760
  %v7944 = vsub.f32 %v7942, %v7943
  %v7945 = vand.u32 %v7944, 4294901760
  %7946 = vmatpush1.msra.mxu0 %v7945
  %7947 = vmatprep.subr.mxu0 0.0
  %v7948 = vand.u32 %v35, 4294901760
  %v7949 = vsub.f32 %v35, %v7948
  %v7950 = vand.u32 %v7949, 4294901760
  %v7951 = vsub.f32 %v7949, %v7950
  %v7952 = vand.u32 %v7951, 4294901760
  %7953 = vmatpush1.msra.mxu0 %v7952
  %7954 = vmatprep.subr.mxu0 0.0
  %v7955 = vand.u32 %v36, 4294901760
  %v7956 = vsub.f32 %v36, %v7955
  %v7957 = vand.u32 %v7956, 4294901760
  %v7958 = vsub.f32 %v7956, %v7957
  %v7959 = vand.u32 %v7958, 4294901760
  %7960 = vmatpush1.msra.mxu0 %v7959
  %7961 = vmatprep.subr.mxu0 0.0
  %v7962 = vand.u32 %v37, 4294901760
  %v7963 = vsub.f32 %v37, %v7962
  %v7964 = vand.u32 %v7963, 4294901760
  %v7965 = vsub.f32 %v7963, %v7964
  %v7966 = vand.u32 %v7965, 4294901760
  %7967 = vmatpush1.msra.mxu0 %v7966
  %7968 = vmatprep.subr.mxu0 0.0
  %v7969 = vand.u32 %v38, 4294901760
  %v7970 = vsub.f32 %v38, %v7969
  %v7971 = vand.u32 %v7970, 4294901760
  %v7972 = vsub.f32 %v7970, %v7971
  %v7973 = vand.u32 %v7972, 4294901760
  %7974 = vmatpush1.msra.mxu0 %v7973
  %7975 = vmatprep.subr.mxu0 0.0
  %v7976 = vand.u32 %v39, 4294901760
  %v7977 = vsub.f32 %v39, %v7976
  %v7978 = vand.u32 %v7977, 4294901760
  %v7979 = vsub.f32 %v7977, %v7978
  %v7980 = vand.u32 %v7979, 4294901760
  %7981 = vmatpush1.msra.mxu0 %v7980
  %7982 = vmatprep.subr.mxu0 0.0
  %v7983 = vand.u32 %v40, 4294901760
  %v7984 = vsub.f32 %v40, %v7983
  %v7985 = vand.u32 %v7984, 4294901760
  %v7986 = vsub.f32 %v7984, %v7985
  %v7987 = vand.u32 %v7986, 4294901760
  %7988 = vmatpush1.msra.mxu0 %v7987
  %7989 = vmatprep.subr.mxu0 0.0
  %7990 = vmatpush1.msra.mxu0 0.0
  %7991 = vmatprep.subr.mxu0 0.0
  %7992 = vmatpush1.msra.mxu0 0.0
  %7993 = vmatprep.subr.mxu0 0.0
  %7994 = vmatpush1.msra.mxu0 0.0
  %7995 = vmatprep.subr.mxu0 0.0
  %7996 = vmatpush1.msra.mxu0 0.0
  %7997 = vmatprep.subr.mxu0 0.0
  %7998 = vmatpush1.msra.mxu0 0.0
  %7999 = vmatprep.subr.mxu0 0.0
  %8000 = vmatpush1.msra.mxu0 0.0
  %8001 = vmatprep.subr.mxu0 0.0
  %8002 = vmatpush1.msra.mxu0 0.0
  %8003 = vmatprep.subr.mxu0 0.0
  %8004 = vmatpush1.msra.mxu0 0.0
  %8005 = vmatprep.subr.mxu0 0.0
  %8006 = vmatpush1.msra.mxu0 0.0
  %8007 = vmatprep.subr.mxu0 0.0
  %8008 = vmatpush1.msra.mxu0 0.0
  %8009 = vmatprep.subr.mxu0 0.0
  %8010 = vmatpush1.msra.mxu0 0.0
  %8011 = vmatprep.subr.mxu0 0.0
  %8012 = vmatpush1.msra.mxu0 0.0
  %8013 = vmatprep.subr.mxu0 0.0
  %8014 = vmatpush1.msra.mxu0 0.0
  %8015 = vmatprep.subr.mxu0 0.0
  %8016 = vmatpush1.msra.mxu0 0.0
  %8017 = vmatprep.subr.mxu0 0.0
  %8018 = vmatpush1.msra.mxu0 0.0
  %8019 = vmatprep.subr.mxu0 0.0
  %8020 = vmatpush1.msra.mxu0 0.0
  %8021 = vmatprep.mubr.f32.mxu0 0.0
  %v8022 = vand.u32 %v7140, 4294901760
  %8023 = vmatmul.mubr.f32.gmra.mrb[0].mxu0 %v8022
  %v8024 = vpop.f32.mrb[0].mxu0
  %v8025 = vadd.f32 %v7874, %v8024
  %v8026 = vpop.f32.mrb[0].mxu0
  %8027 = vdwg.mxu0
  %8028 = vmatprep.subr.mxu0 0.0
  %v8029 = vand.u32 %v25, 4294901760
  %v8030 = vsub.f32 %v25, %v8029
  %8031 = vmatpush1.msra.mxu0 %v8030
  %8032 = vmatprep.subr.mxu0 0.0
  %v8033 = vand.u32 %v26, 4294901760
  %v8034 = vsub.f32 %v26, %v8033
  %8035 = vmatpush1.msra.mxu0 %v8034
  %8036 = vmatprep.subr.mxu0 0.0
  %v8037 = vand.u32 %v27, 4294901760
  %v8038 = vsub.f32 %v27, %v8037
  %8039 = vmatpush1.msra.mxu0 %v8038
  %8040 = vmatprep.subr.mxu0 0.0
  %v8041 = vand.u32 %v28, 4294901760
  %v8042 = vsub.f32 %v28, %v8041
  %8043 = vmatpush1.msra.mxu0 %v8042
  %8044 = vmatprep.subr.mxu0 0.0
  %v8045 = vand.u32 %v29, 4294901760
  %v8046 = vsub.f32 %v29, %v8045
  %8047 = vmatpush1.msra.mxu0 %v8046
  %8048 = vmatprep.subr.mxu0 0.0
  %v8049 = vand.u32 %v30, 4294901760
  %v8050 = vsub.f32 %v30, %v8049
  %8051 = vmatpush1.msra.mxu0 %v8050
  %8052 = vmatprep.subr.mxu0 0.0
  %v8053 = vand.u32 %v31, 4294901760
  %v8054 = vsub.f32 %v31, %v8053
  %8055 = vmatpush1.msra.mxu0 %v8054
  %8056 = vmatprep.subr.mxu0 0.0
  %v8057 = vand.u32 %v32, 4294901760
  %v8058 = vsub.f32 %v32, %v8057
  %8059 = vmatpush1.msra.mxu0 %v8058
  %8060 = vmatprep.subr.mxu0 0.0
  %v8061 = vand.u32 %v33, 4294901760
  %v8062 = vsub.f32 %v33, %v8061
  %8063 = vmatpush1.msra.mxu0 %v8062
  %8064 = vmatprep.subr.mxu0 0.0
  %v8065 = vand.u32 %v34, 4294901760
  %v8066 = vsub.f32 %v34, %v8065
  %8067 = vmatpush1.msra.mxu0 %v8066
  %8068 = vmatprep.subr.mxu0 0.0
  %v8069 = vand.u32 %v35, 4294901760
  %v8070 = vsub.f32 %v35, %v8069
  %8071 = vmatpush1.msra.mxu0 %v8070
  %8072 = vmatprep.subr.mxu0 0.0
  %v8073 = vand.u32 %v36, 4294901760
  %v8074 = vsub.f32 %v36, %v8073
  %8075 = vmatpush1.msra.mxu0 %v8074
  %8076 = vmatprep.subr.mxu0 0.0
  %v8077 = vand.u32 %v37, 4294901760
  %v8078 = vsub.f32 %v37, %v8077
  %8079 = vmatpush1.msra.mxu0 %v8078
  %8080 = vmatprep.subr.mxu0 0.0
  %v8081 = vand.u32 %v38, 4294901760
  %v8082 = vsub.f32 %v38, %v8081
  %8083 = vmatpush1.msra.mxu0 %v8082
  %8084 = vmatprep.subr.mxu0 0.0
  %v8085 = vand.u32 %v39, 4294901760
  %v8086 = vsub.f32 %v39, %v8085
  %8087 = vmatpush1.msra.mxu0 %v8086
  %8088 = vmatprep.subr.mxu0 0.0
  %v8089 = vand.u32 %v40, 4294901760
  %v8090 = vsub.f32 %v40, %v8089
  %8091 = vmatpush1.msra.mxu0 %v8090
  %8092 = vmatprep.subr.mxu0 0.0
  %8093 = vmatpush1.msra.mxu0 0.0
  %8094 = vmatprep.subr.mxu0 0.0
  %8095 = vmatpush1.msra.mxu0 0.0
  %8096 = vmatprep.subr.mxu0 0.0
  %8097 = vmatpush1.msra.mxu0 0.0
  %8098 = vmatprep.subr.mxu0 0.0
  %8099 = vmatpush1.msra.mxu0 0.0
  %8100 = vmatprep.subr.mxu0 0.0
  %8101 = vmatpush1.msra.mxu0 0.0
  %8102 = vmatprep.subr.mxu0 0.0
  %8103 = vmatpush1.msra.mxu0 0.0
  %8104 = vmatprep.subr.mxu0 0.0
  %8105 = vmatpush1.msra.mxu0 0.0
  %8106 = vmatprep.subr.mxu0 0.0
  %8107 = vmatpush1.msra.mxu0 0.0
  %8108 = vmatprep.subr.mxu0 0.0
  %8109 = vmatpush1.msra.mxu0 0.0
  %8110 = vmatprep.subr.mxu0 0.0
  %8111 = vmatpush1.msra.mxu0 0.0
  %8112 = vmatprep.subr.mxu0 0.0
  %8113 = vmatpush1.msra.mxu0 0.0
  %8114 = vmatprep.subr.mxu0 0.0
  %8115 = vmatpush1.msra.mxu0 0.0
  %8116 = vmatprep.subr.mxu0 0.0
  %8117 = vmatpush1.msra.mxu0 0.0
  %8118 = vmatprep.subr.mxu0 0.0
  %8119 = vmatpush1.msra.mxu0 0.0
  %8120 = vmatprep.subr.mxu0 0.0
  %8121 = vmatpush1.msra.mxu0 0.0
  %8122 = vmatprep.subr.mxu0 0.0
  %8123 = vmatpush1.msra.mxu0 0.0
  %8124 = vmatprep.mubr.f32.mxu0 0.0
  %v8125 = vand.u32 %v7140, 4294901760
  %v8126 = vsub.f32 %v7140, %v8125
  %8127 = vmatmul.mubr.f32.gmra.mrb[0].mxu0 %v8126
  %v8128 = vpop.f32.mrb[0].mxu0
  %v8129 = vadd.f32 %v8025, %v8128
  %v8130 = vpop.f32.mrb[0].mxu0
  %8131 = vdwg.mxu0
  %8132 = vmatprep.subr.mxu0 0.0
  %v8133 = vand.u32 %v25, 4294901760
  %8134 = vmatpush1.msra.mxu0 %v8133
  %8135 = vmatprep.subr.mxu0 0.0
  %v8136 = vand.u32 %v26, 4294901760
  %8137 = vmatpush1.msra.mxu0 %v8136
  %8138 = vmatprep.subr.mxu0 0.0
  %v8139 = vand.u32 %v27, 4294901760
  %8140 = vmatpush1.msra.mxu0 %v8139
  %8141 = vmatprep.subr.mxu0 0.0
  %v8142 = vand.u32 %v28, 4294901760
  %8143 = vmatpush1.msra.mxu0 %v8142
  %8144 = vmatprep.subr.mxu0 0.0
  %v8145 = vand.u32 %v29, 4294901760
  %8146 = vmatpush1.msra.mxu0 %v8145
  %8147 = vmatprep.subr.mxu0 0.0
  %v8148 = vand.u32 %v30, 4294901760
  %8149 = vmatpush1.msra.mxu0 %v8148
  %8150 = vmatprep.subr.mxu0 0.0
  %v8151 = vand.u32 %v31, 4294901760
  %8152 = vmatpush1.msra.mxu0 %v8151
  %8153 = vmatprep.subr.mxu0 0.0
  %v8154 = vand.u32 %v32, 4294901760
  %8155 = vmatpush1.msra.mxu0 %v8154
  %8156 = vmatprep.subr.mxu0 0.0
  %v8157 = vand.u32 %v33, 4294901760
  %8158 = vmatpush1.msra.mxu0 %v8157
  %8159 = vmatprep.subr.mxu0 0.0
  %v8160 = vand.u32 %v34, 4294901760
  %8161 = vmatpush1.msra.mxu0 %v8160
  %8162 = vmatprep.subr.mxu0 0.0
  %v8163 = vand.u32 %v35, 4294901760
  %8164 = vmatpush1.msra.mxu0 %v8163
  %8165 = vmatprep.subr.mxu0 0.0
  %v8166 = vand.u32 %v36, 4294901760
  %8167 = vmatpush1.msra.mxu0 %v8166
  %8168 = vmatprep.subr.mxu0 0.0
  %v8169 = vand.u32 %v37, 4294901760
  %8170 = vmatpush1.msra.mxu0 %v8169
  %8171 = vmatprep.subr.mxu0 0.0
  %v8172 = vand.u32 %v38, 4294901760
  %8173 = vmatpush1.msra.mxu0 %v8172
  %8174 = vmatprep.subr.mxu0 0.0
  %v8175 = vand.u32 %v39, 4294901760
  %8176 = vmatpush1.msra.mxu0 %v8175
  %8177 = vmatprep.subr.mxu0 0.0
  %v8178 = vand.u32 %v40, 4294901760
  %8179 = vmatpush1.msra.mxu0 %v8178
  %8180 = vmatprep.subr.mxu0 0.0
  %8181 = vmatpush1.msra.mxu0 0.0
  %8182 = vmatprep.subr.mxu0 0.0
  %8183 = vmatpush1.msra.mxu0 0.0
  %8184 = vmatprep.subr.mxu0 0.0
  %8185 = vmatpush1.msra.mxu0 0.0
  %8186 = vmatprep.subr.mxu0 0.0
  %8187 = vmatpush1.msra.mxu0 0.0
  %8188 = vmatprep.subr.mxu0 0.0
  %8189 = vmatpush1.msra.mxu0 0.0
  %8190 = vmatprep.subr.mxu0 0.0
  %8191 = vmatpush1.msra.mxu0 0.0
  %8192 = vmatprep.subr.mxu0 0.0
  %8193 = vmatpush1.msra.mxu0 0.0
  %8194 = vmatprep.subr.mxu0 0.0
  %8195 = vmatpush1.msra.mxu0 0.0
  %8196 = vmatprep.subr.mxu0 0.0
  %8197 = vmatpush1.msra.mxu0 0.0
  %8198 = vmatprep.subr.mxu0 0.0
  %8199 = vmatpush1.msra.mxu0 0.0
  %8200 = vmatprep.subr.mxu0 0.0
  %8201 = vmatpush1.msra.mxu0 0.0
  %8202 = vmatprep.subr.mxu0 0.0
  %8203 = vmatpush1.msra.mxu0 0.0
  %8204 = vmatprep.subr.mxu0 0.0
  %8205 = vmatpush1.msra.mxu0 0.0
  %8206 = vmatprep.subr.mxu0 0.0
  %8207 = vmatpush1.msra.mxu0 0.0
  %8208 = vmatprep.subr.mxu0 0.0
  %8209 = vmatpush1.msra.mxu0 0.0
  %8210 = vmatprep.subr.mxu0 0.0
  %8211 = vmatpush1.msra.mxu0 0.0
  %8212 = vmatprep.mubr.f32.mxu0 0.0
  %v8213 = vand.u32 %v7140, 4294901760
  %v8214 = vsub.f32 %v7140, %v8213
  %v8215 = vand.u32 %v8214, 4294901760
  %8216 = vmatmul.mubr.f32.gmra.mrb[0].mxu0 %v8215
  %v8217 = vpop.f32.mrb[0].mxu0
  %v8218 = vadd.f32 %v8129, %v8217
  %v8219 = vpop.f32.mrb[0].mxu0
  %8220 = vdwg.mxu0
  %8221 = vmatprep.subr.mxu0 0.0
  %v8222 = vand.u32 %v25, 4294901760
  %v8223 = vsub.f32 %v25, %v8222
  %v8224 = vand.u32 %v8223, 4294901760
  %8225 = vmatpush1.msra.mxu0 %v8224
  %8226 = vmatprep.subr.mxu0 0.0
  %v8227 = vand.u32 %v26, 4294901760
  %v8228 = vsub.f32 %v26, %v8227
  %v8229 = vand.u32 %v8228, 4294901760
  %8230 = vmatpush1.msra.mxu0 %v8229
  %8231 = vmatprep.subr.mxu0 0.0
  %v8232 = vand.u32 %v27, 4294901760
  %v8233 = vsub.f32 %v27, %v8232
  %v8234 = vand.u32 %v8233, 4294901760
  %8235 = vmatpush1.msra.mxu0 %v8234
  %8236 = vmatprep.subr.mxu0 0.0
  %v8237 = vand.u32 %v28, 4294901760
  %v8238 = vsub.f32 %v28, %v8237
  %v8239 = vand.u32 %v8238, 4294901760
  %8240 = vmatpush1.msra.mxu0 %v8239
  %8241 = vmatprep.subr.mxu0 0.0
  %v8242 = vand.u32 %v29, 4294901760
  %v8243 = vsub.f32 %v29, %v8242
  %v8244 = vand.u32 %v8243, 4294901760
  %8245 = vmatpush1.msra.mxu0 %v8244
  %8246 = vmatprep.subr.mxu0 0.0
  %v8247 = vand.u32 %v30, 4294901760
  %v8248 = vsub.f32 %v30, %v8247
  %v8249 = vand.u32 %v8248, 4294901760
  %8250 = vmatpush1.msra.mxu0 %v8249
  %8251 = vmatprep.subr.mxu0 0.0
  %v8252 = vand.u32 %v31, 4294901760
  %v8253 = vsub.f32 %v31, %v8252
  %v8254 = vand.u32 %v8253, 4294901760
  %8255 = vmatpush1.msra.mxu0 %v8254
  %8256 = vmatprep.subr.mxu0 0.0
  %v8257 = vand.u32 %v32, 4294901760
  %v8258 = vsub.f32 %v32, %v8257
  %v8259 = vand.u32 %v8258, 4294901760
  %8260 = vmatpush1.msra.mxu0 %v8259
  %8261 = vmatprep.subr.mxu0 0.0
  %v8262 = vand.u32 %v33, 4294901760
  %v8263 = vsub.f32 %v33, %v8262
  %v8264 = vand.u32 %v8263, 4294901760
  %8265 = vmatpush1.msra.mxu0 %v8264
  %8266 = vmatprep.subr.mxu0 0.0
  %v8267 = vand.u32 %v34, 4294901760
  %v8268 = vsub.f32 %v34, %v8267
  %v8269 = vand.u32 %v8268, 4294901760
  %8270 = vmatpush1.msra.mxu0 %v8269
  %8271 = vmatprep.subr.mxu0 0.0
  %v8272 = vand.u32 %v35, 4294901760
  %v8273 = vsub.f32 %v35, %v8272
  %v8274 = vand.u32 %v8273, 4294901760
  %8275 = vmatpush1.msra.mxu0 %v8274
  %8276 = vmatprep.subr.mxu0 0.0
  %v8277 = vand.u32 %v36, 4294901760
  %v8278 = vsub.f32 %v36, %v8277
  %v8279 = vand.u32 %v8278, 4294901760
  %8280 = vmatpush1.msra.mxu0 %v8279
  %8281 = vmatprep.subr.mxu0 0.0
  %v8282 = vand.u32 %v37, 4294901760
  %v8283 = vsub.f32 %v37, %v8282
  %v8284 = vand.u32 %v8283, 4294901760
  %8285 = vmatpush1.msra.mxu0 %v8284
  %8286 = vmatprep.subr.mxu0 0.0
  %v8287 = vand.u32 %v38, 4294901760
  %v8288 = vsub.f32 %v38, %v8287
  %v8289 = vand.u32 %v8288, 4294901760
  %8290 = vmatpush1.msra.mxu0 %v8289
  %8291 = vmatprep.subr.mxu0 0.0
  %v8292 = vand.u32 %v39, 4294901760
  %v8293 = vsub.f32 %v39, %v8292
  %v8294 = vand.u32 %v8293, 4294901760
  %8295 = vmatpush1.msra.mxu0 %v8294
  %8296 = vmatprep.subr.mxu0 0.0
  %v8297 = vand.u32 %v40, 4294901760
  %v8298 = vsub.f32 %v40, %v8297
  %v8299 = vand.u32 %v8298, 4294901760
  %8300 = vmatpush1.msra.mxu0 %v8299
  %8301 = vmatprep.subr.mxu0 0.0
  %8302 = vmatpush1.msra.mxu0 0.0
  %8303 = vmatprep.subr.mxu0 0.0
  %8304 = vmatpush1.msra.mxu0 0.0
  %8305 = vmatprep.subr.mxu0 0.0
  %8306 = vmatpush1.msra.mxu0 0.0
  %8307 = vmatprep.subr.mxu0 0.0
  %8308 = vmatpush1.msra.mxu0 0.0
  %8309 = vmatprep.subr.mxu0 0.0
  %8310 = vmatpush1.msra.mxu0 0.0
  %8311 = vmatprep.subr.mxu0 0.0
  %8312 = vmatpush1.msra.mxu0 0.0
  %8313 = vmatprep.subr.mxu0 0.0
  %8314 = vmatpush1.msra.mxu0 0.0
  %8315 = vmatprep.subr.mxu0 0.0
  %8316 = vmatpush1.msra.mxu0 0.0
  %8317 = vmatprep.subr.mxu0 0.0
  %8318 = vmatpush1.msra.mxu0 0.0
  %8319 = vmatprep.subr.mxu0 0.0
  %8320 = vmatpush1.msra.mxu0 0.0
  %8321 = vmatprep.subr.mxu0 0.0
  %8322 = vmatpush1.msra.mxu0 0.0
  %8323 = vmatprep.subr.mxu0 0.0
  %8324 = vmatpush1.msra.mxu0 0.0
  %8325 = vmatprep.subr.mxu0 0.0
  %8326 = vmatpush1.msra.mxu0 0.0
  %8327 = vmatprep.subr.mxu0 0.0
  %8328 = vmatpush1.msra.mxu0 0.0
  %8329 = vmatprep.subr.mxu0 0.0
  %8330 = vmatpush1.msra.mxu0 0.0
  %8331 = vmatprep.subr.mxu0 0.0
  %8332 = vmatpush1.msra.mxu0 0.0
  %8333 = vmatprep.mubr.f32.mxu0 0.0
  %v8334 = vand.u32 %v7140, 4294901760
  %8335 = vmatmul.mubr.f32.gmra.mrb[0].mxu0 %v8334
  %v8336 = vpop.f32.mrb[0].mxu0
  %v8337 = vadd.f32 %v8218, %v8336
  %v8338 = vpop.f32.mrb[0].mxu0
  %8339 = vdwg.mxu0
  %8340 = vmatprep.subr.mxu0 0.0
  %v8341 = vand.u32 %v25, 4294901760
  %8342 = vmatpush1.msra.mxu0 %v8341
  %8343 = vmatprep.subr.mxu0 0.0
  %v8344 = vand.u32 %v26, 4294901760
  %8345 = vmatpush1.msra.mxu0 %v8344
  %8346 = vmatprep.subr.mxu0 0.0
  %v8347 = vand.u32 %v27, 4294901760
  %8348 = vmatpush1.msra.mxu0 %v8347
  %8349 = vmatprep.subr.mxu0 0.0
  %v8350 = vand.u32 %v28, 4294901760
  %8351 = vmatpush1.msra.mxu0 %v8350
  %8352 = vmatprep.subr.mxu0 0.0
  %v8353 = vand.u32 %v29, 4294901760
  %8354 = vmatpush1.msra.mxu0 %v8353
  %8355 = vmatprep.subr.mxu0 0.0
  %v8356 = vand.u32 %v30, 4294901760
  %8357 = vmatpush1.msra.mxu0 %v8356
  %8358 = vmatprep.subr.mxu0 0.0
  %v8359 = vand.u32 %v31, 4294901760
  %8360 = vmatpush1.msra.mxu0 %v8359
  %8361 = vmatprep.subr.mxu0 0.0
  %v8362 = vand.u32 %v32, 4294901760
  %8363 = vmatpush1.msra.mxu0 %v8362
  %8364 = vmatprep.subr.mxu0 0.0
  %v8365 = vand.u32 %v33, 4294901760
  %8366 = vmatpush1.msra.mxu0 %v8365
  %8367 = vmatprep.subr.mxu0 0.0
  %v8368 = vand.u32 %v34, 4294901760
  %8369 = vmatpush1.msra.mxu0 %v8368
  %8370 = vmatprep.subr.mxu0 0.0
  %v8371 = vand.u32 %v35, 4294901760
  %8372 = vmatpush1.msra.mxu0 %v8371
  %8373 = vmatprep.subr.mxu0 0.0
  %v8374 = vand.u32 %v36, 4294901760
  %8375 = vmatpush1.msra.mxu0 %v8374
  %8376 = vmatprep.subr.mxu0 0.0
  %v8377 = vand.u32 %v37, 4294901760
  %8378 = vmatpush1.msra.mxu0 %v8377
  %8379 = vmatprep.subr.mxu0 0.0
  %v8380 = vand.u32 %v38, 4294901760
  %8381 = vmatpush1.msra.mxu0 %v8380
  %8382 = vmatprep.subr.mxu0 0.0
  %v8383 = vand.u32 %v39, 4294901760
  %8384 = vmatpush1.msra.mxu0 %v8383
  %8385 = vmatprep.subr.mxu0 0.0
  %v8386 = vand.u32 %v40, 4294901760
  %8387 = vmatpush1.msra.mxu0 %v8386
  %8388 = vmatprep.subr.mxu0 0.0
  %8389 = vmatpush1.msra.mxu0 0.0
  %8390 = vmatprep.subr.mxu0 0.0
  %8391 = vmatpush1.msra.mxu0 0.0
  %8392 = vmatprep.subr.mxu0 0.0
  %8393 = vmatpush1.msra.mxu0 0.0
  %8394 = vmatprep.subr.mxu0 0.0
  %8395 = vmatpush1.msra.mxu0 0.0
  %8396 = vmatprep.subr.mxu0 0.0
  %8397 = vmatpush1.msra.mxu0 0.0
  %8398 = vmatprep.subr.mxu0 0.0
  %8399 = vmatpush1.msra.mxu0 0.0
  %8400 = vmatprep.subr.mxu0 0.0
  %8401 = vmatpush1.msra.mxu0 0.0
  %8402 = vmatprep.subr.mxu0 0.0
  %8403 = vmatpush1.msra.mxu0 0.0
  %8404 = vmatprep.subr.mxu0 0.0
  %8405 = vmatpush1.msra.mxu0 0.0
  %8406 = vmatprep.subr.mxu0 0.0
  %8407 = vmatpush1.msra.mxu0 0.0
  %8408 = vmatprep.subr.mxu0 0.0
  %8409 = vmatpush1.msra.mxu0 0.0
  %8410 = vmatprep.subr.mxu0 0.0
  %8411 = vmatpush1.msra.mxu0 0.0
  %8412 = vmatprep.subr.mxu0 0.0
  %8413 = vmatpush1.msra.mxu0 0.0
  %8414 = vmatprep.subr.mxu0 0.0
  %8415 = vmatpush1.msra.mxu0 0.0
  %8416 = vmatprep.subr.mxu0 0.0
  %8417 = vmatpush1.msra.mxu0 0.0
  %8418 = vmatprep.subr.mxu0 0.0
  %8419 = vmatpush1.msra.mxu0 0.0
  %8420 = vmatprep.mubr.f32.mxu0 0.0
  %v8421 = vand.u32 %v7140, 4294901760
  %8422 = vmatmul.mubr.f32.gmra.mrb[0].mxu0 %v8421
  %v8423 = vpop.f32.mrb[0].mxu0
  %v8424 = vadd.f32 %v8337, %v8423
  %v8425 = vpop.f32.mrb[0].mxu0
  %8426 = vdwg.mxu0
  %v8427 = vadd.f32 %v7785, %v8424
  %v8428 = vtanh.pop %v8427
  %8429 = vmatprep.subr.mxu0 0.0
  %v8430 = vand.u32 %v41, 4294901760
  %8431 = vmatpush1.msra.mxu0 %v8430
  %8432 = vmatprep.subr.mxu0 0.0
  %v8433 = vand.u32 %v42, 4294901760
  %8434 = vmatpush1.msra.mxu0 %v8433
  %8435 = vmatprep.subr.mxu0 0.0
  %v8436 = vand.u32 %v43, 4294901760
  %8437 = vmatpush1.msra.mxu0 %v8436
  %8438 = vmatprep.subr.mxu0 0.0
  %v8439 = vand.u32 %v44, 4294901760
  %8440 = vmatpush1.msra.mxu0 %v8439
  %8441 = vmatprep.subr.mxu0 0.0
  %v8442 = vand.u32 %v45, 4294901760
  %8443 = vmatpush1.msra.mxu0 %v8442
  %8444 = vmatprep.subr.mxu0 0.0
  %v8445 = vand.u32 %v46, 4294901760
  %8446 = vmatpush1.msra.mxu0 %v8445
  %8447 = vmatprep.subr.mxu0 0.0
  %v8448 = vand.u32 %v47, 4294901760
  %8449 = vmatpush1.msra.mxu0 %v8448
  %8450 = vmatprep.subr.mxu0 0.0
  %v8451 = vand.u32 %v48, 4294901760
  %8452 = vmatpush1.msra.mxu0 %v8451
  %8453 = vmatprep.subr.mxu0 0.0
  %v8454 = vand.u32 %v49, 4294901760
  %8455 = vmatpush1.msra.mxu0 %v8454
  %8456 = vmatprep.subr.mxu0 0.0
  %v8457 = vand.u32 %v50, 4294901760
  %8458 = vmatpush1.msra.mxu0 %v8457
  %8459 = vmatprep.subr.mxu0 0.0
  %v8460 = vand.u32 %v51, 4294901760
  %8461 = vmatpush1.msra.mxu0 %v8460
  %8462 = vmatprep.subr.mxu0 0.0
  %v8463 = vand.u32 %v52, 4294901760
  %8464 = vmatpush1.msra.mxu0 %v8463
  %8465 = vmatprep.subr.mxu0 0.0
  %v8466 = vand.u32 %v53, 4294901760
  %8467 = vmatpush1.msra.mxu0 %v8466
  %8468 = vmatprep.subr.mxu0 0.0
  %v8469 = vand.u32 %v54, 4294901760
  %8470 = vmatpush1.msra.mxu0 %v8469
  %8471 = vmatprep.subr.mxu0 0.0
  %v8472 = vand.u32 %v55, 4294901760
  %8473 = vmatpush1.msra.mxu0 %v8472
  %8474 = vmatprep.subr.mxu0 0.0
  %v8475 = vand.u32 %v56, 4294901760
  %8476 = vmatpush1.msra.mxu0 %v8475
  %8477 = vmatprep.subr.mxu0 0.0
  %8478 = vmatpush1.msra.mxu0 0.0
  %8479 = vmatprep.subr.mxu0 0.0
  %8480 = vmatpush1.msra.mxu0 0.0
  %8481 = vmatprep.subr.mxu0 0.0
  %8482 = vmatpush1.msra.mxu0 0.0
  %8483 = vmatprep.subr.mxu0 0.0
  %8484 = vmatpush1.msra.mxu0 0.0
  %8485 = vmatprep.subr.mxu0 0.0
  %8486 = vmatpush1.msra.mxu0 0.0
  %8487 = vmatprep.subr.mxu0 0.0
  %8488 = vmatpush1.msra.mxu0 0.0
  %8489 = vmatprep.subr.mxu0 0.0
  %8490 = vmatpush1.msra.mxu0 0.0
  %8491 = vmatprep.subr.mxu0 0.0
  %8492 = vmatpush1.msra.mxu0 0.0
  %8493 = vmatprep.subr.mxu0 0.0
  %8494 = vmatpush1.msra.mxu0 0.0
  %8495 = vmatprep.subr.mxu0 0.0
  %8496 = vmatpush1.msra.mxu0 0.0
  %8497 = vmatprep.subr.mxu0 0.0
  %8498 = vmatpush1.msra.mxu0 0.0
  %8499 = vmatprep.subr.mxu0 0.0
  %8500 = vmatpush1.msra.mxu0 0.0
  %8501 = vmatprep.subr.mxu0 0.0
  %8502 = vmatpush1.msra.mxu0 0.0
  %8503 = vmatprep.subr.mxu0 0.0
  %8504 = vmatpush1.msra.mxu0 0.0
  %8505 = vmatprep.subr.mxu0 0.0
  %8506 = vmatpush1.msra.mxu0 0.0
  %8507 = vmatprep.subr.mxu0 0.0
  %8508 = vmatpush1.msra.mxu0 0.0
  %8509 = vmatprep.mubr.f32.mxu0 0.0
  %v8510 = vand.u32 %v8428, 4294901760
  %v8511 = vsub.f32 %v8428, %v8510
  %v8512 = vand.u32 %v8511, 4294901760
  %v8513 = vsub.f32 %v8511, %v8512
  %v8514 = vand.u32 %v8513, 4294901760
  %8515 = vmatmul.mubr.f32.gmra.mrb[0].mxu0 %v8514
  %v8516 = vpop.f32.mrb[0].mxu0
  %v8517 = vadd.f32 0.0, %v8516
  %v8518 = vpop.f32.mrb[0].mxu0
  %8519 = vdwg.mxu0
  %8520 = vmatprep.subr.mxu0 0.0
  %v8521 = vand.u32 %v41, 4294901760
  %v8522 = vsub.f32 %v41, %v8521
  %v8523 = vand.u32 %v8522, 4294901760
  %v8524 = vsub.f32 %v8522, %v8523
  %v8525 = vand.u32 %v8524, 4294901760
  %8526 = vmatpush1.msra.mxu0 %v8525
  %8527 = vmatprep.subr.mxu0 0.0
  %v8528 = vand.u32 %v42, 4294901760
  %v8529 = vsub.f32 %v42, %v8528
  %v8530 = vand.u32 %v8529, 4294901760
  %v8531 = vsub.f32 %v8529, %v8530
  %v8532 = vand.u32 %v8531, 4294901760
  %8533 = vmatpush1.msra.mxu0 %v8532
  %8534 = vmatprep.subr.mxu0 0.0
  %v8535 = vand.u32 %v43, 4294901760
  %v8536 = vsub.f32 %v43, %v8535
  %v8537 = vand.u32 %v8536, 4294901760
  %v8538 = vsub.f32 %v8536, %v8537
  %v8539 = vand.u32 %v8538, 4294901760
  %8540 = vmatpush1.msra.mxu0 %v8539
  %8541 = vmatprep.subr.mxu0 0.0
  %v8542 = vand.u32 %v44, 4294901760
  %v8543 = vsub.f32 %v44, %v8542
  %v8544 = vand.u32 %v8543, 4294901760
  %v8545 = vsub.f32 %v8543, %v8544
  %v8546 = vand.u32 %v8545, 4294901760
  %8547 = vmatpush1.msra.mxu0 %v8546
  %8548 = vmatprep.subr.mxu0 0.0
  %v8549 = vand.u32 %v45, 4294901760
  %v8550 = vsub.f32 %v45, %v8549
  %v8551 = vand.u32 %v8550, 4294901760
  %v8552 = vsub.f32 %v8550, %v8551
  %v8553 = vand.u32 %v8552, 4294901760
  %8554 = vmatpush1.msra.mxu0 %v8553
  %8555 = vmatprep.subr.mxu0 0.0
  %v8556 = vand.u32 %v46, 4294901760
  %v8557 = vsub.f32 %v46, %v8556
  %v8558 = vand.u32 %v8557, 4294901760
  %v8559 = vsub.f32 %v8557, %v8558
  %v8560 = vand.u32 %v8559, 4294901760
  %8561 = vmatpush1.msra.mxu0 %v8560
  %8562 = vmatprep.subr.mxu0 0.0
  %v8563 = vand.u32 %v47, 4294901760
  %v8564 = vsub.f32 %v47, %v8563
  %v8565 = vand.u32 %v8564, 4294901760
  %v8566 = vsub.f32 %v8564, %v8565
  %v8567 = vand.u32 %v8566, 4294901760
  %8568 = vmatpush1.msra.mxu0 %v8567
  %8569 = vmatprep.subr.mxu0 0.0
  %v8570 = vand.u32 %v48, 4294901760
  %v8571 = vsub.f32 %v48, %v8570
  %v8572 = vand.u32 %v8571, 4294901760
  %v8573 = vsub.f32 %v8571, %v8572
  %v8574 = vand.u32 %v8573, 4294901760
  %8575 = vmatpush1.msra.mxu0 %v8574
  %8576 = vmatprep.subr.mxu0 0.0
  %v8577 = vand.u32 %v49, 4294901760
  %v8578 = vsub.f32 %v49, %v8577
  %v8579 = vand.u32 %v8578, 4294901760
  %v8580 = vsub.f32 %v8578, %v8579
  %v8581 = vand.u32 %v8580, 4294901760
  %8582 = vmatpush1.msra.mxu0 %v8581
  %8583 = vmatprep.subr.mxu0 0.0
  %v8584 = vand.u32 %v50, 4294901760
  %v8585 = vsub.f32 %v50, %v8584
  %v8586 = vand.u32 %v8585, 4294901760
  %v8587 = vsub.f32 %v8585, %v8586
  %v8588 = vand.u32 %v8587, 4294901760
  %8589 = vmatpush1.msra.mxu0 %v8588
  %8590 = vmatprep.subr.mxu0 0.0
  %v8591 = vand.u32 %v51, 4294901760
  %v8592 = vsub.f32 %v51, %v8591
  %v8593 = vand.u32 %v8592, 4294901760
  %v8594 = vsub.f32 %v8592, %v8593
  %v8595 = vand.u32 %v8594, 4294901760
  %8596 = vmatpush1.msra.mxu0 %v8595
  %8597 = vmatprep.subr.mxu0 0.0
  %v8598 = vand.u32 %v52, 4294901760
  %v8599 = vsub.f32 %v52, %v8598
  %v8600 = vand.u32 %v8599, 4294901760
  %v8601 = vsub.f32 %v8599, %v8600
  %v8602 = vand.u32 %v8601, 4294901760
  %8603 = vmatpush1.msra.mxu0 %v8602
  %8604 = vmatprep.subr.mxu0 0.0
  %v8605 = vand.u32 %v53, 4294901760
  %v8606 = vsub.f32 %v53, %v8605
  %v8607 = vand.u32 %v8606, 4294901760
  %v8608 = vsub.f32 %v8606, %v8607
  %v8609 = vand.u32 %v8608, 4294901760
  %8610 = vmatpush1.msra.mxu0 %v8609
  %8611 = vmatprep.subr.mxu0 0.0
  %v8612 = vand.u32 %v54, 4294901760
  %v8613 = vsub.f32 %v54, %v8612
  %v8614 = vand.u32 %v8613, 4294901760
  %v8615 = vsub.f32 %v8613, %v8614
  %v8616 = vand.u32 %v8615, 4294901760
  %8617 = vmatpush1.msra.mxu0 %v8616
  %8618 = vmatprep.subr.mxu0 0.0
  %v8619 = vand.u32 %v55, 4294901760
  %v8620 = vsub.f32 %v55, %v8619
  %v8621 = vand.u32 %v8620, 4294901760
  %v8622 = vsub.f32 %v8620, %v8621
  %v8623 = vand.u32 %v8622, 4294901760
  %8624 = vmatpush1.msra.mxu0 %v8623
  %8625 = vmatprep.subr.mxu0 0.0
  %v8626 = vand.u32 %v56, 4294901760
  %v8627 = vsub.f32 %v56, %v8626
  %v8628 = vand.u32 %v8627, 4294901760
  %v8629 = vsub.f32 %v8627, %v8628
  %v8630 = vand.u32 %v8629, 4294901760
  %8631 = vmatpush1.msra.mxu0 %v8630
  %8632 = vmatprep.subr.mxu0 0.0
  %8633 = vmatpush1.msra.mxu0 0.0
  %8634 = vmatprep.subr.mxu0 0.0
  %8635 = vmatpush1.msra.mxu0 0.0
  %8636 = vmatprep.subr.mxu0 0.0
  %8637 = vmatpush1.msra.mxu0 0.0
  %8638 = vmatprep.subr.mxu0 0.0
  %8639 = vmatpush1.msra.mxu0 0.0
  %8640 = vmatprep.subr.mxu0 0.0
  %8641 = vmatpush1.msra.mxu0 0.0
  %8642 = vmatprep.subr.mxu0 0.0
  %8643 = vmatpush1.msra.mxu0 0.0
  %8644 = vmatprep.subr.mxu0 0.0
  %8645 = vmatpush1.msra.mxu0 0.0
  %8646 = vmatprep.subr.mxu0 0.0
  %8647 = vmatpush1.msra.mxu0 0.0
  %8648 = vmatprep.subr.mxu0 0.0
  %8649 = vmatpush1.msra.mxu0 0.0
  %8650 = vmatprep.subr.mxu0 0.0
  %8651 = vmatpush1.msra.mxu0 0.0
  %8652 = vmatprep.subr.mxu0 0.0
  %8653 = vmatpush1.msra.mxu0 0.0
  %8654 = vmatprep.subr.mxu0 0.0
  %8655 = vmatpush1.msra.mxu0 0.0
  %8656 = vmatprep.subr.mxu0 0.0
  %8657 = vmatpush1.msra.mxu0 0.0
  %8658 = vmatprep.subr.mxu0 0.0
  %8659 = vmatpush1.msra.mxu0 0.0
  %8660 = vmatprep.subr.mxu0 0.0
  %8661 = vmatpush1.msra.mxu0 0.0
  %8662 = vmatprep.subr.mxu0 0.0
  %8663 = vmatpush1.msra.mxu0 0.0
  %8664 = vmatprep.mubr.f32.mxu0 0.0
  %v8665 = vand.u32 %v8428, 4294901760
  %8666 = vmatmul.mubr.f32.gmra.mrb[0].mxu0 %v8665
  %v8667 = vpop.f32.mrb[0].mxu0
  %v8668 = vadd.f32 %v8517, %v8667
  %v8669 = vpop.f32.mrb[0].mxu0
  %8670 = vdwg.mxu0
  %8671 = vmatprep.subr.mxu0 0.0
  %v8672 = vand.u32 %v41, 4294901760
  %v8673 = vsub.f32 %v41, %v8672
  %8674 = vmatpush1.msra.mxu0 %v8673
  %8675 = vmatprep.subr.mxu0 0.0
  %v8676 = vand.u32 %v42, 4294901760
  %v8677 = vsub.f32 %v42, %v8676
  %8678 = vmatpush1.msra.mxu0 %v8677
  %8679 = vmatprep.subr.mxu0 0.0
  %v8680 = vand.u32 %v43, 4294901760
  %v8681 = vsub.f32 %v43, %v8680
  %8682 = vmatpush1.msra.mxu0 %v8681
  %8683 = vmatprep.subr.mxu0 0.0
  %v8684 = vand.u32 %v44, 4294901760
  %v8685 = vsub.f32 %v44, %v8684
  %8686 = vmatpush1.msra.mxu0 %v8685
  %8687 = vmatprep.subr.mxu0 0.0
  %v8688 = vand.u32 %v45, 4294901760
  %v8689 = vsub.f32 %v45, %v8688
  %8690 = vmatpush1.msra.mxu0 %v8689
  %8691 = vmatprep.subr.mxu0 0.0
  %v8692 = vand.u32 %v46, 4294901760
  %v8693 = vsub.f32 %v46, %v8692
  %8694 = vmatpush1.msra.mxu0 %v8693
  %8695 = vmatprep.subr.mxu0 0.0
  %v8696 = vand.u32 %v47, 4294901760
  %v8697 = vsub.f32 %v47, %v8696
  %8698 = vmatpush1.msra.mxu0 %v8697
  %8699 = vmatprep.subr.mxu0 0.0
  %v8700 = vand.u32 %v48, 4294901760
  %v8701 = vsub.f32 %v48, %v8700
  %8702 = vmatpush1.msra.mxu0 %v8701
  %8703 = vmatprep.subr.mxu0 0.0
  %v8704 = vand.u32 %v49, 4294901760
  %v8705 = vsub.f32 %v49, %v8704
  %8706 = vmatpush1.msra.mxu0 %v8705
  %8707 = vmatprep.subr.mxu0 0.0
  %v8708 = vand.u32 %v50, 4294901760
  %v8709 = vsub.f32 %v50, %v8708
  %8710 = vmatpush1.msra.mxu0 %v8709
  %8711 = vmatprep.subr.mxu0 0.0
  %v8712 = vand.u32 %v51, 4294901760
  %v8713 = vsub.f32 %v51, %v8712
  %8714 = vmatpush1.msra.mxu0 %v8713
  %8715 = vmatprep.subr.mxu0 0.0
  %v8716 = vand.u32 %v52, 4294901760
  %v8717 = vsub.f32 %v52, %v8716
  %8718 = vmatpush1.msra.mxu0 %v8717
  %8719 = vmatprep.subr.mxu0 0.0
  %v8720 = vand.u32 %v53, 4294901760
  %v8721 = vsub.f32 %v53, %v8720
  %8722 = vmatpush1.msra.mxu0 %v8721
  %8723 = vmatprep.subr.mxu0 0.0
  %v8724 = vand.u32 %v54, 4294901760
  %v8725 = vsub.f32 %v54, %v8724
  %8726 = vmatpush1.msra.mxu0 %v8725
  %8727 = vmatprep.subr.mxu0 0.0
  %v8728 = vand.u32 %v55, 4294901760
  %v8729 = vsub.f32 %v55, %v8728
  %8730 = vmatpush1.msra.mxu0 %v8729
  %8731 = vmatprep.subr.mxu0 0.0
  %v8732 = vand.u32 %v56, 4294901760
  %v8733 = vsub.f32 %v56, %v8732
  %8734 = vmatpush1.msra.mxu0 %v8733
  %8735 = vmatprep.subr.mxu0 0.0
  %8736 = vmatpush1.msra.mxu0 0.0
  %8737 = vmatprep.subr.mxu0 0.0
  %8738 = vmatpush1.msra.mxu0 0.0
  %8739 = vmatprep.subr.mxu0 0.0
  %8740 = vmatpush1.msra.mxu0 0.0
  %8741 = vmatprep.subr.mxu0 0.0
  %8742 = vmatpush1.msra.mxu0 0.0
  %8743 = vmatprep.subr.mxu0 0.0
  %8744 = vmatpush1.msra.mxu0 0.0
  %8745 = vmatprep.subr.mxu0 0.0
  %8746 = vmatpush1.msra.mxu0 0.0
  %8747 = vmatprep.subr.mxu0 0.0
  %8748 = vmatpush1.msra.mxu0 0.0
  %8749 = vmatprep.subr.mxu0 0.0
  %8750 = vmatpush1.msra.mxu0 0.0
  %8751 = vmatprep.subr.mxu0 0.0
  %8752 = vmatpush1.msra.mxu0 0.0
  %8753 = vmatprep.subr.mxu0 0.0
  %8754 = vmatpush1.msra.mxu0 0.0
  %8755 = vmatprep.subr.mxu0 0.0
  %8756 = vmatpush1.msra.mxu0 0.0
  %8757 = vmatprep.subr.mxu0 0.0
  %8758 = vmatpush1.msra.mxu0 0.0
  %8759 = vmatprep.subr.mxu0 0.0
  %8760 = vmatpush1.msra.mxu0 0.0
  %8761 = vmatprep.subr.mxu0 0.0
  %8762 = vmatpush1.msra.mxu0 0.0
  %8763 = vmatprep.subr.mxu0 0.0
  %8764 = vmatpush1.msra.mxu0 0.0
  %8765 = vmatprep.subr.mxu0 0.0
  %8766 = vmatpush1.msra.mxu0 0.0
  %8767 = vmatprep.mubr.f32.mxu0 0.0
  %v8768 = vand.u32 %v8428, 4294901760
  %v8769 = vsub.f32 %v8428, %v8768
  %8770 = vmatmul.mubr.f32.gmra.mrb[0].mxu0 %v8769
  %v8771 = vpop.f32.mrb[0].mxu0
  %v8772 = vadd.f32 %v8668, %v8771
  %v8773 = vpop.f32.mrb[0].mxu0
  %8774 = vdwg.mxu0
  %8775 = vmatprep.subr.mxu0 0.0
  %v8776 = vand.u32 %v41, 4294901760
  %8777 = vmatpush1.msra.mxu0 %v8776
  %8778 = vmatprep.subr.mxu0 0.0
  %v8779 = vand.u32 %v42, 4294901760
  %8780 = vmatpush1.msra.mxu0 %v8779
  %8781 = vmatprep.subr.mxu0 0.0
  %v8782 = vand.u32 %v43, 4294901760
  %8783 = vmatpush1.msra.mxu0 %v8782
  %8784 = vmatprep.subr.mxu0 0.0
  %v8785 = vand.u32 %v44, 4294901760
  %8786 = vmatpush1.msra.mxu0 %v8785
  %8787 = vmatprep.subr.mxu0 0.0
  %v8788 = vand.u32 %v45, 4294901760
  %8789 = vmatpush1.msra.mxu0 %v8788
  %8790 = vmatprep.subr.mxu0 0.0
  %v8791 = vand.u32 %v46, 4294901760
  %8792 = vmatpush1.msra.mxu0 %v8791
  %8793 = vmatprep.subr.mxu0 0.0
  %v8794 = vand.u32 %v47, 4294901760
  %8795 = vmatpush1.msra.mxu0 %v8794
  %8796 = vmatprep.subr.mxu0 0.0
  %v8797 = vand.u32 %v48, 4294901760
  %8798 = vmatpush1.msra.mxu0 %v8797
  %8799 = vmatprep.subr.mxu0 0.0
  %v8800 = vand.u32 %v49, 4294901760
  %8801 = vmatpush1.msra.mxu0 %v8800
  %8802 = vmatprep.subr.mxu0 0.0
  %v8803 = vand.u32 %v50, 4294901760
  %8804 = vmatpush1.msra.mxu0 %v8803
  %8805 = vmatprep.subr.mxu0 0.0
  %v8806 = vand.u32 %v51, 4294901760
  %8807 = vmatpush1.msra.mxu0 %v8806
  %8808 = vmatprep.subr.mxu0 0.0
  %v8809 = vand.u32 %v52, 4294901760
  %8810 = vmatpush1.msra.mxu0 %v8809
  %8811 = vmatprep.subr.mxu0 0.0
  %v8812 = vand.u32 %v53, 4294901760
  %8813 = vmatpush1.msra.mxu0 %v8812
  %8814 = vmatprep.subr.mxu0 0.0
  %v8815 = vand.u32 %v54, 4294901760
  %8816 = vmatpush1.msra.mxu0 %v8815
  %8817 = vmatprep.subr.mxu0 0.0
  %v8818 = vand.u32 %v55, 4294901760
  %8819 = vmatpush1.msra.mxu0 %v8818
  %8820 = vmatprep.subr.mxu0 0.0
  %v8821 = vand.u32 %v56, 4294901760
  %8822 = vmatpush1.msra.mxu0 %v8821
  %8823 = vmatprep.subr.mxu0 0.0
  %8824 = vmatpush1.msra.mxu0 0.0
  %8825 = vmatprep.subr.mxu0 0.0
  %8826 = vmatpush1.msra.mxu0 0.0
  %8827 = vmatprep.subr.mxu0 0.0
  %8828 = vmatpush1.msra.mxu0 0.0
  %8829 = vmatprep.subr.mxu0 0.0
  %8830 = vmatpush1.msra.mxu0 0.0
  %8831 = vmatprep.subr.mxu0 0.0
  %8832 = vmatpush1.msra.mxu0 0.0
  %8833 = vmatprep.subr.mxu0 0.0
  %8834 = vmatpush1.msra.mxu0 0.0
  %8835 = vmatprep.subr.mxu0 0.0
  %8836 = vmatpush1.msra.mxu0 0.0
  %8837 = vmatprep.subr.mxu0 0.0
  %8838 = vmatpush1.msra.mxu0 0.0
  %8839 = vmatprep.subr.mxu0 0.0
  %8840 = vmatpush1.msra.mxu0 0.0
  %8841 = vmatprep.subr.mxu0 0.0
  %8842 = vmatpush1.msra.mxu0 0.0
  %8843 = vmatprep.subr.mxu0 0.0
  %8844 = vmatpush1.msra.mxu0 0.0
  %8845 = vmatprep.subr.mxu0 0.0
  %8846 = vmatpush1.msra.mxu0 0.0
  %8847 = vmatprep.subr.mxu0 0.0
  %8848 = vmatpush1.msra.mxu0 0.0
  %8849 = vmatprep.subr.mxu0 0.0
  %8850 = vmatpush1.msra.mxu0 0.0
  %8851 = vmatprep.subr.mxu0 0.0
  %8852 = vmatpush1.msra.mxu0 0.0
  %8853 = vmatprep.subr.mxu0 0.0
  %8854 = vmatpush1.msra.mxu0 0.0
  %8855 = vmatprep.mubr.f32.mxu0 0.0
  %v8856 = vand.u32 %v8428, 4294901760
  %v8857 = vsub.f32 %v8428, %v8856
  %v8858 = vand.u32 %v8857, 4294901760
  %8859 = vmatmul.mubr.f32.gmra.mrb[0].mxu0 %v8858
  %v8860 = vpop.f32.mrb[0].mxu0
  %v8861 = vadd.f32 %v8772, %v8860
  %v8862 = vpop.f32.mrb[0].mxu0
  %8863 = vdwg.mxu0
  %8864 = vmatprep.subr.mxu0 0.0
  %v8865 = vand.u32 %v41, 4294901760
  %v8866 = vsub.f32 %v41, %v8865
  %v8867 = vand.u32 %v8866, 4294901760
  %8868 = vmatpush1.msra.mxu0 %v8867
  %8869 = vmatprep.subr.mxu0 0.0
  %v8870 = vand.u32 %v42, 4294901760
  %v8871 = vsub.f32 %v42, %v8870
  %v8872 = vand.u32 %v8871, 4294901760
  %8873 = vmatpush1.msra.mxu0 %v8872
  %8874 = vmatprep.subr.mxu0 0.0
  %v8875 = vand.u32 %v43, 4294901760
  %v8876 = vsub.f32 %v43, %v8875
  %v8877 = vand.u32 %v8876, 4294901760
  %8878 = vmatpush1.msra.mxu0 %v8877
  %8879 = vmatprep.subr.mxu0 0.0
  %v8880 = vand.u32 %v44, 4294901760
  %v8881 = vsub.f32 %v44, %v8880
  %v8882 = vand.u32 %v8881, 4294901760
  %8883 = vmatpush1.msra.mxu0 %v8882
  %8884 = vmatprep.subr.mxu0 0.0
  %v8885 = vand.u32 %v45, 4294901760
  %v8886 = vsub.f32 %v45, %v8885
  %v8887 = vand.u32 %v8886, 4294901760
  %8888 = vmatpush1.msra.mxu0 %v8887
  %8889 = vmatprep.subr.mxu0 0.0
  %v8890 = vand.u32 %v46, 4294901760
  %v8891 = vsub.f32 %v46, %v8890
  %v8892 = vand.u32 %v8891, 4294901760
  %8893 = vmatpush1.msra.mxu0 %v8892
  %8894 = vmatprep.subr.mxu0 0.0
  %v8895 = vand.u32 %v47, 4294901760
  %v8896 = vsub.f32 %v47, %v8895
  %v8897 = vand.u32 %v8896, 4294901760
  %8898 = vmatpush1.msra.mxu0 %v8897
  %8899 = vmatprep.subr.mxu0 0.0
  %v8900 = vand.u32 %v48, 4294901760
  %v8901 = vsub.f32 %v48, %v8900
  %v8902 = vand.u32 %v8901, 4294901760
  %8903 = vmatpush1.msra.mxu0 %v8902
  %8904 = vmatprep.subr.mxu0 0.0
  %v8905 = vand.u32 %v49, 4294901760
  %v8906 = vsub.f32 %v49, %v8905
  %v8907 = vand.u32 %v8906, 4294901760
  %8908 = vmatpush1.msra.mxu0 %v8907
  %8909 = vmatprep.subr.mxu0 0.0
  %v8910 = vand.u32 %v50, 4294901760
  %v8911 = vsub.f32 %v50, %v8910
  %v8912 = vand.u32 %v8911, 4294901760
  %8913 = vmatpush1.msra.mxu0 %v8912
  %8914 = vmatprep.subr.mxu0 0.0
  %v8915 = vand.u32 %v51, 4294901760
  %v8916 = vsub.f32 %v51, %v8915
  %v8917 = vand.u32 %v8916, 4294901760
  %8918 = vmatpush1.msra.mxu0 %v8917
  %8919 = vmatprep.subr.mxu0 0.0
  %v8920 = vand.u32 %v52, 4294901760
  %v8921 = vsub.f32 %v52, %v8920
  %v8922 = vand.u32 %v8921, 4294901760
  %8923 = vmatpush1.msra.mxu0 %v8922
  %8924 = vmatprep.subr.mxu0 0.0
  %v8925 = vand.u32 %v53, 4294901760
  %v8926 = vsub.f32 %v53, %v8925
  %v8927 = vand.u32 %v8926, 4294901760
  %8928 = vmatpush1.msra.mxu0 %v8927
  %8929 = vmatprep.subr.mxu0 0.0
  %v8930 = vand.u32 %v54, 4294901760
  %v8931 = vsub.f32 %v54, %v8930
  %v8932 = vand.u32 %v8931, 4294901760
  %8933 = vmatpush1.msra.mxu0 %v8932
  %8934 = vmatprep.subr.mxu0 0.0
  %v8935 = vand.u32 %v55, 4294901760
  %v8936 = vsub.f32 %v55, %v8935
  %v8937 = vand.u32 %v8936, 4294901760
  %8938 = vmatpush1.msra.mxu0 %v8937
  %8939 = vmatprep.subr.mxu0 0.0
  %v8940 = vand.u32 %v56, 4294901760
  %v8941 = vsub.f32 %v56, %v8940
  %v8942 = vand.u32 %v8941, 4294901760
  %8943 = vmatpush1.msra.mxu0 %v8942
  %8944 = vmatprep.subr.mxu0 0.0
  %8945 = vmatpush1.msra.mxu0 0.0
  %8946 = vmatprep.subr.mxu0 0.0
  %8947 = vmatpush1.msra.mxu0 0.0
  %8948 = vmatprep.subr.mxu0 0.0
  %8949 = vmatpush1.msra.mxu0 0.0
  %8950 = vmatprep.subr.mxu0 0.0
  %8951 = vmatpush1.msra.mxu0 0.0
  %8952 = vmatprep.subr.mxu0 0.0
  %8953 = vmatpush1.msra.mxu0 0.0
  %8954 = vmatprep.subr.mxu0 0.0
  %8955 = vmatpush1.msra.mxu0 0.0
  %8956 = vmatprep.subr.mxu0 0.0
  %8957 = vmatpush1.msra.mxu0 0.0
  %8958 = vmatprep.subr.mxu0 0.0
  %8959 = vmatpush1.msra.mxu0 0.0
  %8960 = vmatprep.subr.mxu0 0.0
  %8961 = vmatpush1.msra.mxu0 0.0
  %8962 = vmatprep.subr.mxu0 0.0
  %8963 = vmatpush1.msra.mxu0 0.0
  %8964 = vmatprep.subr.mxu0 0.0
  %8965 = vmatpush1.msra.mxu0 0.0
  %8966 = vmatprep.subr.mxu0 0.0
  %8967 = vmatpush1.msra.mxu0 0.0
  %8968 = vmatprep.subr.mxu0 0.0
  %8969 = vmatpush1.msra.mxu0 0.0
  %8970 = vmatprep.subr.mxu0 0.0
  %8971 = vmatpush1.msra.mxu0 0.0
  %8972 = vmatprep.subr.mxu0 0.0
  %8973 = vmatpush1.msra.mxu0 0.0
  %8974 = vmatprep.subr.mxu0 0.0
  %8975 = vmatpush1.msra.mxu0 0.0
  %8976 = vmatprep.mubr.f32.mxu0 0.0
  %v8977 = vand.u32 %v8428, 4294901760
  %8978 = vmatmul.mubr.f32.gmra.mrb[0].mxu0 %v8977
  %v8979 = vpop.f32.mrb[0].mxu0
  %v8980 = vadd.f32 %v8861, %v8979
  %v8981 = vpop.f32.mrb[0].mxu0
  %8982 = vdwg.mxu0
  %8983 = vmatprep.subr.mxu0 0.0
  %v8984 = vand.u32 %v41, 4294901760
  %8985 = vmatpush1.msra.mxu0 %v8984
  %8986 = vmatprep.subr.mxu0 0.0
  %v8987 = vand.u32 %v42, 4294901760
  %8988 = vmatpush1.msra.mxu0 %v8987
  %8989 = vmatprep.subr.mxu0 0.0
  %v8990 = vand.u32 %v43, 4294901760
  %8991 = vmatpush1.msra.mxu0 %v8990
  %8992 = vmatprep.subr.mxu0 0.0
  %v8993 = vand.u32 %v44, 4294901760
  %8994 = vmatpush1.msra.mxu0 %v8993
  %8995 = vmatprep.subr.mxu0 0.0
  %v8996 = vand.u32 %v45, 4294901760
  %8997 = vmatpush1.msra.mxu0 %v8996
  %8998 = vmatprep.subr.mxu0 0.0
  %v8999 = vand.u32 %v46, 4294901760
  %9000 = vmatpush1.msra.mxu0 %v8999
  %9001 = vmatprep.subr.mxu0 0.0
  %v9002 = vand.u32 %v47, 4294901760
  %9003 = vmatpush1.msra.mxu0 %v9002
  %9004 = vmatprep.subr.mxu0 0.0
  %v9005 = vand.u32 %v48, 4294901760
  %9006 = vmatpush1.msra.mxu0 %v9005
  %9007 = vmatprep.subr.mxu0 0.0
  %v9008 = vand.u32 %v49, 4294901760
  %9009 = vmatpush1.msra.mxu0 %v9008
  %9010 = vmatprep.subr.mxu0 0.0
  %v9011 = vand.u32 %v50, 4294901760
  %9012 = vmatpush1.msra.mxu0 %v9011
  %9013 = vmatprep.subr.mxu0 0.0
  %v9014 = vand.u32 %v51, 4294901760
  %9015 = vmatpush1.msra.mxu0 %v9014
  %9016 = vmatprep.subr.mxu0 0.0
  %v9017 = vand.u32 %v52, 4294901760
  %9018 = vmatpush1.msra.mxu0 %v9017
  %9019 = vmatprep.subr.mxu0 0.0
  %v9020 = vand.u32 %v53, 4294901760
  %9021 = vmatpush1.msra.mxu0 %v9020
  %9022 = vmatprep.subr.mxu0 0.0
  %v9023 = vand.u32 %v54, 4294901760
  %9024 = vmatpush1.msra.mxu0 %v9023
  %9025 = vmatprep.subr.mxu0 0.0
  %v9026 = vand.u32 %v55, 4294901760
  %9027 = vmatpush1.msra.mxu0 %v9026
  %9028 = vmatprep.subr.mxu0 0.0
  %v9029 = vand.u32 %v56, 4294901760
  %9030 = vmatpush1.msra.mxu0 %v9029
  %9031 = vmatprep.subr.mxu0 0.0
  %9032 = vmatpush1.msra.mxu0 0.0
  %9033 = vmatprep.subr.mxu0 0.0
  %9034 = vmatpush1.msra.mxu0 0.0
  %9035 = vmatprep.subr.mxu0 0.0
  %9036 = vmatpush1.msra.mxu0 0.0
  %9037 = vmatprep.subr.mxu0 0.0
  %9038 = vmatpush1.msra.mxu0 0.0
  %9039 = vmatprep.subr.mxu0 0.0
  %9040 = vmatpush1.msra.mxu0 0.0
  %9041 = vmatprep.subr.mxu0 0.0
  %9042 = vmatpush1.msra.mxu0 0.0
  %9043 = vmatprep.subr.mxu0 0.0
  %9044 = vmatpush1.msra.mxu0 0.0
  %9045 = vmatprep.subr.mxu0 0.0
  %9046 = vmatpush1.msra.mxu0 0.0
  %9047 = vmatprep.subr.mxu0 0.0
  %9048 = vmatpush1.msra.mxu0 0.0
  %9049 = vmatprep.subr.mxu0 0.0
  %9050 = vmatpush1.msra.mxu0 0.0
  %9051 = vmatprep.subr.mxu0 0.0
  %9052 = vmatpush1.msra.mxu0 0.0
  %9053 = vmatprep.subr.mxu0 0.0
  %9054 = vmatpush1.msra.mxu0 0.0
  %9055 = vmatprep.subr.mxu0 0.0
  %9056 = vmatpush1.msra.mxu0 0.0
  %9057 = vmatprep.subr.mxu0 0.0
  %9058 = vmatpush1.msra.mxu0 0.0
  %9059 = vmatprep.subr.mxu0 0.0
  %9060 = vmatpush1.msra.mxu0 0.0
  %9061 = vmatprep.subr.mxu0 0.0
  %9062 = vmatpush1.msra.mxu0 0.0
  %9063 = vmatprep.mubr.f32.mxu0 0.0
  %v9064 = vand.u32 %v8428, 4294901760
  %9065 = vmatmul.mubr.f32.gmra.mrb[0].mxu0 %v9064
  %v9066 = vpop.f32.mrb[0].mxu0
  %v9067 = vadd.f32 %v8980, %v9066
  %v9068 = vpop.f32.mrb[0].mxu0
  %9069 = vdwg.mxu0
  %s9070 = scalar_lea.vmem %s4, 48
  %9071 = vst [vmem:[%s9070] sm:$0xff] %v9067
  %s9072 = scalar_lea.vmem %s0, 56
  %v9073 = vld [vmem:[%s9072] sm:$0xff]
  %9074 = vmatprep.subr.mxu0 0.0
  %v9075 = vand.u32 %v25, 4294901760
  %9076 = vmatpush1.msra.mxu0 %v9075
  %9077 = vmatprep.subr.mxu0 0.0
  %v9078 = vand.u32 %v26, 4294901760
  %9079 = vmatpush1.msra.mxu0 %v9078
  %9080 = vmatprep.subr.mxu0 0.0
  %v9081 = vand.u32 %v27, 4294901760
  %9082 = vmatpush1.msra.mxu0 %v9081
  %9083 = vmatprep.subr.mxu0 0.0
  %v9084 = vand.u32 %v28, 4294901760
  %9085 = vmatpush1.msra.mxu0 %v9084
  %9086 = vmatprep.subr.mxu0 0.0
  %v9087 = vand.u32 %v29, 4294901760
  %9088 = vmatpush1.msra.mxu0 %v9087
  %9089 = vmatprep.subr.mxu0 0.0
  %v9090 = vand.u32 %v30, 4294901760
  %9091 = vmatpush1.msra.mxu0 %v9090
  %9092 = vmatprep.subr.mxu0 0.0
  %v9093 = vand.u32 %v31, 4294901760
  %9094 = vmatpush1.msra.mxu0 %v9093
  %9095 = vmatprep.subr.mxu0 0.0
  %v9096 = vand.u32 %v32, 4294901760
  %9097 = vmatpush1.msra.mxu0 %v9096
  %9098 = vmatprep.subr.mxu0 0.0
  %v9099 = vand.u32 %v33, 4294901760
  %9100 = vmatpush1.msra.mxu0 %v9099
  %9101 = vmatprep.subr.mxu0 0.0
  %v9102 = vand.u32 %v34, 4294901760
  %9103 = vmatpush1.msra.mxu0 %v9102
  %9104 = vmatprep.subr.mxu0 0.0
  %v9105 = vand.u32 %v35, 4294901760
  %9106 = vmatpush1.msra.mxu0 %v9105
  %9107 = vmatprep.subr.mxu0 0.0
  %v9108 = vand.u32 %v36, 4294901760
  %9109 = vmatpush1.msra.mxu0 %v9108
  %9110 = vmatprep.subr.mxu0 0.0
  %v9111 = vand.u32 %v37, 4294901760
  %9112 = vmatpush1.msra.mxu0 %v9111
  %9113 = vmatprep.subr.mxu0 0.0
  %v9114 = vand.u32 %v38, 4294901760
  %9115 = vmatpush1.msra.mxu0 %v9114
  %9116 = vmatprep.subr.mxu0 0.0
  %v9117 = vand.u32 %v39, 4294901760
  %9118 = vmatpush1.msra.mxu0 %v9117
  %9119 = vmatprep.subr.mxu0 0.0
  %v9120 = vand.u32 %v40, 4294901760
  %9121 = vmatpush1.msra.mxu0 %v9120
  %9122 = vmatprep.subr.mxu0 0.0
  %9123 = vmatpush1.msra.mxu0 0.0
  %9124 = vmatprep.subr.mxu0 0.0
  %9125 = vmatpush1.msra.mxu0 0.0
  %9126 = vmatprep.subr.mxu0 0.0
  %9127 = vmatpush1.msra.mxu0 0.0
  %9128 = vmatprep.subr.mxu0 0.0
  %9129 = vmatpush1.msra.mxu0 0.0
  %9130 = vmatprep.subr.mxu0 0.0
  %9131 = vmatpush1.msra.mxu0 0.0
  %9132 = vmatprep.subr.mxu0 0.0
  %9133 = vmatpush1.msra.mxu0 0.0
  %9134 = vmatprep.subr.mxu0 0.0
  %9135 = vmatpush1.msra.mxu0 0.0
  %9136 = vmatprep.subr.mxu0 0.0
  %9137 = vmatpush1.msra.mxu0 0.0
  %9138 = vmatprep.subr.mxu0 0.0
  %9139 = vmatpush1.msra.mxu0 0.0
  %9140 = vmatprep.subr.mxu0 0.0
  %9141 = vmatpush1.msra.mxu0 0.0
  %9142 = vmatprep.subr.mxu0 0.0
  %9143 = vmatpush1.msra.mxu0 0.0
  %9144 = vmatprep.subr.mxu0 0.0
  %9145 = vmatpush1.msra.mxu0 0.0
  %9146 = vmatprep.subr.mxu0 0.0
  %9147 = vmatpush1.msra.mxu0 0.0
  %9148 = vmatprep.subr.mxu0 0.0
  %9149 = vmatpush1.msra.mxu0 0.0
  %9150 = vmatprep.subr.mxu0 0.0
  %9151 = vmatpush1.msra.mxu0 0.0
  %9152 = vmatprep.subr.mxu0 0.0
  %9153 = vmatpush1.msra.mxu0 0.0
  %9154 = vmatprep.mubr.f32.mxu0 0.0
  %v9155 = vand.u32 %v8428, 4294901760
  %v9156 = vsub.f32 %v8428, %v9155
  %v9157 = vand.u32 %v9156, 4294901760
  %v9158 = vsub.f32 %v9156, %v9157
  %v9159 = vand.u32 %v9158, 4294901760
  %9160 = vmatmul.mubr.f32.gmra.mrb[0].mxu0 %v9159
  %v9161 = vpop.f32.mrb[0].mxu0
  %v9162 = vadd.f32 0.0, %v9161
  %v9163 = vpop.f32.mrb[0].mxu0
  %9164 = vdwg.mxu0
  %9165 = vmatprep.subr.mxu0 0.0
  %v9166 = vand.u32 %v25, 4294901760
  %v9167 = vsub.f32 %v25, %v9166
  %v9168 = vand.u32 %v9167, 4294901760
  %v9169 = vsub.f32 %v9167, %v9168
  %v9170 = vand.u32 %v9169, 4294901760
  %9171 = vmatpush1.msra.mxu0 %v9170
  %9172 = vmatprep.subr.mxu0 0.0
  %v9173 = vand.u32 %v26, 4294901760
  %v9174 = vsub.f32 %v26, %v9173
  %v9175 = vand.u32 %v9174, 4294901760
  %v9176 = vsub.f32 %v9174, %v9175
  %v9177 = vand.u32 %v9176, 4294901760
  %9178 = vmatpush1.msra.mxu0 %v9177
  %9179 = vmatprep.subr.mxu0 0.0
  %v9180 = vand.u32 %v27, 4294901760
  %v9181 = vsub.f32 %v27, %v9180
  %v9182 = vand.u32 %v9181, 4294901760
  %v9183 = vsub.f32 %v9181, %v9182
  %v9184 = vand.u32 %v9183, 4294901760
  %9185 = vmatpush1.msra.mxu0 %v9184
  %9186 = vmatprep.subr.mxu0 0.0
  %v9187 = vand.u32 %v28, 4294901760
  %v9188 = vsub.f32 %v28, %v9187
  %v9189 = vand.u32 %v9188, 4294901760
  %v9190 = vsub.f32 %v9188, %v9189
  %v9191 = vand.u32 %v9190, 4294901760
  %9192 = vmatpush1.msra.mxu0 %v9191
  %9193 = vmatprep.subr.mxu0 0.0
  %v9194 = vand.u32 %v29, 4294901760
  %v9195 = vsub.f32 %v29, %v9194
  %v9196 = vand.u32 %v9195, 4294901760
  %v9197 = vsub.f32 %v9195, %v9196
  %v9198 = vand.u32 %v9197, 4294901760
  %9199 = vmatpush1.msra.mxu0 %v9198
  %9200 = vmatprep.subr.mxu0 0.0
  %v9201 = vand.u32 %v30, 4294901760
  %v9202 = vsub.f32 %v30, %v9201
  %v9203 = vand.u32 %v9202, 4294901760
  %v9204 = vsub.f32 %v9202, %v9203
  %v9205 = vand.u32 %v9204, 4294901760
  %9206 = vmatpush1.msra.mxu0 %v9205
  %9207 = vmatprep.subr.mxu0 0.0
  %v9208 = vand.u32 %v31, 4294901760
  %v9209 = vsub.f32 %v31, %v9208
  %v9210 = vand.u32 %v9209, 4294901760
  %v9211 = vsub.f32 %v9209, %v9210
  %v9212 = vand.u32 %v9211, 4294901760
  %9213 = vmatpush1.msra.mxu0 %v9212
  %9214 = vmatprep.subr.mxu0 0.0
  %v9215 = vand.u32 %v32, 4294901760
  %v9216 = vsub.f32 %v32, %v9215
  %v9217 = vand.u32 %v9216, 4294901760
  %v9218 = vsub.f32 %v9216, %v9217
  %v9219 = vand.u32 %v9218, 4294901760
  %9220 = vmatpush1.msra.mxu0 %v9219
  %9221 = vmatprep.subr.mxu0 0.0
  %v9222 = vand.u32 %v33, 4294901760
  %v9223 = vsub.f32 %v33, %v9222
  %v9224 = vand.u32 %v9223, 4294901760
  %v9225 = vsub.f32 %v9223, %v9224
  %v9226 = vand.u32 %v9225, 4294901760
  %9227 = vmatpush1.msra.mxu0 %v9226
  %9228 = vmatprep.subr.mxu0 0.0
  %v9229 = vand.u32 %v34, 4294901760
  %v9230 = vsub.f32 %v34, %v9229
  %v9231 = vand.u32 %v9230, 4294901760
  %v9232 = vsub.f32 %v9230, %v9231
  %v9233 = vand.u32 %v9232, 4294901760
  %9234 = vmatpush1.msra.mxu0 %v9233
  %9235 = vmatprep.subr.mxu0 0.0
  %v9236 = vand.u32 %v35, 4294901760
  %v9237 = vsub.f32 %v35, %v9236
  %v9238 = vand.u32 %v9237, 4294901760
  %v9239 = vsub.f32 %v9237, %v9238
  %v9240 = vand.u32 %v9239, 4294901760
  %9241 = vmatpush1.msra.mxu0 %v9240
  %9242 = vmatprep.subr.mxu0 0.0
  %v9243 = vand.u32 %v36, 4294901760
  %v9244 = vsub.f32 %v36, %v9243
  %v9245 = vand.u32 %v9244, 4294901760
  %v9246 = vsub.f32 %v9244, %v9245
  %v9247 = vand.u32 %v9246, 4294901760
  %9248 = vmatpush1.msra.mxu0 %v9247
  %9249 = vmatprep.subr.mxu0 0.0
  %v9250 = vand.u32 %v37, 4294901760
  %v9251 = vsub.f32 %v37, %v9250
  %v9252 = vand.u32 %v9251, 4294901760
  %v9253 = vsub.f32 %v9251, %v9252
  %v9254 = vand.u32 %v9253, 4294901760
  %9255 = vmatpush1.msra.mxu0 %v9254
  %9256 = vmatprep.subr.mxu0 0.0
  %v9257 = vand.u32 %v38, 4294901760
  %v9258 = vsub.f32 %v38, %v9257
  %v9259 = vand.u32 %v9258, 4294901760
  %v9260 = vsub.f32 %v9258, %v9259
  %v9261 = vand.u32 %v9260, 4294901760
  %9262 = vmatpush1.msra.mxu0 %v9261
  %9263 = vmatprep.subr.mxu0 0.0
  %v9264 = vand.u32 %v39, 4294901760
  %v9265 = vsub.f32 %v39, %v9264
  %v9266 = vand.u32 %v9265, 4294901760
  %v9267 = vsub.f32 %v9265, %v9266
  %v9268 = vand.u32 %v9267, 4294901760
  %9269 = vmatpush1.msra.mxu0 %v9268
  %9270 = vmatprep.subr.mxu0 0.0
  %v9271 = vand.u32 %v40, 4294901760
  %v9272 = vsub.f32 %v40, %v9271
  %v9273 = vand.u32 %v9272, 4294901760
  %v9274 = vsub.f32 %v9272, %v9273
  %v9275 = vand.u32 %v9274, 4294901760
  %9276 = vmatpush1.msra.mxu0 %v9275
  %9277 = vmatprep.subr.mxu0 0.0
  %9278 = vmatpush1.msra.mxu0 0.0
  %9279 = vmatprep.subr.mxu0 0.0
  %9280 = vmatpush1.msra.mxu0 0.0
  %9281 = vmatprep.subr.mxu0 0.0
  %9282 = vmatpush1.msra.mxu0 0.0
  %9283 = vmatprep.subr.mxu0 0.0
  %9284 = vmatpush1.msra.mxu0 0.0
  %9285 = vmatprep.subr.mxu0 0.0
  %9286 = vmatpush1.msra.mxu0 0.0
  %9287 = vmatprep.subr.mxu0 0.0
  %9288 = vmatpush1.msra.mxu0 0.0
  %9289 = vmatprep.subr.mxu0 0.0
  %9290 = vmatpush1.msra.mxu0 0.0
  %9291 = vmatprep.subr.mxu0 0.0
  %9292 = vmatpush1.msra.mxu0 0.0
  %9293 = vmatprep.subr.mxu0 0.0
  %9294 = vmatpush1.msra.mxu0 0.0
  %9295 = vmatprep.subr.mxu0 0.0
  %9296 = vmatpush1.msra.mxu0 0.0
  %9297 = vmatprep.subr.mxu0 0.0
  %9298 = vmatpush1.msra.mxu0 0.0
  %9299 = vmatprep.subr.mxu0 0.0
  %9300 = vmatpush1.msra.mxu0 0.0
  %9301 = vmatprep.subr.mxu0 0.0
  %9302 = vmatpush1.msra.mxu0 0.0
  %9303 = vmatprep.subr.mxu0 0.0
  %9304 = vmatpush1.msra.mxu0 0.0
  %9305 = vmatprep.subr.mxu0 0.0
  %9306 = vmatpush1.msra.mxu0 0.0
  %9307 = vmatprep.subr.mxu0 0.0
  %9308 = vmatpush1.msra.mxu0 0.0
  %9309 = vmatprep.mubr.f32.mxu0 0.0
  %v9310 = vand.u32 %v8428, 4294901760
  %9311 = vmatmul.mubr.f32.gmra.mrb[0].mxu0 %v9310
  %v9312 = vpop.f32.mrb[0].mxu0
  %v9313 = vadd.f32 %v9162, %v9312
  %v9314 = vpop.f32.mrb[0].mxu0
  %9315 = vdwg.mxu0
  %9316 = vmatprep.subr.mxu0 0.0
  %v9317 = vand.u32 %v25, 4294901760
  %v9318 = vsub.f32 %v25, %v9317
  %9319 = vmatpush1.msra.mxu0 %v9318
  %9320 = vmatprep.subr.mxu0 0.0
  %v9321 = vand.u32 %v26, 4294901760
  %v9322 = vsub.f32 %v26, %v9321
  %9323 = vmatpush1.msra.mxu0 %v9322
  %9324 = vmatprep.subr.mxu0 0.0
  %v9325 = vand.u32 %v27, 4294901760
  %v9326 = vsub.f32 %v27, %v9325
  %9327 = vmatpush1.msra.mxu0 %v9326
  %9328 = vmatprep.subr.mxu0 0.0
  %v9329 = vand.u32 %v28, 4294901760
  %v9330 = vsub.f32 %v28, %v9329
  %9331 = vmatpush1.msra.mxu0 %v9330
  %9332 = vmatprep.subr.mxu0 0.0
  %v9333 = vand.u32 %v29, 4294901760
  %v9334 = vsub.f32 %v29, %v9333
  %9335 = vmatpush1.msra.mxu0 %v9334
  %9336 = vmatprep.subr.mxu0 0.0
  %v9337 = vand.u32 %v30, 4294901760
  %v9338 = vsub.f32 %v30, %v9337
  %9339 = vmatpush1.msra.mxu0 %v9338
  %9340 = vmatprep.subr.mxu0 0.0
  %v9341 = vand.u32 %v31, 4294901760
  %v9342 = vsub.f32 %v31, %v9341
  %9343 = vmatpush1.msra.mxu0 %v9342
  %9344 = vmatprep.subr.mxu0 0.0
  %v9345 = vand.u32 %v32, 4294901760
  %v9346 = vsub.f32 %v32, %v9345
  %9347 = vmatpush1.msra.mxu0 %v9346
  %9348 = vmatprep.subr.mxu0 0.0
  %v9349 = vand.u32 %v33, 4294901760
  %v9350 = vsub.f32 %v33, %v9349
  %9351 = vmatpush1.msra.mxu0 %v9350
  %9352 = vmatprep.subr.mxu0 0.0
  %v9353 = vand.u32 %v34, 4294901760
  %v9354 = vsub.f32 %v34, %v9353
  %9355 = vmatpush1.msra.mxu0 %v9354
  %9356 = vmatprep.subr.mxu0 0.0
  %v9357 = vand.u32 %v35, 4294901760
  %v9358 = vsub.f32 %v35, %v9357
  %9359 = vmatpush1.msra.mxu0 %v9358
  %9360 = vmatprep.subr.mxu0 0.0
  %v9361 = vand.u32 %v36, 4294901760
  %v9362 = vsub.f32 %v36, %v9361
  %9363 = vmatpush1.msra.mxu0 %v9362
  %9364 = vmatprep.subr.mxu0 0.0
  %v9365 = vand.u32 %v37, 4294901760
  %v9366 = vsub.f32 %v37, %v9365
  %9367 = vmatpush1.msra.mxu0 %v9366
  %9368 = vmatprep.subr.mxu0 0.0
  %v9369 = vand.u32 %v38, 4294901760
  %v9370 = vsub.f32 %v38, %v9369
  %9371 = vmatpush1.msra.mxu0 %v9370
  %9372 = vmatprep.subr.mxu0 0.0
  %v9373 = vand.u32 %v39, 4294901760
  %v9374 = vsub.f32 %v39, %v9373
  %9375 = vmatpush1.msra.mxu0 %v9374
  %9376 = vmatprep.subr.mxu0 0.0
  %v9377 = vand.u32 %v40, 4294901760
  %v9378 = vsub.f32 %v40, %v9377
  %9379 = vmatpush1.msra.mxu0 %v9378
  %9380 = vmatprep.subr.mxu0 0.0
  %9381 = vmatpush1.msra.mxu0 0.0
  %9382 = vmatprep.subr.mxu0 0.0
  %9383 = vmatpush1.msra.mxu0 0.0
  %9384 = vmatprep.subr.mxu0 0.0
  %9385 = vmatpush1.msra.mxu0 0.0
  %9386 = vmatprep.subr.mxu0 0.0
  %9387 = vmatpush1.msra.mxu0 0.0
  %9388 = vmatprep.subr.mxu0 0.0
  %9389 = vmatpush1.msra.mxu0 0.0
  %9390 = vmatprep.subr.mxu0 0.0
  %9391 = vmatpush1.msra.mxu0 0.0
  %9392 = vmatprep.subr.mxu0 0.0
  %9393 = vmatpush1.msra.mxu0 0.0
  %9394 = vmatprep.subr.mxu0 0.0
  %9395 = vmatpush1.msra.mxu0 0.0
  %9396 = vmatprep.subr.mxu0 0.0
  %9397 = vmatpush1.msra.mxu0 0.0
  %9398 = vmatprep.subr.mxu0 0.0
  %9399 = vmatpush1.msra.mxu0 0.0
  %9400 = vmatprep.subr.mxu0 0.0
  %9401 = vmatpush1.msra.mxu0 0.0
  %9402 = vmatprep.subr.mxu0 0.0
  %9403 = vmatpush1.msra.mxu0 0.0
  %9404 = vmatprep.subr.mxu0 0.0
  %9405 = vmatpush1.msra.mxu0 0.0
  %9406 = vmatprep.subr.mxu0 0.0
  %9407 = vmatpush1.msra.mxu0 0.0
  %9408 = vmatprep.subr.mxu0 0.0
  %9409 = vmatpush1.msra.mxu0 0.0
  %9410 = vmatprep.subr.mxu0 0.0
  %9411 = vmatpush1.msra.mxu0 0.0
  %9412 = vmatprep.mubr.f32.mxu0 0.0
  %v9413 = vand.u32 %v8428, 4294901760
  %v9414 = vsub.f32 %v8428, %v9413
  %9415 = vmatmul.mubr.f32.gmra.mrb[0].mxu0 %v9414
  %v9416 = vpop.f32.mrb[0].mxu0
  %v9417 = vadd.f32 %v9313, %v9416
  %v9418 = vpop.f32.mrb[0].mxu0
  %9419 = vdwg.mxu0
  %9420 = vmatprep.subr.mxu0 0.0
  %v9421 = vand.u32 %v25, 4294901760
  %9422 = vmatpush1.msra.mxu0 %v9421
  %9423 = vmatprep.subr.mxu0 0.0
  %v9424 = vand.u32 %v26, 4294901760
  %9425 = vmatpush1.msra.mxu0 %v9424
  %9426 = vmatprep.subr.mxu0 0.0
  %v9427 = vand.u32 %v27, 4294901760
  %9428 = vmatpush1.msra.mxu0 %v9427
  %9429 = vmatprep.subr.mxu0 0.0
  %v9430 = vand.u32 %v28, 4294901760
  %9431 = vmatpush1.msra.mxu0 %v9430
  %9432 = vmatprep.subr.mxu0 0.0
  %v9433 = vand.u32 %v29, 4294901760
  %9434 = vmatpush1.msra.mxu0 %v9433
  %9435 = vmatprep.subr.mxu0 0.0
  %v9436 = vand.u32 %v30, 4294901760
  %9437 = vmatpush1.msra.mxu0 %v9436
  %9438 = vmatprep.subr.mxu0 0.0
  %v9439 = vand.u32 %v31, 4294901760
  %9440 = vmatpush1.msra.mxu0 %v9439
  %9441 = vmatprep.subr.mxu0 0.0
  %v9442 = vand.u32 %v32, 4294901760
  %9443 = vmatpush1.msra.mxu0 %v9442
  %9444 = vmatprep.subr.mxu0 0.0
  %v9445 = vand.u32 %v33, 4294901760
  %9446 = vmatpush1.msra.mxu0 %v9445
  %9447 = vmatprep.subr.mxu0 0.0
  %v9448 = vand.u32 %v34, 4294901760
  %9449 = vmatpush1.msra.mxu0 %v9448
  %9450 = vmatprep.subr.mxu0 0.0
  %v9451 = vand.u32 %v35, 4294901760
  %9452 = vmatpush1.msra.mxu0 %v9451
  %9453 = vmatprep.subr.mxu0 0.0
  %v9454 = vand.u32 %v36, 4294901760
  %9455 = vmatpush1.msra.mxu0 %v9454
  %9456 = vmatprep.subr.mxu0 0.0
  %v9457 = vand.u32 %v37, 4294901760
  %9458 = vmatpush1.msra.mxu0 %v9457
  %9459 = vmatprep.subr.mxu0 0.0
  %v9460 = vand.u32 %v38, 4294901760
  %9461 = vmatpush1.msra.mxu0 %v9460
  %9462 = vmatprep.subr.mxu0 0.0
  %v9463 = vand.u32 %v39, 4294901760
  %9464 = vmatpush1.msra.mxu0 %v9463
  %9465 = vmatprep.subr.mxu0 0.0
  %v9466 = vand.u32 %v40, 4294901760
  %9467 = vmatpush1.msra.mxu0 %v9466
  %9468 = vmatprep.subr.mxu0 0.0
  %9469 = vmatpush1.msra.mxu0 0.0
  %9470 = vmatprep.subr.mxu0 0.0
  %9471 = vmatpush1.msra.mxu0 0.0
  %9472 = vmatprep.subr.mxu0 0.0
  %9473 = vmatpush1.msra.mxu0 0.0
  %9474 = vmatprep.subr.mxu0 0.0
  %9475 = vmatpush1.msra.mxu0 0.0
  %9476 = vmatprep.subr.mxu0 0.0
  %9477 = vmatpush1.msra.mxu0 0.0
  %9478 = vmatprep.subr.mxu0 0.0
  %9479 = vmatpush1.msra.mxu0 0.0
  %9480 = vmatprep.subr.mxu0 0.0
  %9481 = vmatpush1.msra.mxu0 0.0
  %9482 = vmatprep.subr.mxu0 0.0
  %9483 = vmatpush1.msra.mxu0 0.0
  %9484 = vmatprep.subr.mxu0 0.0
  %9485 = vmatpush1.msra.mxu0 0.0
  %9486 = vmatprep.subr.mxu0 0.0
  %9487 = vmatpush1.msra.mxu0 0.0
  %9488 = vmatprep.subr.mxu0 0.0
  %9489 = vmatpush1.msra.mxu0 0.0
  %9490 = vmatprep.subr.mxu0 0.0
  %9491 = vmatpush1.msra.mxu0 0.0
  %9492 = vmatprep.subr.mxu0 0.0
  %9493 = vmatpush1.msra.mxu0 0.0
  %9494 = vmatprep.subr.mxu0 0.0
  %9495 = vmatpush1.msra.mxu0 0.0
  %9496 = vmatprep.subr.mxu0 0.0
  %9497 = vmatpush1.msra.mxu0 0.0
  %9498 = vmatprep.subr.mxu0 0.0
  %9499 = vmatpush1.msra.mxu0 0.0
  %9500 = vmatprep.mubr.f32.mxu0 0.0
  %v9501 = vand.u32 %v8428, 4294901760
  %v9502 = vsub.f32 %v8428, %v9501
  %v9503 = vand.u32 %v9502, 4294901760
  %9504 = vmatmul.mubr.f32.gmra.mrb[0].mxu0 %v9503
  %v9505 = vpop.f32.mrb[0].mxu0
  %v9506 = vadd.f32 %v9417, %v9505
  %v9507 = vpop.f32.mrb[0].mxu0
  %9508 = vdwg.mxu0
  %9509 = vmatprep.subr.mxu0 0.0
  %v9510 = vand.u32 %v25, 4294901760
  %v9511 = vsub.f32 %v25, %v9510
  %v9512 = vand.u32 %v9511, 4294901760
  %9513 = vmatpush1.msra.mxu0 %v9512
  %9514 = vmatprep.subr.mxu0 0.0
  %v9515 = vand.u32 %v26, 4294901760
  %v9516 = vsub.f32 %v26, %v9515
  %v9517 = vand.u32 %v9516, 4294901760
  %9518 = vmatpush1.msra.mxu0 %v9517
  %9519 = vmatprep.subr.mxu0 0.0
  %v9520 = vand.u32 %v27, 4294901760
  %v9521 = vsub.f32 %v27, %v9520
  %v9522 = vand.u32 %v9521, 4294901760
  %9523 = vmatpush1.msra.mxu0 %v9522
  %9524 = vmatprep.subr.mxu0 0.0
  %v9525 = vand.u32 %v28, 4294901760
  %v9526 = vsub.f32 %v28, %v9525
  %v9527 = vand.u32 %v9526, 4294901760
  %9528 = vmatpush1.msra.mxu0 %v9527
  %9529 = vmatprep.subr.mxu0 0.0
  %v9530 = vand.u32 %v29, 4294901760
  %v9531 = vsub.f32 %v29, %v9530
  %v9532 = vand.u32 %v9531, 4294901760
  %9533 = vmatpush1.msra.mxu0 %v9532
  %9534 = vmatprep.subr.mxu0 0.0
  %v9535 = vand.u32 %v30, 4294901760
  %v9536 = vsub.f32 %v30, %v9535
  %v9537 = vand.u32 %v9536, 4294901760
  %9538 = vmatpush1.msra.mxu0 %v9537
  %9539 = vmatprep.subr.mxu0 0.0
  %v9540 = vand.u32 %v31, 4294901760
  %v9541 = vsub.f32 %v31, %v9540
  %v9542 = vand.u32 %v9541, 4294901760
  %9543 = vmatpush1.msra.mxu0 %v9542
  %9544 = vmatprep.subr.mxu0 0.0
  %v9545 = vand.u32 %v32, 4294901760
  %v9546 = vsub.f32 %v32, %v9545
  %v9547 = vand.u32 %v9546, 4294901760
  %9548 = vmatpush1.msra.mxu0 %v9547
  %9549 = vmatprep.subr.mxu0 0.0
  %v9550 = vand.u32 %v33, 4294901760
  %v9551 = vsub.f32 %v33, %v9550
  %v9552 = vand.u32 %v9551, 4294901760
  %9553 = vmatpush1.msra.mxu0 %v9552
  %9554 = vmatprep.subr.mxu0 0.0
  %v9555 = vand.u32 %v34, 4294901760
  %v9556 = vsub.f32 %v34, %v9555
  %v9557 = vand.u32 %v9556, 4294901760
  %9558 = vmatpush1.msra.mxu0 %v9557
  %9559 = vmatprep.subr.mxu0 0.0
  %v9560 = vand.u32 %v35, 4294901760
  %v9561 = vsub.f32 %v35, %v9560
  %v9562 = vand.u32 %v9561, 4294901760
  %9563 = vmatpush1.msra.mxu0 %v9562
  %9564 = vmatprep.subr.mxu0 0.0
  %v9565 = vand.u32 %v36, 4294901760
  %v9566 = vsub.f32 %v36, %v9565
  %v9567 = vand.u32 %v9566, 4294901760
  %9568 = vmatpush1.msra.mxu0 %v9567
  %9569 = vmatprep.subr.mxu0 0.0
  %v9570 = vand.u32 %v37, 4294901760
  %v9571 = vsub.f32 %v37, %v9570
  %v9572 = vand.u32 %v9571, 4294901760
  %9573 = vmatpush1.msra.mxu0 %v9572
  %9574 = vmatprep.subr.mxu0 0.0
  %v9575 = vand.u32 %v38, 4294901760
  %v9576 = vsub.f32 %v38, %v9575
  %v9577 = vand.u32 %v9576, 4294901760
  %9578 = vmatpush1.msra.mxu0 %v9577
  %9579 = vmatprep.subr.mxu0 0.0
  %v9580 = vand.u32 %v39, 4294901760
  %v9581 = vsub.f32 %v39, %v9580
  %v9582 = vand.u32 %v9581, 4294901760
  %9583 = vmatpush1.msra.mxu0 %v9582
  %9584 = vmatprep.subr.mxu0 0.0
  %v9585 = vand.u32 %v40, 4294901760
  %v9586 = vsub.f32 %v40, %v9585
  %v9587 = vand.u32 %v9586, 4294901760
  %9588 = vmatpush1.msra.mxu0 %v9587
  %9589 = vmatprep.subr.mxu0 0.0
  %9590 = vmatpush1.msra.mxu0 0.0
  %9591 = vmatprep.subr.mxu0 0.0
  %9592 = vmatpush1.msra.mxu0 0.0
  %9593 = vmatprep.subr.mxu0 0.0
  %9594 = vmatpush1.msra.mxu0 0.0
  %9595 = vmatprep.subr.mxu0 0.0
  %9596 = vmatpush1.msra.mxu0 0.0
  %9597 = vmatprep.subr.mxu0 0.0
  %9598 = vmatpush1.msra.mxu0 0.0
  %9599 = vmatprep.subr.mxu0 0.0
  %9600 = vmatpush1.msra.mxu0 0.0
  %9601 = vmatprep.subr.mxu0 0.0
  %9602 = vmatpush1.msra.mxu0 0.0
  %9603 = vmatprep.subr.mxu0 0.0
  %9604 = vmatpush1.msra.mxu0 0.0
  %9605 = vmatprep.subr.mxu0 0.0
  %9606 = vmatpush1.msra.mxu0 0.0
  %9607 = vmatprep.subr.mxu0 0.0
  %9608 = vmatpush1.msra.mxu0 0.0
  %9609 = vmatprep.subr.mxu0 0.0
  %9610 = vmatpush1.msra.mxu0 0.0
  %9611 = vmatprep.subr.mxu0 0.0
  %9612 = vmatpush1.msra.mxu0 0.0
  %9613 = vmatprep.subr.mxu0 0.0
  %9614 = vmatpush1.msra.mxu0 0.0
  %9615 = vmatprep.subr.mxu0 0.0
  %9616 = vmatpush1.msra.mxu0 0.0
  %9617 = vmatprep.subr.mxu0 0.0
  %9618 = vmatpush1.msra.mxu0 0.0
  %9619 = vmatprep.subr.mxu0 0.0
  %9620 = vmatpush1.msra.mxu0 0.0
  %9621 = vmatprep.mubr.f32.mxu0 0.0
  %v9622 = vand.u32 %v8428, 4294901760
  %9623 = vmatmul.mubr.f32.gmra.mrb[0].mxu0 %v9622
  %v9624 = vpop.f32.mrb[0].mxu0
  %v9625 = vadd.f32 %v9506, %v9624
  %v9626 = vpop.f32.mrb[0].mxu0
  %9627 = vdwg.mxu0
  %9628 = vmatprep.subr.mxu0 0.0
  %v9629 = vand.u32 %v25, 4294901760
  %9630 = vmatpush1.msra.mxu0 %v9629
  %9631 = vmatprep.subr.mxu0 0.0
  %v9632 = vand.u32 %v26, 4294901760
  %9633 = vmatpush1.msra.mxu0 %v9632
  %9634 = vmatprep.subr.mxu0 0.0
  %v9635 = vand.u32 %v27, 4294901760
  %9636 = vmatpush1.msra.mxu0 %v9635
  %9637 = vmatprep.subr.mxu0 0.0
  %v9638 = vand.u32 %v28, 4294901760
  %9639 = vmatpush1.msra.mxu0 %v9638
  %9640 = vmatprep.subr.mxu0 0.0
  %v9641 = vand.u32 %v29, 4294901760
  %9642 = vmatpush1.msra.mxu0 %v9641
  %9643 = vmatprep.subr.mxu0 0.0
  %v9644 = vand.u32 %v30, 4294901760
  %9645 = vmatpush1.msra.mxu0 %v9644
  %9646 = vmatprep.subr.mxu0 0.0
  %v9647 = vand.u32 %v31, 4294901760
  %9648 = vmatpush1.msra.mxu0 %v9647
  %9649 = vmatprep.subr.mxu0 0.0
  %v9650 = vand.u32 %v32, 4294901760
  %9651 = vmatpush1.msra.mxu0 %v9650
  %9652 = vmatprep.subr.mxu0 0.0
  %v9653 = vand.u32 %v33, 4294901760
  %9654 = vmatpush1.msra.mxu0 %v9653
  %9655 = vmatprep.subr.mxu0 0.0
  %v9656 = vand.u32 %v34, 4294901760
  %9657 = vmatpush1.msra.mxu0 %v9656
  %9658 = vmatprep.subr.mxu0 0.0
  %v9659 = vand.u32 %v35, 4294901760
  %9660 = vmatpush1.msra.mxu0 %v9659
  %9661 = vmatprep.subr.mxu0 0.0
  %v9662 = vand.u32 %v36, 4294901760
  %9663 = vmatpush1.msra.mxu0 %v9662
  %9664 = vmatprep.subr.mxu0 0.0
  %v9665 = vand.u32 %v37, 4294901760
  %9666 = vmatpush1.msra.mxu0 %v9665
  %9667 = vmatprep.subr.mxu0 0.0
  %v9668 = vand.u32 %v38, 4294901760
  %9669 = vmatpush1.msra.mxu0 %v9668
  %9670 = vmatprep.subr.mxu0 0.0
  %v9671 = vand.u32 %v39, 4294901760
  %9672 = vmatpush1.msra.mxu0 %v9671
  %9673 = vmatprep.subr.mxu0 0.0
  %v9674 = vand.u32 %v40, 4294901760
  %9675 = vmatpush1.msra.mxu0 %v9674
  %9676 = vmatprep.subr.mxu0 0.0
  %9677 = vmatpush1.msra.mxu0 0.0
  %9678 = vmatprep.subr.mxu0 0.0
  %9679 = vmatpush1.msra.mxu0 0.0
  %9680 = vmatprep.subr.mxu0 0.0
  %9681 = vmatpush1.msra.mxu0 0.0
  %9682 = vmatprep.subr.mxu0 0.0
  %9683 = vmatpush1.msra.mxu0 0.0
  %9684 = vmatprep.subr.mxu0 0.0
  %9685 = vmatpush1.msra.mxu0 0.0
  %9686 = vmatprep.subr.mxu0 0.0
  %9687 = vmatpush1.msra.mxu0 0.0
  %9688 = vmatprep.subr.mxu0 0.0
  %9689 = vmatpush1.msra.mxu0 0.0
  %9690 = vmatprep.subr.mxu0 0.0
  %9691 = vmatpush1.msra.mxu0 0.0
  %9692 = vmatprep.subr.mxu0 0.0
  %9693 = vmatpush1.msra.mxu0 0.0
  %9694 = vmatprep.subr.mxu0 0.0
  %9695 = vmatpush1.msra.mxu0 0.0
  %9696 = vmatprep.subr.mxu0 0.0
  %9697 = vmatpush1.msra.mxu0 0.0
  %9698 = vmatprep.subr.mxu0 0.0
  %9699 = vmatpush1.msra.mxu0 0.0
  %9700 = vmatprep.subr.mxu0 0.0
  %9701 = vmatpush1.msra.mxu0 0.0
  %9702 = vmatprep.subr.mxu0 0.0
  %9703 = vmatpush1.msra.mxu0 0.0
  %9704 = vmatprep.subr.mxu0 0.0
  %9705 = vmatpush1.msra.mxu0 0.0
  %9706 = vmatprep.subr.mxu0 0.0
  %9707 = vmatpush1.msra.mxu0 0.0
  %9708 = vmatprep.mubr.f32.mxu0 0.0
  %v9709 = vand.u32 %v8428, 4294901760
  %9710 = vmatmul.mubr.f32.gmra.mrb[0].mxu0 %v9709
  %v9711 = vpop.f32.mrb[0].mxu0
  %v9712 = vadd.f32 %v9625, %v9711
  %v9713 = vpop.f32.mrb[0].mxu0
  %9714 = vdwg.mxu0
  %v9715 = vadd.f32 %v9073, %v9712
  %v9716 = vtanh.pop %v9715
  %9717 = vmatprep.subr.mxu0 0.0
  %v9718 = vand.u32 %v41, 4294901760
  %9719 = vmatpush1.msra.mxu0 %v9718
  %9720 = vmatprep.subr.mxu0 0.0
  %v9721 = vand.u32 %v42, 4294901760
  %9722 = vmatpush1.msra.mxu0 %v9721
  %9723 = vmatprep.subr.mxu0 0.0
  %v9724 = vand.u32 %v43, 4294901760
  %9725 = vmatpush1.msra.mxu0 %v9724
  %9726 = vmatprep.subr.mxu0 0.0
  %v9727 = vand.u32 %v44, 4294901760
  %9728 = vmatpush1.msra.mxu0 %v9727
  %9729 = vmatprep.subr.mxu0 0.0
  %v9730 = vand.u32 %v45, 4294901760
  %9731 = vmatpush1.msra.mxu0 %v9730
  %9732 = vmatprep.subr.mxu0 0.0
  %v9733 = vand.u32 %v46, 4294901760
  %9734 = vmatpush1.msra.mxu0 %v9733
  %9735 = vmatprep.subr.mxu0 0.0
  %v9736 = vand.u32 %v47, 4294901760
  %9737 = vmatpush1.msra.mxu0 %v9736
  %9738 = vmatprep.subr.mxu0 0.0
  %v9739 = vand.u32 %v48, 4294901760
  %9740 = vmatpush1.msra.mxu0 %v9739
  %9741 = vmatprep.subr.mxu0 0.0
  %v9742 = vand.u32 %v49, 4294901760
  %9743 = vmatpush1.msra.mxu0 %v9742
  %9744 = vmatprep.subr.mxu0 0.0
  %v9745 = vand.u32 %v50, 4294901760
  %9746 = vmatpush1.msra.mxu0 %v9745
  %9747 = vmatprep.subr.mxu0 0.0
  %v9748 = vand.u32 %v51, 4294901760
  %9749 = vmatpush1.msra.mxu0 %v9748
  %9750 = vmatprep.subr.mxu0 0.0
  %v9751 = vand.u32 %v52, 4294901760
  %9752 = vmatpush1.msra.mxu0 %v9751
  %9753 = vmatprep.subr.mxu0 0.0
  %v9754 = vand.u32 %v53, 4294901760
  %9755 = vmatpush1.msra.mxu0 %v9754
  %9756 = vmatprep.subr.mxu0 0.0
  %v9757 = vand.u32 %v54, 4294901760
  %9758 = vmatpush1.msra.mxu0 %v9757
  %9759 = vmatprep.subr.mxu0 0.0
  %v9760 = vand.u32 %v55, 4294901760
  %9761 = vmatpush1.msra.mxu0 %v9760
  %9762 = vmatprep.subr.mxu0 0.0
  %v9763 = vand.u32 %v56, 4294901760
  %9764 = vmatpush1.msra.mxu0 %v9763
  %9765 = vmatprep.subr.mxu0 0.0
  %9766 = vmatpush1.msra.mxu0 0.0
  %9767 = vmatprep.subr.mxu0 0.0
  %9768 = vmatpush1.msra.mxu0 0.0
  %9769 = vmatprep.subr.mxu0 0.0
  %9770 = vmatpush1.msra.mxu0 0.0
  %9771 = vmatprep.subr.mxu0 0.0
  %9772 = vmatpush1.msra.mxu0 0.0
  %9773 = vmatprep.subr.mxu0 0.0
  %9774 = vmatpush1.msra.mxu0 0.0
  %9775 = vmatprep.subr.mxu0 0.0
  %9776 = vmatpush1.msra.mxu0 0.0
  %9777 = vmatprep.subr.mxu0 0.0
  %9778 = vmatpush1.msra.mxu0 0.0
  %9779 = vmatprep.subr.mxu0 0.0
  %9780 = vmatpush1.msra.mxu0 0.0
  %9781 = vmatprep.subr.mxu0 0.0
  %9782 = vmatpush1.msra.mxu0 0.0
  %9783 = vmatprep.subr.mxu0 0.0
  %9784 = vmatpush1.msra.mxu0 0.0
  %9785 = vmatprep.subr.mxu0 0.0
  %9786 = vmatpush1.msra.mxu0 0.0
  %9787 = vmatprep.subr.mxu0 0.0
  %9788 = vmatpush1.msra.mxu0 0.0
  %9789 = vmatprep.subr.mxu0 0.0
  %9790 = vmatpush1.msra.mxu0 0.0
  %9791 = vmatprep.subr.mxu0 0.0
  %9792 = vmatpush1.msra.mxu0 0.0
  %9793 = vmatprep.subr.mxu0 0.0
  %9794 = vmatpush1.msra.mxu0 0.0
  %9795 = vmatprep.subr.mxu0 0.0
  %9796 = vmatpush1.msra.mxu0 0.0
  %9797 = vmatprep.mubr.f32.mxu0 0.0
  %v9798 = vand.u32 %v9716, 4294901760
  %v9799 = vsub.f32 %v9716, %v9798
  %v9800 = vand.u32 %v9799, 4294901760
  %v9801 = vsub.f32 %v9799, %v9800
  %v9802 = vand.u32 %v9801, 4294901760
  %9803 = vmatmul.mubr.f32.gmra.mrb[0].mxu0 %v9802
  %v9804 = vpop.f32.mrb[0].mxu0
  %v9805 = vadd.f32 0.0, %v9804
  %v9806 = vpop.f32.mrb[0].mxu0
  %9807 = vdwg.mxu0
  %9808 = vmatprep.subr.mxu0 0.0
  %v9809 = vand.u32 %v41, 4294901760
  %v9810 = vsub.f32 %v41, %v9809
  %v9811 = vand.u32 %v9810, 4294901760
  %v9812 = vsub.f32 %v9810, %v9811
  %v9813 = vand.u32 %v9812, 4294901760
  %9814 = vmatpush1.msra.mxu0 %v9813
  %9815 = vmatprep.subr.mxu0 0.0
  %v9816 = vand.u32 %v42, 4294901760
  %v9817 = vsub.f32 %v42, %v9816
  %v9818 = vand.u32 %v9817, 4294901760
  %v9819 = vsub.f32 %v9817, %v9818
  %v9820 = vand.u32 %v9819, 4294901760
  %9821 = vmatpush1.msra.mxu0 %v9820
  %9822 = vmatprep.subr.mxu0 0.0
  %v9823 = vand.u32 %v43, 4294901760
  %v9824 = vsub.f32 %v43, %v9823
  %v9825 = vand.u32 %v9824, 4294901760
  %v9826 = vsub.f32 %v9824, %v9825
  %v9827 = vand.u32 %v9826, 4294901760
  %9828 = vmatpush1.msra.mxu0 %v9827
  %9829 = vmatprep.subr.mxu0 0.0
  %v9830 = vand.u32 %v44, 4294901760
  %v9831 = vsub.f32 %v44, %v9830
  %v9832 = vand.u32 %v9831, 4294901760
  %v9833 = vsub.f32 %v9831, %v9832
  %v9834 = vand.u32 %v9833, 4294901760
  %9835 = vmatpush1.msra.mxu0 %v9834
  %9836 = vmatprep.subr.mxu0 0.0
  %v9837 = vand.u32 %v45, 4294901760
  %v9838 = vsub.f32 %v45, %v9837
  %v9839 = vand.u32 %v9838, 4294901760
  %v9840 = vsub.f32 %v9838, %v9839
  %v9841 = vand.u32 %v9840, 4294901760
  %9842 = vmatpush1.msra.mxu0 %v9841
  %9843 = vmatprep.subr.mxu0 0.0
  %v9844 = vand.u32 %v46, 4294901760
  %v9845 = vsub.f32 %v46, %v9844
  %v9846 = vand.u32 %v9845, 4294901760
  %v9847 = vsub.f32 %v9845, %v9846
  %v9848 = vand.u32 %v9847, 4294901760
  %9849 = vmatpush1.msra.mxu0 %v9848
  %9850 = vmatprep.subr.mxu0 0.0
  %v9851 = vand.u32 %v47, 4294901760
  %v9852 = vsub.f32 %v47, %v9851
  %v9853 = vand.u32 %v9852, 4294901760
  %v9854 = vsub.f32 %v9852, %v9853
  %v9855 = vand.u32 %v9854, 4294901760
  %9856 = vmatpush1.msra.mxu0 %v9855
  %9857 = vmatprep.subr.mxu0 0.0
  %v9858 = vand.u32 %v48, 4294901760
  %v9859 = vsub.f32 %v48, %v9858
  %v9860 = vand.u32 %v9859, 4294901760
  %v9861 = vsub.f32 %v9859, %v9860
  %v9862 = vand.u32 %v9861, 4294901760
  %9863 = vmatpush1.msra.mxu0 %v9862
  %9864 = vmatprep.subr.mxu0 0.0
  %v9865 = vand.u32 %v49, 4294901760
  %v9866 = vsub.f32 %v49, %v9865
  %v9867 = vand.u32 %v9866, 4294901760
  %v9868 = vsub.f32 %v9866, %v9867
  %v9869 = vand.u32 %v9868, 4294901760
  %9870 = vmatpush1.msra.mxu0 %v9869
  %9871 = vmatprep.subr.mxu0 0.0
  %v9872 = vand.u32 %v50, 4294901760
  %v9873 = vsub.f32 %v50, %v9872
  %v9874 = vand.u32 %v9873, 4294901760
  %v9875 = vsub.f32 %v9873, %v9874
  %v9876 = vand.u32 %v9875, 4294901760
  %9877 = vmatpush1.msra.mxu0 %v9876
  %9878 = vmatprep.subr.mxu0 0.0
  %v9879 = vand.u32 %v51, 4294901760
  %v9880 = vsub.f32 %v51, %v9879
  %v9881 = vand.u32 %v9880, 4294901760
  %v9882 = vsub.f32 %v9880, %v9881
  %v9883 = vand.u32 %v9882, 4294901760
  %9884 = vmatpush1.msra.mxu0 %v9883
  %9885 = vmatprep.subr.mxu0 0.0
  %v9886 = vand.u32 %v52, 4294901760
  %v9887 = vsub.f32 %v52, %v9886
  %v9888 = vand.u32 %v9887, 4294901760
  %v9889 = vsub.f32 %v9887, %v9888
  %v9890 = vand.u32 %v9889, 4294901760
  %9891 = vmatpush1.msra.mxu0 %v9890
  %9892 = vmatprep.subr.mxu0 0.0
  %v9893 = vand.u32 %v53, 4294901760
  %v9894 = vsub.f32 %v53, %v9893
  %v9895 = vand.u32 %v9894, 4294901760
  %v9896 = vsub.f32 %v9894, %v9895
  %v9897 = vand.u32 %v9896, 4294901760
  %9898 = vmatpush1.msra.mxu0 %v9897
  %9899 = vmatprep.subr.mxu0 0.0
  %v9900 = vand.u32 %v54, 4294901760
  %v9901 = vsub.f32 %v54, %v9900
  %v9902 = vand.u32 %v9901, 4294901760
  %v9903 = vsub.f32 %v9901, %v9902
  %v9904 = vand.u32 %v9903, 4294901760
  %9905 = vmatpush1.msra.mxu0 %v9904
  %9906 = vmatprep.subr.mxu0 0.0
  %v9907 = vand.u32 %v55, 4294901760
  %v9908 = vsub.f32 %v55, %v9907
  %v9909 = vand.u32 %v9908, 4294901760
  %v9910 = vsub.f32 %v9908, %v9909
  %v9911 = vand.u32 %v9910, 4294901760
  %9912 = vmatpush1.msra.mxu0 %v9911
  %9913 = vmatprep.subr.mxu0 0.0
  %v9914 = vand.u32 %v56, 4294901760
  %v9915 = vsub.f32 %v56, %v9914
  %v9916 = vand.u32 %v9915, 4294901760
  %v9917 = vsub.f32 %v9915, %v9916
  %v9918 = vand.u32 %v9917, 4294901760
  %9919 = vmatpush1.msra.mxu0 %v9918
  %9920 = vmatprep.subr.mxu0 0.0
  %9921 = vmatpush1.msra.mxu0 0.0
  %9922 = vmatprep.subr.mxu0 0.0
  %9923 = vmatpush1.msra.mxu0 0.0
  %9924 = vmatprep.subr.mxu0 0.0
  %9925 = vmatpush1.msra.mxu0 0.0
  %9926 = vmatprep.subr.mxu0 0.0
  %9927 = vmatpush1.msra.mxu0 0.0
  %9928 = vmatprep.subr.mxu0 0.0
  %9929 = vmatpush1.msra.mxu0 0.0
  %9930 = vmatprep.subr.mxu0 0.0
  %9931 = vmatpush1.msra.mxu0 0.0
  %9932 = vmatprep.subr.mxu0 0.0
  %9933 = vmatpush1.msra.mxu0 0.0
  %9934 = vmatprep.subr.mxu0 0.0
  %9935 = vmatpush1.msra.mxu0 0.0
  %9936 = vmatprep.subr.mxu0 0.0
  %9937 = vmatpush1.msra.mxu0 0.0
  %9938 = vmatprep.subr.mxu0 0.0
  %9939 = vmatpush1.msra.mxu0 0.0
  %9940 = vmatprep.subr.mxu0 0.0
  %9941 = vmatpush1.msra.mxu0 0.0
  %9942 = vmatprep.subr.mxu0 0.0
  %9943 = vmatpush1.msra.mxu0 0.0
  %9944 = vmatprep.subr.mxu0 0.0
  %9945 = vmatpush1.msra.mxu0 0.0
  %9946 = vmatprep.subr.mxu0 0.0
  %9947 = vmatpush1.msra.mxu0 0.0
  %9948 = vmatprep.subr.mxu0 0.0
  %9949 = vmatpush1.msra.mxu0 0.0
  %9950 = vmatprep.subr.mxu0 0.0
  %9951 = vmatpush1.msra.mxu0 0.0
  %9952 = vmatprep.mubr.f32.mxu0 0.0
  %v9953 = vand.u32 %v9716, 4294901760
  %9954 = vmatmul.mubr.f32.gmra.mrb[0].mxu0 %v9953
  %v9955 = vpop.f32.mrb[0].mxu0
  %v9956 = vadd.f32 %v9805, %v9955
  %v9957 = vpop.f32.mrb[0].mxu0
  %9958 = vdwg.mxu0
  %9959 = vmatprep.subr.mxu0 0.0
  %v9960 = vand.u32 %v41, 4294901760
  %v9961 = vsub.f32 %v41, %v9960
  %9962 = vmatpush1.msra.mxu0 %v9961
  %9963 = vmatprep.subr.mxu0 0.0
  %v9964 = vand.u32 %v42, 4294901760
  %v9965 = vsub.f32 %v42, %v9964
  %9966 = vmatpush1.msra.mxu0 %v9965
  %9967 = vmatprep.subr.mxu0 0.0
  %v9968 = vand.u32 %v43, 4294901760
  %v9969 = vsub.f32 %v43, %v9968
  %9970 = vmatpush1.msra.mxu0 %v9969
  %9971 = vmatprep.subr.mxu0 0.0
  %v9972 = vand.u32 %v44, 4294901760
  %v9973 = vsub.f32 %v44, %v9972
  %9974 = vmatpush1.msra.mxu0 %v9973
  %9975 = vmatprep.subr.mxu0 0.0
  %v9976 = vand.u32 %v45, 4294901760
  %v9977 = vsub.f32 %v45, %v9976
  %9978 = vmatpush1.msra.mxu0 %v9977
  %9979 = vmatprep.subr.mxu0 0.0
  %v9980 = vand.u32 %v46, 4294901760
  %v9981 = vsub.f32 %v46, %v9980
  %9982 = vmatpush1.msra.mxu0 %v9981
  %9983 = vmatprep.subr.mxu0 0.0
  %v9984 = vand.u32 %v47, 4294901760
  %v9985 = vsub.f32 %v47, %v9984
  %9986 = vmatpush1.msra.mxu0 %v9985
  %9987 = vmatprep.subr.mxu0 0.0
  %v9988 = vand.u32 %v48, 4294901760
  %v9989 = vsub.f32 %v48, %v9988
  %9990 = vmatpush1.msra.mxu0 %v9989
  %9991 = vmatprep.subr.mxu0 0.0
  %v9992 = vand.u32 %v49, 4294901760
  %v9993 = vsub.f32 %v49, %v9992
  %9994 = vmatpush1.msra.mxu0 %v9993
  %9995 = vmatprep.subr.mxu0 0.0
  %v9996 = vand.u32 %v50, 4294901760
  %v9997 = vsub.f32 %v50, %v9996
  %9998 = vmatpush1.msra.mxu0 %v9997
  %9999 = vmatprep.subr.mxu0 0.0
  %v10000 = vand.u32 %v51, 4294901760
  %v10001 = vsub.f32 %v51, %v10000
  %10002 = vmatpush1.msra.mxu0 %v10001
  %10003 = vmatprep.subr.mxu0 0.0
  %v10004 = vand.u32 %v52, 4294901760
  %v10005 = vsub.f32 %v52, %v10004
  %10006 = vmatpush1.msra.mxu0 %v10005
  %10007 = vmatprep.subr.mxu0 0.0
  %v10008 = vand.u32 %v53, 4294901760
  %v10009 = vsub.f32 %v53, %v10008
  %10010 = vmatpush1.msra.mxu0 %v10009
  %10011 = vmatprep.subr.mxu0 0.0
  %v10012 = vand.u32 %v54, 4294901760
  %v10013 = vsub.f32 %v54, %v10012
  %10014 = vmatpush1.msra.mxu0 %v10013
  %10015 = vmatprep.subr.mxu0 0.0
  %v10016 = vand.u32 %v55, 4294901760
  %v10017 = vsub.f32 %v55, %v10016
  %10018 = vmatpush1.msra.mxu0 %v10017
  %10019 = vmatprep.subr.mxu0 0.0
  %v10020 = vand.u32 %v56, 4294901760
  %v10021 = vsub.f32 %v56, %v10020
  %10022 = vmatpush1.msra.mxu0 %v10021
  %10023 = vmatprep.subr.mxu0 0.0
  %10024 = vmatpush1.msra.mxu0 0.0
  %10025 = vmatprep.subr.mxu0 0.0
  %10026 = vmatpush1.msra.mxu0 0.0
  %10027 = vmatprep.subr.mxu0 0.0
  %10028 = vmatpush1.msra.mxu0 0.0
  %10029 = vmatprep.subr.mxu0 0.0
  %10030 = vmatpush1.msra.mxu0 0.0
  %10031 = vmatprep.subr.mxu0 0.0
  %10032 = vmatpush1.msra.mxu0 0.0
  %10033 = vmatprep.subr.mxu0 0.0
  %10034 = vmatpush1.msra.mxu0 0.0
  %10035 = vmatprep.subr.mxu0 0.0
  %10036 = vmatpush1.msra.mxu0 0.0
  %10037 = vmatprep.subr.mxu0 0.0
  %10038 = vmatpush1.msra.mxu0 0.0
  %10039 = vmatprep.subr.mxu0 0.0
  %10040 = vmatpush1.msra.mxu0 0.0
  %10041 = vmatprep.subr.mxu0 0.0
  %10042 = vmatpush1.msra.mxu0 0.0
  %10043 = vmatprep.subr.mxu0 0.0
  %10044 = vmatpush1.msra.mxu0 0.0
  %10045 = vmatprep.subr.mxu0 0.0
  %10046 = vmatpush1.msra.mxu0 0.0
  %10047 = vmatprep.subr.mxu0 0.0
  %10048 = vmatpush1.msra.mxu0 0.0
  %10049 = vmatprep.subr.mxu0 0.0
  %10050 = vmatpush1.msra.mxu0 0.0
  %10051 = vmatprep.subr.mxu0 0.0
  %10052 = vmatpush1.msra.mxu0 0.0
  %10053 = vmatprep.subr.mxu0 0.0
  %10054 = vmatpush1.msra.mxu0 0.0
  %10055 = vmatprep.mubr.f32.mxu0 0.0
  %v10056 = vand.u32 %v9716, 4294901760
  %v10057 = vsub.f32 %v9716, %v10056
  %10058 = vmatmul.mubr.f32.gmra.mrb[0].mxu0 %v10057
  %v10059 = vpop.f32.mrb[0].mxu0
  %v10060 = vadd.f32 %v9956, %v10059
  %v10061 = vpop.f32.mrb[0].mxu0
  %10062 = vdwg.mxu0
  %10063 = vmatprep.subr.mxu0 0.0
  %v10064 = vand.u32 %v41, 4294901760
  %10065 = vmatpush1.msra.mxu0 %v10064
  %10066 = vmatprep.subr.mxu0 0.0
  %v10067 = vand.u32 %v42, 4294901760
  %10068 = vmatpush1.msra.mxu0 %v10067
  %10069 = vmatprep.subr.mxu0 0.0
  %v10070 = vand.u32 %v43, 4294901760
  %10071 = vmatpush1.msra.mxu0 %v10070
  %10072 = vmatprep.subr.mxu0 0.0
  %v10073 = vand.u32 %v44, 4294901760
  %10074 = vmatpush1.msra.mxu0 %v10073
  %10075 = vmatprep.subr.mxu0 0.0
  %v10076 = vand.u32 %v45, 4294901760
  %10077 = vmatpush1.msra.mxu0 %v10076
  %10078 = vmatprep.subr.mxu0 0.0
  %v10079 = vand.u32 %v46, 4294901760
  %10080 = vmatpush1.msra.mxu0 %v10079
  %10081 = vmatprep.subr.mxu0 0.0
  %v10082 = vand.u32 %v47, 4294901760
  %10083 = vmatpush1.msra.mxu0 %v10082
  %10084 = vmatprep.subr.mxu0 0.0
  %v10085 = vand.u32 %v48, 4294901760
  %10086 = vmatpush1.msra.mxu0 %v10085
  %10087 = vmatprep.subr.mxu0 0.0
  %v10088 = vand.u32 %v49, 4294901760
  %10089 = vmatpush1.msra.mxu0 %v10088
  %10090 = vmatprep.subr.mxu0 0.0
  %v10091 = vand.u32 %v50, 4294901760
  %10092 = vmatpush1.msra.mxu0 %v10091
  %10093 = vmatprep.subr.mxu0 0.0
  %v10094 = vand.u32 %v51, 4294901760
  %10095 = vmatpush1.msra.mxu0 %v10094
  %10096 = vmatprep.subr.mxu0 0.0
  %v10097 = vand.u32 %v52, 4294901760
  %10098 = vmatpush1.msra.mxu0 %v10097
  %10099 = vmatprep.subr.mxu0 0.0
  %v10100 = vand.u32 %v53, 4294901760
  %10101 = vmatpush1.msra.mxu0 %v10100
  %10102 = vmatprep.subr.mxu0 0.0
  %v10103 = vand.u32 %v54, 4294901760
  %10104 = vmatpush1.msra.mxu0 %v10103
  %10105 = vmatprep.subr.mxu0 0.0
  %v10106 = vand.u32 %v55, 4294901760
  %10107 = vmatpush1.msra.mxu0 %v10106
  %10108 = vmatprep.subr.mxu0 0.0
  %v10109 = vand.u32 %v56, 4294901760
  %10110 = vmatpush1.msra.mxu0 %v10109
  %10111 = vmatprep.subr.mxu0 0.0
  %10112 = vmatpush1.msra.mxu0 0.0
  %10113 = vmatprep.subr.mxu0 0.0
  %10114 = vmatpush1.msra.mxu0 0.0
  %10115 = vmatprep.subr.mxu0 0.0
  %10116 = vmatpush1.msra.mxu0 0.0
  %10117 = vmatprep.subr.mxu0 0.0
  %10118 = vmatpush1.msra.mxu0 0.0
  %10119 = vmatprep.subr.mxu0 0.0
  %10120 = vmatpush1.msra.mxu0 0.0
  %10121 = vmatprep.subr.mxu0 0.0
  %10122 = vmatpush1.msra.mxu0 0.0
  %10123 = vmatprep.subr.mxu0 0.0
  %10124 = vmatpush1.msra.mxu0 0.0
  %10125 = vmatprep.subr.mxu0 0.0
  %10126 = vmatpush1.msra.mxu0 0.0
  %10127 = vmatprep.subr.mxu0 0.0
  %10128 = vmatpush1.msra.mxu0 0.0
  %10129 = vmatprep.subr.mxu0 0.0
  %10130 = vmatpush1.msra.mxu0 0.0
  %10131 = vmatprep.subr.mxu0 0.0
  %10132 = vmatpush1.msra.mxu0 0.0
  %10133 = vmatprep.subr.mxu0 0.0
  %10134 = vmatpush1.msra.mxu0 0.0
  %10135 = vmatprep.subr.mxu0 0.0
  %10136 = vmatpush1.msra.mxu0 0.0
  %10137 = vmatprep.subr.mxu0 0.0
  %10138 = vmatpush1.msra.mxu0 0.0
  %10139 = vmatprep.subr.mxu0 0.0
  %10140 = vmatpush1.msra.mxu0 0.0
  %10141 = vmatprep.subr.mxu0 0.0
  %10142 = vmatpush1.msra.mxu0 0.0
  %10143 = vmatprep.mubr.f32.mxu0 0.0
  %v10144 = vand.u32 %v9716, 4294901760
  %v10145 = vsub.f32 %v9716, %v10144
  %v10146 = vand.u32 %v10145, 4294901760
  %10147 = vmatmul.mubr.f32.gmra.mrb[0].mxu0 %v10146
  %v10148 = vpop.f32.mrb[0].mxu0
  %v10149 = vadd.f32 %v10060, %v10148
  %v10150 = vpop.f32.mrb[0].mxu0
  %10151 = vdwg.mxu0
  %10152 = vmatprep.subr.mxu0 0.0
  %v10153 = vand.u32 %v41, 4294901760
  %v10154 = vsub.f32 %v41, %v10153
  %v10155 = vand.u32 %v10154, 4294901760
  %10156 = vmatpush1.msra.mxu0 %v10155
  %10157 = vmatprep.subr.mxu0 0.0
  %v10158 = vand.u32 %v42, 4294901760
  %v10159 = vsub.f32 %v42, %v10158
  %v10160 = vand.u32 %v10159, 4294901760
  %10161 = vmatpush1.msra.mxu0 %v10160
  %10162 = vmatprep.subr.mxu0 0.0
  %v10163 = vand.u32 %v43, 4294901760
  %v10164 = vsub.f32 %v43, %v10163
  %v10165 = vand.u32 %v10164, 4294901760
  %10166 = vmatpush1.msra.mxu0 %v10165
  %10167 = vmatprep.subr.mxu0 0.0
  %v10168 = vand.u32 %v44, 4294901760
  %v10169 = vsub.f32 %v44, %v10168
  %v10170 = vand.u32 %v10169, 4294901760
  %10171 = vmatpush1.msra.mxu0 %v10170
  %10172 = vmatprep.subr.mxu0 0.0
  %v10173 = vand.u32 %v45, 4294901760
  %v10174 = vsub.f32 %v45, %v10173
  %v10175 = vand.u32 %v10174, 4294901760
  %10176 = vmatpush1.msra.mxu0 %v10175
  %10177 = vmatprep.subr.mxu0 0.0
  %v10178 = vand.u32 %v46, 4294901760
  %v10179 = vsub.f32 %v46, %v10178
  %v10180 = vand.u32 %v10179, 4294901760
  %10181 = vmatpush1.msra.mxu0 %v10180
  %10182 = vmatprep.subr.mxu0 0.0
  %v10183 = vand.u32 %v47, 4294901760
  %v10184 = vsub.f32 %v47, %v10183
  %v10185 = vand.u32 %v10184, 4294901760
  %10186 = vmatpush1.msra.mxu0 %v10185
  %10187 = vmatprep.subr.mxu0 0.0
  %v10188 = vand.u32 %v48, 4294901760
  %v10189 = vsub.f32 %v48, %v10188
  %v10190 = vand.u32 %v10189, 4294901760
  %10191 = vmatpush1.msra.mxu0 %v10190
  %10192 = vmatprep.subr.mxu0 0.0
  %v10193 = vand.u32 %v49, 4294901760
  %v10194 = vsub.f32 %v49, %v10193
  %v10195 = vand.u32 %v10194, 4294901760
  %10196 = vmatpush1.msra.mxu0 %v10195
  %10197 = vmatprep.subr.mxu0 0.0
  %v10198 = vand.u32 %v50, 4294901760
  %v10199 = vsub.f32 %v50, %v10198
  %v10200 = vand.u32 %v10199, 4294901760
  %10201 = vmatpush1.msra.mxu0 %v10200
  %10202 = vmatprep.subr.mxu0 0.0
  %v10203 = vand.u32 %v51, 4294901760
  %v10204 = vsub.f32 %v51, %v10203
  %v10205 = vand.u32 %v10204, 4294901760
  %10206 = vmatpush1.msra.mxu0 %v10205
  %10207 = vmatprep.subr.mxu0 0.0
  %v10208 = vand.u32 %v52, 4294901760
  %v10209 = vsub.f32 %v52, %v10208
  %v10210 = vand.u32 %v10209, 4294901760
  %10211 = vmatpush1.msra.mxu0 %v10210
  %10212 = vmatprep.subr.mxu0 0.0
  %v10213 = vand.u32 %v53, 4294901760
  %v10214 = vsub.f32 %v53, %v10213
  %v10215 = vand.u32 %v10214, 4294901760
  %10216 = vmatpush1.msra.mxu0 %v10215
  %10217 = vmatprep.subr.mxu0 0.0
  %v10218 = vand.u32 %v54, 4294901760
  %v10219 = vsub.f32 %v54, %v10218
  %v10220 = vand.u32 %v10219, 4294901760
  %10221 = vmatpush1.msra.mxu0 %v10220
  %10222 = vmatprep.subr.mxu0 0.0
  %v10223 = vand.u32 %v55, 4294901760
  %v10224 = vsub.f32 %v55, %v10223
  %v10225 = vand.u32 %v10224, 4294901760
  %10226 = vmatpush1.msra.mxu0 %v10225
  %10227 = vmatprep.subr.mxu0 0.0
  %v10228 = vand.u32 %v56, 4294901760
  %v10229 = vsub.f32 %v56, %v10228
  %v10230 = vand.u32 %v10229, 4294901760
  %10231 = vmatpush1.msra.mxu0 %v10230
  %10232 = vmatprep.subr.mxu0 0.0
  %10233 = vmatpush1.msra.mxu0 0.0
  %10234 = vmatprep.subr.mxu0 0.0
  %10235 = vmatpush1.msra.mxu0 0.0
  %10236 = vmatprep.subr.mxu0 0.0
  %10237 = vmatpush1.msra.mxu0 0.0
  %10238 = vmatprep.subr.mxu0 0.0
  %10239 = vmatpush1.msra.mxu0 0.0
  %10240 = vmatprep.subr.mxu0 0.0
  %10241 = vmatpush1.msra.mxu0 0.0
  %10242 = vmatprep.subr.mxu0 0.0
  %10243 = vmatpush1.msra.mxu0 0.0
  %10244 = vmatprep.subr.mxu0 0.0
  %10245 = vmatpush1.msra.mxu0 0.0
  %10246 = vmatprep.subr.mxu0 0.0
  %10247 = vmatpush1.msra.mxu0 0.0
  %10248 = vmatprep.subr.mxu0 0.0
  %10249 = vmatpush1.msra.mxu0 0.0
  %10250 = vmatprep.subr.mxu0 0.0
  %10251 = vmatpush1.msra.mxu0 0.0
  %10252 = vmatprep.subr.mxu0 0.0
  %10253 = vmatpush1.msra.mxu0 0.0
  %10254 = vmatprep.subr.mxu0 0.0
  %10255 = vmatpush1.msra.mxu0 0.0
  %10256 = vmatprep.subr.mxu0 0.0
  %10257 = vmatpush1.msra.mxu0 0.0
  %10258 = vmatprep.subr.mxu0 0.0
  %10259 = vmatpush1.msra.mxu0 0.0
  %10260 = vmatprep.subr.mxu0 0.0
  %10261 = vmatpush1.msra.mxu0 0.0
  %10262 = vmatprep.subr.mxu0 0.0
  %10263 = vmatpush1.msra.mxu0 0.0
  %10264 = vmatprep.mubr.f32.mxu0 0.0
  %v10265 = vand.u32 %v9716, 4294901760
  %10266 = vmatmul.mubr.f32.gmra.mrb[0].mxu0 %v10265
  %v10267 = vpop.f32.mrb[0].mxu0
  %v10268 = vadd.f32 %v10149, %v10267
  %v10269 = vpop.f32.mrb[0].mxu0
  %10270 = vdwg.mxu0
  %10271 = vmatprep.subr.mxu0 0.0
  %v10272 = vand.u32 %v41, 4294901760
  %10273 = vmatpush1.msra.mxu0 %v10272
  %10274 = vmatprep.subr.mxu0 0.0
  %v10275 = vand.u32 %v42, 4294901760
  %10276 = vmatpush1.msra.mxu0 %v10275
  %10277 = vmatprep.subr.mxu0 0.0
  %v10278 = vand.u32 %v43, 4294901760
  %10279 = vmatpush1.msra.mxu0 %v10278
  %10280 = vmatprep.subr.mxu0 0.0
  %v10281 = vand.u32 %v44, 4294901760
  %10282 = vmatpush1.msra.mxu0 %v10281
  %10283 = vmatprep.subr.mxu0 0.0
  %v10284 = vand.u32 %v45, 4294901760
  %10285 = vmatpush1.msra.mxu0 %v10284
  %10286 = vmatprep.subr.mxu0 0.0
  %v10287 = vand.u32 %v46, 4294901760
  %10288 = vmatpush1.msra.mxu0 %v10287
  %10289 = vmatprep.subr.mxu0 0.0
  %v10290 = vand.u32 %v47, 4294901760
  %10291 = vmatpush1.msra.mxu0 %v10290
  %10292 = vmatprep.subr.mxu0 0.0
  %v10293 = vand.u32 %v48, 4294901760
  %10294 = vmatpush1.msra.mxu0 %v10293
  %10295 = vmatprep.subr.mxu0 0.0
  %v10296 = vand.u32 %v49, 4294901760
  %10297 = vmatpush1.msra.mxu0 %v10296
  %10298 = vmatprep.subr.mxu0 0.0
  %v10299 = vand.u32 %v50, 4294901760
  %10300 = vmatpush1.msra.mxu0 %v10299
  %10301 = vmatprep.subr.mxu0 0.0
  %v10302 = vand.u32 %v51, 4294901760
  %10303 = vmatpush1.msra.mxu0 %v10302
  %10304 = vmatprep.subr.mxu0 0.0
  %v10305 = vand.u32 %v52, 4294901760
  %10306 = vmatpush1.msra.mxu0 %v10305
  %10307 = vmatprep.subr.mxu0 0.0
  %v10308 = vand.u32 %v53, 4294901760
  %10309 = vmatpush1.msra.mxu0 %v10308
  %10310 = vmatprep.subr.mxu0 0.0
  %v10311 = vand.u32 %v54, 4294901760
  %10312 = vmatpush1.msra.mxu0 %v10311
  %10313 = vmatprep.subr.mxu0 0.0
  %v10314 = vand.u32 %v55, 4294901760
  %10315 = vmatpush1.msra.mxu0 %v10314
  %10316 = vmatprep.subr.mxu0 0.0
  %v10317 = vand.u32 %v56, 4294901760
  %10318 = vmatpush1.msra.mxu0 %v10317
  %10319 = vmatprep.subr.mxu0 0.0
  %10320 = vmatpush1.msra.mxu0 0.0
  %10321 = vmatprep.subr.mxu0 0.0
  %10322 = vmatpush1.msra.mxu0 0.0
  %10323 = vmatprep.subr.mxu0 0.0
  %10324 = vmatpush1.msra.mxu0 0.0
  %10325 = vmatprep.subr.mxu0 0.0
  %10326 = vmatpush1.msra.mxu0 0.0
  %10327 = vmatprep.subr.mxu0 0.0
  %10328 = vmatpush1.msra.mxu0 0.0
  %10329 = vmatprep.subr.mxu0 0.0
  %10330 = vmatpush1.msra.mxu0 0.0
  %10331 = vmatprep.subr.mxu0 0.0
  %10332 = vmatpush1.msra.mxu0 0.0
  %10333 = vmatprep.subr.mxu0 0.0
  %10334 = vmatpush1.msra.mxu0 0.0
  %10335 = vmatprep.subr.mxu0 0.0
  %10336 = vmatpush1.msra.mxu0 0.0
  %10337 = vmatprep.subr.mxu0 0.0
  %10338 = vmatpush1.msra.mxu0 0.0
  %10339 = vmatprep.subr.mxu0 0.0
  %10340 = vmatpush1.msra.mxu0 0.0
  %10341 = vmatprep.subr.mxu0 0.0
  %10342 = vmatpush1.msra.mxu0 0.0
  %10343 = vmatprep.subr.mxu0 0.0
  %10344 = vmatpush1.msra.mxu0 0.0
  %10345 = vmatprep.subr.mxu0 0.0
  %10346 = vmatpush1.msra.mxu0 0.0
  %10347 = vmatprep.subr.mxu0 0.0
  %10348 = vmatpush1.msra.mxu0 0.0
  %10349 = vmatprep.subr.mxu0 0.0
  %10350 = vmatpush1.msra.mxu0 0.0
  %10351 = vmatprep.mubr.f32.mxu0 0.0
  %v10352 = vand.u32 %v9716, 4294901760
  %10353 = vmatmul.mubr.f32.gmra.mrb[0].mxu0 %v10352
  %v10354 = vpop.f32.mrb[0].mxu0
  %v10355 = vadd.f32 %v10268, %v10354
  %v10356 = vpop.f32.mrb[0].mxu0
  %10357 = vdwg.mxu0
  %s10358 = scalar_lea.vmem %s4, 56
  %10359 = vst [vmem:[%s10358] sm:$0xff] %v10355
  %10360 = vst [vmem:[#allocation2] sm:$0xff] %v9716
  // Predicated region
  $region22: #{rnn_classifier_forward.1} parent=0 // pred_check
    %p10361 = pneg %p19
  $region23: #{rnn_classifier_forward.1} parent=0 // pred_check_branch
    %10363 = sbr.rel (%p10361) target = $region25
  $region24: #{rnn_classifier_forward.1} parent=0 // pred_region
    %10364 = vst [vmem:[%s5] sm:$0xff] %v9716
  $region25: #{rnn_classifier_forward.1} parent=0 // pred_fallthru
    _
  // Predicated region
  $region26: #{rnn_classifier_forward.1} parent=0 // pred_check
    _
  $region27: #{rnn_classifier_forward.1} parent=0 // pred_check_branch
    %10366 = sbr.rel (0) target = $region29
  $region28: #{rnn_classifier_forward.1} parent=0 // pred_region
    _
  $region29: #{rnn_classifier_forward.1} parent=0 // pred_fallthru
    _
  // Predicated region
  $region30: #{rnn_classifier_forward.1} parent=0 // pred_check
    _
  $region31: #{rnn_classifier_forward.1} parent=0 // pred_check_branch
    %10368 = sbr.rel (0) target = $region33
  $region32: #{rnn_classifier_forward.1} parent=0 // pred_region
    _
  $region33: #{rnn_classifier_forward.1} parent=0 // pred_fallthru
    _
  // Predicated region
  $region34: #{rnn_classifier_forward.1} parent=0 // pred_check
    _
  $region35: #{rnn_classifier_forward.1} parent=0 // pred_check_branch
    %10370 = sbr.rel (0) target = $region37
  $region36: #{rnn_classifier_forward.1} parent=0 // pred_region
    _
  $region37: #{rnn_classifier_forward.1} parent=0 // pred_fallthru
    _
  // Predicated region
  $region38: #{rnn_classifier_forward.1} parent=0 // pred_check
    _
  $region39: #{rnn_classifier_forward.1} parent=0 // pred_check_branch
    %10372 = sbr.rel (0) target = $region41
  $region40: #{rnn_classifier_forward.1} parent=0 // pred_region
    _
  $region41: #{rnn_classifier_forward.1} parent=0 // pred_fallthru
    _

</llo_original>
